<compile_context>
chip_gen: v6e
topology: v6e:2x2x1
jax: 0.10.0
libtpu: 0.0.40
codegen_flags: <defaults>
</compile_context>

<pallas_src>
import functools

import jax
import jax.numpy as jnp
from jax.experimental import pallas as pl
from jax.experimental.pallas import tpu as pltpu

EPS = 1e-5
INV_SQRT2 = 0.7071067811865476


# ----------------------------- Pallas kernel ------------------------------- #

def _swin_block_kernel(x_ref, wqkv_ref, bqkv_ref, wmats_ref, bvec_ref, bias_ref,
                       o_ref, merge_ref):
    """Fused Swin block on one (row-group x window-column) tile of windows.

    x_ref block : (B, Hg, ws, C)  == B * Hg/ws windows of ws*ws tokens (row-major).
    wqkv_ref    : (C, 3C)  bf16   -- LN1 gamma and q-scale folded in.
    bqkv_ref    : (1, 3C)  f32    -- LN1 beta folded in.
    wmats_ref   : (3, C, C) bf16  -- [proj, fc1 (LN2 gamma folded), fc2].
    bvec_ref    : (3, C)   f32    -- [proj bias, fc1 bias (LN2 beta folded), fc2 bias].
    bias_ref    : (nh, N, N) f32  -- relative position bias (shared by all windows).
    merge_ref   : (M, C)   f32 VMEM scratch for the head merge.
    """
    blk = x_ref[...]                                    # (B, Hg, ws, C) f32
    Bb, Hg, wsz, C = blk.shape
    nh, N, _ = bias_ref.shape
    hd = C // nh
    nwin = Bb * (Hg // wsz)                             # windows in this tile
    M = nwin * N                                        # token rows
    G = nh * nwin

    x = blk.reshape(M, C)                               # leading-dim reshape (free)

    # ---- LayerNorm 1 (gamma/beta folded into Wqkv / bqkv in the wrapper) ----
    mu = jnp.mean(x, axis=-1, keepdims=True)
    var = jnp.mean((x - mu) ** 2, axis=-1, keepdims=True)
    xn = (x - mu) * jax.lax.rsqrt(var + EPS)

    # ---- dense QKV projection: single (M, C) @ (C, 3C) MXU matmul ----
    qkv = jnp.dot(xn.astype(jnp.bfloat16), wqkv_ref[...],
                  preferred_element_type=jnp.float32) + bqkv_ref[...]
    qkv = qkv.astype(jnp.bfloat16)                      # (M, 3C), cols = (q|k|v, head, hd)

    # per-head split -> head-major (G, N, hd): static lane slices + leading-dim stack.
    def heads(part):
        cols = [qkv[:, part * C + h * hd: part * C + (h + 1) * hd] for h in range(nh)]
        return jnp.stack(cols, axis=0).reshape(G, N, hd)    # (nh, M, hd) -> (G, N, hd)

    q = heads(0)
    k = heads(1)
    v = heads(2)

    # ---- windowed attention, batched over G = heads * windows ----
    attn = jnp.einsum('gnd,gmd->gnm', q, k,
                      preferred_element_type=jnp.float32)   # (G, N, N) f32
    attn = (attn.reshape(nh, nwin, N, N) + bias_ref[...][:, None]).reshape(G, N, N)
    attn = attn - jnp.max(attn, axis=-1, keepdims=True)
    prob = jnp.exp(attn)
    prob = prob * pl.reciprocal(jnp.sum(prob, axis=-1, keepdims=True), approx=True)

    o = jnp.einsum('gnm,gmd->gnd', prob.astype(jnp.bfloat16), v,
                   preferred_element_type=jnp.float32)      # (G, N, hd)

    # ---- merge heads back to token-major (M, C) via VMEM scratch, one dense proj ----
    wm = wmats_ref[...]                                  # (3, C, C) bf16
    bv = bvec_ref[...]                                   # (3, C)    f32
    o_r = o.reshape(nh, M, hd)                           # leading-dim reshape (free)
    for h in range(nh):
        merge_ref[:, h * hd:(h + 1) * hd] = o_r[h]       # static lane-slice stores
    o_tok = merge_ref[...]                               # (M, C), cols = (head, hd)

    y = jnp.dot(o_tok.astype(jnp.bfloat16), wm[0],
                preferred_element_type=jnp.float32) + bv[0:1]

    x2 = x + y                                           # residual 1 (f32)

    # ---- LayerNorm 2 (gamma/beta folded into fc1) + MLP (hidden == C, exact GELU) ----
    mu2 = jnp.mean(x2, axis=-1, keepdims=True)
    var2 = jnp.mean((x2 - mu2) ** 2, axis=-1, keepdims=True)
    xn2 = (x2 - mu2) * jax.lax.rsqrt(var2 + EPS)

    h1 = jnp.dot(xn2.astype(jnp.bfloat16), wm[1],
                 preferred_element_type=jnp.float32) + bv[1:2]
    h1 = 0.5 * h1 * (1.0 + jax.lax.erf(h1 * INV_SQRT2))
    y2 = jnp.dot(h1.astype(jnp.bfloat16), wm[2],
                 preferred_element_type=jnp.float32) + bv[2:3]

    # TODO(synk): at C=32 this store is a masked (32/128-lane) vst; a lane-dense
    # (B, Hg, ws*C) out layout would need a minor-dim reshape/relayout in-kernel, which is
    # deferred for lowering safety here (it becomes a free reshape once C >= 128).
    o_ref[...] = (x2 + y2).reshape(Bb, Hg, wsz, C)


# ------------------------------ JAX glue code ------------------------------ #

def window_partition(x, ws):
    B, H, W, C = x.shape
    x = x.reshape(B, H // ws, ws, W // ws, ws, C)
    return x.transpose(0, 1, 3, 2, 4, 5).reshape(-1, ws, ws, C)


def window_reverse(windows, ws, H, W):
    B = windows.shape[0] // (H * W // ws // ws)
    x = windows.reshape(B, H // ws, W // ws, ws, ws, -1)
    return x.transpose(0, 1, 3, 2, 4, 5).reshape(B, H, W, -1)


def relative_position_index(ws):
    coords = jnp.stack(jnp.meshgrid(jnp.arange(ws), jnp.arange(ws), indexing='ij'))
    cf = coords.reshape(2, -1)
    rel = (cf[:, :, None] - cf[:, None, :]).transpose(1, 2, 0)
    rel = rel.at[:, :, 0].add(ws - 1)
    rel = rel.at[:, :, 1].add(ws - 1)
    rel = rel.at[:, :, 0].multiply(2 * ws - 1)
    return rel.sum(-1)                                                   # (N, N)


def init_params(key, dim, num_heads, window_size):
    ks = jax.random.split(key, 8)
    C = dim
    num_rel = (2 * window_size - 1) ** 2
    return {
        'g1': jnp.ones((1, C), jnp.float32),
        'b1': jnp.zeros((1, C), jnp.float32),
        # Linear weights stored already-transposed: y = x @ W + b; qkv cols ordered (3, nh, hd)
        'wqkv': 0.02 * jax.random.normal(ks[0], (C, 3 * C), jnp.float32),
        'bqkv': 0.02 * jax.random.normal(ks[1], (1, 3 * C), jnp.float32),
        'wproj': 0.02 * jax.random.normal(ks[2], (C, C), jnp.float32),
        'bproj': 0.02 * jax.random.normal(ks[3], (1, C), jnp.float32),
        'rel_bias_table': 0.02 * jax.random.normal(ks[4], (num_rel, num_heads), jnp.float32),
        'g2': jnp.ones((1, C), jnp.float32),
        'b2': jnp.zeros((1, C), jnp.float32),
        'w1': 0.02 * jax.random.normal(ks[5], (C, C), jnp.float32),   # Mlp hidden == dim (spec)
        'bb1': 0.02 * jax.random.normal(ks[6], (1, C), jnp.float32),
        'w2': 0.02 * jax.random.normal(ks[7], (C, C), jnp.float32),
        'bb2': jnp.zeros((1, C), jnp.float32),
    }


def swin_block_forward(x, p, H, W, *, window_size, shift_size, num_heads, row_groups=None):
    B, L, C = x.shape
    assert L == H * W
    ws = window_size
    nh = num_heads
    hd = C // nh
    N = ws * ws
    scale = hd ** (-0.5)

    # ---- fold LN1 gamma/beta + q-scale into the QKV projection; LN2 into fc1 (exact) ----
    g1, b1 = p['g1'][0], p['b1'][0]
    g2, b2 = p['g2'][0], p['b2'][0]
    wqkv_eff = p['wqkv'] * g1[:, None]
    bqkv_eff = b1 @ p['wqkv'] + p['bqkv'][0]
    wqkv_eff = wqkv_eff.at[:, :C].multiply(scale)         # fold q scale
    bqkv_eff = bqkv_eff.at[:C].multiply(scale)
    w1_eff = p['w1'] * g2[:, None]
    bb1_eff = b2 @ p['w1'] + p['bb1'][0]

    wqkv_bf = wqkv_eff.astype(jnp.bfloat16)                                  # (C, 3C)
    bqkv_f = bqkv_eff.reshape(1, 3 * C)                                      # (1, 3C)
    wmats = jnp.stack([p['wproj'], w1_eff, p['w2']], axis=0).astype(jnp.bfloat16)  # (3,C,C)
    bvec = jnp.stack([p['bproj'][0], bb1_eff, p['bb2'][0]], axis=0)          # (3, C) f32

    # ---- relative position bias shared by every window: (nh, N, N) ----
    rpi = relative_position_index(ws)
    rel_bias = p['rel_bias_table'][rpi.reshape(-1)].reshape(N, N, nh).transpose(2, 0, 1)

    # ---- spatial layout: pad to window multiple, optional cyclic shift (XLA) ----
    xv = x.reshape(B, H, W, C)
    pad_r = (ws - W % ws) % ws
    pad_b = (ws - H % ws) % ws
    if pad_r or pad_b:
        # TODO(synk): PyTorch applies norm1 before zero-padding; the fused kernel norms the
        # padded rows too (only affects pad tokens inside mixed windows; unused in this
        # config and the padded rows are cropped anyway).
        xv = jnp.pad(xv, ((0, 0), (0, pad_b), (0, pad_r), (0, 0)))
    Hp, Wp = H + pad_b, W + pad_r
    if shift_size > 0:
        # Note: the spec's WindowAttention takes no attention mask, so none is applied.
        xv = jnp.roll(xv, shift=(-shift_size, -shift_size), axis=(1, 2))

    # ---- grid: window-columns x row-groups ----
    if row_groups is None:
        try:
            num_tc = int(getattr(jax.devices()[0], "num_cores", 1))
        except Exception:
            num_tc = 1
        # single-TC (v5e/v6e): the grid is a sequential loop -> keep steps minimal.
        # multi-TC (v7x megacore): split rows too so each core gets its own steps and
        # weight/bias prologue DMA overlaps compute.
        row_groups = (Hp // ws) if num_tc > 1 else 1
    assert Hp % row_groups == 0
    Hg = Hp // row_groups
    assert Hg % ws == 0 and Wp % ws == 0
    m_blk = B * Hg * ws                                    # token rows per grid step

    cst2 = lambda j, i: (0, 0)
    cst3 = lambda j, i: (0, 0, 0)

    out4 = pl.pallas_call(
        _swin_block_kernel,
        out_shape=jax.ShapeDtypeStruct((B, Hp, Wp, C), jnp.float32),
        grid=(Wp // ws, row_groups),
        in_specs=[
            pl.BlockSpec((B, Hg, ws, C), lambda j, i: (0, i, j, 0)),   # window partition
            pl.BlockSpec((C, 3 * C), cst2),                            # Wqkv (bf16, LN1+scale folded)
            pl.BlockSpec((1, 3 * C), cst2),                            # qkv bias
            pl.BlockSpec((3, C, C), cst3),                             # [proj, fc1, fc2] (bf16)
            pl.BlockSpec((3, C), cst2),                                # their biases
            pl.BlockSpec((nh, N, N), cst3),                            # rel-pos bias (per head)
        ],
        out_specs=pl.BlockSpec((B, Hg, ws, C), lambda j, i: (0, i, j, 0)),  # window reverse
        scratch_shapes=[pltpu.VMEM((m_blk, C), jnp.float32)],
        compiler_params=pltpu.CompilerParams(
            dimension_semantics=("parallel", "parallel"),
            vmem_limit_bytes=32 * 1024 * 1024),
    )(xv, wqkv_bf, bqkv_f, wmats, bvec, rel_bias)

    if shift_size > 0:
        out4 = jnp.roll(out4, shift=(shift_size, shift_size), axis=(1, 2))
    return out4[:, :H, :W, :].reshape(B, H * W, C)


# ----------------------- pure-JAX reference (for check) --------------------- #

def _layernorm(x, g, b):
    mu = jnp.mean(x, axis=-1, keepdims=True)
    var = jnp.mean((x - mu) ** 2, axis=-1, keepdims=True)
    return (x - mu) * jax.lax.rsqrt(var + EPS) * g + b


def reference_forward(x, p, H, W, *, window_size, shift_size, num_heads):
    B, L, C = x.shape
    ws = window_size
    N = ws * ws
    head_dim = C // num_heads
    scale = head_dim ** (-0.5)
    shortcut = x

    xn = _layernorm(x, p['g1'][0], p['b1'][0]).reshape(B, H, W, C)
    pad_r = (ws - W % ws) % ws
    pad_b = (ws - H % ws) % ws
    xn = jnp.pad(xn, ((0, 0), (0, pad_b), (0, pad_r), (0, 0)))
    Hp, Wp = H + pad_b, W + pad_r
    if shift_size > 0:
        xn = jnp.roll(xn, shift=(-shift_size, -shift_size), axis=(1, 2))
    xw = window_partition(xn, ws).reshape(-1, N, C)

    qkv = xw @ p['wqkv'] + p['bqkv'][0]
    nW = xw.shape[0]
    qkv = qkv.reshape(nW, N, 3, num_heads, head_dim).transpose(2, 0, 3, 1, 4)
    q, k, v = qkv[0] * scale, qkv[1], qkv[2]
    attn = jnp.einsum('whnd,whmd->whnm', q, k)
    rpi = relative_position_index(ws)
    bias = p['rel_bias_table'][rpi.reshape(-1)].reshape(N, N, num_heads).transpose(2, 0, 1)
    attn = attn + bias[None]
    attn = jax.nn.softmax(attn, axis=-1)
    out = jnp.einsum('whnm,whmd->whnd', attn, v)
    out = out.transpose(0, 2, 1, 3).reshape(nW, N, C)
    out = out @ p['wproj'] + p['bproj'][0]

    out = out.reshape(-1, ws, ws, C)
    shifted = window_reverse(out, ws, Hp, Wp)
    if shift_size > 0:
        shifted = jnp.roll(shifted, shift=(shift_size, shift_size), axis=(1, 2))
    xv = shifted[:, :H, :W, :].reshape(B, H * W, C)
    x2 = shortcut + xv

    xn2 = _layernorm(x2, p['g2'][0], p['b2'][0])
    h = xn2 @ p['w1'] + p['bb1'][0]
    h = 0.5 * h * (1.0 + jax.lax.erf(h * INV_SQRT2))
    y = h @ p['w2'] + p['bb2'][0]
    return x2 + y


# --------------------------------- main ------------------------------------ #

if __name__ == "__main__":
    B, H, W = 2, 16, 16
    dim = 32
    num_heads = 4
    window_size = 8
    shift_size = 0   # block constructed with default shift_size=0

    key = jax.random.PRNGKey(0)
    kx, kp = jax.random.split(key)
    x = jax.random.normal(kx, (B, H * W, dim), jnp.float32)
    params = init_params(kp, dim, num_heads, window_size)

    fwd = jax.jit(functools.partial(swin_block_forward, H=H, W=W,
                                    window_size=window_size,
                                    shift_size=shift_size,
                                    num_heads=num_heads))
    out = jax.block_until_ready(fwd(x, params))

    ref = reference_forward(x, params, H, W, window_size=window_size,
                            shift_size=shift_size, num_heads=num_heads)
    assert out.shape == (B, H * W, dim)
    # bf16 MXU operands with f32 accumulation: loosen tolerance vs the f32 reference.
    err = float(jnp.max(jnp.abs(out - ref)))
    assert err < 2e-2, f"mismatch vs pure-JAX reference: {err}"

    print("KERNEL_OK")
</pallas_src>

<mosaic_0001>
module attributes {stable_mosaic.version = 11 : i64} {
  func.func @_swin_block_kernel(%arg0: i32, %arg1: i32, %arg2: memref<2x16x8x32xf32, #tpu.memory_space<vmem>>, %arg3: memref<32x96xbf16, #tpu.memory_space<vmem>>, %arg4: memref<1x96xf32, #tpu.memory_space<vmem>>, %arg5: memref<3x32x32xbf16, #tpu.memory_space<vmem>>, %arg6: memref<3x32xf32, #tpu.memory_space<vmem>>, %arg7: memref<4x64x64xf32, #tpu.memory_space<vmem>>, %arg8: memref<2x16x8x32xf32, #tpu.memory_space<vmem>>, %arg9: memref<256x32xf32, #tpu.memory_space<vmem>>) attributes {dimension_semantics = [#tpu.dimension_semantics<parallel>, #tpu.dimension_semantics<parallel>], iteration_bounds = array<i64: 2, 1>, scalar_prefetch = 0 : i64, scratch_operands = 1 : i64, tpu.core_type = #tpu.core_type<tc>, window_params = [{transform_indices = @transform_0, window_bounds = array<i64: 2, 16, 8, 32>}, {pipeline_mode = #tpu.pipeline_mode<synchronous>, transform_indices = @transform_1, window_bounds = array<i64: 32, 96>}, {pipeline_mode = #tpu.pipeline_mode<synchronous>, transform_indices = @transform_2, window_bounds = array<i64: 1, 96>}, {pipeline_mode = #tpu.pipeline_mode<synchronous>, transform_indices = @transform_3, window_bounds = array<i64: 3, 32, 32>}, {pipeline_mode = #tpu.pipeline_mode<synchronous>, transform_indices = @transform_4, window_bounds = array<i64: 3, 32>}, {pipeline_mode = #tpu.pipeline_mode<synchronous>, transform_indices = @transform_5, window_bounds = array<i64: 4, 64, 64>}, {transform_indices = @transform_6, window_bounds = array<i64: 2, 16, 8, 32>}]} {
    %c0 = arith.constant 0 : index
    %c0_0 = arith.constant 0 : index
    %c0_1 = arith.constant 0 : index
    %c0_2 = arith.constant 0 : index
    %0 = vector.load %arg2[%c0, %c0_0, %c0_1, %c0_2] : memref<2x16x8x32xf32, #tpu.memory_space<vmem>>, vector<2x16x8x32xf32>
    %1 = vector.shape_cast %0 : vector<2x16x8x32xf32> to vector<256x32xf32>
    %cst = arith.constant dense<0.000000e+00> : vector<256xf32>
    %2 = vector.multi_reduction <add>, %1, %cst [1] : vector<256x32xf32> to vector<256xf32>
    %3 = vector.shape_cast %2 : vector<256xf32> to vector<256x1xf32>
    %cst_3 = arith.constant 3.200000e+01 : f32
    %4 = vector.broadcast %cst_3 : f32 to vector<256x1xf32>
    %5 = arith.divf %3, %4 : vector<256x1xf32>
    %6 = vector.broadcast %5 : vector<256x1xf32> to vector<256x32xf32>
    %7 = arith.subf %1, %6 : vector<256x32xf32>
    %8 = arith.mulf %7, %7 : vector<256x32xf32>
    %cst_4 = arith.constant dense<0.000000e+00> : vector<256xf32>
    %9 = vector.multi_reduction <add>, %8, %cst_4 [1] : vector<256x32xf32> to vector<256xf32>
    %10 = vector.shape_cast %9 : vector<256xf32> to vector<256x1xf32>
    %cst_5 = arith.constant 3.200000e+01 : f32
    %11 = vector.broadcast %cst_5 : f32 to vector<256x1xf32>
    %12 = arith.divf %10, %11 : vector<256x1xf32>
    %13 = vector.broadcast %5 : vector<256x1xf32> to vector<256x32xf32>
    %14 = arith.subf %1, %13 : vector<256x32xf32>
    %cst_6 = arith.constant 9.99999974E-6 : f32
    %15 = vector.broadcast %cst_6 : f32 to vector<256x1xf32>
    %16 = arith.addf %12, %15 : vector<256x1xf32>
    %17 = math.rsqrt %16 : vector<256x1xf32>
    %18 = vector.broadcast %17 : vector<256x1xf32> to vector<256x32xf32>
    %19 = arith.mulf %14, %18 : vector<256x32xf32>
    %20 = arith.truncf %19 : vector<256x32xf32> to vector<256x32xbf16>
    %c0_7 = arith.constant 0 : index
    %c0_8 = arith.constant 0 : index
    %21 = vector.load %arg3[%c0_7, %c0_8] : memref<32x96xbf16, #tpu.memory_space<vmem>>, vector<32x96xbf16>
    %cst_9 = arith.constant dense<0.000000e+00> : vector<256x96xf32>
    %22 = tpu.matmul %20, %21, %cst_9 {dimension_numbers = #tpu.dot_dimension_numbers<[1], [0], [0], [1], [0, 0, 1, 1], [], []>} : vector<256x32xbf16>, vector<32x96xbf16>, vector<256x96xf32> -> vector<256x96xf32>
    %c0_10 = arith.constant 0 : index
    %c0_11 = arith.constant 0 : index
    %23 = vector.load %arg4[%c0_10, %c0_11] : memref<1x96xf32, #tpu.memory_space<vmem>>, vector<1x96xf32>
    %24 = vector.broadcast %23 : vector<1x96xf32> to vector<256x96xf32>
    %25 = arith.addf %22, %24 : vector<256x96xf32>
    %26 = arith.truncf %25 : vector<256x96xf32> to vector<256x96xbf16>
    %27 = vector.extract_strided_slice %26 {offsets = [0, 0], sizes = [256, 8], strides = [1, 1]} : vector<256x96xbf16> to vector<256x8xbf16>
    %28 = vector.extract_strided_slice %26 {offsets = [0, 8], sizes = [256, 8], strides = [1, 1]} : vector<256x96xbf16> to vector<256x8xbf16>
    %29 = vector.extract_strided_slice %26 {offsets = [0, 16], sizes = [256, 8], strides = [1, 1]} : vector<256x96xbf16> to vector<256x8xbf16>
    %30 = vector.extract_strided_slice %26 {offsets = [0, 24], sizes = [256, 8], strides = [1, 1]} : vector<256x96xbf16> to vector<256x8xbf16>
    %31 = vector.shape_cast %27 : vector<256x8xbf16> to vector<1x256x8xbf16>
    %32 = vector.shape_cast %28 : vector<256x8xbf16> to vector<1x256x8xbf16>
    %33 = vector.shape_cast %29 : vector<256x8xbf16> to vector<1x256x8xbf16>
    %34 = vector.shape_cast %30 : vector<256x8xbf16> to vector<1x256x8xbf16>
    %35 = tpu.concatenate %31, %32, %33, %34 in 0 : vector<1x256x8xbf16>, vector<1x256x8xbf16>, vector<1x256x8xbf16>, vector<1x256x8xbf16> -> vector<4x256x8xbf16>
    %36 = vector.shape_cast %35 : vector<4x256x8xbf16> to vector<16x64x8xbf16>
    %37 = vector.extract_strided_slice %26 {offsets = [0, 32], sizes = [256, 8], strides = [1, 1]} : vector<256x96xbf16> to vector<256x8xbf16>
    %38 = vector.extract_strided_slice %26 {offsets = [0, 40], sizes = [256, 8], strides = [1, 1]} : vector<256x96xbf16> to vector<256x8xbf16>
    %39 = vector.extract_strided_slice %26 {offsets = [0, 48], sizes = [256, 8], strides = [1, 1]} : vector<256x96xbf16> to vector<256x8xbf16>
    %40 = vector.extract_strided_slice %26 {offsets = [0, 56], sizes = [256, 8], strides = [1, 1]} : vector<256x96xbf16> to vector<256x8xbf16>
    %41 = vector.shape_cast %37 : vector<256x8xbf16> to vector<1x256x8xbf16>
    %42 = vector.shape_cast %38 : vector<256x8xbf16> to vector<1x256x8xbf16>
    %43 = vector.shape_cast %39 : vector<256x8xbf16> to vector<1x256x8xbf16>
    %44 = vector.shape_cast %40 : vector<256x8xbf16> to vector<1x256x8xbf16>
    %45 = tpu.concatenate %41, %42, %43, %44 in 0 : vector<1x256x8xbf16>, vector<1x256x8xbf16>, vector<1x256x8xbf16>, vector<1x256x8xbf16> -> vector<4x256x8xbf16>
    %46 = vector.shape_cast %45 : vector<4x256x8xbf16> to vector<16x64x8xbf16>
    %47 = vector.extract_strided_slice %26 {offsets = [0, 64], sizes = [256, 8], strides = [1, 1]} : vector<256x96xbf16> to vector<256x8xbf16>
    %48 = vector.extract_strided_slice %26 {offsets = [0, 72], sizes = [256, 8], strides = [1, 1]} : vector<256x96xbf16> to vector<256x8xbf16>
    %49 = vector.extract_strided_slice %26 {offsets = [0, 80], sizes = [256, 8], strides = [1, 1]} : vector<256x96xbf16> to vector<256x8xbf16>
    %50 = vector.extract_strided_slice %26 {offsets = [0, 88], sizes = [256, 8], strides = [1, 1]} : vector<256x96xbf16> to vector<256x8xbf16>
    %51 = vector.shape_cast %47 : vector<256x8xbf16> to vector<1x256x8xbf16>
    %52 = vector.shape_cast %48 : vector<256x8xbf16> to vector<1x256x8xbf16>
    %53 = vector.shape_cast %49 : vector<256x8xbf16> to vector<1x256x8xbf16>
    %54 = vector.shape_cast %50 : vector<256x8xbf16> to vector<1x256x8xbf16>
    %55 = tpu.concatenate %51, %52, %53, %54 in 0 : vector<1x256x8xbf16>, vector<1x256x8xbf16>, vector<1x256x8xbf16>, vector<1x256x8xbf16> -> vector<4x256x8xbf16>
    %56 = vector.shape_cast %55 : vector<4x256x8xbf16> to vector<16x64x8xbf16>
    "tpu.trace_start"() <{level = 10 : i32, message = "gnd,gmd->gnm"}> : () -> ()
    %cst_12 = arith.constant dense<0.000000e+00> : vector<16x64x64xf32>
    %57 = tpu.matmul %36, %46, %cst_12 {dimension_numbers = #tpu.dot_dimension_numbers<[2], [2], [1], [1], [0, 0, 0, 1, 1, 1], [0], [0]>} : vector<16x64x8xbf16>, vector<16x64x8xbf16>, vector<16x64x64xf32> -> vector<16x64x64xf32>
    "tpu.trace_stop"() : () -> ()
    %58 = vector.shape_cast %57 : vector<16x64x64xf32> to vector<4x4x64x64xf32>
    %c0_13 = arith.constant 0 : index
    %c0_14 = arith.constant 0 : index
    %c0_15 = arith.constant 0 : index
    %59 = vector.load %arg7[%c0_13, %c0_14, %c0_15] : memref<4x64x64xf32, #tpu.memory_space<vmem>>, vector<4x64x64xf32>
    %60 = vector.shape_cast %59 : vector<4x64x64xf32> to vector<4x1x64x64xf32>
    %61 = vector.broadcast %60 : vector<4x1x64x64xf32> to vector<4x4x64x64xf32>
    %62 = arith.addf %58, %61 : vector<4x4x64x64xf32>
    %63 = vector.shape_cast %62 : vector<4x4x64x64xf32> to vector<16x64x64xf32>
    %cst_16 = arith.constant dense<0xFF800000> : vector<16x64xf32>
    %64 = vector.multi_reduction <maximumf>, %63, %cst_16 [2] : vector<16x64x64xf32> to vector<16x64xf32>
    %65 = vector.shape_cast %64 : vector<16x64xf32> to vector<16x64x1xf32>
    %66 = vector.broadcast %65 : vector<16x64x1xf32> to vector<16x64x64xf32>
    %67 = arith.subf %63, %66 : vector<16x64x64xf32>
    %68 = math.exp %67 : vector<16x64x64xf32>
    %cst_17 = arith.constant dense<0.000000e+00> : vector<16x64xf32>
    %69 = vector.multi_reduction <add>, %68, %cst_17 [2] : vector<16x64x64xf32> to vector<16x64xf32>
    %70 = vector.shape_cast %69 : vector<16x64xf32> to vector<16x64x1xf32>
    %71 = tpu.reciprocal %70 {approx = true} : vector<16x64x1xf32> -> vector<16x64x1xf32>
    %72 = vector.broadcast %71 : vector<16x64x1xf32> to vector<16x64x64xf32>
    %73 = arith.mulf %68, %72 : vector<16x64x64xf32>
    %74 = arith.truncf %73 : vector<16x64x64xf32> to vector<16x64x64xbf16>
    "tpu.trace_start"() <{level = 10 : i32, message = "gnm,gmd->gnd"}> : () -> ()
    %cst_18 = arith.constant dense<0.000000e+00> : vector<16x64x8xf32>
    %75 = tpu.matmul %74, %56, %cst_18 {dimension_numbers = #tpu.dot_dimension_numbers<[2], [1], [1], [2], [0, 0, 0, 1, 1, 2], [0], [0]>} : vector<16x64x64xbf16>, vector<16x64x8xbf16>, vector<16x64x8xf32> -> vector<16x64x8xf32>
    "tpu.trace_stop"() : () -> ()
    %c0_19 = arith.constant 0 : index
    %c0_20 = arith.constant 0 : index
    %c0_21 = arith.constant 0 : index
    %76 = vector.load %arg5[%c0_19, %c0_20, %c0_21] : memref<3x32x32xbf16, #tpu.memory_space<vmem>>, vector<3x32x32xbf16>
    %c0_22 = arith.constant 0 : index
    %c0_23 = arith.constant 0 : index
    %77 = vector.load %arg6[%c0_22, %c0_23] : memref<3x32xf32, #tpu.memory_space<vmem>>, vector<3x32xf32>
    %78 = vector.shape_cast %75 : vector<16x64x8xf32> to vector<4x256x8xf32>
    %79 = vector.extract_strided_slice %78 {offsets = [0, 0, 0], sizes = [1, 256, 8], strides = [1, 1, 1]} : vector<4x256x8xf32> to vector<1x256x8xf32>
    %80 = vector.shape_cast %79 : vector<1x256x8xf32> to vector<256x8xf32>
    %c0_24 = arith.constant 0 : index
    %c0_25 = arith.constant 0 : index
    %81 = vector.load %arg9[%c0_24, %c0_25] : memref<256x32xf32, #tpu.memory_space<vmem>>, vector<256x8xf32>
    tpu.vector_store %arg9[%c0_24, %c0_25], %80 {strides = array<i32>} : memref<256x32xf32, #tpu.memory_space<vmem>>, vector<256x8xf32>,
    %82 = vector.extract_strided_slice %78 {offsets = [1, 0, 0], sizes = [1, 256, 8], strides = [1, 1, 1]} : vector<4x256x8xf32> to vector<1x256x8xf32>
    %83 = vector.shape_cast %82 : vector<1x256x8xf32> to vector<256x8xf32>
    %c0_26 = arith.constant 0 : index
    %c8 = arith.constant 8 : index
    %84 = vector.load %arg9[%c0_26, %c8] : memref<256x32xf32, #tpu.memory_space<vmem>>, vector<256x8xf32>
    tpu.vector_store %arg9[%c0_26, %c8], %83 {strides = array<i32>} : memref<256x32xf32, #tpu.memory_space<vmem>>, vector<256x8xf32>,
    %85 = vector.extract_strided_slice %78 {offsets = [2, 0, 0], sizes = [1, 256, 8], strides = [1, 1, 1]} : vector<4x256x8xf32> to vector<1x256x8xf32>
    %86 = vector.shape_cast %85 : vector<1x256x8xf32> to vector<256x8xf32>
    %c0_27 = arith.constant 0 : index
    %c16 = arith.constant 16 : index
    %87 = vector.load %arg9[%c0_27, %c16] : memref<256x32xf32, #tpu.memory_space<vmem>>, vector<256x8xf32>
    tpu.vector_store %arg9[%c0_27, %c16], %86 {strides = array<i32>} : memref<256x32xf32, #tpu.memory_space<vmem>>, vector<256x8xf32>,
    %88 = vector.extract_strided_slice %78 {offsets = [3, 0, 0], sizes = [1, 256, 8], strides = [1, 1, 1]} : vector<4x256x8xf32> to vector<1x256x8xf32>
    %89 = vector.shape_cast %88 : vector<1x256x8xf32> to vector<256x8xf32>
    %c0_28 = arith.constant 0 : index
    %c24 = arith.constant 24 : index
    %90 = vector.load %arg9[%c0_28, %c24] : memref<256x32xf32, #tpu.memory_space<vmem>>, vector<256x8xf32>
    tpu.vector_store %arg9[%c0_28, %c24], %89 {strides = array<i32>} : memref<256x32xf32, #tpu.memory_space<vmem>>, vector<256x8xf32>,
    %c0_29 = arith.constant 0 : index
    %c0_30 = arith.constant 0 : index
    %91 = vector.load %arg9[%c0_29, %c0_30] : memref<256x32xf32, #tpu.memory_space<vmem>>, vector<256x32xf32>
    %92 = arith.truncf %91 : vector<256x32xf32> to vector<256x32xbf16>
    %93 = vector.extract_strided_slice %76 {offsets = [0, 0, 0], sizes = [1, 32, 32], strides = [1, 1, 1]} : vector<3x32x32xbf16> to vector<1x32x32xbf16>
    %94 = vector.shape_cast %93 : vector<1x32x32xbf16> to vector<32x32xbf16>
    %cst_31 = arith.constant dense<0.000000e+00> : vector<256x32xf32>
    %95 = tpu.matmul %92, %94, %cst_31 {dimension_numbers = #tpu.dot_dimension_numbers<[1], [0], [0], [1], [0, 0, 1, 1], [], []>} : vector<256x32xbf16>, vector<32x32xbf16>, vector<256x32xf32> -> vector<256x32xf32>
    %96 = vector.extract_strided_slice %77 {offsets = [0, 0], sizes = [1, 32], strides = [1, 1]} : vector<3x32xf32> to vector<1x32xf32>
    %97 = vector.broadcast %96 : vector<1x32xf32> to vector<256x32xf32>
    %98 = arith.addf %95, %97 : vector<256x32xf32>
    %99 = arith.addf %1, %98 : vector<256x32xf32>
    %cst_32 = arith.constant dense<0.000000e+00> : vector<256xf32>
    %100 = vector.multi_reduction <add>, %99, %cst_32 [1] : vector<256x32xf32> to vector<256xf32>
    %101 = vector.shape_cast %100 : vector<256xf32> to vector<256x1xf32>
    %cst_33 = arith.constant 3.200000e+01 : f32
    %102 = vector.broadcast %cst_33 : f32 to vector<256x1xf32>
    %103 = arith.divf %101, %102 : vector<256x1xf32>
    %104 = vector.broadcast %103 : vector<256x1xf32> to vector<256x32xf32>
    %105 = arith.subf %99, %104 : vector<256x32xf32>
    %106 = arith.mulf %105, %105 : vector<256x32xf32>
    %cst_34 = arith.constant dense<0.000000e+00> : vector<256xf32>
    %107 = vector.multi_reduction <add>, %106, %cst_34 [1] : vector<256x32xf32> to vector<256xf32>
    %108 = vector.shape_cast %107 : vector<256xf32> to vector<256x1xf32>
    %cst_35 = arith.constant 3.200000e+01 : f32
    %109 = vector.broadcast %cst_35 : f32 to vector<256x1xf32>
    %110 = arith.divf %108, %109 : vector<256x1xf32>
    %111 = vector.broadcast %103 : vector<256x1xf32> to vector<256x32xf32>
    %112 = arith.subf %99, %111 : vector<256x32xf32>
    %cst_36 = arith.constant 9.99999974E-6 : f32
    %113 = vector.broadcast %cst_36 : f32 to vector<256x1xf32>
    %114 = arith.addf %110, %113 : vector<256x1xf32>
    %115 = math.rsqrt %114 : vector<256x1xf32>
    %116 = vector.broadcast %115 : vector<256x1xf32> to vector<256x32xf32>
    %117 = arith.mulf %112, %116 : vector<256x32xf32>
    %118 = arith.truncf %117 : vector<256x32xf32> to vector<256x32xbf16>
    %119 = vector.extract_strided_slice %76 {offsets = [1, 0, 0], sizes = [1, 32, 32], strides = [1, 1, 1]} : vector<3x32x32xbf16> to vector<1x32x32xbf16>
    %120 = vector.shape_cast %119 : vector<1x32x32xbf16> to vector<32x32xbf16>
    %cst_37 = arith.constant dense<0.000000e+00> : vector<256x32xf32>
    %121 = tpu.matmul %118, %120, %cst_37 {dimension_numbers = #tpu.dot_dimension_numbers<[1], [0], [0], [1], [0, 0, 1, 1], [], []>} : vector<256x32xbf16>, vector<32x32xbf16>, vector<256x32xf32> -> vector<256x32xf32>
    %122 = vector.extract_strided_slice %77 {offsets = [1, 0], sizes = [1, 32], strides = [1, 1]} : vector<3x32xf32> to vector<1x32xf32>
    %123 = vector.broadcast %122 : vector<1x32xf32> to vector<256x32xf32>
    %124 = arith.addf %121, %123 : vector<256x32xf32>
    %cst_38 = arith.constant 5.000000e-01 : f32
    %125 = vector.broadcast %cst_38 : f32 to vector<256x32xf32>
    %126 = arith.mulf %125, %124 : vector<256x32xf32>
    %cst_39 = arith.constant 0.707106769 : f32
    %127 = vector.broadcast %cst_39 : f32 to vector<256x32xf32>
    %128 = arith.mulf %124, %127 : vector<256x32xf32>
    %129 = math.erf %128 : vector<256x32xf32>
    %cst_40 = arith.constant 1.000000e+00 : f32
    %130 = vector.broadcast %cst_40 : f32 to vector<256x32xf32>
    %131 = arith.addf %130, %129 : vector<256x32xf32>
    %132 = arith.mulf %126, %131 : vector<256x32xf32>
    %133 = arith.truncf %132 : vector<256x32xf32> to vector<256x32xbf16>
    %134 = vector.extract_strided_slice %76 {offsets = [2, 0, 0], sizes = [1, 32, 32], strides = [1, 1, 1]} : vector<3x32x32xbf16> to vector<1x32x32xbf16>
    %135 = vector.shape_cast %134 : vector<1x32x32xbf16> to vector<32x32xbf16>
    %cst_41 = arith.constant dense<0.000000e+00> : vector<256x32xf32>
    %136 = tpu.matmul %133, %135, %cst_41 {dimension_numbers = #tpu.dot_dimension_numbers<[1], [0], [0], [1], [0, 0, 1, 1], [], []>} : vector<256x32xbf16>, vector<32x32xbf16>, vector<256x32xf32> -> vector<256x32xf32>
    %137 = vector.extract_strided_slice %77 {offsets = [2, 0], sizes = [1, 32], strides = [1, 1]} : vector<3x32xf32> to vector<1x32xf32>
    %138 = vector.broadcast %137 : vector<1x32xf32> to vector<256x32xf32>
    %139 = arith.addf %136, %138 : vector<256x32xf32>
    %140 = arith.addf %99, %139 : vector<256x32xf32>
    %141 = vector.shape_cast %140 : vector<256x32xf32> to vector<2x16x8x32xf32>
    %c0_42 = arith.constant 0 : index
    %c0_43 = arith.constant 0 : index
    %c0_44 = arith.constant 0 : index
    %c0_45 = arith.constant 0 : index
    %142 = vector.load %arg8[%c0_42, %c0_43, %c0_44, %c0_45] : memref<2x16x8x32xf32, #tpu.memory_space<vmem>>, vector<2x16x8x32xf32>
    tpu.vector_store %arg8[%c0_42, %c0_43, %c0_44, %c0_45], %141 {strides = array<i32>} : memref<2x16x8x32xf32, #tpu.memory_space<vmem>>, vector<2x16x8x32xf32>,
    return
  }
  func.func @transform_0(%arg0: i32, %arg1: i32) -> (i32, i32, i32, i32) {
    %c0_i32 = arith.constant 0 : i32
    %c0_i32_0 = arith.constant 0 : i32
    %c0_i32_1 = arith.constant 0 : i32
    return %c0_i32, %arg1, %arg0, %c0_i32_0 : i32, i32, i32, i32
  }
  func.func @transform_1(%arg0: i32, %arg1: i32) -> (i32, i32) {
    %c0_i32 = arith.constant 0 : i32
    %c0_i32_0 = arith.constant 0 : i32
    %c0_i32_1 = arith.constant 0 : i32
    return %c0_i32, %c0_i32_0 : i32, i32
  }
  func.func @transform_2(%arg0: i32, %arg1: i32) -> (i32, i32) {
    %c0_i32 = arith.constant 0 : i32
    %c0_i32_0 = arith.constant 0 : i32
    %c0_i32_1 = arith.constant 0 : i32
    return %c0_i32, %c0_i32_0 : i32, i32
  }
  func.func @transform_3(%arg0: i32, %arg1: i32) -> (i32, i32, i32) {
    %c0_i32 = arith.constant 0 : i32
    %c0_i32_0 = arith.constant 0 : i32
    %c0_i32_1 = arith.constant 0 : i32
    %c0_i32_2 = arith.constant 0 : i32
    return %c0_i32, %c0_i32_0, %c0_i32_1 : i32, i32, i32
  }
  func.func @transform_4(%arg0: i32, %arg1: i32) -> (i32, i32) {
    %c0_i32 = arith.constant 0 : i32
    %c0_i32_0 = arith.constant 0 : i32
    %c0_i32_1 = arith.constant 0 : i32
    return %c0_i32, %c0_i32_0 : i32, i32
  }
  func.func @transform_5(%arg0: i32, %arg1: i32) -> (i32, i32, i32) {
    %c0_i32 = arith.constant 0 : i32
    %c0_i32_0 = arith.constant 0 : i32
    %c0_i32_1 = arith.constant 0 : i32
    %c0_i32_2 = arith.constant 0 : i32
    return %c0_i32, %c0_i32_0, %c0_i32_1 : i32, i32, i32
  }
  func.func @transform_6(%arg0: i32, %arg1: i32) -> (i32, i32, i32, i32) {
    %c0_i32 = arith.constant 0 : i32
    %c0_i32_0 = arith.constant 0 : i32
    %c0_i32_1 = arith.constant 0 : i32
    return %c0_i32, %arg1, %arg0, %c0_i32_0 : i32, i32, i32, i32
  }
}

</mosaic_0001>

<llo_original>
// kernel: sub.8
$region0: #{sub.8}
  %s0 = inlined_call_operand.vmem [shape: s32[2,8,8], index: 0, kind: input, shape index: {}]
  %s1 = inlined_call_operand.vmem [shape: s32[2,64], index: 1, kind: output, shape index: {}]
  $region1: #{sub.8} parent=0
    #allocation0 [shape = 'u8[4096]{0}', space=vmem, size = 0x1000, scoped, tag = 'scoped mem for output reshape']
    %s2 = smov 3
    %v3 = vld [vmem:[%s0] ss:$8 sm:%s2]
    %vm4 = vcmask 64512
    %5 = vst.msk [vmem:[#allocation0] sm:$0x3] %vm4, %v3
    %s6 = scalar_lea.vmem %s0, 7
    %s7 = smov 3
    %v8 = vld [vmem:[%s6] ss:$8 sm:%s7]
    %9 = vrot.lane.b32.xlu0 %v8, 56
    %v10 = vpop.permute.xlu0 %9
    %vm11 = vcmask 523712
    %12 = vst.msk [vmem:[#allocation0] sm:$0x3] %vm11, %v10
    %s13 = scalar_lea.vmem %s0, 6
    %s14 = smov 3
    %v15 = vld [vmem:[%s13] ss:$8 sm:%s14]
    %16 = vrot.lane.b32.xlu0 %v15, 48
    %v17 = vpop.permute.xlu0 %16
    %vm18 = vcmask 458112
    %19 = vst.msk [vmem:[#allocation0] sm:$0x3] %vm18, %v17
    %s20 = scalar_lea.vmem %s0, 5
    %s21 = smov 3
    %v22 = vld [vmem:[%s20] ss:$8 sm:%s21]
    %23 = vrot.lane.b32.xlu0 %v22, 40
    %v24 = vpop.permute.xlu0 %23
    %vm25 = vcmask 392512
    %26 = vst.msk [vmem:[#allocation0] sm:$0x3] %vm25, %v24
    %s27 = scalar_lea.vmem %s0, 4
    %s28 = smov 3
    %v29 = vld [vmem:[%s27] ss:$8 sm:%s28]
    %30 = vrot.lane.b32.xlu0 %v29, 32
    %v31 = vpop.permute.xlu0 %30
    %vm32 = vcmask 326912
    %33 = vst.msk [vmem:[#allocation0] sm:$0x3] %vm32, %v31
    %s34 = scalar_lea.vmem %s0, 3
    %s35 = smov 3
    %v36 = vld [vmem:[%s34] ss:$8 sm:%s35]
    %37 = vrot.lane.b32.xlu0 %v36, 24
    %v38 = vpop.permute.xlu0 %37
    %vm39 = vcmask 261312
    %40 = vst.msk [vmem:[#allocation0] sm:$0x3] %vm39, %v38
    %s41 = scalar_lea.vmem %s0, 2
    %s42 = smov 3
    %v43 = vld [vmem:[%s41] ss:$8 sm:%s42]
    %44 = vrot.lane.b32.xlu0 %v43, 16
    %v45 = vpop.permute.xlu0 %44
    %vm46 = vcmask 195712
    %47 = vst.msk [vmem:[#allocation0] sm:$0x3] %vm46, %v45
    %s48 = scalar_lea.vmem %s0, 1
    %s49 = smov 3
    %v50 = vld [vmem:[%s48] ss:$8 sm:%s49]
    %51 = vrot.lane.b32.xlu0 %v50, 8
    %v52 = vpop.permute.xlu0 %51
    %vm53 = vcmask 130112
    %54 = vst.msk [vmem:[#allocation0] sm:$0x3] %vm53, %v52
    %s56 = sshll.u32 1, 2
    %s57 = ssub.s32 %s56, 1
    %v59 = vld [vmem:[#allocation0] sm:%s57]
    %s60 = sshll.u32 1, 2
    %s61 = ssub.s32 %s60, 1
    %62 = vst [vmem:[%s1] sm:%s61] %v59

// kernel: swin_block_forward.1
$region0: #{swin_block_forward.1}
  #allocation0 [shape = 'u32[]', space=smem, size = 0x4, offset = 0x4, fixed_abs, tag = 'smem constant byte address 0x4 - core index']
  #allocation1 [shape = 'u32[144,128]{1,0:T(1,128)}', space=vmem, size = 0x12000, scoped, tag = 'internal scratch']
  #allocation2 [shape = 'f32[256,32]{1,0:T(8,128)}', space=vmem, size = 0x20000, scoped, tag = 'scratch operand']
  %s0 = inlined_call_operand.vmem [shape: f32[2,16,16,32], index: 0, kind: input, shape index: {}]
  %s1 = inlined_call_operand.vmem [shape: bf16[32,96], index: 1, kind: input, shape index: {}]
  %s2 = inlined_call_operand.vmem [shape: f32[1,96], index: 2, kind: input, shape index: {}]
  %s3 = inlined_call_operand.vmem [shape: bf16[3,32,32], index: 3, kind: input, shape index: {}]
  %s4 = inlined_call_operand.vmem [shape: f32[3,32], index: 4, kind: input, shape index: {}]
  %s5 = inlined_call_operand.vmem [shape: f32[4,64,64], index: 5, kind: input, shape index: {}]
  %s6 = inlined_call_operand.vmem [shape: f32[2,16,16,32], index: 6, kind: output, shape index: {}]
  %s7 = sld [smem:[#allocation0]]
  $region129: #{swin_block_forward.1} parent=0
    _
  %s9 = ssub.s32 1, %s7
  %s10 = scalar_select 0, %s9, %s7
  $region1: #{swin_block_forward.1} parent=0
    #allocation3 [shape = 'u8[262144]{0}', space=vmem, size = 0x40000, scoped, tag = 'input window, operand 0']
    #allocation4 [shape = 'u8[262144]{0}', space=vmem, size = 0x40000, scoped, tag = 'output window, operand 0']
    loop: start=0, step=1, limit=4
    $region2: #{swin_block_forward.1} parent=1 // loop_pre_header
      _
    $region3: #{swin_block_forward.1} parent=1 // loop_header
      %s12 = sphi 0, %s16
      %p13 = scmp.ge.s32.totalorder %s12, 4
      %s19 = sphi 0, %s31
      %s20 = sphi 0, %s27
      %s21 = sphi 0, %s19
      %s22 = sphi 0, %s20
      %s23 = sphi 0, %s21
      %s24 = sphi 0, %s22
      %s36 = sphi 0, %s38
      %s39 = sphi 0, %s36
      %s40 = sphi 0, %s39
      %s56 = sphi 0, %s40
      %s60 = sphi 0, %s60
      %s62 = sphi 0, %s60
      %s63 = sphi 0, %s62
      %s77 = sphi 0, %s63
      %s81 = sphi 0, %s81
      %s83 = sphi 0, %s81
      %s84 = sphi 0, %s83
      %s98 = sphi 0, %s84
      %s102 = sphi 0, %s102
      %s104 = sphi 0, %s102
      %s105 = sphi 0, %s104
      %s119 = sphi 0, %s105
      %s123 = sphi 0, %s123
      %s125 = sphi 0, %s123
      %s126 = sphi 0, %s125
      %s140 = sphi 0, %s126
      %s144 = sphi 0, %s144
      %s146 = sphi 0, %s144
      %s147 = sphi 0, %s146
      %s161 = sphi 0, %s147
      %s169 = sphi 0, %s171
      %s172 = sphi 0, %s169
      %s173 = sphi 0, %s172
      %s189 = sphi 0, %s173
    $region4: #{swin_block_forward.1} parent=1 // loop_header_branch
      %15 = sbr.rel (%p13) target = $region8
    $region5: #{swin_block_forward.1} parent=1 // loop_body
      %s17 = ssub.s32 %s12, 1
      %s18 = ssub.s32 %s12, 2
      %s25 = sadd.s32 1, %s20
      %p26 = scmp.ge.s32.totalorder %s25, 1
      %s27 = scalar_select %p26, 0, %s25
      %s28 = sadd.s32 1, %s19
      %s29 = scalar_select %p26, %s28, %s19
      %p30 = scmp.ge.s32.totalorder %s29, 2
      %s31 = scalar_select %p30, 0, %s29
      %s32 = ssub.s32 %s20, %s27
      %s33 = ssub.s32 %s19, %s31
      %s34 = sor.u32 %s32, %s33
      %p35 = scmp.eq.s32.totalorder %s34, 0
      %s37 = sadd.s32 %s36, 1
      %s38 = scalar_select %p35, %s36, %s37
      %p41 = pneg %p35
      %p42 = scmp.eq.s32.totalorder %s12, 1
      %p43 = por %p41, %p42
      %p44 = scmp.ne.s32.totalorder %s36, %s39
      %p45 = scmp.eq.s32.totalorder %s12, 0
      %p46 = por %p44, %p45
      %p47 = scmp.ne.s32.totalorder %s36, %s39
      %p48 = scmp.eq.s32.totalorder %s17, 1
      %p49 = por %p47, %p48
      %p50 = scmp.ne.s32.totalorder %s39, %s40
      %p51 = scmp.eq.s32.totalorder %s17, 0
      %p52 = por %p50, %p51
      %p53 = scmp.ne.s32.totalorder %s39, %s40
      %p54 = scmp.eq.s32.totalorder %s18, 1
      %p55 = por %p53, %p54
      %p57 = scmp.ne.s32.totalorder %s40, %s56
      %p58 = scmp.eq.s32.totalorder %s18, 0
      %p59 = por %p57, %p58
      %s61 = sadd.s32 %s60, 1
      %p64 = scmp.eq.s32.totalorder %s12, 1
      %p65 = scmp.ne.s32.totalorder %s60, %s62
      %p66 = scmp.eq.s32.totalorder %s12, 0
      %p67 = por %p65, %p66
      %p68 = scmp.ne.s32.totalorder %s60, %s62
      %p69 = scmp.eq.s32.totalorder %s17, 1
      %p70 = por %p68, %p69
      %p71 = scmp.ne.s32.totalorder %s62, %s63
      %p72 = scmp.eq.s32.totalorder %s17, 0
      %p73 = por %p71, %p72
      %p74 = scmp.ne.s32.totalorder %s62, %s63
      %p75 = scmp.eq.s32.totalorder %s18, 1
      %p76 = por %p74, %p75
      %p78 = scmp.ne.s32.totalorder %s63, %s77
      %p79 = scmp.eq.s32.totalorder %s18, 0
      %p80 = por %p78, %p79
      %s82 = sadd.s32 %s81, 1
      %p85 = scmp.eq.s32.totalorder %s12, 1
      %p86 = scmp.ne.s32.totalorder %s81, %s83
      %p87 = scmp.eq.s32.totalorder %s12, 0
      %p88 = por %p86, %p87
      %p89 = scmp.ne.s32.totalorder %s81, %s83
      %p90 = scmp.eq.s32.totalorder %s17, 1
      %p91 = por %p89, %p90
      %p92 = scmp.ne.s32.totalorder %s83, %s84
      %p93 = scmp.eq.s32.totalorder %s17, 0
      %p94 = por %p92, %p93
      %p95 = scmp.ne.s32.totalorder %s83, %s84
      %p96 = scmp.eq.s32.totalorder %s18, 1
      %p97 = por %p95, %p96
      %p99 = scmp.ne.s32.totalorder %s84, %s98
      %p100 = scmp.eq.s32.totalorder %s18, 0
      %p101 = por %p99, %p100
      %s103 = sadd.s32 %s102, 1
      %p106 = scmp.eq.s32.totalorder %s12, 1
      %p107 = scmp.ne.s32.totalorder %s102, %s104
      %p108 = scmp.eq.s32.totalorder %s12, 0
      %p109 = por %p107, %p108
      %p110 = scmp.ne.s32.totalorder %s102, %s104
      %p111 = scmp.eq.s32.totalorder %s17, 1
      %p112 = por %p110, %p111
      %p113 = scmp.ne.s32.totalorder %s104, %s105
      %p114 = scmp.eq.s32.totalorder %s17, 0
      %p115 = por %p113, %p114
      %p116 = scmp.ne.s32.totalorder %s104, %s105
      %p117 = scmp.eq.s32.totalorder %s18, 1
      %p118 = por %p116, %p117
      %p120 = scmp.ne.s32.totalorder %s105, %s119
      %p121 = scmp.eq.s32.totalorder %s18, 0
      %p122 = por %p120, %p121
      %s124 = sadd.s32 %s123, 1
      %p127 = scmp.eq.s32.totalorder %s12, 1
      %p128 = scmp.ne.s32.totalorder %s123, %s125
      %p129 = scmp.eq.s32.totalorder %s12, 0
      %p130 = por %p128, %p129
      %p131 = scmp.ne.s32.totalorder %s123, %s125
      %p132 = scmp.eq.s32.totalorder %s17, 1
      %p133 = por %p131, %p132
      %p134 = scmp.ne.s32.totalorder %s125, %s126
      %p135 = scmp.eq.s32.totalorder %s17, 0
      %p136 = por %p134, %p135
      %p137 = scmp.ne.s32.totalorder %s125, %s126
      %p138 = scmp.eq.s32.totalorder %s18, 1
      %p139 = por %p137, %p138
      %p141 = scmp.ne.s32.totalorder %s126, %s140
      %p142 = scmp.eq.s32.totalorder %s18, 0
      %p143 = por %p141, %p142
      %s145 = sadd.s32 %s144, 1
      %p148 = scmp.eq.s32.totalorder %s12, 1
      %p149 = scmp.ne.s32.totalorder %s144, %s146
      %p150 = scmp.eq.s32.totalorder %s12, 0
      %p151 = por %p149, %p150
      %p152 = scmp.ne.s32.totalorder %s144, %s146
      %p153 = scmp.eq.s32.totalorder %s17, 1
      %p154 = por %p152, %p153
      %p155 = scmp.ne.s32.totalorder %s146, %s147
      %p156 = scmp.eq.s32.totalorder %s17, 0
      %p157 = por %p155, %p156
      %p158 = scmp.ne.s32.totalorder %s146, %s147
      %p159 = scmp.eq.s32.totalorder %s18, 1
      %p160 = por %p158, %p159
      %p162 = scmp.ne.s32.totalorder %s147, %s161
      %p163 = scmp.eq.s32.totalorder %s18, 0
      %p164 = por %p162, %p163
      %s165 = ssub.s32 %s20, %s27
      %s166 = ssub.s32 %s19, %s31
      %s167 = sor.u32 %s165, %s166
      %p168 = scmp.eq.s32.totalorder %s167, 0
      %s170 = sadd.s32 %s169, 1
      %s171 = scalar_select %p168, %s169, %s170
      %p174 = pneg %p168
      %p175 = scmp.eq.s32.totalorder %s12, 1
      %p176 = por %p174, %p175
      %p177 = scmp.ne.s32.totalorder %s169, %s172
      %p178 = scmp.eq.s32.totalorder %s12, 0
      %p179 = por %p177, %p178
      %p180 = scmp.ne.s32.totalorder %s169, %s172
      %p181 = scmp.eq.s32.totalorder %s17, 1
      %p182 = por %p180, %p181
      %p183 = scmp.ne.s32.totalorder %s172, %s173
      %p184 = scmp.eq.s32.totalorder %s17, 0
      %p185 = por %p183, %p184
      %p186 = scmp.ne.s32.totalorder %s172, %s173
      %p187 = scmp.eq.s32.totalorder %s18, 1
      %p188 = por %p186, %p187
      %p190 = scmp.ne.s32.totalorder %s173, %s189
      %p191 = scmp.eq.s32.totalorder %s18, 0
      %p192 = por %p190, %p191
      %p193 = scmp.le.s32.totalorder 1, %s12
      %p194 = scmp.lt.s32.totalorder %s12, 3
      %p195 = pnand %p193, %p194
      %p196 = pneg %p195
      // Predicated region
      $region9: #{swin_block_forward.1} parent=5 // pred_check
        _
      $region10: #{swin_block_forward.1} parent=5 // pred_check_branch
        %198 = sbr.rel (%p195) target = $region12
      $region11: #{swin_block_forward.1} parent=5 // pred_region
        %s199 = ssub.s32 %s12, 1
        // Predicated region
        $region13: #{swin_block_forward.1} parent=11 // pred_check
          %p200 = pneg %p73
        $region14: #{swin_block_forward.1} parent=11 // pred_check_branch
          %202 = sbr.rel (%p200) target = $region16
        $region15: #{swin_block_forward.1} parent=11 // pred_region
          _
        $region16: #{swin_block_forward.1} parent=11 // pred_fallthru
          _
        // Predicated region
        $region17: #{swin_block_forward.1} parent=11 // pred_check
          %p203 = pneg %p94
        $region18: #{swin_block_forward.1} parent=11 // pred_check_branch
          %205 = sbr.rel (%p203) target = $region20
        $region19: #{swin_block_forward.1} parent=11 // pred_region
          _
        $region20: #{swin_block_forward.1} parent=11 // pred_fallthru
          _
        // Predicated region
        $region21: #{swin_block_forward.1} parent=11 // pred_check
          %p206 = pneg %p115
        $region22: #{swin_block_forward.1} parent=11 // pred_check_branch
          %208 = sbr.rel (%p206) target = $region24
        $region23: #{swin_block_forward.1} parent=11 // pred_region
          _
        $region24: #{swin_block_forward.1} parent=11 // pred_fallthru
          _
        // Predicated region
        $region25: #{swin_block_forward.1} parent=11 // pred_check
          %p209 = pneg %p136
        $region26: #{swin_block_forward.1} parent=11 // pred_check_branch
          %211 = sbr.rel (%p209) target = $region28
        $region27: #{swin_block_forward.1} parent=11 // pred_region
          _
        $region28: #{swin_block_forward.1} parent=11 // pred_fallthru
          _
        // Predicated region
        $region29: #{swin_block_forward.1} parent=11 // pred_check
          %p212 = pneg %p157
        $region30: #{swin_block_forward.1} parent=11 // pred_check_branch
          %214 = sbr.rel (%p212) target = $region32
        $region31: #{swin_block_forward.1} parent=11 // pred_region
          _
        $region32: #{swin_block_forward.1} parent=11 // pred_fallthru
          _
      $region12: #{swin_block_forward.1} parent=5 // pred_fallthru
        _
      %p215 = scmp.lt.s32.totalorder %s12, 2
      // Predicated region
      $region33: #{swin_block_forward.1} parent=5 // pred_check
        %p216 = pneg %p215
      $region34: #{swin_block_forward.1} parent=5 // pred_check_branch
        %218 = sbr.rel (%p216) target = $region36
      $region35: #{swin_block_forward.1} parent=5 // pred_region
        // Predicated region
        $region37: #{swin_block_forward.1} parent=35 // pred_check
          %p219 = pneg %p46
        $region38: #{swin_block_forward.1} parent=35 // pred_check_branch
          %221 = sbr.rel (%p219) target = $region40
        $region39: #{swin_block_forward.1} parent=35 // pred_region
          %s222 = sand.u32 %s36, 1
          %s223 = sand.u32 %s36, 1
          %s224 = smul.addr %s223, 256
          %s225 = scalar_lea.vmem [#allocation3], %s224
          %s226 = smul.u32 16, %s20
          %s227 = smul.addr %s226, 2
          %s228 = sadd.s32 %s19, %s227
          %s229 = smul.addr %s228, 8
          %s230 = scalar_lea.vmem %s0, %s229
          // Predicated region
          $region41: #{swin_block_forward.1} parent=39 // pred_check
            _
          $region42: #{swin_block_forward.1} parent=39 // pred_check_branch
            %232 = sbr.rel (0) target = $region44
          $region43: #{swin_block_forward.1} parent=39 // pred_region
            // Predicated region
            $region45: #{swin_block_forward.1} parent=43 // pred_check
              _
            $region46: #{swin_block_forward.1} parent=43 // pred_check_branch
              %234 = sbr.rel (0) target = $region48
            $region47: #{swin_block_forward.1} parent=43 // pred_region
              // Predicated region
              $region60: #{swin_block_forward.1} parent=47 // pred_check
                _
              $region61: #{swin_block_forward.1} parent=47 // pred_check_branch
                %312 = sbr.rel (0) target = $region63
              $region62: #{swin_block_forward.1} parent=47 // pred_region
                loop: start=0, step=1, limit=1
                $region64: #{swin_block_forward.1} parent=62 // loop_pre_header
                  _
                $region65: #{swin_block_forward.1} parent=62 // loop_header
                  %s314 = sphi 0, %s318
                  %p315 = scmp.ge.s32.totalorder %s314, 1
                  %s319 = sphi %s230, %s230
                  %s320 = sphi %s225, %s225
                $region66: #{swin_block_forward.1} parent=62 // loop_header_branch
                  %317 = sbr.rel (%p315) target = $region70
                $region67: #{swin_block_forward.1} parent=62 // loop_body
                  %v321 = vld [vmem:[%s319] sm:$0xff]
                  %322 = vst [vmem:[%s320] sm:$0xff] %v321
                  %v323 = vld [vmem:[%s319 + $0x10] sm:$0xff]
                  %324 = vst [vmem:[%s320 + $0x8] sm:$0xff] %v323
                  %v325 = vld [vmem:[%s319 + $0x20] sm:$0xff]
                  %326 = vst [vmem:[%s320 + $0x10] sm:$0xff] %v325
                  %v327 = vld [vmem:[%s319 + $0x30] sm:$0xff]
                  %328 = vst [vmem:[%s320 + $0x18] sm:$0xff] %v327
                  %v329 = vld [vmem:[%s319 + $0x40] sm:$0xff]
                  %330 = vst [vmem:[%s320 + $0x20] sm:$0xff] %v329
                  %v331 = vld [vmem:[%s319 + $0x50] sm:$0xff]
                  %332 = vst [vmem:[%s320 + $0x28] sm:$0xff] %v331
                  %v333 = vld [vmem:[%s319 + $0x60] sm:$0xff]
                  %334 = vst [vmem:[%s320 + $0x30] sm:$0xff] %v333
                  %v335 = vld [vmem:[%s319 + $0x70] sm:$0xff]
                  %336 = vst [vmem:[%s320 + $0x38] sm:$0xff] %v335
                  %v337 = vld [vmem:[%s319 + $0x80] sm:$0xff]
                  %338 = vst [vmem:[%s320 + $0x40] sm:$0xff] %v337
                  %v339 = vld [vmem:[%s319 + $0x90] sm:$0xff]
                  %340 = vst [vmem:[%s320 + $0x48] sm:$0xff] %v339
                  %v341 = vld [vmem:[%s319 + $0xa0] sm:$0xff]
                  %342 = vst [vmem:[%s320 + $0x50] sm:$0xff] %v341
                  %v343 = vld [vmem:[%s319 + $0xb0] sm:$0xff]
                  %344 = vst [vmem:[%s320 + $0x58] sm:$0xff] %v343
                  %v345 = vld [vmem:[%s319 + $0xc0] sm:$0xff]
                  %346 = vst [vmem:[%s320 + $0x60] sm:$0xff] %v345
                  %v347 = vld [vmem:[%s319 + $0xd0] sm:$0xff]
                  %348 = vst [vmem:[%s320 + $0x68] sm:$0xff] %v347
                  %v349 = vld [vmem:[%s319 + $0xe0] sm:$0xff]
                  %350 = vst [vmem:[%s320 + $0x70] sm:$0xff] %v349
                  %v351 = vld [vmem:[%s319 + $0xf0] sm:$0xff]
                  %352 = vst [vmem:[%s320 + $0x78] sm:$0xff] %v351
                  %v353 = vld [vmem:[%s319 + $0x100] sm:$0xff]
                  %354 = vst [vmem:[%s320 + $0x80] sm:$0xff] %v353
                  %v355 = vld [vmem:[%s319 + $0x110] sm:$0xff]
                  %356 = vst [vmem:[%s320 + $0x88] sm:$0xff] %v355
                  %v357 = vld [vmem:[%s319 + $0x120] sm:$0xff]
                  %358 = vst [vmem:[%s320 + $0x90] sm:$0xff] %v357
                  %v359 = vld [vmem:[%s319 + $0x130] sm:$0xff]
                  %360 = vst [vmem:[%s320 + $0x98] sm:$0xff] %v359
                  %v361 = vld [vmem:[%s319 + $0x140] sm:$0xff]
                  %362 = vst [vmem:[%s320 + $0xa0] sm:$0xff] %v361
                  %v363 = vld [vmem:[%s319 + $0x150] sm:$0xff]
                  %364 = vst [vmem:[%s320 + $0xa8] sm:$0xff] %v363
                  %v365 = vld [vmem:[%s319 + $0x160] sm:$0xff]
                  %366 = vst [vmem:[%s320 + $0xb0] sm:$0xff] %v365
                  %v367 = vld [vmem:[%s319 + $0x170] sm:$0xff]
                  %368 = vst [vmem:[%s320 + $0xb8] sm:$0xff] %v367
                  %v369 = vld [vmem:[%s319 + $0x180] sm:$0xff]
                  %370 = vst [vmem:[%s320 + $0xc0] sm:$0xff] %v369
                  %v371 = vld [vmem:[%s319 + $0x190] sm:$0xff]
                  %372 = vst [vmem:[%s320 + $0xc8] sm:$0xff] %v371
                  %v373 = vld [vmem:[%s319 + $0x1a0] sm:$0xff]
                  %374 = vst [vmem:[%s320 + $0xd0] sm:$0xff] %v373
                  %v375 = vld [vmem:[%s319 + $0x1b0] sm:$0xff]
                  %376 = vst [vmem:[%s320 + $0xd8] sm:$0xff] %v375
                  %v377 = vld [vmem:[%s319 + $0x1c0] sm:$0xff]
                  %378 = vst [vmem:[%s320 + $0xe0] sm:$0xff] %v377
                  %v379 = vld [vmem:[%s319 + $0x1d0] sm:$0xff]
                  %380 = vst [vmem:[%s320 + $0xe8] sm:$0xff] %v379
                  %v381 = vld [vmem:[%s319 + $0x1e0] sm:$0xff]
                  %382 = vst [vmem:[%s320 + $0xf0] sm:$0xff] %v381
                  %v383 = vld [vmem:[%s319 + $0x1f0] sm:$0xff]
                  %384 = vst [vmem:[%s320 + $0xf8] sm:$0xff] %v383
                $region68: #{swin_block_forward.1} parent=62 // loop_footer
                  %s318 = sadd.s32 1, %s314
                $region69: #{swin_block_forward.1} parent=62 // loop_footer_branch
                  %313 = sbr.rel target = $region65
                $region70: #{swin_block_forward.1} parent=62 // loop_exit
                  _
              $region63: #{swin_block_forward.1} parent=47 // pred_fallthru
                _
              // Predicated region
              $region71: #{swin_block_forward.1} parent=47 // pred_check
                _
              $region72: #{swin_block_forward.1} parent=47 // pred_check_branch
                %386 = sbr.rel target = $region74
              $region73: #{swin_block_forward.1} parent=47 // pred_region
                _
              $region74: #{swin_block_forward.1} parent=47 // pred_fallthru
                _
            $region48: #{swin_block_forward.1} parent=43 // pred_fallthru
              _
            // Predicated region
            $region49: #{swin_block_forward.1} parent=43 // pred_check
              _
            $region50: #{swin_block_forward.1} parent=43 // pred_check_branch
              %236 = sbr.rel target = $region52
            $region51: #{swin_block_forward.1} parent=43 // pred_region
              %s238 = ssub.s32 256, 1
              loop: start=0, step=1, limit=1
              $region53: #{swin_block_forward.1} parent=51 // loop_pre_header
                _
              $region54: #{swin_block_forward.1} parent=51 // loop_header
                %s240 = sphi 0, %s244
                %p241 = scmp.ge.s32.totalorder %s240, 1
                %s245 = sphi %s230, %s230
                %s246 = sphi %s225, %s225
              $region55: #{swin_block_forward.1} parent=51 // loop_header_branch
                %243 = sbr.rel (%p241) target = $region59
              $region56: #{swin_block_forward.1} parent=51 // loop_body
                %v247 = vld [vmem:[%s245] sm:%s238]
                %248 = vst [vmem:[%s246] sm:%s238] %v247
                %v249 = vld [vmem:[%s245 + $0x10] sm:%s238]
                %250 = vst [vmem:[%s246 + $0x8] sm:%s238] %v249
                %v251 = vld [vmem:[%s245 + $0x20] sm:%s238]
                %252 = vst [vmem:[%s246 + $0x10] sm:%s238] %v251
                %v253 = vld [vmem:[%s245 + $0x30] sm:%s238]
                %254 = vst [vmem:[%s246 + $0x18] sm:%s238] %v253
                %v255 = vld [vmem:[%s245 + $0x40] sm:%s238]
                %256 = vst [vmem:[%s246 + $0x20] sm:%s238] %v255
                %v257 = vld [vmem:[%s245 + $0x50] sm:%s238]
                %258 = vst [vmem:[%s246 + $0x28] sm:%s238] %v257
                %v259 = vld [vmem:[%s245 + $0x60] sm:%s238]
                %260 = vst [vmem:[%s246 + $0x30] sm:%s238] %v259
                %v261 = vld [vmem:[%s245 + $0x70] sm:%s238]
                %262 = vst [vmem:[%s246 + $0x38] sm:%s238] %v261
                %v263 = vld [vmem:[%s245 + $0x80] sm:%s238]
                %264 = vst [vmem:[%s246 + $0x40] sm:%s238] %v263
                %v265 = vld [vmem:[%s245 + $0x90] sm:%s238]
                %266 = vst [vmem:[%s246 + $0x48] sm:%s238] %v265
                %v267 = vld [vmem:[%s245 + $0xa0] sm:%s238]
                %268 = vst [vmem:[%s246 + $0x50] sm:%s238] %v267
                %v269 = vld [vmem:[%s245 + $0xb0] sm:%s238]
                %270 = vst [vmem:[%s246 + $0x58] sm:%s238] %v269
                %v271 = vld [vmem:[%s245 + $0xc0] sm:%s238]
                %272 = vst [vmem:[%s246 + $0x60] sm:%s238] %v271
                %v273 = vld [vmem:[%s245 + $0xd0] sm:%s238]
                %274 = vst [vmem:[%s246 + $0x68] sm:%s238] %v273
                %v275 = vld [vmem:[%s245 + $0xe0] sm:%s238]
                %276 = vst [vmem:[%s246 + $0x70] sm:%s238] %v275
                %v277 = vld [vmem:[%s245 + $0xf0] sm:%s238]
                %278 = vst [vmem:[%s246 + $0x78] sm:%s238] %v277
                %v279 = vld [vmem:[%s245 + $0x100] sm:%s238]
                %280 = vst [vmem:[%s246 + $0x80] sm:%s238] %v279
                %v281 = vld [vmem:[%s245 + $0x110] sm:%s238]
                %282 = vst [vmem:[%s246 + $0x88] sm:%s238] %v281
                %v283 = vld [vmem:[%s245 + $0x120] sm:%s238]
                %284 = vst [vmem:[%s246 + $0x90] sm:%s238] %v283
                %v285 = vld [vmem:[%s245 + $0x130] sm:%s238]
                %286 = vst [vmem:[%s246 + $0x98] sm:%s238] %v285
                %v287 = vld [vmem:[%s245 + $0x140] sm:%s238]
                %288 = vst [vmem:[%s246 + $0xa0] sm:%s238] %v287
                %v289 = vld [vmem:[%s245 + $0x150] sm:%s238]
                %290 = vst [vmem:[%s246 + $0xa8] sm:%s238] %v289
                %v291 = vld [vmem:[%s245 + $0x160] sm:%s238]
                %292 = vst [vmem:[%s246 + $0xb0] sm:%s238] %v291
                %v293 = vld [vmem:[%s245 + $0x170] sm:%s238]
                %294 = vst [vmem:[%s246 + $0xb8] sm:%s238] %v293
                %v295 = vld [vmem:[%s245 + $0x180] sm:%s238]
                %296 = vst [vmem:[%s246 + $0xc0] sm:%s238] %v295
                %v297 = vld [vmem:[%s245 + $0x190] sm:%s238]
                %298 = vst [vmem:[%s246 + $0xc8] sm:%s238] %v297
                %v299 = vld [vmem:[%s245 + $0x1a0] sm:%s238]
                %300 = vst [vmem:[%s246 + $0xd0] sm:%s238] %v299
                %v301 = vld [vmem:[%s245 + $0x1b0] sm:%s238]
                %302 = vst [vmem:[%s246 + $0xd8] sm:%s238] %v301
                %v303 = vld [vmem:[%s245 + $0x1c0] sm:%s238]
                %304 = vst [vmem:[%s246 + $0xe0] sm:%s238] %v303
                %v305 = vld [vmem:[%s245 + $0x1d0] sm:%s238]
                %306 = vst [vmem:[%s246 + $0xe8] sm:%s238] %v305
                %v307 = vld [vmem:[%s245 + $0x1e0] sm:%s238]
                %308 = vst [vmem:[%s246 + $0xf0] sm:%s238] %v307
                %v309 = vld [vmem:[%s245 + $0x1f0] sm:%s238]
                %310 = vst [vmem:[%s246 + $0xf8] sm:%s238] %v309
              $region57: #{swin_block_forward.1} parent=51 // loop_footer
                %s244 = sadd.s32 1, %s240
              $region58: #{swin_block_forward.1} parent=51 // loop_footer_branch
                %239 = sbr.rel target = $region54
              $region59: #{swin_block_forward.1} parent=51 // loop_exit
                _
            $region52: #{swin_block_forward.1} parent=43 // pred_fallthru
              _
          $region44: #{swin_block_forward.1} parent=39 // pred_fallthru
            _
          %387 = vnop
        $region40: #{swin_block_forward.1} parent=35 // pred_fallthru
          _
      $region36: #{swin_block_forward.1} parent=5 // pred_fallthru
        _
      %p388 = scmp.le.s32.totalorder 1, %s12
      %p389 = scmp.lt.s32.totalorder %s12, 3
      %p390 = pnand %p388, %p389
      %p391 = pneg %p390
      // Predicated region
      $region75: #{swin_block_forward.1} parent=5 // pred_check
        _
      $region76: #{swin_block_forward.1} parent=5 // pred_check_branch
        %393 = sbr.rel (%p390) target = $region78
      $region77: #{swin_block_forward.1} parent=5 // pred_region
        %s394 = ssub.s32 %s12, 1
        %s395 = sand.u32 %s39, 1
        %s396 = sand.u32 %s39, 1
        %s397 = smul.addr %s396, 256
        %s398 = scalar_lea.vmem [#allocation3], %s397
        // Predicated region
        $region79: #{swin_block_forward.1} parent=77 // pred_check
          %p399 = pneg %p52
        $region80: #{swin_block_forward.1} parent=77 // pred_check_branch
          %401 = sbr.rel (%p399) target = $region82
        $region81: #{swin_block_forward.1} parent=77 // pred_region
          _
        $region82: #{swin_block_forward.1} parent=77 // pred_fallthru
          _
        %s402 = sand.u32 %s39, 1
        %s403 = sand.u32 %s39, 1
        %s404 = smul.addr %s403, 256
        %s405 = scalar_lea.vmem [#allocation3], %s404
        %p406 = pneg %p52
        %p407 = pneg %p49
        %p408 = pneg %p73
        %p409 = pneg %p70
        %p410 = pneg %p94
        %p411 = pneg %p91
        %p412 = pneg %p115
        %p413 = pneg %p112
        %p414 = pneg %p136
        %p415 = pneg %p133
        %p416 = pneg %p157
        %p417 = pneg %p154
        %p418 = pneg %p185
        %p419 = pneg %p182
        %s420 = sand.u32 %s172, 1
        %s421 = sand.u32 %s172, 1
        %s422 = smul.addr %s421, 256
        %s423 = scalar_lea.vmem [#allocation4], %s422
        %s424 = smul.u32 16, %s22
        %s425 = smul.u32 16, %s22
        %v427 = vld [vmem:[%s398] sm:$0xff]
        %v428 = vld [vmem:[%s398 + $0x8] sm:$0xff]
        %v429 = vld [vmem:[%s398 + $0x10] sm:$0xff]
        %v430 = vld [vmem:[%s398 + $0x18] sm:$0xff]
        %v431 = vld [vmem:[%s398 + $0x20] sm:$0xff]
        %v432 = vld [vmem:[%s398 + $0x28] sm:$0xff]
        %v433 = vld [vmem:[%s398 + $0x30] sm:$0xff]
        %v434 = vld [vmem:[%s398 + $0x38] sm:$0xff]
        %v435 = vld [vmem:[%s398 + $0x40] sm:$0xff]
        %v436 = vld [vmem:[%s398 + $0x48] sm:$0xff]
        %v437 = vld [vmem:[%s398 + $0x50] sm:$0xff]
        %v438 = vld [vmem:[%s398 + $0x58] sm:$0xff]
        %v439 = vld [vmem:[%s398 + $0x60] sm:$0xff]
        %v440 = vld [vmem:[%s398 + $0x68] sm:$0xff]
        %v441 = vld [vmem:[%s398 + $0x70] sm:$0xff]
        %v442 = vld [vmem:[%s398 + $0x78] sm:$0xff]
        %v443 = vld [vmem:[%s398 + $0x80] sm:$0xff]
        %v444 = vld [vmem:[%s398 + $0x88] sm:$0xff]
        %v445 = vld [vmem:[%s398 + $0x90] sm:$0xff]
        %v446 = vld [vmem:[%s398 + $0x98] sm:$0xff]
        %v447 = vld [vmem:[%s398 + $0xa0] sm:$0xff]
        %v448 = vld [vmem:[%s398 + $0xa8] sm:$0xff]
        %v449 = vld [vmem:[%s398 + $0xb0] sm:$0xff]
        %v450 = vld [vmem:[%s398 + $0xb8] sm:$0xff]
        %v451 = vld [vmem:[%s398 + $0xc0] sm:$0xff]
        %v452 = vld [vmem:[%s398 + $0xc8] sm:$0xff]
        %v453 = vld [vmem:[%s398 + $0xd0] sm:$0xff]
        %v454 = vld [vmem:[%s398 + $0xd8] sm:$0xff]
        %v455 = vld [vmem:[%s398 + $0xe0] sm:$0xff]
        %v456 = vld [vmem:[%s398 + $0xe8] sm:$0xff]
        %v457 = vld [vmem:[%s398 + $0xf0] sm:$0xff]
        %v458 = vld [vmem:[%s398 + $0xf8] sm:$0xff]
        %vm459 = vcmask 261120
        %v460 = vsel %vm459, %v427, 0.0
        %461 = vadd.xlane.f32.xlu0 %v460
        %v462 = vpop.xlane.xlu0 %461
        %v463 = vsel %vm459, %v428, 0.0
        %464 = vadd.xlane.f32.xlu0 %v463
        %v465 = vpop.xlane.xlu0 %464
        %v466 = vsel %vm459, %v429, 0.0
        %467 = vadd.xlane.f32.xlu0 %v466
        %v468 = vpop.xlane.xlu0 %467
        %v469 = vsel %vm459, %v430, 0.0
        %470 = vadd.xlane.f32.xlu0 %v469
        %v471 = vpop.xlane.xlu0 %470
        %v472 = vsel %vm459, %v431, 0.0
        %473 = vadd.xlane.f32.xlu0 %v472
        %v474 = vpop.xlane.xlu0 %473
        %v475 = vsel %vm459, %v432, 0.0
        %476 = vadd.xlane.f32.xlu0 %v475
        %v477 = vpop.xlane.xlu0 %476
        %v478 = vsel %vm459, %v433, 0.0
        %479 = vadd.xlane.f32.xlu0 %v478
        %v480 = vpop.xlane.xlu0 %479
        %v481 = vsel %vm459, %v434, 0.0
        %482 = vadd.xlane.f32.xlu0 %v481
        %v483 = vpop.xlane.xlu0 %482
        %v484 = vsel %vm459, %v435, 0.0
        %485 = vadd.xlane.f32.xlu0 %v484
        %v486 = vpop.xlane.xlu0 %485
        %v487 = vsel %vm459, %v436, 0.0
        %488 = vadd.xlane.f32.xlu0 %v487
        %v489 = vpop.xlane.xlu0 %488
        %v490 = vsel %vm459, %v437, 0.0
        %491 = vadd.xlane.f32.xlu0 %v490
        %v492 = vpop.xlane.xlu0 %491
        %v493 = vsel %vm459, %v438, 0.0
        %494 = vadd.xlane.f32.xlu0 %v493
        %v495 = vpop.xlane.xlu0 %494
        %v496 = vsel %vm459, %v439, 0.0
        %497 = vadd.xlane.f32.xlu0 %v496
        %v498 = vpop.xlane.xlu0 %497
        %v499 = vsel %vm459, %v440, 0.0
        %500 = vadd.xlane.f32.xlu0 %v499
        %v501 = vpop.xlane.xlu0 %500
        %v502 = vsel %vm459, %v441, 0.0
        %503 = vadd.xlane.f32.xlu0 %v502
        %v504 = vpop.xlane.xlu0 %503
        %v505 = vsel %vm459, %v442, 0.0
        %506 = vadd.xlane.f32.xlu0 %v505
        %v507 = vpop.xlane.xlu0 %506
        %v508 = vsel %vm459, %v443, 0.0
        %509 = vadd.xlane.f32.xlu0 %v508
        %v510 = vpop.xlane.xlu0 %509
        %v511 = vsel %vm459, %v444, 0.0
        %512 = vadd.xlane.f32.xlu0 %v511
        %v513 = vpop.xlane.xlu0 %512
        %v514 = vsel %vm459, %v445, 0.0
        %515 = vadd.xlane.f32.xlu0 %v514
        %v516 = vpop.xlane.xlu0 %515
        %v517 = vsel %vm459, %v446, 0.0
        %518 = vadd.xlane.f32.xlu0 %v517
        %v519 = vpop.xlane.xlu0 %518
        %v520 = vsel %vm459, %v447, 0.0
        %521 = vadd.xlane.f32.xlu0 %v520
        %v522 = vpop.xlane.xlu0 %521
        %v523 = vsel %vm459, %v448, 0.0
        %524 = vadd.xlane.f32.xlu0 %v523
        %v525 = vpop.xlane.xlu0 %524
        %v526 = vsel %vm459, %v449, 0.0
        %527 = vadd.xlane.f32.xlu0 %v526
        %v528 = vpop.xlane.xlu0 %527
        %v529 = vsel %vm459, %v450, 0.0
        %530 = vadd.xlane.f32.xlu0 %v529
        %v531 = vpop.xlane.xlu0 %530
        %v532 = vsel %vm459, %v451, 0.0
        %533 = vadd.xlane.f32.xlu0 %v532
        %v534 = vpop.xlane.xlu0 %533
        %v535 = vsel %vm459, %v452, 0.0
        %536 = vadd.xlane.f32.xlu0 %v535
        %v537 = vpop.xlane.xlu0 %536
        %v538 = vsel %vm459, %v453, 0.0
        %539 = vadd.xlane.f32.xlu0 %v538
        %v540 = vpop.xlane.xlu0 %539
        %v541 = vsel %vm459, %v454, 0.0
        %542 = vadd.xlane.f32.xlu0 %v541
        %v543 = vpop.xlane.xlu0 %542
        %v544 = vsel %vm459, %v455, 0.0
        %545 = vadd.xlane.f32.xlu0 %v544
        %v546 = vpop.xlane.xlu0 %545
        %v547 = vsel %vm459, %v456, 0.0
        %548 = vadd.xlane.f32.xlu0 %v547
        %v549 = vpop.xlane.xlu0 %548
        %v550 = vsel %vm459, %v457, 0.0
        %551 = vadd.xlane.f32.xlu0 %v550
        %v552 = vpop.xlane.xlu0 %551
        %v553 = vsel %vm459, %v458, 0.0
        %554 = vadd.xlane.f32.xlu0 %v553
        %v555 = vpop.xlane.xlu0 %554
        %v556 = vrcp.pop 32.0
        %v557 = vmul.f32 %v462, %v556
        %v558 = vmul.f32 %v465, %v556
        %v559 = vmul.f32 %v468, %v556
        %v560 = vmul.f32 %v471, %v556
        %v561 = vmul.f32 %v474, %v556
        %v562 = vmul.f32 %v477, %v556
        %v563 = vmul.f32 %v480, %v556
        %v564 = vmul.f32 %v483, %v556
        %v565 = vmul.f32 %v486, %v556
        %v566 = vmul.f32 %v489, %v556
        %v567 = vmul.f32 %v492, %v556
        %v568 = vmul.f32 %v495, %v556
        %v569 = vmul.f32 %v498, %v556
        %v570 = vmul.f32 %v501, %v556
        %v571 = vmul.f32 %v504, %v556
        %v572 = vmul.f32 %v507, %v556
        %v573 = vmul.f32 %v510, %v556
        %v574 = vmul.f32 %v513, %v556
        %v575 = vmul.f32 %v516, %v556
        %v576 = vmul.f32 %v519, %v556
        %v577 = vmul.f32 %v522, %v556
        %v578 = vmul.f32 %v525, %v556
        %v579 = vmul.f32 %v528, %v556
        %v580 = vmul.f32 %v531, %v556
        %v581 = vmul.f32 %v534, %v556
        %v582 = vmul.f32 %v537, %v556
        %v583 = vmul.f32 %v540, %v556
        %v584 = vmul.f32 %v543, %v556
        %v585 = vmul.f32 %v546, %v556
        %v586 = vmul.f32 %v549, %v556
        %v587 = vmul.f32 %v552, %v556
        %v588 = vmul.f32 %v555, %v556
        %v589 = vsub.f32 %v427, %v557
        %v590 = vsub.f32 %v428, %v558
        %v591 = vsub.f32 %v429, %v559
        %v592 = vsub.f32 %v430, %v560
        %v593 = vsub.f32 %v431, %v561
        %v594 = vsub.f32 %v432, %v562
        %v595 = vsub.f32 %v433, %v563
        %v596 = vsub.f32 %v434, %v564
        %v597 = vsub.f32 %v435, %v565
        %v598 = vsub.f32 %v436, %v566
        %v599 = vsub.f32 %v437, %v567
        %v600 = vsub.f32 %v438, %v568
        %v601 = vsub.f32 %v439, %v569
        %v602 = vsub.f32 %v440, %v570
        %v603 = vsub.f32 %v441, %v571
        %v604 = vsub.f32 %v442, %v572
        %v605 = vsub.f32 %v443, %v573
        %v606 = vsub.f32 %v444, %v574
        %v607 = vsub.f32 %v445, %v575
        %v608 = vsub.f32 %v446, %v576
        %v609 = vsub.f32 %v447, %v577
        %v610 = vsub.f32 %v448, %v578
        %v611 = vsub.f32 %v449, %v579
        %v612 = vsub.f32 %v450, %v580
        %v613 = vsub.f32 %v451, %v581
        %v614 = vsub.f32 %v452, %v582
        %v615 = vsub.f32 %v453, %v583
        %v616 = vsub.f32 %v454, %v584
        %v617 = vsub.f32 %v455, %v585
        %v618 = vsub.f32 %v456, %v586
        %v619 = vsub.f32 %v457, %v587
        %v620 = vsub.f32 %v458, %v588
        %v621 = vmul.f32 %v589, %v589
        %v622 = vmul.f32 %v590, %v590
        %v623 = vmul.f32 %v591, %v591
        %v624 = vmul.f32 %v592, %v592
        %v625 = vmul.f32 %v593, %v593
        %v626 = vmul.f32 %v594, %v594
        %v627 = vmul.f32 %v595, %v595
        %v628 = vmul.f32 %v596, %v596
        %v629 = vmul.f32 %v597, %v597
        %v630 = vmul.f32 %v598, %v598
        %v631 = vmul.f32 %v599, %v599
        %v632 = vmul.f32 %v600, %v600
        %v633 = vmul.f32 %v601, %v601
        %v634 = vmul.f32 %v602, %v602
        %v635 = vmul.f32 %v603, %v603
        %v636 = vmul.f32 %v604, %v604
        %v637 = vmul.f32 %v605, %v605
        %v638 = vmul.f32 %v606, %v606
        %v639 = vmul.f32 %v607, %v607
        %v640 = vmul.f32 %v608, %v608
        %v641 = vmul.f32 %v609, %v609
        %v642 = vmul.f32 %v610, %v610
        %v643 = vmul.f32 %v611, %v611
        %v644 = vmul.f32 %v612, %v612
        %v645 = vmul.f32 %v613, %v613
        %v646 = vmul.f32 %v614, %v614
        %v647 = vmul.f32 %v615, %v615
        %v648 = vmul.f32 %v616, %v616
        %v649 = vmul.f32 %v617, %v617
        %v650 = vmul.f32 %v618, %v618
        %v651 = vmul.f32 %v619, %v619
        %v652 = vmul.f32 %v620, %v620
        %v653 = vsel %vm459, %v621, 0.0
        %654 = vadd.xlane.f32.xlu0 %v653
        %v655 = vpop.xlane.xlu0 %654
        %v656 = vsel %vm459, %v622, 0.0
        %657 = vadd.xlane.f32.xlu0 %v656
        %v658 = vpop.xlane.xlu0 %657
        %v659 = vsel %vm459, %v623, 0.0
        %660 = vadd.xlane.f32.xlu0 %v659
        %v661 = vpop.xlane.xlu0 %660
        %v662 = vsel %vm459, %v624, 0.0
        %663 = vadd.xlane.f32.xlu0 %v662
        %v664 = vpop.xlane.xlu0 %663
        %v665 = vsel %vm459, %v625, 0.0
        %666 = vadd.xlane.f32.xlu0 %v665
        %v667 = vpop.xlane.xlu0 %666
        %v668 = vsel %vm459, %v626, 0.0
        %669 = vadd.xlane.f32.xlu0 %v668
        %v670 = vpop.xlane.xlu0 %669
        %v671 = vsel %vm459, %v627, 0.0
        %672 = vadd.xlane.f32.xlu0 %v671
        %v673 = vpop.xlane.xlu0 %672
        %v674 = vsel %vm459, %v628, 0.0
        %675 = vadd.xlane.f32.xlu0 %v674
        %v676 = vpop.xlane.xlu0 %675
        %v677 = vsel %vm459, %v629, 0.0
        %678 = vadd.xlane.f32.xlu0 %v677
        %v679 = vpop.xlane.xlu0 %678
        %v680 = vsel %vm459, %v630, 0.0
        %681 = vadd.xlane.f32.xlu0 %v680
        %v682 = vpop.xlane.xlu0 %681
        %v683 = vsel %vm459, %v631, 0.0
        %684 = vadd.xlane.f32.xlu0 %v683
        %v685 = vpop.xlane.xlu0 %684
        %v686 = vsel %vm459, %v632, 0.0
        %687 = vadd.xlane.f32.xlu0 %v686
        %v688 = vpop.xlane.xlu0 %687
        %v689 = vsel %vm459, %v633, 0.0
        %690 = vadd.xlane.f32.xlu0 %v689
        %v691 = vpop.xlane.xlu0 %690
        %v692 = vsel %vm459, %v634, 0.0
        %693 = vadd.xlane.f32.xlu0 %v692
        %v694 = vpop.xlane.xlu0 %693
        %v695 = vsel %vm459, %v635, 0.0
        %696 = vadd.xlane.f32.xlu0 %v695
        %v697 = vpop.xlane.xlu0 %696
        %v698 = vsel %vm459, %v636, 0.0
        %699 = vadd.xlane.f32.xlu0 %v698
        %v700 = vpop.xlane.xlu0 %699
        %v701 = vsel %vm459, %v637, 0.0
        %702 = vadd.xlane.f32.xlu0 %v701
        %v703 = vpop.xlane.xlu0 %702
        %v704 = vsel %vm459, %v638, 0.0
        %705 = vadd.xlane.f32.xlu0 %v704
        %v706 = vpop.xlane.xlu0 %705
        %v707 = vsel %vm459, %v639, 0.0
        %708 = vadd.xlane.f32.xlu0 %v707
        %v709 = vpop.xlane.xlu0 %708
        %v710 = vsel %vm459, %v640, 0.0
        %711 = vadd.xlane.f32.xlu0 %v710
        %v712 = vpop.xlane.xlu0 %711
        %v713 = vsel %vm459, %v641, 0.0
        %714 = vadd.xlane.f32.xlu0 %v713
        %v715 = vpop.xlane.xlu0 %714
        %v716 = vsel %vm459, %v642, 0.0
        %717 = vadd.xlane.f32.xlu0 %v716
        %v718 = vpop.xlane.xlu0 %717
        %v719 = vsel %vm459, %v643, 0.0
        %720 = vadd.xlane.f32.xlu0 %v719
        %v721 = vpop.xlane.xlu0 %720
        %v722 = vsel %vm459, %v644, 0.0
        %723 = vadd.xlane.f32.xlu0 %v722
        %v724 = vpop.xlane.xlu0 %723
        %v725 = vsel %vm459, %v645, 0.0
        %726 = vadd.xlane.f32.xlu0 %v725
        %v727 = vpop.xlane.xlu0 %726
        %v728 = vsel %vm459, %v646, 0.0
        %729 = vadd.xlane.f32.xlu0 %v728
        %v730 = vpop.xlane.xlu0 %729
        %v731 = vsel %vm459, %v647, 0.0
        %732 = vadd.xlane.f32.xlu0 %v731
        %v733 = vpop.xlane.xlu0 %732
        %v734 = vsel %vm459, %v648, 0.0
        %735 = vadd.xlane.f32.xlu0 %v734
        %v736 = vpop.xlane.xlu0 %735
        %v737 = vsel %vm459, %v649, 0.0
        %738 = vadd.xlane.f32.xlu0 %v737
        %v739 = vpop.xlane.xlu0 %738
        %v740 = vsel %vm459, %v650, 0.0
        %741 = vadd.xlane.f32.xlu0 %v740
        %v742 = vpop.xlane.xlu0 %741
        %v743 = vsel %vm459, %v651, 0.0
        %744 = vadd.xlane.f32.xlu0 %v743
        %v745 = vpop.xlane.xlu0 %744
        %v746 = vsel %vm459, %v652, 0.0
        %747 = vadd.xlane.f32.xlu0 %v746
        %v748 = vpop.xlane.xlu0 %747
        %v749 = vmul.f32 %v655, %v556
        %v750 = vmul.f32 %v658, %v556
        %v751 = vmul.f32 %v661, %v556
        %v752 = vmul.f32 %v664, %v556
        %v753 = vmul.f32 %v667, %v556
        %v754 = vmul.f32 %v670, %v556
        %v755 = vmul.f32 %v673, %v556
        %v756 = vmul.f32 %v676, %v556
        %v757 = vmul.f32 %v679, %v556
        %v758 = vmul.f32 %v682, %v556
        %v759 = vmul.f32 %v685, %v556
        %v760 = vmul.f32 %v688, %v556
        %v761 = vmul.f32 %v691, %v556
        %v762 = vmul.f32 %v694, %v556
        %v763 = vmul.f32 %v697, %v556
        %v764 = vmul.f32 %v700, %v556
        %v765 = vmul.f32 %v703, %v556
        %v766 = vmul.f32 %v706, %v556
        %v767 = vmul.f32 %v709, %v556
        %v768 = vmul.f32 %v712, %v556
        %v769 = vmul.f32 %v715, %v556
        %v770 = vmul.f32 %v718, %v556
        %v771 = vmul.f32 %v721, %v556
        %v772 = vmul.f32 %v724, %v556
        %v773 = vmul.f32 %v727, %v556
        %v774 = vmul.f32 %v730, %v556
        %v775 = vmul.f32 %v733, %v556
        %v776 = vmul.f32 %v736, %v556
        %v777 = vmul.f32 %v739, %v556
        %v778 = vmul.f32 %v742, %v556
        %v779 = vmul.f32 %v745, %v556
        %v780 = vmul.f32 %v748, %v556
        %v781 = vadd.f32 %v749, 1e-05
        %v782 = vadd.f32 %v750, 1e-05
        %v783 = vadd.f32 %v751, 1e-05
        %v784 = vadd.f32 %v752, 1e-05
        %v785 = vadd.f32 %v753, 1e-05
        %v786 = vadd.f32 %v754, 1e-05
        %v787 = vadd.f32 %v755, 1e-05
        %v788 = vadd.f32 %v756, 1e-05
        %v789 = vadd.f32 %v757, 1e-05
        %v790 = vadd.f32 %v758, 1e-05
        %v791 = vadd.f32 %v759, 1e-05
        %v792 = vadd.f32 %v760, 1e-05
        %v793 = vadd.f32 %v761, 1e-05
        %v794 = vadd.f32 %v762, 1e-05
        %v795 = vadd.f32 %v763, 1e-05
        %v796 = vadd.f32 %v764, 1e-05
        %v797 = vadd.f32 %v765, 1e-05
        %v798 = vadd.f32 %v766, 1e-05
        %v799 = vadd.f32 %v767, 1e-05
        %v800 = vadd.f32 %v768, 1e-05
        %v801 = vadd.f32 %v769, 1e-05
        %v802 = vadd.f32 %v770, 1e-05
        %v803 = vadd.f32 %v771, 1e-05
        %v804 = vadd.f32 %v772, 1e-05
        %v805 = vadd.f32 %v773, 1e-05
        %v806 = vadd.f32 %v774, 1e-05
        %v807 = vadd.f32 %v775, 1e-05
        %v808 = vadd.f32 %v776, 1e-05
        %v809 = vadd.f32 %v777, 1e-05
        %v810 = vadd.f32 %v778, 1e-05
        %v811 = vadd.f32 %v779, 1e-05
        %v812 = vadd.f32 %v780, 1e-05
        %v813 = vrsqrt.pop %v781
        %v814 = vrsqrt.pop %v782
        %v815 = vrsqrt.pop %v783
        %v816 = vrsqrt.pop %v784
        %v817 = vrsqrt.pop %v785
        %v818 = vrsqrt.pop %v786
        %v819 = vrsqrt.pop %v787
        %v820 = vrsqrt.pop %v788
        %v821 = vrsqrt.pop %v789
        %v822 = vrsqrt.pop %v790
        %v823 = vrsqrt.pop %v791
        %v824 = vrsqrt.pop %v792
        %v825 = vrsqrt.pop %v793
        %v826 = vrsqrt.pop %v794
        %v827 = vrsqrt.pop %v795
        %v828 = vrsqrt.pop %v796
        %v829 = vrsqrt.pop %v797
        %v830 = vrsqrt.pop %v798
        %v831 = vrsqrt.pop %v799
        %v832 = vrsqrt.pop %v800
        %v833 = vrsqrt.pop %v801
        %v834 = vrsqrt.pop %v802
        %v835 = vrsqrt.pop %v803
        %v836 = vrsqrt.pop %v804
        %v837 = vrsqrt.pop %v805
        %v838 = vrsqrt.pop %v806
        %v839 = vrsqrt.pop %v807
        %v840 = vrsqrt.pop %v808
        %v841 = vrsqrt.pop %v809
        %v842 = vrsqrt.pop %v810
        %v843 = vrsqrt.pop %v811
        %v844 = vrsqrt.pop %v812
        %v845 = vmul.f32 %v589, %v813
        %v846 = vmul.f32 %v590, %v814
        %v847 = vmul.f32 %v591, %v815
        %v848 = vmul.f32 %v592, %v816
        %v849 = vmul.f32 %v593, %v817
        %v850 = vmul.f32 %v594, %v818
        %v851 = vmul.f32 %v595, %v819
        %v852 = vmul.f32 %v596, %v820
        %v853 = vmul.f32 %v597, %v821
        %v854 = vmul.f32 %v598, %v822
        %v855 = vmul.f32 %v599, %v823
        %v856 = vmul.f32 %v600, %v824
        %v857 = vmul.f32 %v601, %v825
        %v858 = vmul.f32 %v602, %v826
        %v859 = vmul.f32 %v603, %v827
        %v860 = vmul.f32 %v604, %v828
        %v861 = vmul.f32 %v605, %v829
        %v862 = vmul.f32 %v606, %v830
        %v863 = vmul.f32 %v607, %v831
        %v864 = vmul.f32 %v608, %v832
        %v865 = vmul.f32 %v609, %v833
        %v866 = vmul.f32 %v610, %v834
        %v867 = vmul.f32 %v611, %v835
        %v868 = vmul.f32 %v612, %v836
        %v869 = vmul.f32 %v613, %v837
        %v870 = vmul.f32 %v614, %v838
        %v871 = vmul.f32 %v615, %v839
        %v872 = vmul.f32 %v616, %v840
        %v873 = vmul.f32 %v617, %v841
        %v874 = vmul.f32 %v618, %v842
        %v875 = vmul.f32 %v619, %v843
        %v876 = vmul.f32 %v620, %v844
        %v877 = vpack.c.bf16 %v846, %v845
        %v878 = vpack.c.bf16 %v848, %v847
        %v879 = vpack.c.bf16 %v850, %v849
        %v880 = vpack.c.bf16 %v852, %v851
        %v881 = vpack.c.bf16 %v854, %v853
        %v882 = vpack.c.bf16 %v856, %v855
        %v883 = vpack.c.bf16 %v858, %v857
        %v884 = vpack.c.bf16 %v860, %v859
        %v885 = vpack.c.bf16 %v862, %v861
        %v886 = vpack.c.bf16 %v864, %v863
        %v887 = vpack.c.bf16 %v866, %v865
        %v888 = vpack.c.bf16 %v868, %v867
        %v889 = vpack.c.bf16 %v870, %v869
        %v890 = vpack.c.bf16 %v872, %v871
        %v891 = vpack.c.bf16 %v874, %v873
        %v892 = vpack.c.bf16 %v876, %v875
        %v893 = vld [vmem:[%s1] sm:$0xf]
        %v894 = vld [vmem:[%s1 + $0x4] sm:$0xf]
        %v895 = vld [vmem:[%s1 + $0x8] sm:$0xf]
        %v896 = vld [vmem:[%s1 + $0xc] sm:$0xf]
        %v897 = vld [vmem:[%s2] sm:$0x1]
        %v899 = vlaneseq
        %v900 = vshrl.u32 %v899, 7
        %v901 = vsub.s32 0, %v900
        %v902 = vrot.slane %v897, %v901
        %v908 = vunpack.c.l.b16 %v893
        %v909 = vunpack.c.l.b16 %v894
        %v910 = vunpack.c.l.b16 %v895
        %v911 = vunpack.c.l.b16 %v896
        %v912 = vpack.c.b16 %v909, %v908
        %v913 = vpack.c.b16 %v911, %v910
        %v917 = vsel %vm459, %v877, 0
        %v920 = vsel %vm459, %v878, 0
        %v923 = vsel %vm459, %v879, 0
        %v926 = vsel %vm459, %v880, 0
        %v929 = vsel %vm459, %v881, 0
        %v932 = vsel %vm459, %v882, 0
        %v935 = vsel %vm459, %v883, 0
        %v938 = vsel %vm459, %v884, 0
        %v941 = vsel %vm459, %v885, 0
        %v944 = vsel %vm459, %v886, 0
        %v947 = vsel %vm459, %v887, 0
        %v950 = vsel %vm459, %v888, 0
        %v953 = vsel %vm459, %v889, 0
        %v956 = vsel %vm459, %v890, 0
        %v959 = vsel %vm459, %v891, 0
        %v962 = vsel %vm459, %v892, 0
        %964 = vmatprep.subr.bf16.mxu0 0
        %965 = vmatpush1.bf16.msra.mxu0 0
        %966 = vmatprep.subr.bf16.mxu0 0
        %967 = vmatpush1.bf16.msra.mxu0 0
        %968 = vmatprep.subr.bf16.mxu0 0
        %969 = vmatpush1.bf16.msra.mxu0 0
        %970 = vmatprep.subr.bf16.mxu0 0
        %971 = vmatpush1.bf16.msra.mxu0 0
        %972 = vmatprep.subr.bf16.mxu0 0
        %973 = vmatpush1.bf16.msra.mxu0 0
        %974 = vmatprep.subr.bf16.mxu0 0
        %975 = vmatpush1.bf16.msra.mxu0 0
        %976 = vmatprep.subr.bf16.mxu0 0
        %977 = vmatpush1.bf16.msra.mxu0 %v913
        %978 = vmatprep.subr.bf16.mxu0 0
        %979 = vmatpush1.bf16.msra.mxu0 %v912
        %980 = vmatprep.subr.bf16.mxu0 0
        %981 = vmatpush2.bf16.msra.mxu0 0
        %982 = vmatprep.subr.bf16.mxu0 0
        %983 = vmatpush2.bf16.msra.mxu0 0
        %984 = vmatprep.subr.bf16.mxu0 0
        %985 = vmatpush2.bf16.msra.mxu0 0
        %986 = vmatprep.subr.bf16.mxu0 0
        %987 = vmatpush2.bf16.msra.mxu0 0
        %988 = vmatprep.subr.bf16.mxu0 0
        %989 = vmatpush2.bf16.msra.mxu0 0
        %990 = vmatprep.subr.bf16.mxu0 0
        %991 = vmatpush2.bf16.msra.mxu0 0
        %992 = vmatprep.subr.bf16.mxu0 0
        %993 = vmatpush2.bf16.msra.mxu0 0
        %994 = vmatprep.subr.bf16.mxu0 0
        %995 = vmatpush2.bf16.msra.mxu0 0
        %996 = vmatprep.mubr.bf16.mxu0 0
        %997 = vmatmul.mubr.bf16.gmra.mxu0 %v917
        %v998 = vpop.f32.mrf.mxu0
        %v999 = vadd.f32 %v902, %v998
        %v1000 = vpop.f32.mrf.mxu0
        %v1001 = vpop.f32.mrf.mxu0
        %v1002 = vadd.f32 %v902, %v1001
        %v1003 = vpop.f32.mrf.mxu0
        %1004 = vmatprep.mubr.bf16.mxu0 0
        %1005 = vmatmul.mubr.bf16.gmra.mxu0 %v920
        %v1006 = vpop.f32.mrf.mxu0
        %v1007 = vadd.f32 %v902, %v1006
        %v1008 = vpop.f32.mrf.mxu0
        %v1009 = vpop.f32.mrf.mxu0
        %v1010 = vadd.f32 %v902, %v1009
        %v1011 = vpop.f32.mrf.mxu0
        %1012 = vmatprep.mubr.bf16.mxu0 0
        %1013 = vmatmul.mubr.bf16.gmra.mxu0 %v923
        %v1014 = vpop.f32.mrf.mxu0
        %v1015 = vadd.f32 %v902, %v1014
        %v1016 = vpop.f32.mrf.mxu0
        %v1017 = vpop.f32.mrf.mxu0
        %v1018 = vadd.f32 %v902, %v1017
        %v1019 = vpop.f32.mrf.mxu0
        %1020 = vmatprep.mubr.bf16.mxu0 0
        %1021 = vmatmul.mubr.bf16.gmra.mxu0 %v926
        %v1022 = vpop.f32.mrf.mxu0
        %v1023 = vadd.f32 %v902, %v1022
        %v1024 = vpop.f32.mrf.mxu0
        %v1025 = vpop.f32.mrf.mxu0
        %v1026 = vadd.f32 %v902, %v1025
        %v1027 = vpop.f32.mrf.mxu0
        %1028 = vmatprep.mubr.bf16.mxu0 0
        %1029 = vmatmul.mubr.bf16.gmra.mxu0 %v929
        %v1030 = vpop.f32.mrf.mxu0
        %v1031 = vadd.f32 %v902, %v1030
        %v1032 = vpop.f32.mrf.mxu0
        %v1033 = vpop.f32.mrf.mxu0
        %v1034 = vadd.f32 %v902, %v1033
        %v1035 = vpop.f32.mrf.mxu0
        %1036 = vmatprep.mubr.bf16.mxu0 0
        %1037 = vmatmul.mubr.bf16.gmra.mxu0 %v932
        %v1038 = vpop.f32.mrf.mxu0
        %v1039 = vadd.f32 %v902, %v1038
        %v1040 = vpop.f32.mrf.mxu0
        %v1041 = vpop.f32.mrf.mxu0
        %v1042 = vadd.f32 %v902, %v1041
        %v1043 = vpop.f32.mrf.mxu0
        %1044 = vmatprep.mubr.bf16.mxu0 0
        %1045 = vmatmul.mubr.bf16.gmra.mxu0 %v935
        %v1046 = vpop.f32.mrf.mxu0
        %v1047 = vadd.f32 %v902, %v1046
        %v1048 = vpop.f32.mrf.mxu0
        %v1049 = vpop.f32.mrf.mxu0
        %v1050 = vadd.f32 %v902, %v1049
        %v1051 = vpop.f32.mrf.mxu0
        %1052 = vmatprep.mubr.bf16.mxu0 0
        %1053 = vmatmul.mubr.bf16.gmra.mxu0 %v938
        %v1054 = vpop.f32.mrf.mxu0
        %v1055 = vadd.f32 %v902, %v1054
        %v1056 = vpop.f32.mrf.mxu0
        %v1057 = vpop.f32.mrf.mxu0
        %v1058 = vadd.f32 %v902, %v1057
        %v1059 = vpop.f32.mrf.mxu0
        %1060 = vmatprep.mubr.bf16.mxu0 0
        %1061 = vmatmul.mubr.bf16.gmra.mxu0 %v941
        %v1062 = vpop.f32.mrf.mxu0
        %v1063 = vadd.f32 %v902, %v1062
        %v1064 = vpop.f32.mrf.mxu0
        %v1065 = vpop.f32.mrf.mxu0
        %v1066 = vadd.f32 %v902, %v1065
        %v1067 = vpop.f32.mrf.mxu0
        %1068 = vmatprep.mubr.bf16.mxu0 0
        %1069 = vmatmul.mubr.bf16.gmra.mxu0 %v944
        %v1070 = vpop.f32.mrf.mxu0
        %v1071 = vadd.f32 %v902, %v1070
        %v1072 = vpop.f32.mrf.mxu0
        %v1073 = vpop.f32.mrf.mxu0
        %v1074 = vadd.f32 %v902, %v1073
        %v1075 = vpop.f32.mrf.mxu0
        %1076 = vmatprep.mubr.bf16.mxu0 0
        %1077 = vmatmul.mubr.bf16.gmra.mxu0 %v947
        %v1078 = vpop.f32.mrf.mxu0
        %v1079 = vadd.f32 %v902, %v1078
        %v1080 = vpop.f32.mrf.mxu0
        %v1081 = vpop.f32.mrf.mxu0
        %v1082 = vadd.f32 %v902, %v1081
        %v1083 = vpop.f32.mrf.mxu0
        %1084 = vmatprep.mubr.bf16.mxu0 0
        %1085 = vmatmul.mubr.bf16.gmra.mxu0 %v950
        %v1086 = vpop.f32.mrf.mxu0
        %v1087 = vadd.f32 %v902, %v1086
        %v1088 = vpop.f32.mrf.mxu0
        %v1089 = vpop.f32.mrf.mxu0
        %v1090 = vadd.f32 %v902, %v1089
        %v1091 = vpop.f32.mrf.mxu0
        %1092 = vmatprep.mubr.bf16.mxu0 0
        %1093 = vmatmul.mubr.bf16.gmra.mxu0 %v953
        %v1094 = vpop.f32.mrf.mxu0
        %v1095 = vadd.f32 %v902, %v1094
        %v1096 = vpop.f32.mrf.mxu0
        %v1097 = vpop.f32.mrf.mxu0
        %v1098 = vadd.f32 %v902, %v1097
        %v1099 = vpop.f32.mrf.mxu0
        %1100 = vmatprep.mubr.bf16.mxu0 0
        %1101 = vmatmul.mubr.bf16.gmra.mxu0 %v956
        %v1102 = vpop.f32.mrf.mxu0
        %v1103 = vadd.f32 %v902, %v1102
        %v1104 = vpop.f32.mrf.mxu0
        %v1105 = vpop.f32.mrf.mxu0
        %v1106 = vadd.f32 %v902, %v1105
        %v1107 = vpop.f32.mrf.mxu0
        %1108 = vmatprep.mubr.bf16.mxu0 0
        %1109 = vmatmul.mubr.bf16.gmra.mxu0 %v959
        %v1110 = vpop.f32.mrf.mxu0
        %v1111 = vadd.f32 %v902, %v1110
        %v1112 = vpop.f32.mrf.mxu0
        %v1113 = vpop.f32.mrf.mxu0
        %v1114 = vadd.f32 %v902, %v1113
        %v1115 = vpop.f32.mrf.mxu0
        %1116 = vmatprep.mubr.bf16.mxu0 0
        %1117 = vmatmul.mubr.bf16.gmra.mxu0 %v962
        %v1118 = vpop.f32.mrf.mxu0
        %v1119 = vadd.f32 %v902, %v1118
        %v1120 = vpop.f32.mrf.mxu0
        %v1121 = vpop.f32.mrf.mxu0
        %v1122 = vadd.f32 %v902, %v1121
        %v1123 = vpop.f32.mrf.mxu0
        %1124 = vdwg.mxu0
        %v1125 = vpack.c.bf16 %v1002, %v999
        %v1126 = vpack.c.bf16 %v1010, %v1007
        %v1127 = vpack.c.bf16 %v1018, %v1015
        %v1128 = vpack.c.bf16 %v1026, %v1023
        %v1129 = vpack.c.bf16 %v1034, %v1031
        %v1130 = vpack.c.bf16 %v1042, %v1039
        %v1131 = vpack.c.bf16 %v1050, %v1047
        %v1132 = vpack.c.bf16 %v1058, %v1055
        %v1133 = vpack.c.bf16 %v1066, %v1063
        %v1134 = vpack.c.bf16 %v1074, %v1071
        %v1135 = vpack.c.bf16 %v1082, %v1079
        %v1136 = vpack.c.bf16 %v1090, %v1087
        %v1137 = vpack.c.bf16 %v1098, %v1095
        %v1138 = vpack.c.bf16 %v1106, %v1103
        %v1139 = vpack.c.bf16 %v1114, %v1111
        %v1140 = vpack.c.bf16 %v1122, %v1119
        %1157 = vrot.lane.b32.xlu0 %v1125, 120
        %v1158 = vpop.permute.xlu0 %1157
        %1159 = vrot.lane.b32.xlu0 %v1126, 120
        %v1160 = vpop.permute.xlu0 %1159
        %1161 = vrot.lane.b32.xlu0 %v1127, 120
        %v1162 = vpop.permute.xlu0 %1161
        %1163 = vrot.lane.b32.xlu0 %v1128, 120
        %v1164 = vpop.permute.xlu0 %1163
        %1165 = vrot.lane.b32.xlu0 %v1129, 120
        %v1166 = vpop.permute.xlu0 %1165
        %1167 = vrot.lane.b32.xlu0 %v1130, 120
        %v1168 = vpop.permute.xlu0 %1167
        %1169 = vrot.lane.b32.xlu0 %v1131, 120
        %v1170 = vpop.permute.xlu0 %1169
        %1171 = vrot.lane.b32.xlu0 %v1132, 120
        %v1172 = vpop.permute.xlu0 %1171
        %1173 = vrot.lane.b32.xlu0 %v1133, 120
        %v1174 = vpop.permute.xlu0 %1173
        %1175 = vrot.lane.b32.xlu0 %v1134, 120
        %v1176 = vpop.permute.xlu0 %1175
        %1177 = vrot.lane.b32.xlu0 %v1135, 120
        %v1178 = vpop.permute.xlu0 %1177
        %1179 = vrot.lane.b32.xlu0 %v1136, 120
        %v1180 = vpop.permute.xlu0 %1179
        %1181 = vrot.lane.b32.xlu0 %v1137, 120
        %v1182 = vpop.permute.xlu0 %1181
        %1183 = vrot.lane.b32.xlu0 %v1138, 120
        %v1184 = vpop.permute.xlu0 %1183
        %1185 = vrot.lane.b32.xlu0 %v1139, 120
        %v1186 = vpop.permute.xlu0 %1185
        %1187 = vrot.lane.b32.xlu0 %v1140, 120
        %v1188 = vpop.permute.xlu0 %1187
        %1189 = vrot.lane.b32.xlu0 %v1125, 112
        %v1190 = vpop.permute.xlu0 %1189
        %1191 = vrot.lane.b32.xlu0 %v1126, 112
        %v1192 = vpop.permute.xlu0 %1191
        %1193 = vrot.lane.b32.xlu0 %v1127, 112
        %v1194 = vpop.permute.xlu0 %1193
        %1195 = vrot.lane.b32.xlu0 %v1128, 112
        %v1196 = vpop.permute.xlu0 %1195
        %1197 = vrot.lane.b32.xlu0 %v1129, 112
        %v1198 = vpop.permute.xlu0 %1197
        %1199 = vrot.lane.b32.xlu0 %v1130, 112
        %v1200 = vpop.permute.xlu0 %1199
        %1201 = vrot.lane.b32.xlu0 %v1131, 112
        %v1202 = vpop.permute.xlu0 %1201
        %1203 = vrot.lane.b32.xlu0 %v1132, 112
        %v1204 = vpop.permute.xlu0 %1203
        %1205 = vrot.lane.b32.xlu0 %v1133, 112
        %v1206 = vpop.permute.xlu0 %1205
        %1207 = vrot.lane.b32.xlu0 %v1134, 112
        %v1208 = vpop.permute.xlu0 %1207
        %1209 = vrot.lane.b32.xlu0 %v1135, 112
        %v1210 = vpop.permute.xlu0 %1209
        %1211 = vrot.lane.b32.xlu0 %v1136, 112
        %v1212 = vpop.permute.xlu0 %1211
        %1213 = vrot.lane.b32.xlu0 %v1137, 112
        %v1214 = vpop.permute.xlu0 %1213
        %1215 = vrot.lane.b32.xlu0 %v1138, 112
        %v1216 = vpop.permute.xlu0 %1215
        %1217 = vrot.lane.b32.xlu0 %v1139, 112
        %v1218 = vpop.permute.xlu0 %1217
        %1219 = vrot.lane.b32.xlu0 %v1140, 112
        %v1220 = vpop.permute.xlu0 %1219
        %1221 = vrot.lane.b32.xlu0 %v1125, 104
        %v1222 = vpop.permute.xlu0 %1221
        %1223 = vrot.lane.b32.xlu0 %v1126, 104
        %v1224 = vpop.permute.xlu0 %1223
        %1225 = vrot.lane.b32.xlu0 %v1127, 104
        %v1226 = vpop.permute.xlu0 %1225
        %1227 = vrot.lane.b32.xlu0 %v1128, 104
        %v1228 = vpop.permute.xlu0 %1227
        %1229 = vrot.lane.b32.xlu0 %v1129, 104
        %v1230 = vpop.permute.xlu0 %1229
        %1231 = vrot.lane.b32.xlu0 %v1130, 104
        %v1232 = vpop.permute.xlu0 %1231
        %1233 = vrot.lane.b32.xlu0 %v1131, 104
        %v1234 = vpop.permute.xlu0 %1233
        %1235 = vrot.lane.b32.xlu0 %v1132, 104
        %v1236 = vpop.permute.xlu0 %1235
        %1237 = vrot.lane.b32.xlu0 %v1133, 104
        %v1238 = vpop.permute.xlu0 %1237
        %1239 = vrot.lane.b32.xlu0 %v1134, 104
        %v1240 = vpop.permute.xlu0 %1239
        %1241 = vrot.lane.b32.xlu0 %v1135, 104
        %v1242 = vpop.permute.xlu0 %1241
        %1243 = vrot.lane.b32.xlu0 %v1136, 104
        %v1244 = vpop.permute.xlu0 %1243
        %1245 = vrot.lane.b32.xlu0 %v1137, 104
        %v1246 = vpop.permute.xlu0 %1245
        %1247 = vrot.lane.b32.xlu0 %v1138, 104
        %v1248 = vpop.permute.xlu0 %1247
        %1249 = vrot.lane.b32.xlu0 %v1139, 104
        %v1250 = vpop.permute.xlu0 %1249
        %1251 = vrot.lane.b32.xlu0 %v1140, 104
        %v1252 = vpop.permute.xlu0 %1251
        %1253 = vrot.lane.b32.xlu0 %v1125, 96
        %v1254 = vpop.permute.xlu0 %1253
        %1255 = vrot.lane.b32.xlu0 %v1126, 96
        %v1256 = vpop.permute.xlu0 %1255
        %1257 = vrot.lane.b32.xlu0 %v1127, 96
        %v1258 = vpop.permute.xlu0 %1257
        %1259 = vrot.lane.b32.xlu0 %v1128, 96
        %v1260 = vpop.permute.xlu0 %1259
        %vm1261 = vcmask 64512
        %v1263 = vsel %vm1261, %v1125, 0
        %v1266 = vsel %vm1261, %v1126, 0
        %v1269 = vsel %vm1261, %v1127, 0
        %v1272 = vsel %vm1261, %v1128, 0
        %v1275 = vsel %vm1261, %v1254, 0
        %v1278 = vsel %vm1261, %v1256, 0
        %v1281 = vsel %vm1261, %v1258, 0
        %v1284 = vsel %vm1261, %v1260, 0
        %1286 = vmatprep.subr.bf16.mxu0 0
        %1287 = vmatpush1.bf16.xpose.msra.mxu0 0
        %1288 = vmatprep.subr.bf16.mxu0 0
        %1289 = vmatpush1.bf16.xpose.msra.mxu0 0
        %1290 = vmatprep.subr.bf16.mxu0 0
        %1291 = vmatpush1.bf16.xpose.msra.mxu0 0
        %1292 = vmatprep.subr.bf16.mxu0 0
        %1293 = vmatpush1.bf16.xpose.msra.mxu0 0
        %1294 = vmatprep.subr.bf16.mxu0 0
        %1295 = vmatpush1.bf16.xpose.msra.mxu0 %v1284
        %1296 = vmatprep.subr.bf16.mxu0 0
        %1297 = vmatpush1.bf16.xpose.msra.mxu0 %v1281
        %1298 = vmatprep.subr.bf16.mxu0 0
        %1299 = vmatpush1.bf16.xpose.msra.mxu0 %v1278
        %1300 = vmatprep.subr.bf16.mxu0 0
        %1301 = vmatpush1.bf16.xpose.msra.mxu0 %v1275
        %1302 = vmatprep.subr.bf16.mxu0 0
        %1303 = vmatpush2.bf16.xpose.msra.mxu0 0
        %1304 = vmatprep.subr.bf16.mxu0 0
        %1305 = vmatpush2.bf16.xpose.msra.mxu0 0
        %1306 = vmatprep.subr.bf16.mxu0 0
        %1307 = vmatpush2.bf16.xpose.msra.mxu0 0
        %1308 = vmatprep.subr.bf16.mxu0 0
        %1309 = vmatpush2.bf16.xpose.msra.mxu0 0
        %1310 = vmatprep.subr.bf16.mxu0 0
        %1311 = vmatpush2.bf16.xpose.msra.mxu0 0
        %1312 = vmatprep.subr.bf16.mxu0 0
        %1313 = vmatpush2.bf16.xpose.msra.mxu0 0
        %1314 = vmatprep.subr.bf16.mxu0 0
        %1315 = vmatpush2.bf16.xpose.msra.mxu0 0
        %1316 = vmatprep.subr.bf16.mxu0 0
        %1317 = vmatpush2.bf16.xpose.msra.mxu0 0
        %1318 = vmatprep.mubr.bf16.mxu0 0
        %1319 = vmatmul.mubr.bf16.gmra.mxu0 %v1263
        %v1320 = vpop.f32.mrf.mxu0
        %v1321 = vadd.f32 0.0, %v1320
        %v1322 = vpop.f32.mrf.mxu0
        %v1323 = vpop.f32.mrf.mxu0
        %v1324 = vadd.f32 0.0, %v1323
        %v1325 = vpop.f32.mrf.mxu0
        %1326 = vmatprep.mubr.bf16.mxu0 0
        %1327 = vmatmul.mubr.bf16.gmra.mxu0 %v1266
        %v1328 = vpop.f32.mrf.mxu0
        %v1329 = vadd.f32 0.0, %v1328
        %v1330 = vpop.f32.mrf.mxu0
        %v1331 = vpop.f32.mrf.mxu0
        %v1332 = vadd.f32 0.0, %v1331
        %v1333 = vpop.f32.mrf.mxu0
        %1334 = vmatprep.mubr.bf16.mxu0 0
        %1335 = vmatmul.mubr.bf16.gmra.mxu0 %v1269
        %v1336 = vpop.f32.mrf.mxu0
        %v1337 = vadd.f32 0.0, %v1336
        %v1338 = vpop.f32.mrf.mxu0
        %v1339 = vpop.f32.mrf.mxu0
        %v1340 = vadd.f32 0.0, %v1339
        %v1341 = vpop.f32.mrf.mxu0
        %1342 = vmatprep.mubr.bf16.mxu0 0
        %1343 = vmatmul.mubr.bf16.gmra.mxu0 %v1272
        %v1344 = vpop.f32.mrf.mxu0
        %v1345 = vadd.f32 0.0, %v1344
        %v1346 = vpop.f32.mrf.mxu0
        %v1347 = vpop.f32.mrf.mxu0
        %v1348 = vadd.f32 0.0, %v1347
        %v1349 = vpop.f32.mrf.mxu0
        %1350 = vdwg.mxu0
        %1351 = vrot.lane.b32.xlu0 %v1129, 96
        %v1352 = vpop.permute.xlu0 %1351
        %1353 = vrot.lane.b32.xlu0 %v1130, 96
        %v1354 = vpop.permute.xlu0 %1353
        %1355 = vrot.lane.b32.xlu0 %v1131, 96
        %v1356 = vpop.permute.xlu0 %1355
        %1357 = vrot.lane.b32.xlu0 %v1132, 96
        %v1358 = vpop.permute.xlu0 %1357
        %v1360 = vsel %vm1261, %v1129, 0
        %v1363 = vsel %vm1261, %v1130, 0
        %v1366 = vsel %vm1261, %v1131, 0
        %v1369 = vsel %vm1261, %v1132, 0
        %v1372 = vsel %vm1261, %v1352, 0
        %v1375 = vsel %vm1261, %v1354, 0
        %v1378 = vsel %vm1261, %v1356, 0
        %v1381 = vsel %vm1261, %v1358, 0
        %1383 = vmatprep.subr.bf16.mxu0 0
        %1384 = vmatpush1.bf16.xpose.msra.mxu0 0
        %1385 = vmatprep.subr.bf16.mxu0 0
        %1386 = vmatpush1.bf16.xpose.msra.mxu0 0
        %1387 = vmatprep.subr.bf16.mxu0 0
        %1388 = vmatpush1.bf16.xpose.msra.mxu0 0
        %1389 = vmatprep.subr.bf16.mxu0 0
        %1390 = vmatpush1.bf16.xpose.msra.mxu0 0
        %1391 = vmatprep.subr.bf16.mxu0 0
        %1392 = vmatpush1.bf16.xpose.msra.mxu0 %v1381
        %1393 = vmatprep.subr.bf16.mxu0 0
        %1394 = vmatpush1.bf16.xpose.msra.mxu0 %v1378
        %1395 = vmatprep.subr.bf16.mxu0 0
        %1396 = vmatpush1.bf16.xpose.msra.mxu0 %v1375
        %1397 = vmatprep.subr.bf16.mxu0 0
        %1398 = vmatpush1.bf16.xpose.msra.mxu0 %v1372
        %1399 = vmatprep.subr.bf16.mxu0 0
        %1400 = vmatpush2.bf16.xpose.msra.mxu0 0
        %1401 = vmatprep.subr.bf16.mxu0 0
        %1402 = vmatpush2.bf16.xpose.msra.mxu0 0
        %1403 = vmatprep.subr.bf16.mxu0 0
        %1404 = vmatpush2.bf16.xpose.msra.mxu0 0
        %1405 = vmatprep.subr.bf16.mxu0 0
        %1406 = vmatpush2.bf16.xpose.msra.mxu0 0
        %1407 = vmatprep.subr.bf16.mxu0 0
        %1408 = vmatpush2.bf16.xpose.msra.mxu0 0
        %1409 = vmatprep.subr.bf16.mxu0 0
        %1410 = vmatpush2.bf16.xpose.msra.mxu0 0
        %1411 = vmatprep.subr.bf16.mxu0 0
        %1412 = vmatpush2.bf16.xpose.msra.mxu0 0
        %1413 = vmatprep.subr.bf16.mxu0 0
        %1414 = vmatpush2.bf16.xpose.msra.mxu0 0
        %1415 = vmatprep.mubr.bf16.mxu0 0
        %1416 = vmatmul.mubr.bf16.gmra.mxu0 %v1360
        %v1417 = vpop.f32.mrf.mxu0
        %v1418 = vadd.f32 0.0, %v1417
        %v1419 = vpop.f32.mrf.mxu0
        %v1420 = vpop.f32.mrf.mxu0
        %v1421 = vadd.f32 0.0, %v1420
        %v1422 = vpop.f32.mrf.mxu0
        %1423 = vmatprep.mubr.bf16.mxu0 0
        %1424 = vmatmul.mubr.bf16.gmra.mxu0 %v1363
        %v1425 = vpop.f32.mrf.mxu0
        %v1426 = vadd.f32 0.0, %v1425
        %v1427 = vpop.f32.mrf.mxu0
        %v1428 = vpop.f32.mrf.mxu0
        %v1429 = vadd.f32 0.0, %v1428
        %v1430 = vpop.f32.mrf.mxu0
        %1431 = vmatprep.mubr.bf16.mxu0 0
        %1432 = vmatmul.mubr.bf16.gmra.mxu0 %v1366
        %v1433 = vpop.f32.mrf.mxu0
        %v1434 = vadd.f32 0.0, %v1433
        %v1435 = vpop.f32.mrf.mxu0
        %v1436 = vpop.f32.mrf.mxu0
        %v1437 = vadd.f32 0.0, %v1436
        %v1438 = vpop.f32.mrf.mxu0
        %1439 = vmatprep.mubr.bf16.mxu0 0
        %1440 = vmatmul.mubr.bf16.gmra.mxu0 %v1369
        %v1441 = vpop.f32.mrf.mxu0
        %v1442 = vadd.f32 0.0, %v1441
        %v1443 = vpop.f32.mrf.mxu0
        %v1444 = vpop.f32.mrf.mxu0
        %v1445 = vadd.f32 0.0, %v1444
        %v1446 = vpop.f32.mrf.mxu0
        %1447 = vdwg.mxu0
        %1448 = vrot.lane.b32.xlu0 %v1133, 96
        %v1449 = vpop.permute.xlu0 %1448
        %1450 = vrot.lane.b32.xlu0 %v1134, 96
        %v1451 = vpop.permute.xlu0 %1450
        %1452 = vrot.lane.b32.xlu0 %v1135, 96
        %v1453 = vpop.permute.xlu0 %1452
        %1454 = vrot.lane.b32.xlu0 %v1136, 96
        %v1455 = vpop.permute.xlu0 %1454
        %v1457 = vsel %vm1261, %v1133, 0
        %v1460 = vsel %vm1261, %v1134, 0
        %v1463 = vsel %vm1261, %v1135, 0
        %v1466 = vsel %vm1261, %v1136, 0
        %v1469 = vsel %vm1261, %v1449, 0
        %v1472 = vsel %vm1261, %v1451, 0
        %v1475 = vsel %vm1261, %v1453, 0
        %v1478 = vsel %vm1261, %v1455, 0
        %1480 = vmatprep.subr.bf16.mxu0 0
        %1481 = vmatpush1.bf16.xpose.msra.mxu0 0
        %1482 = vmatprep.subr.bf16.mxu0 0
        %1483 = vmatpush1.bf16.xpose.msra.mxu0 0
        %1484 = vmatprep.subr.bf16.mxu0 0
        %1485 = vmatpush1.bf16.xpose.msra.mxu0 0
        %1486 = vmatprep.subr.bf16.mxu0 0
        %1487 = vmatpush1.bf16.xpose.msra.mxu0 0
        %1488 = vmatprep.subr.bf16.mxu0 0
        %1489 = vmatpush1.bf16.xpose.msra.mxu0 %v1478
        %1490 = vmatprep.subr.bf16.mxu0 0
        %1491 = vmatpush1.bf16.xpose.msra.mxu0 %v1475
        %1492 = vmatprep.subr.bf16.mxu0 0
        %1493 = vmatpush1.bf16.xpose.msra.mxu0 %v1472
        %1494 = vmatprep.subr.bf16.mxu0 0
        %1495 = vmatpush1.bf16.xpose.msra.mxu0 %v1469
        %1496 = vmatprep.subr.bf16.mxu0 0
        %1497 = vmatpush2.bf16.xpose.msra.mxu0 0
        %1498 = vmatprep.subr.bf16.mxu0 0
        %1499 = vmatpush2.bf16.xpose.msra.mxu0 0
        %1500 = vmatprep.subr.bf16.mxu0 0
        %1501 = vmatpush2.bf16.xpose.msra.mxu0 0
        %1502 = vmatprep.subr.bf16.mxu0 0
        %1503 = vmatpush2.bf16.xpose.msra.mxu0 0
        %1504 = vmatprep.subr.bf16.mxu0 0
        %1505 = vmatpush2.bf16.xpose.msra.mxu0 0
        %1506 = vmatprep.subr.bf16.mxu0 0
        %1507 = vmatpush2.bf16.xpose.msra.mxu0 0
        %1508 = vmatprep.subr.bf16.mxu0 0
        %1509 = vmatpush2.bf16.xpose.msra.mxu0 0
        %1510 = vmatprep.subr.bf16.mxu0 0
        %1511 = vmatpush2.bf16.xpose.msra.mxu0 0
        %1512 = vmatprep.mubr.bf16.mxu0 0
        %1513 = vmatmul.mubr.bf16.gmra.mxu0 %v1457
        %v1514 = vpop.f32.mrf.mxu0
        %v1515 = vadd.f32 0.0, %v1514
        %v1516 = vpop.f32.mrf.mxu0
        %v1517 = vpop.f32.mrf.mxu0
        %v1518 = vadd.f32 0.0, %v1517
        %v1519 = vpop.f32.mrf.mxu0
        %1520 = vmatprep.mubr.bf16.mxu0 0
        %1521 = vmatmul.mubr.bf16.gmra.mxu0 %v1460
        %v1522 = vpop.f32.mrf.mxu0
        %v1523 = vadd.f32 0.0, %v1522
        %v1524 = vpop.f32.mrf.mxu0
        %v1525 = vpop.f32.mrf.mxu0
        %v1526 = vadd.f32 0.0, %v1525
        %v1527 = vpop.f32.mrf.mxu0
        %1528 = vmatprep.mubr.bf16.mxu0 0
        %1529 = vmatmul.mubr.bf16.gmra.mxu0 %v1463
        %v1530 = vpop.f32.mrf.mxu0
        %v1531 = vadd.f32 0.0, %v1530
        %v1532 = vpop.f32.mrf.mxu0
        %v1533 = vpop.f32.mrf.mxu0
        %v1534 = vadd.f32 0.0, %v1533
        %v1535 = vpop.f32.mrf.mxu0
        %1536 = vmatprep.mubr.bf16.mxu0 0
        %1537 = vmatmul.mubr.bf16.gmra.mxu0 %v1466
        %v1538 = vpop.f32.mrf.mxu0
        %v1539 = vadd.f32 0.0, %v1538
        %v1540 = vpop.f32.mrf.mxu0
        %v1541 = vpop.f32.mrf.mxu0
        %v1542 = vadd.f32 0.0, %v1541
        %v1543 = vpop.f32.mrf.mxu0
        %1544 = vdwg.mxu0
        %1545 = vrot.lane.b32.xlu0 %v1137, 96
        %v1546 = vpop.permute.xlu0 %1545
        %1547 = vrot.lane.b32.xlu0 %v1138, 96
        %v1548 = vpop.permute.xlu0 %1547
        %1549 = vrot.lane.b32.xlu0 %v1139, 96
        %v1550 = vpop.permute.xlu0 %1549
        %1551 = vrot.lane.b32.xlu0 %v1140, 96
        %v1552 = vpop.permute.xlu0 %1551
        %v1554 = vsel %vm1261, %v1137, 0
        %v1557 = vsel %vm1261, %v1138, 0
        %v1560 = vsel %vm1261, %v1139, 0
        %v1563 = vsel %vm1261, %v1140, 0
        %v1566 = vsel %vm1261, %v1546, 0
        %v1569 = vsel %vm1261, %v1548, 0
        %v1572 = vsel %vm1261, %v1550, 0
        %v1575 = vsel %vm1261, %v1552, 0
        %1577 = vmatprep.subr.bf16.mxu0 0
        %1578 = vmatpush1.bf16.xpose.msra.mxu0 0
        %1579 = vmatprep.subr.bf16.mxu0 0
        %1580 = vmatpush1.bf16.xpose.msra.mxu0 0
        %1581 = vmatprep.subr.bf16.mxu0 0
        %1582 = vmatpush1.bf16.xpose.msra.mxu0 0
        %1583 = vmatprep.subr.bf16.mxu0 0
        %1584 = vmatpush1.bf16.xpose.msra.mxu0 0
        %1585 = vmatprep.subr.bf16.mxu0 0
        %1586 = vmatpush1.bf16.xpose.msra.mxu0 %v1575
        %1587 = vmatprep.subr.bf16.mxu0 0
        %1588 = vmatpush1.bf16.xpose.msra.mxu0 %v1572
        %1589 = vmatprep.subr.bf16.mxu0 0
        %1590 = vmatpush1.bf16.xpose.msra.mxu0 %v1569
        %1591 = vmatprep.subr.bf16.mxu0 0
        %1592 = vmatpush1.bf16.xpose.msra.mxu0 %v1566
        %1593 = vmatprep.subr.bf16.mxu0 0
        %1594 = vmatpush2.bf16.xpose.msra.mxu0 0
        %1595 = vmatprep.subr.bf16.mxu0 0
        %1596 = vmatpush2.bf16.xpose.msra.mxu0 0
        %1597 = vmatprep.subr.bf16.mxu0 0
        %1598 = vmatpush2.bf16.xpose.msra.mxu0 0
        %1599 = vmatprep.subr.bf16.mxu0 0
        %1600 = vmatpush2.bf16.xpose.msra.mxu0 0
        %1601 = vmatprep.subr.bf16.mxu0 0
        %1602 = vmatpush2.bf16.xpose.msra.mxu0 0
        %1603 = vmatprep.subr.bf16.mxu0 0
        %1604 = vmatpush2.bf16.xpose.msra.mxu0 0
        %1605 = vmatprep.subr.bf16.mxu0 0
        %1606 = vmatpush2.bf16.xpose.msra.mxu0 0
        %1607 = vmatprep.subr.bf16.mxu0 0
        %1608 = vmatpush2.bf16.xpose.msra.mxu0 0
        %1609 = vmatprep.mubr.bf16.mxu0 0
        %1610 = vmatmul.mubr.bf16.gmra.mxu0 %v1554
        %v1611 = vpop.f32.mrf.mxu0
        %v1612 = vadd.f32 0.0, %v1611
        %v1613 = vpop.f32.mrf.mxu0
        %v1614 = vpop.f32.mrf.mxu0
        %v1615 = vadd.f32 0.0, %v1614
        %v1616 = vpop.f32.mrf.mxu0
        %1617 = vmatprep.mubr.bf16.mxu0 0
        %1618 = vmatmul.mubr.bf16.gmra.mxu0 %v1557
        %v1619 = vpop.f32.mrf.mxu0
        %v1620 = vadd.f32 0.0, %v1619
        %v1621 = vpop.f32.mrf.mxu0
        %v1622 = vpop.f32.mrf.mxu0
        %v1623 = vadd.f32 0.0, %v1622
        %v1624 = vpop.f32.mrf.mxu0
        %1625 = vmatprep.mubr.bf16.mxu0 0
        %1626 = vmatmul.mubr.bf16.gmra.mxu0 %v1560
        %v1627 = vpop.f32.mrf.mxu0
        %v1628 = vadd.f32 0.0, %v1627
        %v1629 = vpop.f32.mrf.mxu0
        %v1630 = vpop.f32.mrf.mxu0
        %v1631 = vadd.f32 0.0, %v1630
        %v1632 = vpop.f32.mrf.mxu0
        %1633 = vmatprep.mubr.bf16.mxu0 0
        %1634 = vmatmul.mubr.bf16.gmra.mxu0 %v1563
        %v1635 = vpop.f32.mrf.mxu0
        %v1636 = vadd.f32 0.0, %v1635
        %v1637 = vpop.f32.mrf.mxu0
        %v1638 = vpop.f32.mrf.mxu0
        %v1639 = vadd.f32 0.0, %v1638
        %v1640 = vpop.f32.mrf.mxu0
        %1641 = vdwg.mxu0
        %1642 = vrot.lane.b32.xlu0 %v1158, 96
        %v1643 = vpop.permute.xlu0 %1642
        %1644 = vrot.lane.b32.xlu0 %v1160, 96
        %v1645 = vpop.permute.xlu0 %1644
        %1646 = vrot.lane.b32.xlu0 %v1162, 96
        %v1647 = vpop.permute.xlu0 %1646
        %1648 = vrot.lane.b32.xlu0 %v1164, 96
        %v1649 = vpop.permute.xlu0 %1648
        %v1651 = vsel %vm1261, %v1158, 0
        %v1654 = vsel %vm1261, %v1160, 0
        %v1657 = vsel %vm1261, %v1162, 0
        %v1660 = vsel %vm1261, %v1164, 0
        %v1663 = vsel %vm1261, %v1643, 0
        %v1666 = vsel %vm1261, %v1645, 0
        %v1669 = vsel %vm1261, %v1647, 0
        %v1672 = vsel %vm1261, %v1649, 0
        %1674 = vmatprep.subr.bf16.mxu0 0
        %1675 = vmatpush1.bf16.xpose.msra.mxu0 0
        %1676 = vmatprep.subr.bf16.mxu0 0
        %1677 = vmatpush1.bf16.xpose.msra.mxu0 0
        %1678 = vmatprep.subr.bf16.mxu0 0
        %1679 = vmatpush1.bf16.xpose.msra.mxu0 0
        %1680 = vmatprep.subr.bf16.mxu0 0
        %1681 = vmatpush1.bf16.xpose.msra.mxu0 0
        %1682 = vmatprep.subr.bf16.mxu0 0
        %1683 = vmatpush1.bf16.xpose.msra.mxu0 %v1672
        %1684 = vmatprep.subr.bf16.mxu0 0
        %1685 = vmatpush1.bf16.xpose.msra.mxu0 %v1669
        %1686 = vmatprep.subr.bf16.mxu0 0
        %1687 = vmatpush1.bf16.xpose.msra.mxu0 %v1666
        %1688 = vmatprep.subr.bf16.mxu0 0
        %1689 = vmatpush1.bf16.xpose.msra.mxu0 %v1663
        %1690 = vmatprep.subr.bf16.mxu0 0
        %1691 = vmatpush2.bf16.xpose.msra.mxu0 0
        %1692 = vmatprep.subr.bf16.mxu0 0
        %1693 = vmatpush2.bf16.xpose.msra.mxu0 0
        %1694 = vmatprep.subr.bf16.mxu0 0
        %1695 = vmatpush2.bf16.xpose.msra.mxu0 0
        %1696 = vmatprep.subr.bf16.mxu0 0
        %1697 = vmatpush2.bf16.xpose.msra.mxu0 0
        %1698 = vmatprep.subr.bf16.mxu0 0
        %1699 = vmatpush2.bf16.xpose.msra.mxu0 0
        %1700 = vmatprep.subr.bf16.mxu0 0
        %1701 = vmatpush2.bf16.xpose.msra.mxu0 0
        %1702 = vmatprep.subr.bf16.mxu0 0
        %1703 = vmatpush2.bf16.xpose.msra.mxu0 0
        %1704 = vmatprep.subr.bf16.mxu0 0
        %1705 = vmatpush2.bf16.xpose.msra.mxu0 0
        %1706 = vmatprep.mubr.bf16.mxu0 0
        %1707 = vmatmul.mubr.bf16.gmra.mxu0 %v1651
        %v1708 = vpop.f32.mrf.mxu0
        %v1709 = vadd.f32 0.0, %v1708
        %v1710 = vpop.f32.mrf.mxu0
        %v1711 = vpop.f32.mrf.mxu0
        %v1712 = vadd.f32 0.0, %v1711
        %v1713 = vpop.f32.mrf.mxu0
        %1714 = vmatprep.mubr.bf16.mxu0 0
        %1715 = vmatmul.mubr.bf16.gmra.mxu0 %v1654
        %v1716 = vpop.f32.mrf.mxu0
        %v1717 = vadd.f32 0.0, %v1716
        %v1718 = vpop.f32.mrf.mxu0
        %v1719 = vpop.f32.mrf.mxu0
        %v1720 = vadd.f32 0.0, %v1719
        %v1721 = vpop.f32.mrf.mxu0
        %1722 = vmatprep.mubr.bf16.mxu0 0
        %1723 = vmatmul.mubr.bf16.gmra.mxu0 %v1657
        %v1724 = vpop.f32.mrf.mxu0
        %v1725 = vadd.f32 0.0, %v1724
        %v1726 = vpop.f32.mrf.mxu0
        %v1727 = vpop.f32.mrf.mxu0
        %v1728 = vadd.f32 0.0, %v1727
        %v1729 = vpop.f32.mrf.mxu0
        %1730 = vmatprep.mubr.bf16.mxu0 0
        %1731 = vmatmul.mubr.bf16.gmra.mxu0 %v1660
        %v1732 = vpop.f32.mrf.mxu0
        %v1733 = vadd.f32 0.0, %v1732
        %v1734 = vpop.f32.mrf.mxu0
        %v1735 = vpop.f32.mrf.mxu0
        %v1736 = vadd.f32 0.0, %v1735
        %v1737 = vpop.f32.mrf.mxu0
        %1738 = vdwg.mxu0
        %1739 = vrot.lane.b32.xlu0 %v1166, 96
        %v1740 = vpop.permute.xlu0 %1739
        %1741 = vrot.lane.b32.xlu0 %v1168, 96
        %v1742 = vpop.permute.xlu0 %1741
        %1743 = vrot.lane.b32.xlu0 %v1170, 96
        %v1744 = vpop.permute.xlu0 %1743
        %1745 = vrot.lane.b32.xlu0 %v1172, 96
        %v1746 = vpop.permute.xlu0 %1745
        %v1748 = vsel %vm1261, %v1166, 0
        %v1751 = vsel %vm1261, %v1168, 0
        %v1754 = vsel %vm1261, %v1170, 0
        %v1757 = vsel %vm1261, %v1172, 0
        %v1760 = vsel %vm1261, %v1740, 0
        %v1763 = vsel %vm1261, %v1742, 0
        %v1766 = vsel %vm1261, %v1744, 0
        %v1769 = vsel %vm1261, %v1746, 0
        %1771 = vmatprep.subr.bf16.mxu0 0
        %1772 = vmatpush1.bf16.xpose.msra.mxu0 0
        %1773 = vmatprep.subr.bf16.mxu0 0
        %1774 = vmatpush1.bf16.xpose.msra.mxu0 0
        %1775 = vmatprep.subr.bf16.mxu0 0
        %1776 = vmatpush1.bf16.xpose.msra.mxu0 0
        %1777 = vmatprep.subr.bf16.mxu0 0
        %1778 = vmatpush1.bf16.xpose.msra.mxu0 0
        %1779 = vmatprep.subr.bf16.mxu0 0
        %1780 = vmatpush1.bf16.xpose.msra.mxu0 %v1769
        %1781 = vmatprep.subr.bf16.mxu0 0
        %1782 = vmatpush1.bf16.xpose.msra.mxu0 %v1766
        %1783 = vmatprep.subr.bf16.mxu0 0
        %1784 = vmatpush1.bf16.xpose.msra.mxu0 %v1763
        %1785 = vmatprep.subr.bf16.mxu0 0
        %1786 = vmatpush1.bf16.xpose.msra.mxu0 %v1760
        %1787 = vmatprep.subr.bf16.mxu0 0
        %1788 = vmatpush2.bf16.xpose.msra.mxu0 0
        %1789 = vmatprep.subr.bf16.mxu0 0
        %1790 = vmatpush2.bf16.xpose.msra.mxu0 0
        %1791 = vmatprep.subr.bf16.mxu0 0
        %1792 = vmatpush2.bf16.xpose.msra.mxu0 0
        %1793 = vmatprep.subr.bf16.mxu0 0
        %1794 = vmatpush2.bf16.xpose.msra.mxu0 0
        %1795 = vmatprep.subr.bf16.mxu0 0
        %1796 = vmatpush2.bf16.xpose.msra.mxu0 0
        %1797 = vmatprep.subr.bf16.mxu0 0
        %1798 = vmatpush2.bf16.xpose.msra.mxu0 0
        %1799 = vmatprep.subr.bf16.mxu0 0
        %1800 = vmatpush2.bf16.xpose.msra.mxu0 0
        %1801 = vmatprep.subr.bf16.mxu0 0
        %1802 = vmatpush2.bf16.xpose.msra.mxu0 0
        %1803 = vmatprep.mubr.bf16.mxu0 0
        %1804 = vmatmul.mubr.bf16.gmra.mxu0 %v1748
        %v1805 = vpop.f32.mrf.mxu0
        %v1806 = vadd.f32 0.0, %v1805
        %v1807 = vpop.f32.mrf.mxu0
        %v1808 = vpop.f32.mrf.mxu0
        %v1809 = vadd.f32 0.0, %v1808
        %v1810 = vpop.f32.mrf.mxu0
        %1811 = vmatprep.mubr.bf16.mxu0 0
        %1812 = vmatmul.mubr.bf16.gmra.mxu0 %v1751
        %v1813 = vpop.f32.mrf.mxu0
        %v1814 = vadd.f32 0.0, %v1813
        %v1815 = vpop.f32.mrf.mxu0
        %v1816 = vpop.f32.mrf.mxu0
        %v1817 = vadd.f32 0.0, %v1816
        %v1818 = vpop.f32.mrf.mxu0
        %1819 = vmatprep.mubr.bf16.mxu0 0
        %1820 = vmatmul.mubr.bf16.gmra.mxu0 %v1754
        %v1821 = vpop.f32.mrf.mxu0
        %v1822 = vadd.f32 0.0, %v1821
        %v1823 = vpop.f32.mrf.mxu0
        %v1824 = vpop.f32.mrf.mxu0
        %v1825 = vadd.f32 0.0, %v1824
        %v1826 = vpop.f32.mrf.mxu0
        %1827 = vmatprep.mubr.bf16.mxu0 0
        %1828 = vmatmul.mubr.bf16.gmra.mxu0 %v1757
        %v1829 = vpop.f32.mrf.mxu0
        %v1830 = vadd.f32 0.0, %v1829
        %v1831 = vpop.f32.mrf.mxu0
        %v1832 = vpop.f32.mrf.mxu0
        %v1833 = vadd.f32 0.0, %v1832
        %v1834 = vpop.f32.mrf.mxu0
        %1835 = vdwg.mxu0
        %1836 = vrot.lane.b32.xlu0 %v1174, 96
        %v1837 = vpop.permute.xlu0 %1836
        %1838 = vrot.lane.b32.xlu0 %v1176, 96
        %v1839 = vpop.permute.xlu0 %1838
        %1840 = vrot.lane.b32.xlu0 %v1178, 96
        %v1841 = vpop.permute.xlu0 %1840
        %1842 = vrot.lane.b32.xlu0 %v1180, 96
        %v1843 = vpop.permute.xlu0 %1842
        %v1845 = vsel %vm1261, %v1174, 0
        %v1848 = vsel %vm1261, %v1176, 0
        %v1851 = vsel %vm1261, %v1178, 0
        %v1854 = vsel %vm1261, %v1180, 0
        %v1857 = vsel %vm1261, %v1837, 0
        %v1860 = vsel %vm1261, %v1839, 0
        %v1863 = vsel %vm1261, %v1841, 0
        %v1866 = vsel %vm1261, %v1843, 0
        %1868 = vmatprep.subr.bf16.mxu0 0
        %1869 = vmatpush1.bf16.xpose.msra.mxu0 0
        %1870 = vmatprep.subr.bf16.mxu0 0
        %1871 = vmatpush1.bf16.xpose.msra.mxu0 0
        %1872 = vmatprep.subr.bf16.mxu0 0
        %1873 = vmatpush1.bf16.xpose.msra.mxu0 0
        %1874 = vmatprep.subr.bf16.mxu0 0
        %1875 = vmatpush1.bf16.xpose.msra.mxu0 0
        %1876 = vmatprep.subr.bf16.mxu0 0
        %1877 = vmatpush1.bf16.xpose.msra.mxu0 %v1866
        %1878 = vmatprep.subr.bf16.mxu0 0
        %1879 = vmatpush1.bf16.xpose.msra.mxu0 %v1863
        %1880 = vmatprep.subr.bf16.mxu0 0
        %1881 = vmatpush1.bf16.xpose.msra.mxu0 %v1860
        %1882 = vmatprep.subr.bf16.mxu0 0
        %1883 = vmatpush1.bf16.xpose.msra.mxu0 %v1857
        %1884 = vmatprep.subr.bf16.mxu0 0
        %1885 = vmatpush2.bf16.xpose.msra.mxu0 0
        %1886 = vmatprep.subr.bf16.mxu0 0
        %1887 = vmatpush2.bf16.xpose.msra.mxu0 0
        %1888 = vmatprep.subr.bf16.mxu0 0
        %1889 = vmatpush2.bf16.xpose.msra.mxu0 0
        %1890 = vmatprep.subr.bf16.mxu0 0
        %1891 = vmatpush2.bf16.xpose.msra.mxu0 0
        %1892 = vmatprep.subr.bf16.mxu0 0
        %1893 = vmatpush2.bf16.xpose.msra.mxu0 0
        %1894 = vmatprep.subr.bf16.mxu0 0
        %1895 = vmatpush2.bf16.xpose.msra.mxu0 0
        %1896 = vmatprep.subr.bf16.mxu0 0
        %1897 = vmatpush2.bf16.xpose.msra.mxu0 0
        %1898 = vmatprep.subr.bf16.mxu0 0
        %1899 = vmatpush2.bf16.xpose.msra.mxu0 0
        %1900 = vmatprep.mubr.bf16.mxu0 0
        %1901 = vmatmul.mubr.bf16.gmra.mxu0 %v1845
        %v1902 = vpop.f32.mrf.mxu0
        %v1903 = vadd.f32 0.0, %v1902
        %v1904 = vpop.f32.mrf.mxu0
        %v1905 = vpop.f32.mrf.mxu0
        %v1906 = vadd.f32 0.0, %v1905
        %v1907 = vpop.f32.mrf.mxu0
        %1908 = vmatprep.mubr.bf16.mxu0 0
        %1909 = vmatmul.mubr.bf16.gmra.mxu0 %v1848
        %v1910 = vpop.f32.mrf.mxu0
        %v1911 = vadd.f32 0.0, %v1910
        %v1912 = vpop.f32.mrf.mxu0
        %v1913 = vpop.f32.mrf.mxu0
        %v1914 = vadd.f32 0.0, %v1913
        %v1915 = vpop.f32.mrf.mxu0
        %1916 = vmatprep.mubr.bf16.mxu0 0
        %1917 = vmatmul.mubr.bf16.gmra.mxu0 %v1851
        %v1918 = vpop.f32.mrf.mxu0
        %v1919 = vadd.f32 0.0, %v1918
        %v1920 = vpop.f32.mrf.mxu0
        %v1921 = vpop.f32.mrf.mxu0
        %v1922 = vadd.f32 0.0, %v1921
        %v1923 = vpop.f32.mrf.mxu0
        %1924 = vmatprep.mubr.bf16.mxu0 0
        %1925 = vmatmul.mubr.bf16.gmra.mxu0 %v1854
        %v1926 = vpop.f32.mrf.mxu0
        %v1927 = vadd.f32 0.0, %v1926
        %v1928 = vpop.f32.mrf.mxu0
        %v1929 = vpop.f32.mrf.mxu0
        %v1930 = vadd.f32 0.0, %v1929
        %v1931 = vpop.f32.mrf.mxu0
        %1932 = vdwg.mxu0
        %1933 = vrot.lane.b32.xlu0 %v1182, 96
        %v1934 = vpop.permute.xlu0 %1933
        %1935 = vrot.lane.b32.xlu0 %v1184, 96
        %v1936 = vpop.permute.xlu0 %1935
        %1937 = vrot.lane.b32.xlu0 %v1186, 96
        %v1938 = vpop.permute.xlu0 %1937
        %1939 = vrot.lane.b32.xlu0 %v1188, 96
        %v1940 = vpop.permute.xlu0 %1939
        %v1942 = vsel %vm1261, %v1182, 0
        %v1945 = vsel %vm1261, %v1184, 0
        %v1948 = vsel %vm1261, %v1186, 0
        %v1951 = vsel %vm1261, %v1188, 0
        %v1954 = vsel %vm1261, %v1934, 0
        %v1957 = vsel %vm1261, %v1936, 0
        %v1960 = vsel %vm1261, %v1938, 0
        %v1963 = vsel %vm1261, %v1940, 0
        %1965 = vmatprep.subr.bf16.mxu0 0
        %1966 = vmatpush1.bf16.xpose.msra.mxu0 0
        %1967 = vmatprep.subr.bf16.mxu0 0
        %1968 = vmatpush1.bf16.xpose.msra.mxu0 0
        %1969 = vmatprep.subr.bf16.mxu0 0
        %1970 = vmatpush1.bf16.xpose.msra.mxu0 0
        %1971 = vmatprep.subr.bf16.mxu0 0
        %1972 = vmatpush1.bf16.xpose.msra.mxu0 0
        %1973 = vmatprep.subr.bf16.mxu0 0
        %1974 = vmatpush1.bf16.xpose.msra.mxu0 %v1963
        %1975 = vmatprep.subr.bf16.mxu0 0
        %1976 = vmatpush1.bf16.xpose.msra.mxu0 %v1960
        %1977 = vmatprep.subr.bf16.mxu0 0
        %1978 = vmatpush1.bf16.xpose.msra.mxu0 %v1957
        %1979 = vmatprep.subr.bf16.mxu0 0
        %1980 = vmatpush1.bf16.xpose.msra.mxu0 %v1954
        %1981 = vmatprep.subr.bf16.mxu0 0
        %1982 = vmatpush2.bf16.xpose.msra.mxu0 0
        %1983 = vmatprep.subr.bf16.mxu0 0
        %1984 = vmatpush2.bf16.xpose.msra.mxu0 0
        %1985 = vmatprep.subr.bf16.mxu0 0
        %1986 = vmatpush2.bf16.xpose.msra.mxu0 0
        %1987 = vmatprep.subr.bf16.mxu0 0
        %1988 = vmatpush2.bf16.xpose.msra.mxu0 0
        %1989 = vmatprep.subr.bf16.mxu0 0
        %1990 = vmatpush2.bf16.xpose.msra.mxu0 0
        %1991 = vmatprep.subr.bf16.mxu0 0
        %1992 = vmatpush2.bf16.xpose.msra.mxu0 0
        %1993 = vmatprep.subr.bf16.mxu0 0
        %1994 = vmatpush2.bf16.xpose.msra.mxu0 0
        %1995 = vmatprep.subr.bf16.mxu0 0
        %1996 = vmatpush2.bf16.xpose.msra.mxu0 0
        %1997 = vmatprep.mubr.bf16.mxu0 0
        %1998 = vmatmul.mubr.bf16.gmra.mxu0 %v1942
        %v1999 = vpop.f32.mrf.mxu0
        %v2000 = vadd.f32 0.0, %v1999
        %v2001 = vpop.f32.mrf.mxu0
        %v2002 = vpop.f32.mrf.mxu0
        %v2003 = vadd.f32 0.0, %v2002
        %v2004 = vpop.f32.mrf.mxu0
        %2005 = vmatprep.mubr.bf16.mxu0 0
        %2006 = vmatmul.mubr.bf16.gmra.mxu0 %v1945
        %v2007 = vpop.f32.mrf.mxu0
        %v2008 = vadd.f32 0.0, %v2007
        %v2009 = vpop.f32.mrf.mxu0
        %v2010 = vpop.f32.mrf.mxu0
        %v2011 = vadd.f32 0.0, %v2010
        %v2012 = vpop.f32.mrf.mxu0
        %2013 = vmatprep.mubr.bf16.mxu0 0
        %2014 = vmatmul.mubr.bf16.gmra.mxu0 %v1948
        %v2015 = vpop.f32.mrf.mxu0
        %v2016 = vadd.f32 0.0, %v2015
        %v2017 = vpop.f32.mrf.mxu0
        %v2018 = vpop.f32.mrf.mxu0
        %v2019 = vadd.f32 0.0, %v2018
        %v2020 = vpop.f32.mrf.mxu0
        %2021 = vmatprep.mubr.bf16.mxu0 0
        %2022 = vmatmul.mubr.bf16.gmra.mxu0 %v1951
        %v2023 = vpop.f32.mrf.mxu0
        %v2024 = vadd.f32 0.0, %v2023
        %v2025 = vpop.f32.mrf.mxu0
        %v2026 = vpop.f32.mrf.mxu0
        %v2027 = vadd.f32 0.0, %v2026
        %v2028 = vpop.f32.mrf.mxu0
        %2029 = vdwg.mxu0
        %2030 = vrot.lane.b32.xlu0 %v1190, 96
        %v2031 = vpop.permute.xlu0 %2030
        %2032 = vrot.lane.b32.xlu0 %v1192, 96
        %v2033 = vpop.permute.xlu0 %2032
        %2034 = vrot.lane.b32.xlu0 %v1194, 96
        %v2035 = vpop.permute.xlu0 %2034
        %2036 = vrot.lane.b32.xlu0 %v1196, 96
        %v2037 = vpop.permute.xlu0 %2036
        %v2039 = vsel %vm1261, %v1190, 0
        %v2042 = vsel %vm1261, %v1192, 0
        %v2045 = vsel %vm1261, %v1194, 0
        %v2048 = vsel %vm1261, %v1196, 0
        %v2051 = vsel %vm1261, %v2031, 0
        %v2054 = vsel %vm1261, %v2033, 0
        %v2057 = vsel %vm1261, %v2035, 0
        %v2060 = vsel %vm1261, %v2037, 0
        %2062 = vmatprep.subr.bf16.mxu0 0
        %2063 = vmatpush1.bf16.xpose.msra.mxu0 0
        %2064 = vmatprep.subr.bf16.mxu0 0
        %2065 = vmatpush1.bf16.xpose.msra.mxu0 0
        %2066 = vmatprep.subr.bf16.mxu0 0
        %2067 = vmatpush1.bf16.xpose.msra.mxu0 0
        %2068 = vmatprep.subr.bf16.mxu0 0
        %2069 = vmatpush1.bf16.xpose.msra.mxu0 0
        %2070 = vmatprep.subr.bf16.mxu0 0
        %2071 = vmatpush1.bf16.xpose.msra.mxu0 %v2060
        %2072 = vmatprep.subr.bf16.mxu0 0
        %2073 = vmatpush1.bf16.xpose.msra.mxu0 %v2057
        %2074 = vmatprep.subr.bf16.mxu0 0
        %2075 = vmatpush1.bf16.xpose.msra.mxu0 %v2054
        %2076 = vmatprep.subr.bf16.mxu0 0
        %2077 = vmatpush1.bf16.xpose.msra.mxu0 %v2051
        %2078 = vmatprep.subr.bf16.mxu0 0
        %2079 = vmatpush2.bf16.xpose.msra.mxu0 0
        %2080 = vmatprep.subr.bf16.mxu0 0
        %2081 = vmatpush2.bf16.xpose.msra.mxu0 0
        %2082 = vmatprep.subr.bf16.mxu0 0
        %2083 = vmatpush2.bf16.xpose.msra.mxu0 0
        %2084 = vmatprep.subr.bf16.mxu0 0
        %2085 = vmatpush2.bf16.xpose.msra.mxu0 0
        %2086 = vmatprep.subr.bf16.mxu0 0
        %2087 = vmatpush2.bf16.xpose.msra.mxu0 0
        %2088 = vmatprep.subr.bf16.mxu0 0
        %2089 = vmatpush2.bf16.xpose.msra.mxu0 0
        %2090 = vmatprep.subr.bf16.mxu0 0
        %2091 = vmatpush2.bf16.xpose.msra.mxu0 0
        %2092 = vmatprep.subr.bf16.mxu0 0
        %2093 = vmatpush2.bf16.xpose.msra.mxu0 0
        %2094 = vmatprep.mubr.bf16.mxu0 0
        %2095 = vmatmul.mubr.bf16.gmra.mxu0 %v2039
        %v2096 = vpop.f32.mrf.mxu0
        %v2097 = vadd.f32 0.0, %v2096
        %v2098 = vpop.f32.mrf.mxu0
        %v2099 = vpop.f32.mrf.mxu0
        %v2100 = vadd.f32 0.0, %v2099
        %v2101 = vpop.f32.mrf.mxu0
        %2102 = vmatprep.mubr.bf16.mxu0 0
        %2103 = vmatmul.mubr.bf16.gmra.mxu0 %v2042
        %v2104 = vpop.f32.mrf.mxu0
        %v2105 = vadd.f32 0.0, %v2104
        %v2106 = vpop.f32.mrf.mxu0
        %v2107 = vpop.f32.mrf.mxu0
        %v2108 = vadd.f32 0.0, %v2107
        %v2109 = vpop.f32.mrf.mxu0
        %2110 = vmatprep.mubr.bf16.mxu0 0
        %2111 = vmatmul.mubr.bf16.gmra.mxu0 %v2045
        %v2112 = vpop.f32.mrf.mxu0
        %v2113 = vadd.f32 0.0, %v2112
        %v2114 = vpop.f32.mrf.mxu0
        %v2115 = vpop.f32.mrf.mxu0
        %v2116 = vadd.f32 0.0, %v2115
        %v2117 = vpop.f32.mrf.mxu0
        %2118 = vmatprep.mubr.bf16.mxu0 0
        %2119 = vmatmul.mubr.bf16.gmra.mxu0 %v2048
        %v2120 = vpop.f32.mrf.mxu0
        %v2121 = vadd.f32 0.0, %v2120
        %v2122 = vpop.f32.mrf.mxu0
        %v2123 = vpop.f32.mrf.mxu0
        %v2124 = vadd.f32 0.0, %v2123
        %v2125 = vpop.f32.mrf.mxu0
        %2126 = vdwg.mxu0
        %2127 = vrot.lane.b32.xlu0 %v1198, 96
        %v2128 = vpop.permute.xlu0 %2127
        %2129 = vrot.lane.b32.xlu0 %v1200, 96
        %v2130 = vpop.permute.xlu0 %2129
        %2131 = vrot.lane.b32.xlu0 %v1202, 96
        %v2132 = vpop.permute.xlu0 %2131
        %2133 = vrot.lane.b32.xlu0 %v1204, 96
        %v2134 = vpop.permute.xlu0 %2133
        %v2136 = vsel %vm1261, %v1198, 0
        %v2139 = vsel %vm1261, %v1200, 0
        %v2142 = vsel %vm1261, %v1202, 0
        %v2145 = vsel %vm1261, %v1204, 0
        %v2148 = vsel %vm1261, %v2128, 0
        %v2151 = vsel %vm1261, %v2130, 0
        %v2154 = vsel %vm1261, %v2132, 0
        %v2157 = vsel %vm1261, %v2134, 0
        %2159 = vmatprep.subr.bf16.mxu0 0
        %2160 = vmatpush1.bf16.xpose.msra.mxu0 0
        %2161 = vmatprep.subr.bf16.mxu0 0
        %2162 = vmatpush1.bf16.xpose.msra.mxu0 0
        %2163 = vmatprep.subr.bf16.mxu0 0
        %2164 = vmatpush1.bf16.xpose.msra.mxu0 0
        %2165 = vmatprep.subr.bf16.mxu0 0
        %2166 = vmatpush1.bf16.xpose.msra.mxu0 0
        %2167 = vmatprep.subr.bf16.mxu0 0
        %2168 = vmatpush1.bf16.xpose.msra.mxu0 %v2157
        %2169 = vmatprep.subr.bf16.mxu0 0
        %2170 = vmatpush1.bf16.xpose.msra.mxu0 %v2154
        %2171 = vmatprep.subr.bf16.mxu0 0
        %2172 = vmatpush1.bf16.xpose.msra.mxu0 %v2151
        %2173 = vmatprep.subr.bf16.mxu0 0
        %2174 = vmatpush1.bf16.xpose.msra.mxu0 %v2148
        %2175 = vmatprep.subr.bf16.mxu0 0
        %2176 = vmatpush2.bf16.xpose.msra.mxu0 0
        %2177 = vmatprep.subr.bf16.mxu0 0
        %2178 = vmatpush2.bf16.xpose.msra.mxu0 0
        %2179 = vmatprep.subr.bf16.mxu0 0
        %2180 = vmatpush2.bf16.xpose.msra.mxu0 0
        %2181 = vmatprep.subr.bf16.mxu0 0
        %2182 = vmatpush2.bf16.xpose.msra.mxu0 0
        %2183 = vmatprep.subr.bf16.mxu0 0
        %2184 = vmatpush2.bf16.xpose.msra.mxu0 0
        %2185 = vmatprep.subr.bf16.mxu0 0
        %2186 = vmatpush2.bf16.xpose.msra.mxu0 0
        %2187 = vmatprep.subr.bf16.mxu0 0
        %2188 = vmatpush2.bf16.xpose.msra.mxu0 0
        %2189 = vmatprep.subr.bf16.mxu0 0
        %2190 = vmatpush2.bf16.xpose.msra.mxu0 0
        %2191 = vmatprep.mubr.bf16.mxu0 0
        %2192 = vmatmul.mubr.bf16.gmra.mxu0 %v2136
        %v2193 = vpop.f32.mrf.mxu0
        %v2194 = vadd.f32 0.0, %v2193
        %v2195 = vpop.f32.mrf.mxu0
        %v2196 = vpop.f32.mrf.mxu0
        %v2197 = vadd.f32 0.0, %v2196
        %v2198 = vpop.f32.mrf.mxu0
        %2199 = vmatprep.mubr.bf16.mxu0 0
        %2200 = vmatmul.mubr.bf16.gmra.mxu0 %v2139
        %v2201 = vpop.f32.mrf.mxu0
        %v2202 = vadd.f32 0.0, %v2201
        %v2203 = vpop.f32.mrf.mxu0
        %v2204 = vpop.f32.mrf.mxu0
        %v2205 = vadd.f32 0.0, %v2204
        %v2206 = vpop.f32.mrf.mxu0
        %2207 = vmatprep.mubr.bf16.mxu0 0
        %2208 = vmatmul.mubr.bf16.gmra.mxu0 %v2142
        %v2209 = vpop.f32.mrf.mxu0
        %v2210 = vadd.f32 0.0, %v2209
        %v2211 = vpop.f32.mrf.mxu0
        %v2212 = vpop.f32.mrf.mxu0
        %v2213 = vadd.f32 0.0, %v2212
        %v2214 = vpop.f32.mrf.mxu0
        %2215 = vmatprep.mubr.bf16.mxu0 0
        %2216 = vmatmul.mubr.bf16.gmra.mxu0 %v2145
        %v2217 = vpop.f32.mrf.mxu0
        %v2218 = vadd.f32 0.0, %v2217
        %v2219 = vpop.f32.mrf.mxu0
        %v2220 = vpop.f32.mrf.mxu0
        %v2221 = vadd.f32 0.0, %v2220
        %v2222 = vpop.f32.mrf.mxu0
        %2223 = vdwg.mxu0
        %2224 = vrot.lane.b32.xlu0 %v1206, 96
        %v2225 = vpop.permute.xlu0 %2224
        %2226 = vrot.lane.b32.xlu0 %v1208, 96
        %v2227 = vpop.permute.xlu0 %2226
        %2228 = vrot.lane.b32.xlu0 %v1210, 96
        %v2229 = vpop.permute.xlu0 %2228
        %2230 = vrot.lane.b32.xlu0 %v1212, 96
        %v2231 = vpop.permute.xlu0 %2230
        %v2233 = vsel %vm1261, %v1206, 0
        %v2236 = vsel %vm1261, %v1208, 0
        %v2239 = vsel %vm1261, %v1210, 0
        %v2242 = vsel %vm1261, %v1212, 0
        %v2245 = vsel %vm1261, %v2225, 0
        %v2248 = vsel %vm1261, %v2227, 0
        %v2251 = vsel %vm1261, %v2229, 0
        %v2254 = vsel %vm1261, %v2231, 0
        %2256 = vmatprep.subr.bf16.mxu0 0
        %2257 = vmatpush1.bf16.xpose.msra.mxu0 0
        %2258 = vmatprep.subr.bf16.mxu0 0
        %2259 = vmatpush1.bf16.xpose.msra.mxu0 0
        %2260 = vmatprep.subr.bf16.mxu0 0
        %2261 = vmatpush1.bf16.xpose.msra.mxu0 0
        %2262 = vmatprep.subr.bf16.mxu0 0
        %2263 = vmatpush1.bf16.xpose.msra.mxu0 0
        %2264 = vmatprep.subr.bf16.mxu0 0
        %2265 = vmatpush1.bf16.xpose.msra.mxu0 %v2254
        %2266 = vmatprep.subr.bf16.mxu0 0
        %2267 = vmatpush1.bf16.xpose.msra.mxu0 %v2251
        %2268 = vmatprep.subr.bf16.mxu0 0
        %2269 = vmatpush1.bf16.xpose.msra.mxu0 %v2248
        %2270 = vmatprep.subr.bf16.mxu0 0
        %2271 = vmatpush1.bf16.xpose.msra.mxu0 %v2245
        %2272 = vmatprep.subr.bf16.mxu0 0
        %2273 = vmatpush2.bf16.xpose.msra.mxu0 0
        %2274 = vmatprep.subr.bf16.mxu0 0
        %2275 = vmatpush2.bf16.xpose.msra.mxu0 0
        %2276 = vmatprep.subr.bf16.mxu0 0
        %2277 = vmatpush2.bf16.xpose.msra.mxu0 0
        %2278 = vmatprep.subr.bf16.mxu0 0
        %2279 = vmatpush2.bf16.xpose.msra.mxu0 0
        %2280 = vmatprep.subr.bf16.mxu0 0
        %2281 = vmatpush2.bf16.xpose.msra.mxu0 0
        %2282 = vmatprep.subr.bf16.mxu0 0
        %2283 = vmatpush2.bf16.xpose.msra.mxu0 0
        %2284 = vmatprep.subr.bf16.mxu0 0
        %2285 = vmatpush2.bf16.xpose.msra.mxu0 0
        %2286 = vmatprep.subr.bf16.mxu0 0
        %2287 = vmatpush2.bf16.xpose.msra.mxu0 0
        %2288 = vmatprep.mubr.bf16.mxu0 0
        %2289 = vmatmul.mubr.bf16.gmra.mxu0 %v2233
        %v2290 = vpop.f32.mrf.mxu0
        %v2291 = vadd.f32 0.0, %v2290
        %v2292 = vpop.f32.mrf.mxu0
        %v2293 = vpop.f32.mrf.mxu0
        %v2294 = vadd.f32 0.0, %v2293
        %v2295 = vpop.f32.mrf.mxu0
        %2296 = vmatprep.mubr.bf16.mxu0 0
        %2297 = vmatmul.mubr.bf16.gmra.mxu0 %v2236
        %v2298 = vpop.f32.mrf.mxu0
        %v2299 = vadd.f32 0.0, %v2298
        %v2300 = vpop.f32.mrf.mxu0
        %v2301 = vpop.f32.mrf.mxu0
        %v2302 = vadd.f32 0.0, %v2301
        %v2303 = vpop.f32.mrf.mxu0
        %2304 = vmatprep.mubr.bf16.mxu0 0
        %2305 = vmatmul.mubr.bf16.gmra.mxu0 %v2239
        %v2306 = vpop.f32.mrf.mxu0
        %v2307 = vadd.f32 0.0, %v2306
        %v2308 = vpop.f32.mrf.mxu0
        %v2309 = vpop.f32.mrf.mxu0
        %v2310 = vadd.f32 0.0, %v2309
        %v2311 = vpop.f32.mrf.mxu0
        %2312 = vmatprep.mubr.bf16.mxu0 0
        %2313 = vmatmul.mubr.bf16.gmra.mxu0 %v2242
        %v2314 = vpop.f32.mrf.mxu0
        %v2315 = vadd.f32 0.0, %v2314
        %v2316 = vpop.f32.mrf.mxu0
        %v2317 = vpop.f32.mrf.mxu0
        %v2318 = vadd.f32 0.0, %v2317
        %v2319 = vpop.f32.mrf.mxu0
        %2320 = vdwg.mxu0
        %2321 = vrot.lane.b32.xlu0 %v1214, 96
        %v2322 = vpop.permute.xlu0 %2321
        %2323 = vrot.lane.b32.xlu0 %v1216, 96
        %v2324 = vpop.permute.xlu0 %2323
        %2325 = vrot.lane.b32.xlu0 %v1218, 96
        %v2326 = vpop.permute.xlu0 %2325
        %2327 = vrot.lane.b32.xlu0 %v1220, 96
        %v2328 = vpop.permute.xlu0 %2327
        %v2330 = vsel %vm1261, %v1214, 0
        %v2333 = vsel %vm1261, %v1216, 0
        %v2336 = vsel %vm1261, %v1218, 0
        %v2339 = vsel %vm1261, %v1220, 0
        %v2342 = vsel %vm1261, %v2322, 0
        %v2345 = vsel %vm1261, %v2324, 0
        %v2348 = vsel %vm1261, %v2326, 0
        %v2351 = vsel %vm1261, %v2328, 0
        %2353 = vmatprep.subr.bf16.mxu0 0
        %2354 = vmatpush1.bf16.xpose.msra.mxu0 0
        %2355 = vmatprep.subr.bf16.mxu0 0
        %2356 = vmatpush1.bf16.xpose.msra.mxu0 0
        %2357 = vmatprep.subr.bf16.mxu0 0
        %2358 = vmatpush1.bf16.xpose.msra.mxu0 0
        %2359 = vmatprep.subr.bf16.mxu0 0
        %2360 = vmatpush1.bf16.xpose.msra.mxu0 0
        %2361 = vmatprep.subr.bf16.mxu0 0
        %2362 = vmatpush1.bf16.xpose.msra.mxu0 %v2351
        %2363 = vmatprep.subr.bf16.mxu0 0
        %2364 = vmatpush1.bf16.xpose.msra.mxu0 %v2348
        %2365 = vmatprep.subr.bf16.mxu0 0
        %2366 = vmatpush1.bf16.xpose.msra.mxu0 %v2345
        %2367 = vmatprep.subr.bf16.mxu0 0
        %2368 = vmatpush1.bf16.xpose.msra.mxu0 %v2342
        %2369 = vmatprep.subr.bf16.mxu0 0
        %2370 = vmatpush2.bf16.xpose.msra.mxu0 0
        %2371 = vmatprep.subr.bf16.mxu0 0
        %2372 = vmatpush2.bf16.xpose.msra.mxu0 0
        %2373 = vmatprep.subr.bf16.mxu0 0
        %2374 = vmatpush2.bf16.xpose.msra.mxu0 0
        %2375 = vmatprep.subr.bf16.mxu0 0
        %2376 = vmatpush2.bf16.xpose.msra.mxu0 0
        %2377 = vmatprep.subr.bf16.mxu0 0
        %2378 = vmatpush2.bf16.xpose.msra.mxu0 0
        %2379 = vmatprep.subr.bf16.mxu0 0
        %2380 = vmatpush2.bf16.xpose.msra.mxu0 0
        %2381 = vmatprep.subr.bf16.mxu0 0
        %2382 = vmatpush2.bf16.xpose.msra.mxu0 0
        %2383 = vmatprep.subr.bf16.mxu0 0
        %2384 = vmatpush2.bf16.xpose.msra.mxu0 0
        %2385 = vmatprep.mubr.bf16.mxu0 0
        %2386 = vmatmul.mubr.bf16.gmra.mxu0 %v2330
        %v2387 = vpop.f32.mrf.mxu0
        %v2388 = vadd.f32 0.0, %v2387
        %v2389 = vpop.f32.mrf.mxu0
        %v2390 = vpop.f32.mrf.mxu0
        %v2391 = vadd.f32 0.0, %v2390
        %v2392 = vpop.f32.mrf.mxu0
        %2393 = vmatprep.mubr.bf16.mxu0 0
        %2394 = vmatmul.mubr.bf16.gmra.mxu0 %v2333
        %v2395 = vpop.f32.mrf.mxu0
        %v2396 = vadd.f32 0.0, %v2395
        %v2397 = vpop.f32.mrf.mxu0
        %v2398 = vpop.f32.mrf.mxu0
        %v2399 = vadd.f32 0.0, %v2398
        %v2400 = vpop.f32.mrf.mxu0
        %2401 = vmatprep.mubr.bf16.mxu0 0
        %2402 = vmatmul.mubr.bf16.gmra.mxu0 %v2336
        %v2403 = vpop.f32.mrf.mxu0
        %v2404 = vadd.f32 0.0, %v2403
        %v2405 = vpop.f32.mrf.mxu0
        %v2406 = vpop.f32.mrf.mxu0
        %v2407 = vadd.f32 0.0, %v2406
        %v2408 = vpop.f32.mrf.mxu0
        %2409 = vmatprep.mubr.bf16.mxu0 0
        %2410 = vmatmul.mubr.bf16.gmra.mxu0 %v2339
        %v2411 = vpop.f32.mrf.mxu0
        %v2412 = vadd.f32 0.0, %v2411
        %v2413 = vpop.f32.mrf.mxu0
        %v2414 = vpop.f32.mrf.mxu0
        %v2415 = vadd.f32 0.0, %v2414
        %v2416 = vpop.f32.mrf.mxu0
        %2417 = vdwg.mxu0
        %2418 = vrot.lane.b32.xlu0 %v1222, 96
        %v2419 = vpop.permute.xlu0 %2418
        %2420 = vrot.lane.b32.xlu0 %v1224, 96
        %v2421 = vpop.permute.xlu0 %2420
        %2422 = vrot.lane.b32.xlu0 %v1226, 96
        %v2423 = vpop.permute.xlu0 %2422
        %2424 = vrot.lane.b32.xlu0 %v1228, 96
        %v2425 = vpop.permute.xlu0 %2424
        %v2427 = vsel %vm1261, %v1222, 0
        %v2430 = vsel %vm1261, %v1224, 0
        %v2433 = vsel %vm1261, %v1226, 0
        %v2436 = vsel %vm1261, %v1228, 0
        %v2439 = vsel %vm1261, %v2419, 0
        %v2442 = vsel %vm1261, %v2421, 0
        %v2445 = vsel %vm1261, %v2423, 0
        %v2448 = vsel %vm1261, %v2425, 0
        %2450 = vmatprep.subr.bf16.mxu0 0
        %2451 = vmatpush1.bf16.xpose.msra.mxu0 0
        %2452 = vmatprep.subr.bf16.mxu0 0
        %2453 = vmatpush1.bf16.xpose.msra.mxu0 0
        %2454 = vmatprep.subr.bf16.mxu0 0
        %2455 = vmatpush1.bf16.xpose.msra.mxu0 0
        %2456 = vmatprep.subr.bf16.mxu0 0
        %2457 = vmatpush1.bf16.xpose.msra.mxu0 0
        %2458 = vmatprep.subr.bf16.mxu0 0
        %2459 = vmatpush1.bf16.xpose.msra.mxu0 %v2448
        %2460 = vmatprep.subr.bf16.mxu0 0
        %2461 = vmatpush1.bf16.xpose.msra.mxu0 %v2445
        %2462 = vmatprep.subr.bf16.mxu0 0
        %2463 = vmatpush1.bf16.xpose.msra.mxu0 %v2442
        %2464 = vmatprep.subr.bf16.mxu0 0
        %2465 = vmatpush1.bf16.xpose.msra.mxu0 %v2439
        %2466 = vmatprep.subr.bf16.mxu0 0
        %2467 = vmatpush2.bf16.xpose.msra.mxu0 0
        %2468 = vmatprep.subr.bf16.mxu0 0
        %2469 = vmatpush2.bf16.xpose.msra.mxu0 0
        %2470 = vmatprep.subr.bf16.mxu0 0
        %2471 = vmatpush2.bf16.xpose.msra.mxu0 0
        %2472 = vmatprep.subr.bf16.mxu0 0
        %2473 = vmatpush2.bf16.xpose.msra.mxu0 0
        %2474 = vmatprep.subr.bf16.mxu0 0
        %2475 = vmatpush2.bf16.xpose.msra.mxu0 0
        %2476 = vmatprep.subr.bf16.mxu0 0
        %2477 = vmatpush2.bf16.xpose.msra.mxu0 0
        %2478 = vmatprep.subr.bf16.mxu0 0
        %2479 = vmatpush2.bf16.xpose.msra.mxu0 0
        %2480 = vmatprep.subr.bf16.mxu0 0
        %2481 = vmatpush2.bf16.xpose.msra.mxu0 0
        %2482 = vmatprep.mubr.bf16.mxu0 0
        %2483 = vmatmul.mubr.bf16.gmra.mxu0 %v2427
        %v2484 = vpop.f32.mrf.mxu0
        %v2485 = vadd.f32 0.0, %v2484
        %v2486 = vpop.f32.mrf.mxu0
        %v2487 = vpop.f32.mrf.mxu0
        %v2488 = vadd.f32 0.0, %v2487
        %v2489 = vpop.f32.mrf.mxu0
        %2490 = vmatprep.mubr.bf16.mxu0 0
        %2491 = vmatmul.mubr.bf16.gmra.mxu0 %v2430
        %v2492 = vpop.f32.mrf.mxu0
        %v2493 = vadd.f32 0.0, %v2492
        %v2494 = vpop.f32.mrf.mxu0
        %v2495 = vpop.f32.mrf.mxu0
        %v2496 = vadd.f32 0.0, %v2495
        %v2497 = vpop.f32.mrf.mxu0
        %2498 = vmatprep.mubr.bf16.mxu0 0
        %2499 = vmatmul.mubr.bf16.gmra.mxu0 %v2433
        %v2500 = vpop.f32.mrf.mxu0
        %v2501 = vadd.f32 0.0, %v2500
        %v2502 = vpop.f32.mrf.mxu0
        %v2503 = vpop.f32.mrf.mxu0
        %v2504 = vadd.f32 0.0, %v2503
        %v2505 = vpop.f32.mrf.mxu0
        %2506 = vmatprep.mubr.bf16.mxu0 0
        %2507 = vmatmul.mubr.bf16.gmra.mxu0 %v2436
        %v2508 = vpop.f32.mrf.mxu0
        %v2509 = vadd.f32 0.0, %v2508
        %v2510 = vpop.f32.mrf.mxu0
        %v2511 = vpop.f32.mrf.mxu0
        %v2512 = vadd.f32 0.0, %v2511
        %v2513 = vpop.f32.mrf.mxu0
        %2514 = vdwg.mxu0
        %2515 = vrot.lane.b32.xlu0 %v1230, 96
        %v2516 = vpop.permute.xlu0 %2515
        %2517 = vrot.lane.b32.xlu0 %v1232, 96
        %v2518 = vpop.permute.xlu0 %2517
        %2519 = vrot.lane.b32.xlu0 %v1234, 96
        %v2520 = vpop.permute.xlu0 %2519
        %2521 = vrot.lane.b32.xlu0 %v1236, 96
        %v2522 = vpop.permute.xlu0 %2521
        %v2524 = vsel %vm1261, %v1230, 0
        %v2527 = vsel %vm1261, %v1232, 0
        %v2530 = vsel %vm1261, %v1234, 0
        %v2533 = vsel %vm1261, %v1236, 0
        %v2536 = vsel %vm1261, %v2516, 0
        %v2539 = vsel %vm1261, %v2518, 0
        %v2542 = vsel %vm1261, %v2520, 0
        %v2545 = vsel %vm1261, %v2522, 0
        %2547 = vmatprep.subr.bf16.mxu0 0
        %2548 = vmatpush1.bf16.xpose.msra.mxu0 0
        %2549 = vmatprep.subr.bf16.mxu0 0
        %2550 = vmatpush1.bf16.xpose.msra.mxu0 0
        %2551 = vmatprep.subr.bf16.mxu0 0
        %2552 = vmatpush1.bf16.xpose.msra.mxu0 0
        %2553 = vmatprep.subr.bf16.mxu0 0
        %2554 = vmatpush1.bf16.xpose.msra.mxu0 0
        %2555 = vmatprep.subr.bf16.mxu0 0
        %2556 = vmatpush1.bf16.xpose.msra.mxu0 %v2545
        %2557 = vmatprep.subr.bf16.mxu0 0
        %2558 = vmatpush1.bf16.xpose.msra.mxu0 %v2542
        %2559 = vmatprep.subr.bf16.mxu0 0
        %2560 = vmatpush1.bf16.xpose.msra.mxu0 %v2539
        %2561 = vmatprep.subr.bf16.mxu0 0
        %2562 = vmatpush1.bf16.xpose.msra.mxu0 %v2536
        %2563 = vmatprep.subr.bf16.mxu0 0
        %2564 = vmatpush2.bf16.xpose.msra.mxu0 0
        %2565 = vmatprep.subr.bf16.mxu0 0
        %2566 = vmatpush2.bf16.xpose.msra.mxu0 0
        %2567 = vmatprep.subr.bf16.mxu0 0
        %2568 = vmatpush2.bf16.xpose.msra.mxu0 0
        %2569 = vmatprep.subr.bf16.mxu0 0
        %2570 = vmatpush2.bf16.xpose.msra.mxu0 0
        %2571 = vmatprep.subr.bf16.mxu0 0
        %2572 = vmatpush2.bf16.xpose.msra.mxu0 0
        %2573 = vmatprep.subr.bf16.mxu0 0
        %2574 = vmatpush2.bf16.xpose.msra.mxu0 0
        %2575 = vmatprep.subr.bf16.mxu0 0
        %2576 = vmatpush2.bf16.xpose.msra.mxu0 0
        %2577 = vmatprep.subr.bf16.mxu0 0
        %2578 = vmatpush2.bf16.xpose.msra.mxu0 0
        %2579 = vmatprep.mubr.bf16.mxu0 0
        %2580 = vmatmul.mubr.bf16.gmra.mxu0 %v2524
        %v2581 = vpop.f32.mrf.mxu0
        %v2582 = vadd.f32 0.0, %v2581
        %v2583 = vpop.f32.mrf.mxu0
        %v2584 = vpop.f32.mrf.mxu0
        %v2585 = vadd.f32 0.0, %v2584
        %v2586 = vpop.f32.mrf.mxu0
        %2587 = vmatprep.mubr.bf16.mxu0 0
        %2588 = vmatmul.mubr.bf16.gmra.mxu0 %v2527
        %v2589 = vpop.f32.mrf.mxu0
        %v2590 = vadd.f32 0.0, %v2589
        %v2591 = vpop.f32.mrf.mxu0
        %v2592 = vpop.f32.mrf.mxu0
        %v2593 = vadd.f32 0.0, %v2592
        %v2594 = vpop.f32.mrf.mxu0
        %2595 = vmatprep.mubr.bf16.mxu0 0
        %2596 = vmatmul.mubr.bf16.gmra.mxu0 %v2530
        %v2597 = vpop.f32.mrf.mxu0
        %v2598 = vadd.f32 0.0, %v2597
        %v2599 = vpop.f32.mrf.mxu0
        %v2600 = vpop.f32.mrf.mxu0
        %v2601 = vadd.f32 0.0, %v2600
        %v2602 = vpop.f32.mrf.mxu0
        %2603 = vmatprep.mubr.bf16.mxu0 0
        %2604 = vmatmul.mubr.bf16.gmra.mxu0 %v2533
        %v2605 = vpop.f32.mrf.mxu0
        %v2606 = vadd.f32 0.0, %v2605
        %v2607 = vpop.f32.mrf.mxu0
        %v2608 = vpop.f32.mrf.mxu0
        %v2609 = vadd.f32 0.0, %v2608
        %v2610 = vpop.f32.mrf.mxu0
        %2611 = vdwg.mxu0
        %2612 = vrot.lane.b32.xlu0 %v1238, 96
        %v2613 = vpop.permute.xlu0 %2612
        %2614 = vrot.lane.b32.xlu0 %v1240, 96
        %v2615 = vpop.permute.xlu0 %2614
        %2616 = vrot.lane.b32.xlu0 %v1242, 96
        %v2617 = vpop.permute.xlu0 %2616
        %2618 = vrot.lane.b32.xlu0 %v1244, 96
        %v2619 = vpop.permute.xlu0 %2618
        %v2621 = vsel %vm1261, %v1238, 0
        %v2624 = vsel %vm1261, %v1240, 0
        %v2627 = vsel %vm1261, %v1242, 0
        %v2630 = vsel %vm1261, %v1244, 0
        %v2633 = vsel %vm1261, %v2613, 0
        %v2636 = vsel %vm1261, %v2615, 0
        %v2639 = vsel %vm1261, %v2617, 0
        %v2642 = vsel %vm1261, %v2619, 0
        %2644 = vmatprep.subr.bf16.mxu0 0
        %2645 = vmatpush1.bf16.xpose.msra.mxu0 0
        %2646 = vmatprep.subr.bf16.mxu0 0
        %2647 = vmatpush1.bf16.xpose.msra.mxu0 0
        %2648 = vmatprep.subr.bf16.mxu0 0
        %2649 = vmatpush1.bf16.xpose.msra.mxu0 0
        %2650 = vmatprep.subr.bf16.mxu0 0
        %2651 = vmatpush1.bf16.xpose.msra.mxu0 0
        %2652 = vmatprep.subr.bf16.mxu0 0
        %2653 = vmatpush1.bf16.xpose.msra.mxu0 %v2642
        %2654 = vmatprep.subr.bf16.mxu0 0
        %2655 = vmatpush1.bf16.xpose.msra.mxu0 %v2639
        %2656 = vmatprep.subr.bf16.mxu0 0
        %2657 = vmatpush1.bf16.xpose.msra.mxu0 %v2636
        %2658 = vmatprep.subr.bf16.mxu0 0
        %2659 = vmatpush1.bf16.xpose.msra.mxu0 %v2633
        %2660 = vmatprep.subr.bf16.mxu0 0
        %2661 = vmatpush2.bf16.xpose.msra.mxu0 0
        %2662 = vmatprep.subr.bf16.mxu0 0
        %2663 = vmatpush2.bf16.xpose.msra.mxu0 0
        %2664 = vmatprep.subr.bf16.mxu0 0
        %2665 = vmatpush2.bf16.xpose.msra.mxu0 0
        %2666 = vmatprep.subr.bf16.mxu0 0
        %2667 = vmatpush2.bf16.xpose.msra.mxu0 0
        %2668 = vmatprep.subr.bf16.mxu0 0
        %2669 = vmatpush2.bf16.xpose.msra.mxu0 0
        %2670 = vmatprep.subr.bf16.mxu0 0
        %2671 = vmatpush2.bf16.xpose.msra.mxu0 0
        %2672 = vmatprep.subr.bf16.mxu0 0
        %2673 = vmatpush2.bf16.xpose.msra.mxu0 0
        %2674 = vmatprep.subr.bf16.mxu0 0
        %2675 = vmatpush2.bf16.xpose.msra.mxu0 0
        %2676 = vmatprep.mubr.bf16.mxu0 0
        %2677 = vmatmul.mubr.bf16.gmra.mxu0 %v2621
        %v2678 = vpop.f32.mrf.mxu0
        %v2679 = vadd.f32 0.0, %v2678
        %v2680 = vpop.f32.mrf.mxu0
        %v2681 = vpop.f32.mrf.mxu0
        %v2682 = vadd.f32 0.0, %v2681
        %v2683 = vpop.f32.mrf.mxu0
        %2684 = vmatprep.mubr.bf16.mxu0 0
        %2685 = vmatmul.mubr.bf16.gmra.mxu0 %v2624
        %v2686 = vpop.f32.mrf.mxu0
        %v2687 = vadd.f32 0.0, %v2686
        %v2688 = vpop.f32.mrf.mxu0
        %v2689 = vpop.f32.mrf.mxu0
        %v2690 = vadd.f32 0.0, %v2689
        %v2691 = vpop.f32.mrf.mxu0
        %2692 = vmatprep.mubr.bf16.mxu0 0
        %2693 = vmatmul.mubr.bf16.gmra.mxu0 %v2627
        %v2694 = vpop.f32.mrf.mxu0
        %v2695 = vadd.f32 0.0, %v2694
        %v2696 = vpop.f32.mrf.mxu0
        %v2697 = vpop.f32.mrf.mxu0
        %v2698 = vadd.f32 0.0, %v2697
        %v2699 = vpop.f32.mrf.mxu0
        %2700 = vmatprep.mubr.bf16.mxu0 0
        %2701 = vmatmul.mubr.bf16.gmra.mxu0 %v2630
        %v2702 = vpop.f32.mrf.mxu0
        %v2703 = vadd.f32 0.0, %v2702
        %v2704 = vpop.f32.mrf.mxu0
        %v2705 = vpop.f32.mrf.mxu0
        %v2706 = vadd.f32 0.0, %v2705
        %v2707 = vpop.f32.mrf.mxu0
        %2708 = vdwg.mxu0
        %2709 = vrot.lane.b32.xlu0 %v1246, 96
        %v2710 = vpop.permute.xlu0 %2709
        %2711 = vrot.lane.b32.xlu0 %v1248, 96
        %v2712 = vpop.permute.xlu0 %2711
        %2713 = vrot.lane.b32.xlu0 %v1250, 96
        %v2714 = vpop.permute.xlu0 %2713
        %2715 = vrot.lane.b32.xlu0 %v1252, 96
        %v2716 = vpop.permute.xlu0 %2715
        %v2718 = vsel %vm1261, %v1246, 0
        %v2721 = vsel %vm1261, %v1248, 0
        %v2724 = vsel %vm1261, %v1250, 0
        %v2727 = vsel %vm1261, %v1252, 0
        %v2730 = vsel %vm1261, %v2710, 0
        %v2733 = vsel %vm1261, %v2712, 0
        %v2736 = vsel %vm1261, %v2714, 0
        %v2739 = vsel %vm1261, %v2716, 0
        %2741 = vmatprep.subr.bf16.mxu0 0
        %2742 = vmatpush1.bf16.xpose.msra.mxu0 0
        %2743 = vmatprep.subr.bf16.mxu0 0
        %2744 = vmatpush1.bf16.xpose.msra.mxu0 0
        %2745 = vmatprep.subr.bf16.mxu0 0
        %2746 = vmatpush1.bf16.xpose.msra.mxu0 0
        %2747 = vmatprep.subr.bf16.mxu0 0
        %2748 = vmatpush1.bf16.xpose.msra.mxu0 0
        %2749 = vmatprep.subr.bf16.mxu0 0
        %2750 = vmatpush1.bf16.xpose.msra.mxu0 %v2739
        %2751 = vmatprep.subr.bf16.mxu0 0
        %2752 = vmatpush1.bf16.xpose.msra.mxu0 %v2736
        %2753 = vmatprep.subr.bf16.mxu0 0
        %2754 = vmatpush1.bf16.xpose.msra.mxu0 %v2733
        %2755 = vmatprep.subr.bf16.mxu0 0
        %2756 = vmatpush1.bf16.xpose.msra.mxu0 %v2730
        %2757 = vmatprep.subr.bf16.mxu0 0
        %2758 = vmatpush2.bf16.xpose.msra.mxu0 0
        %2759 = vmatprep.subr.bf16.mxu0 0
        %2760 = vmatpush2.bf16.xpose.msra.mxu0 0
        %2761 = vmatprep.subr.bf16.mxu0 0
        %2762 = vmatpush2.bf16.xpose.msra.mxu0 0
        %2763 = vmatprep.subr.bf16.mxu0 0
        %2764 = vmatpush2.bf16.xpose.msra.mxu0 0
        %2765 = vmatprep.subr.bf16.mxu0 0
        %2766 = vmatpush2.bf16.xpose.msra.mxu0 0
        %2767 = vmatprep.subr.bf16.mxu0 0
        %2768 = vmatpush2.bf16.xpose.msra.mxu0 0
        %2769 = vmatprep.subr.bf16.mxu0 0
        %2770 = vmatpush2.bf16.xpose.msra.mxu0 0
        %2771 = vmatprep.subr.bf16.mxu0 0
        %2772 = vmatpush2.bf16.xpose.msra.mxu0 0
        %2773 = vmatprep.mubr.bf16.mxu0 0
        %2774 = vmatmul.mubr.bf16.gmra.mxu0 %v2718
        %v2775 = vpop.f32.mrf.mxu0
        %v2776 = vadd.f32 0.0, %v2775
        %v2777 = vpop.f32.mrf.mxu0
        %v2778 = vpop.f32.mrf.mxu0
        %v2779 = vadd.f32 0.0, %v2778
        %v2780 = vpop.f32.mrf.mxu0
        %2781 = vmatprep.mubr.bf16.mxu0 0
        %2782 = vmatmul.mubr.bf16.gmra.mxu0 %v2721
        %v2783 = vpop.f32.mrf.mxu0
        %v2784 = vadd.f32 0.0, %v2783
        %v2785 = vpop.f32.mrf.mxu0
        %v2786 = vpop.f32.mrf.mxu0
        %v2787 = vadd.f32 0.0, %v2786
        %v2788 = vpop.f32.mrf.mxu0
        %2789 = vmatprep.mubr.bf16.mxu0 0
        %2790 = vmatmul.mubr.bf16.gmra.mxu0 %v2724
        %v2791 = vpop.f32.mrf.mxu0
        %v2792 = vadd.f32 0.0, %v2791
        %v2793 = vpop.f32.mrf.mxu0
        %v2794 = vpop.f32.mrf.mxu0
        %v2795 = vadd.f32 0.0, %v2794
        %v2796 = vpop.f32.mrf.mxu0
        %2797 = vmatprep.mubr.bf16.mxu0 0
        %2798 = vmatmul.mubr.bf16.gmra.mxu0 %v2727
        %v2799 = vpop.f32.mrf.mxu0
        %v2800 = vadd.f32 0.0, %v2799
        %v2801 = vpop.f32.mrf.mxu0
        %v2802 = vpop.f32.mrf.mxu0
        %v2803 = vadd.f32 0.0, %v2802
        %v2804 = vpop.f32.mrf.mxu0
        %2805 = vdwg.mxu0
        %v2806 = vld [vmem:[%s5] sm:$0xff]
        %v2807 = vld [vmem:[%s5 + $0x8] sm:$0xff]
        %v2808 = vld [vmem:[%s5 + $0x10] sm:$0xff]
        %v2809 = vld [vmem:[%s5 + $0x18] sm:$0xff]
        %v2810 = vld [vmem:[%s5 + $0x20] sm:$0xff]
        %v2811 = vld [vmem:[%s5 + $0x28] sm:$0xff]
        %v2812 = vld [vmem:[%s5 + $0x30] sm:$0xff]
        %v2813 = vld [vmem:[%s5 + $0x38] sm:$0xff]
        %v2814 = vld [vmem:[%s5 + $0x40] sm:$0xff]
        %v2815 = vld [vmem:[%s5 + $0x48] sm:$0xff]
        %v2816 = vld [vmem:[%s5 + $0x50] sm:$0xff]
        %v2817 = vld [vmem:[%s5 + $0x58] sm:$0xff]
        %v2818 = vld [vmem:[%s5 + $0x60] sm:$0xff]
        %v2819 = vld [vmem:[%s5 + $0x68] sm:$0xff]
        %v2820 = vld [vmem:[%s5 + $0x70] sm:$0xff]
        %v2821 = vld [vmem:[%s5 + $0x78] sm:$0xff]
        %v2822 = vld [vmem:[%s5 + $0x80] sm:$0xff]
        %v2823 = vld [vmem:[%s5 + $0x88] sm:$0xff]
        %v2824 = vld [vmem:[%s5 + $0x90] sm:$0xff]
        %v2825 = vld [vmem:[%s5 + $0x98] sm:$0xff]
        %v2826 = vld [vmem:[%s5 + $0xa0] sm:$0xff]
        %v2827 = vld [vmem:[%s5 + $0xa8] sm:$0xff]
        %v2828 = vld [vmem:[%s5 + $0xb0] sm:$0xff]
        %v2829 = vld [vmem:[%s5 + $0xb8] sm:$0xff]
        %v2830 = vld [vmem:[%s5 + $0xc0] sm:$0xff]
        %v2831 = vld [vmem:[%s5 + $0xc8] sm:$0xff]
        %v2832 = vld [vmem:[%s5 + $0xd0] sm:$0xff]
        %v2833 = vld [vmem:[%s5 + $0xd8] sm:$0xff]
        %v2834 = vld [vmem:[%s5 + $0xe0] sm:$0xff]
        %v2835 = vld [vmem:[%s5 + $0xe8] sm:$0xff]
        %v2836 = vld [vmem:[%s5 + $0xf0] sm:$0xff]
        %v2837 = vld [vmem:[%s5 + $0xf8] sm:$0xff]
        %v2838 = vadd.f32 %v1321, %v2806
        %v2839 = vadd.f32 %v1324, %v2807
        %v2840 = vadd.f32 %v1329, %v2808
        %v2841 = vadd.f32 %v1332, %v2809
        %v2842 = vadd.f32 %v1337, %v2810
        %v2843 = vadd.f32 %v1340, %v2811
        %v2844 = vadd.f32 %v1345, %v2812
        %v2845 = vadd.f32 %v1348, %v2813
        %v2846 = vadd.f32 %v1418, %v2806
        %v2847 = vadd.f32 %v1421, %v2807
        %v2848 = vadd.f32 %v1426, %v2808
        %v2849 = vadd.f32 %v1429, %v2809
        %v2850 = vadd.f32 %v1434, %v2810
        %v2851 = vadd.f32 %v1437, %v2811
        %v2852 = vadd.f32 %v1442, %v2812
        %v2853 = vadd.f32 %v1445, %v2813
        %v2854 = vadd.f32 %v1515, %v2806
        %v2855 = vadd.f32 %v1518, %v2807
        %v2856 = vadd.f32 %v1523, %v2808
        %v2857 = vadd.f32 %v1526, %v2809
        %v2858 = vadd.f32 %v1531, %v2810
        %v2859 = vadd.f32 %v1534, %v2811
        %v2860 = vadd.f32 %v1539, %v2812
        %v2861 = vadd.f32 %v1542, %v2813
        %v2862 = vadd.f32 %v1612, %v2806
        %v2863 = vadd.f32 %v1615, %v2807
        %v2864 = vadd.f32 %v1620, %v2808
        %v2865 = vadd.f32 %v1623, %v2809
        %v2866 = vadd.f32 %v1628, %v2810
        %v2867 = vadd.f32 %v1631, %v2811
        %v2868 = vadd.f32 %v1636, %v2812
        %v2869 = vadd.f32 %v1639, %v2813
        %v2870 = vadd.f32 %v1709, %v2814
        %v2871 = vadd.f32 %v1712, %v2815
        %v2872 = vadd.f32 %v1717, %v2816
        %v2873 = vadd.f32 %v1720, %v2817
        %v2874 = vadd.f32 %v1725, %v2818
        %v2875 = vadd.f32 %v1728, %v2819
        %v2876 = vadd.f32 %v1733, %v2820
        %v2877 = vadd.f32 %v1736, %v2821
        %v2878 = vadd.f32 %v1806, %v2814
        %v2879 = vadd.f32 %v1809, %v2815
        %v2880 = vadd.f32 %v1814, %v2816
        %v2881 = vadd.f32 %v1817, %v2817
        %v2882 = vadd.f32 %v1822, %v2818
        %v2883 = vadd.f32 %v1825, %v2819
        %v2884 = vadd.f32 %v1830, %v2820
        %v2885 = vadd.f32 %v1833, %v2821
        %v2886 = vadd.f32 %v1903, %v2814
        %v2887 = vadd.f32 %v1906, %v2815
        %v2888 = vadd.f32 %v1911, %v2816
        %v2889 = vadd.f32 %v1914, %v2817
        %v2890 = vadd.f32 %v1919, %v2818
        %v2891 = vadd.f32 %v1922, %v2819
        %v2892 = vadd.f32 %v1927, %v2820
        %v2893 = vadd.f32 %v1930, %v2821
        %v2894 = vadd.f32 %v2000, %v2814
        %v2895 = vadd.f32 %v2003, %v2815
        %v2896 = vadd.f32 %v2008, %v2816
        %v2897 = vadd.f32 %v2011, %v2817
        %v2898 = vadd.f32 %v2016, %v2818
        %v2899 = vadd.f32 %v2019, %v2819
        %v2900 = vadd.f32 %v2024, %v2820
        %v2901 = vadd.f32 %v2027, %v2821
        %v2902 = vadd.f32 %v2097, %v2822
        %v2903 = vadd.f32 %v2100, %v2823
        %v2904 = vadd.f32 %v2105, %v2824
        %v2905 = vadd.f32 %v2108, %v2825
        %v2906 = vadd.f32 %v2113, %v2826
        %v2907 = vadd.f32 %v2116, %v2827
        %v2908 = vadd.f32 %v2121, %v2828
        %v2909 = vadd.f32 %v2124, %v2829
        %v2910 = vadd.f32 %v2194, %v2822
        %v2911 = vadd.f32 %v2197, %v2823
        %v2912 = vadd.f32 %v2202, %v2824
        %v2913 = vadd.f32 %v2205, %v2825
        %v2914 = vadd.f32 %v2210, %v2826
        %v2915 = vadd.f32 %v2213, %v2827
        %v2916 = vadd.f32 %v2218, %v2828
        %v2917 = vadd.f32 %v2221, %v2829
        %v2918 = vadd.f32 %v2291, %v2822
        %v2919 = vadd.f32 %v2294, %v2823
        %v2920 = vadd.f32 %v2299, %v2824
        %v2921 = vadd.f32 %v2302, %v2825
        %v2922 = vadd.f32 %v2307, %v2826
        %v2923 = vadd.f32 %v2310, %v2827
        %v2924 = vadd.f32 %v2315, %v2828
        %v2925 = vadd.f32 %v2318, %v2829
        %v2926 = vadd.f32 %v2388, %v2822
        %v2927 = vadd.f32 %v2391, %v2823
        %v2928 = vadd.f32 %v2396, %v2824
        %v2929 = vadd.f32 %v2399, %v2825
        %v2930 = vadd.f32 %v2404, %v2826
        %v2931 = vadd.f32 %v2407, %v2827
        %v2932 = vadd.f32 %v2412, %v2828
        %v2933 = vadd.f32 %v2415, %v2829
        %v2934 = vadd.f32 %v2485, %v2830
        %v2935 = vadd.f32 %v2488, %v2831
        %v2936 = vadd.f32 %v2493, %v2832
        %v2937 = vadd.f32 %v2496, %v2833
        %v2938 = vadd.f32 %v2501, %v2834
        %v2939 = vadd.f32 %v2504, %v2835
        %v2940 = vadd.f32 %v2509, %v2836
        %v2941 = vadd.f32 %v2512, %v2837
        %v2942 = vadd.f32 %v2582, %v2830
        %v2943 = vadd.f32 %v2585, %v2831
        %v2944 = vadd.f32 %v2590, %v2832
        %v2945 = vadd.f32 %v2593, %v2833
        %v2946 = vadd.f32 %v2598, %v2834
        %v2947 = vadd.f32 %v2601, %v2835
        %v2948 = vadd.f32 %v2606, %v2836
        %v2949 = vadd.f32 %v2609, %v2837
        %v2950 = vadd.f32 %v2679, %v2830
        %v2951 = vadd.f32 %v2682, %v2831
        %v2952 = vadd.f32 %v2687, %v2832
        %v2953 = vadd.f32 %v2690, %v2833
        %v2954 = vadd.f32 %v2695, %v2834
        %v2955 = vadd.f32 %v2698, %v2835
        %v2956 = vadd.f32 %v2703, %v2836
        %v2957 = vadd.f32 %v2706, %v2837
        %v2958 = vadd.f32 %v2776, %v2830
        %v2959 = vadd.f32 %v2779, %v2831
        %v2960 = vadd.f32 %v2784, %v2832
        %v2961 = vadd.f32 %v2787, %v2833
        %v2962 = vadd.f32 %v2792, %v2834
        %v2963 = vadd.f32 %v2795, %v2835
        %v2964 = vadd.f32 %v2800, %v2836
        %v2965 = vadd.f32 %v2803, %v2837
        %vm2966 = vcmask 523264
        %v2967 = vsel %vm2966, %v2838, -inf
        %2968 = vmax.xlane.f32.xlu0 %v2967
        %v2969 = vpop.xlane.xlu0 %2968
        %v2970 = vsel %vm2966, %v2839, -inf
        %2971 = vmax.xlane.f32.xlu0 %v2970
        %v2972 = vpop.xlane.xlu0 %2971
        %v2973 = vsel %vm2966, %v2840, -inf
        %2974 = vmax.xlane.f32.xlu0 %v2973
        %v2975 = vpop.xlane.xlu0 %2974
        %v2976 = vsel %vm2966, %v2841, -inf
        %2977 = vmax.xlane.f32.xlu0 %v2976
        %v2978 = vpop.xlane.xlu0 %2977
        %v2979 = vsel %vm2966, %v2842, -inf
        %2980 = vmax.xlane.f32.xlu0 %v2979
        %v2981 = vpop.xlane.xlu0 %2980
        %v2982 = vsel %vm2966, %v2843, -inf
        %2983 = vmax.xlane.f32.xlu0 %v2982
        %v2984 = vpop.xlane.xlu0 %2983
        %v2985 = vsel %vm2966, %v2844, -inf
        %2986 = vmax.xlane.f32.xlu0 %v2985
        %v2987 = vpop.xlane.xlu0 %2986
        %v2988 = vsel %vm2966, %v2845, -inf
        %2989 = vmax.xlane.f32.xlu0 %v2988
        %v2990 = vpop.xlane.xlu0 %2989
        %v2991 = vsel %vm2966, %v2846, -inf
        %2992 = vmax.xlane.f32.xlu0 %v2991
        %v2993 = vpop.xlane.xlu0 %2992
        %v2994 = vsel %vm2966, %v2847, -inf
        %2995 = vmax.xlane.f32.xlu0 %v2994
        %v2996 = vpop.xlane.xlu0 %2995
        %v2997 = vsel %vm2966, %v2848, -inf
        %2998 = vmax.xlane.f32.xlu0 %v2997
        %v2999 = vpop.xlane.xlu0 %2998
        %v3000 = vsel %vm2966, %v2849, -inf
        %3001 = vmax.xlane.f32.xlu0 %v3000
        %v3002 = vpop.xlane.xlu0 %3001
        %v3003 = vsel %vm2966, %v2850, -inf
        %3004 = vmax.xlane.f32.xlu0 %v3003
        %v3005 = vpop.xlane.xlu0 %3004
        %v3006 = vsel %vm2966, %v2851, -inf
        %3007 = vmax.xlane.f32.xlu0 %v3006
        %v3008 = vpop.xlane.xlu0 %3007
        %v3009 = vsel %vm2966, %v2852, -inf
        %3010 = vmax.xlane.f32.xlu0 %v3009
        %v3011 = vpop.xlane.xlu0 %3010
        %v3012 = vsel %vm2966, %v2853, -inf
        %3013 = vmax.xlane.f32.xlu0 %v3012
        %v3014 = vpop.xlane.xlu0 %3013
        %v3015 = vsel %vm2966, %v2854, -inf
        %3016 = vmax.xlane.f32.xlu0 %v3015
        %v3017 = vpop.xlane.xlu0 %3016
        %v3018 = vsel %vm2966, %v2855, -inf
        %3019 = vmax.xlane.f32.xlu0 %v3018
        %v3020 = vpop.xlane.xlu0 %3019
        %v3021 = vsel %vm2966, %v2856, -inf
        %3022 = vmax.xlane.f32.xlu0 %v3021
        %v3023 = vpop.xlane.xlu0 %3022
        %v3024 = vsel %vm2966, %v2857, -inf
        %3025 = vmax.xlane.f32.xlu0 %v3024
        %v3026 = vpop.xlane.xlu0 %3025
        %v3027 = vsel %vm2966, %v2858, -inf
        %3028 = vmax.xlane.f32.xlu0 %v3027
        %v3029 = vpop.xlane.xlu0 %3028
        %v3030 = vsel %vm2966, %v2859, -inf
        %3031 = vmax.xlane.f32.xlu0 %v3030
        %v3032 = vpop.xlane.xlu0 %3031
        %v3033 = vsel %vm2966, %v2860, -inf
        %3034 = vmax.xlane.f32.xlu0 %v3033
        %v3035 = vpop.xlane.xlu0 %3034
        %v3036 = vsel %vm2966, %v2861, -inf
        %3037 = vmax.xlane.f32.xlu0 %v3036
        %v3038 = vpop.xlane.xlu0 %3037
        %v3039 = vsel %vm2966, %v2862, -inf
        %3040 = vmax.xlane.f32.xlu0 %v3039
        %v3041 = vpop.xlane.xlu0 %3040
        %v3042 = vsel %vm2966, %v2863, -inf
        %3043 = vmax.xlane.f32.xlu0 %v3042
        %v3044 = vpop.xlane.xlu0 %3043
        %v3045 = vsel %vm2966, %v2864, -inf
        %3046 = vmax.xlane.f32.xlu0 %v3045
        %v3047 = vpop.xlane.xlu0 %3046
        %v3048 = vsel %vm2966, %v2865, -inf
        %3049 = vmax.xlane.f32.xlu0 %v3048
        %v3050 = vpop.xlane.xlu0 %3049
        %v3051 = vsel %vm2966, %v2866, -inf
        %3052 = vmax.xlane.f32.xlu0 %v3051
        %v3053 = vpop.xlane.xlu0 %3052
        %v3054 = vsel %vm2966, %v2867, -inf
        %3055 = vmax.xlane.f32.xlu0 %v3054
        %v3056 = vpop.xlane.xlu0 %3055
        %v3057 = vsel %vm2966, %v2868, -inf
        %3058 = vmax.xlane.f32.xlu0 %v3057
        %v3059 = vpop.xlane.xlu0 %3058
        %v3060 = vsel %vm2966, %v2869, -inf
        %3061 = vmax.xlane.f32.xlu0 %v3060
        %v3062 = vpop.xlane.xlu0 %3061
        %v3063 = vsel %vm2966, %v2870, -inf
        %3064 = vmax.xlane.f32.xlu0 %v3063
        %v3065 = vpop.xlane.xlu0 %3064
        %v3066 = vsel %vm2966, %v2871, -inf
        %3067 = vmax.xlane.f32.xlu0 %v3066
        %v3068 = vpop.xlane.xlu0 %3067
        %v3069 = vsel %vm2966, %v2872, -inf
        %3070 = vmax.xlane.f32.xlu0 %v3069
        %v3071 = vpop.xlane.xlu0 %3070
        %v3072 = vsel %vm2966, %v2873, -inf
        %3073 = vmax.xlane.f32.xlu0 %v3072
        %v3074 = vpop.xlane.xlu0 %3073
        %v3075 = vsel %vm2966, %v2874, -inf
        %3076 = vmax.xlane.f32.xlu0 %v3075
        %v3077 = vpop.xlane.xlu0 %3076
        %v3078 = vsel %vm2966, %v2875, -inf
        %3079 = vmax.xlane.f32.xlu0 %v3078
        %v3080 = vpop.xlane.xlu0 %3079
        %v3081 = vsel %vm2966, %v2876, -inf
        %3082 = vmax.xlane.f32.xlu0 %v3081
        %v3083 = vpop.xlane.xlu0 %3082
        %v3084 = vsel %vm2966, %v2877, -inf
        %3085 = vmax.xlane.f32.xlu0 %v3084
        %v3086 = vpop.xlane.xlu0 %3085
        %v3087 = vsel %vm2966, %v2878, -inf
        %3088 = vmax.xlane.f32.xlu0 %v3087
        %v3089 = vpop.xlane.xlu0 %3088
        %v3090 = vsel %vm2966, %v2879, -inf
        %3091 = vmax.xlane.f32.xlu0 %v3090
        %v3092 = vpop.xlane.xlu0 %3091
        %v3093 = vsel %vm2966, %v2880, -inf
        %3094 = vmax.xlane.f32.xlu0 %v3093
        %v3095 = vpop.xlane.xlu0 %3094
        %v3096 = vsel %vm2966, %v2881, -inf
        %3097 = vmax.xlane.f32.xlu0 %v3096
        %v3098 = vpop.xlane.xlu0 %3097
        %v3099 = vsel %vm2966, %v2882, -inf
        %3100 = vmax.xlane.f32.xlu0 %v3099
        %v3101 = vpop.xlane.xlu0 %3100
        %v3102 = vsel %vm2966, %v2883, -inf
        %3103 = vmax.xlane.f32.xlu0 %v3102
        %v3104 = vpop.xlane.xlu0 %3103
        %v3105 = vsel %vm2966, %v2884, -inf
        %3106 = vmax.xlane.f32.xlu0 %v3105
        %v3107 = vpop.xlane.xlu0 %3106
        %v3108 = vsel %vm2966, %v2885, -inf
        %3109 = vmax.xlane.f32.xlu0 %v3108
        %v3110 = vpop.xlane.xlu0 %3109
        %v3111 = vsel %vm2966, %v2886, -inf
        %3112 = vmax.xlane.f32.xlu0 %v3111
        %v3113 = vpop.xlane.xlu0 %3112
        %v3114 = vsel %vm2966, %v2887, -inf
        %3115 = vmax.xlane.f32.xlu0 %v3114
        %v3116 = vpop.xlane.xlu0 %3115
        %v3117 = vsel %vm2966, %v2888, -inf
        %3118 = vmax.xlane.f32.xlu0 %v3117
        %v3119 = vpop.xlane.xlu0 %3118
        %v3120 = vsel %vm2966, %v2889, -inf
        %3121 = vmax.xlane.f32.xlu0 %v3120
        %v3122 = vpop.xlane.xlu0 %3121
        %v3123 = vsel %vm2966, %v2890, -inf
        %3124 = vmax.xlane.f32.xlu0 %v3123
        %v3125 = vpop.xlane.xlu0 %3124
        %v3126 = vsel %vm2966, %v2891, -inf
        %3127 = vmax.xlane.f32.xlu0 %v3126
        %v3128 = vpop.xlane.xlu0 %3127
        %v3129 = vsel %vm2966, %v2892, -inf
        %3130 = vmax.xlane.f32.xlu0 %v3129
        %v3131 = vpop.xlane.xlu0 %3130
        %v3132 = vsel %vm2966, %v2893, -inf
        %3133 = vmax.xlane.f32.xlu0 %v3132
        %v3134 = vpop.xlane.xlu0 %3133
        %v3135 = vsel %vm2966, %v2894, -inf
        %3136 = vmax.xlane.f32.xlu0 %v3135
        %v3137 = vpop.xlane.xlu0 %3136
        %v3138 = vsel %vm2966, %v2895, -inf
        %3139 = vmax.xlane.f32.xlu0 %v3138
        %v3140 = vpop.xlane.xlu0 %3139
        %v3141 = vsel %vm2966, %v2896, -inf
        %3142 = vmax.xlane.f32.xlu0 %v3141
        %v3143 = vpop.xlane.xlu0 %3142
        %v3144 = vsel %vm2966, %v2897, -inf
        %3145 = vmax.xlane.f32.xlu0 %v3144
        %v3146 = vpop.xlane.xlu0 %3145
        %v3147 = vsel %vm2966, %v2898, -inf
        %3148 = vmax.xlane.f32.xlu0 %v3147
        %v3149 = vpop.xlane.xlu0 %3148
        %v3150 = vsel %vm2966, %v2899, -inf
        %3151 = vmax.xlane.f32.xlu0 %v3150
        %v3152 = vpop.xlane.xlu0 %3151
        %v3153 = vsel %vm2966, %v2900, -inf
        %3154 = vmax.xlane.f32.xlu0 %v3153
        %v3155 = vpop.xlane.xlu0 %3154
        %v3156 = vsel %vm2966, %v2901, -inf
        %3157 = vmax.xlane.f32.xlu0 %v3156
        %v3158 = vpop.xlane.xlu0 %3157
        %v3159 = vsel %vm2966, %v2902, -inf
        %3160 = vmax.xlane.f32.xlu0 %v3159
        %v3161 = vpop.xlane.xlu0 %3160
        %v3162 = vsel %vm2966, %v2903, -inf
        %3163 = vmax.xlane.f32.xlu0 %v3162
        %v3164 = vpop.xlane.xlu0 %3163
        %v3165 = vsel %vm2966, %v2904, -inf
        %3166 = vmax.xlane.f32.xlu0 %v3165
        %v3167 = vpop.xlane.xlu0 %3166
        %v3168 = vsel %vm2966, %v2905, -inf
        %3169 = vmax.xlane.f32.xlu0 %v3168
        %v3170 = vpop.xlane.xlu0 %3169
        %v3171 = vsel %vm2966, %v2906, -inf
        %3172 = vmax.xlane.f32.xlu0 %v3171
        %v3173 = vpop.xlane.xlu0 %3172
        %v3174 = vsel %vm2966, %v2907, -inf
        %3175 = vmax.xlane.f32.xlu0 %v3174
        %v3176 = vpop.xlane.xlu0 %3175
        %v3177 = vsel %vm2966, %v2908, -inf
        %3178 = vmax.xlane.f32.xlu0 %v3177
        %v3179 = vpop.xlane.xlu0 %3178
        %v3180 = vsel %vm2966, %v2909, -inf
        %3181 = vmax.xlane.f32.xlu0 %v3180
        %v3182 = vpop.xlane.xlu0 %3181
        %v3183 = vsel %vm2966, %v2910, -inf
        %3184 = vmax.xlane.f32.xlu0 %v3183
        %v3185 = vpop.xlane.xlu0 %3184
        %v3186 = vsel %vm2966, %v2911, -inf
        %3187 = vmax.xlane.f32.xlu0 %v3186
        %v3188 = vpop.xlane.xlu0 %3187
        %v3189 = vsel %vm2966, %v2912, -inf
        %3190 = vmax.xlane.f32.xlu0 %v3189
        %v3191 = vpop.xlane.xlu0 %3190
        %v3192 = vsel %vm2966, %v2913, -inf
        %3193 = vmax.xlane.f32.xlu0 %v3192
        %v3194 = vpop.xlane.xlu0 %3193
        %v3195 = vsel %vm2966, %v2914, -inf
        %3196 = vmax.xlane.f32.xlu0 %v3195
        %v3197 = vpop.xlane.xlu0 %3196
        %v3198 = vsel %vm2966, %v2915, -inf
        %3199 = vmax.xlane.f32.xlu0 %v3198
        %v3200 = vpop.xlane.xlu0 %3199
        %v3201 = vsel %vm2966, %v2916, -inf
        %3202 = vmax.xlane.f32.xlu0 %v3201
        %v3203 = vpop.xlane.xlu0 %3202
        %v3204 = vsel %vm2966, %v2917, -inf
        %3205 = vmax.xlane.f32.xlu0 %v3204
        %v3206 = vpop.xlane.xlu0 %3205
        %v3207 = vsel %vm2966, %v2918, -inf
        %3208 = vmax.xlane.f32.xlu0 %v3207
        %v3209 = vpop.xlane.xlu0 %3208
        %v3210 = vsel %vm2966, %v2919, -inf
        %3211 = vmax.xlane.f32.xlu0 %v3210
        %v3212 = vpop.xlane.xlu0 %3211
        %v3213 = vsel %vm2966, %v2920, -inf
        %3214 = vmax.xlane.f32.xlu0 %v3213
        %v3215 = vpop.xlane.xlu0 %3214
        %v3216 = vsel %vm2966, %v2921, -inf
        %3217 = vmax.xlane.f32.xlu0 %v3216
        %v3218 = vpop.xlane.xlu0 %3217
        %v3219 = vsel %vm2966, %v2922, -inf
        %3220 = vmax.xlane.f32.xlu0 %v3219
        %v3221 = vpop.xlane.xlu0 %3220
        %v3222 = vsel %vm2966, %v2923, -inf
        %3223 = vmax.xlane.f32.xlu0 %v3222
        %v3224 = vpop.xlane.xlu0 %3223
        %v3225 = vsel %vm2966, %v2924, -inf
        %3226 = vmax.xlane.f32.xlu0 %v3225
        %v3227 = vpop.xlane.xlu0 %3226
        %v3228 = vsel %vm2966, %v2925, -inf
        %3229 = vmax.xlane.f32.xlu0 %v3228
        %v3230 = vpop.xlane.xlu0 %3229
        %v3231 = vsel %vm2966, %v2926, -inf
        %3232 = vmax.xlane.f32.xlu0 %v3231
        %v3233 = vpop.xlane.xlu0 %3232
        %v3234 = vsel %vm2966, %v2927, -inf
        %3235 = vmax.xlane.f32.xlu0 %v3234
        %v3236 = vpop.xlane.xlu0 %3235
        %v3237 = vsel %vm2966, %v2928, -inf
        %3238 = vmax.xlane.f32.xlu0 %v3237
        %v3239 = vpop.xlane.xlu0 %3238
        %v3240 = vsel %vm2966, %v2929, -inf
        %3241 = vmax.xlane.f32.xlu0 %v3240
        %v3242 = vpop.xlane.xlu0 %3241
        %v3243 = vsel %vm2966, %v2930, -inf
        %3244 = vmax.xlane.f32.xlu0 %v3243
        %v3245 = vpop.xlane.xlu0 %3244
        %v3246 = vsel %vm2966, %v2931, -inf
        %3247 = vmax.xlane.f32.xlu0 %v3246
        %v3248 = vpop.xlane.xlu0 %3247
        %v3249 = vsel %vm2966, %v2932, -inf
        %3250 = vmax.xlane.f32.xlu0 %v3249
        %v3251 = vpop.xlane.xlu0 %3250
        %v3252 = vsel %vm2966, %v2933, -inf
        %3253 = vmax.xlane.f32.xlu0 %v3252
        %v3254 = vpop.xlane.xlu0 %3253
        %v3255 = vsel %vm2966, %v2934, -inf
        %3256 = vmax.xlane.f32.xlu0 %v3255
        %v3257 = vpop.xlane.xlu0 %3256
        %v3258 = vsel %vm2966, %v2935, -inf
        %3259 = vmax.xlane.f32.xlu0 %v3258
        %v3260 = vpop.xlane.xlu0 %3259
        %v3261 = vsel %vm2966, %v2936, -inf
        %3262 = vmax.xlane.f32.xlu0 %v3261
        %v3263 = vpop.xlane.xlu0 %3262
        %v3264 = vsel %vm2966, %v2937, -inf
        %3265 = vmax.xlane.f32.xlu0 %v3264
        %v3266 = vpop.xlane.xlu0 %3265
        %v3267 = vsel %vm2966, %v2938, -inf
        %3268 = vmax.xlane.f32.xlu0 %v3267
        %v3269 = vpop.xlane.xlu0 %3268
        %v3270 = vsel %vm2966, %v2939, -inf
        %3271 = vmax.xlane.f32.xlu0 %v3270
        %v3272 = vpop.xlane.xlu0 %3271
        %v3273 = vsel %vm2966, %v2940, -inf
        %3274 = vmax.xlane.f32.xlu0 %v3273
        %v3275 = vpop.xlane.xlu0 %3274
        %v3276 = vsel %vm2966, %v2941, -inf
        %3277 = vmax.xlane.f32.xlu0 %v3276
        %v3278 = vpop.xlane.xlu0 %3277
        %v3279 = vsel %vm2966, %v2942, -inf
        %3280 = vmax.xlane.f32.xlu0 %v3279
        %v3281 = vpop.xlane.xlu0 %3280
        %v3282 = vsel %vm2966, %v2943, -inf
        %3283 = vmax.xlane.f32.xlu0 %v3282
        %v3284 = vpop.xlane.xlu0 %3283
        %v3285 = vsel %vm2966, %v2944, -inf
        %3286 = vmax.xlane.f32.xlu0 %v3285
        %v3287 = vpop.xlane.xlu0 %3286
        %v3288 = vsel %vm2966, %v2945, -inf
        %3289 = vmax.xlane.f32.xlu0 %v3288
        %v3290 = vpop.xlane.xlu0 %3289
        %v3291 = vsel %vm2966, %v2946, -inf
        %3292 = vmax.xlane.f32.xlu0 %v3291
        %v3293 = vpop.xlane.xlu0 %3292
        %v3294 = vsel %vm2966, %v2947, -inf
        %3295 = vmax.xlane.f32.xlu0 %v3294
        %v3296 = vpop.xlane.xlu0 %3295
        %v3297 = vsel %vm2966, %v2948, -inf
        %3298 = vmax.xlane.f32.xlu0 %v3297
        %v3299 = vpop.xlane.xlu0 %3298
        %v3300 = vsel %vm2966, %v2949, -inf
        %3301 = vmax.xlane.f32.xlu0 %v3300
        %v3302 = vpop.xlane.xlu0 %3301
        %v3303 = vsel %vm2966, %v2950, -inf
        %3304 = vmax.xlane.f32.xlu0 %v3303
        %v3305 = vpop.xlane.xlu0 %3304
        %v3306 = vsel %vm2966, %v2951, -inf
        %3307 = vmax.xlane.f32.xlu0 %v3306
        %v3308 = vpop.xlane.xlu0 %3307
        %v3309 = vsel %vm2966, %v2952, -inf
        %3310 = vmax.xlane.f32.xlu0 %v3309
        %v3311 = vpop.xlane.xlu0 %3310
        %v3312 = vsel %vm2966, %v2953, -inf
        %3313 = vmax.xlane.f32.xlu0 %v3312
        %v3314 = vpop.xlane.xlu0 %3313
        %v3315 = vsel %vm2966, %v2954, -inf
        %3316 = vmax.xlane.f32.xlu0 %v3315
        %v3317 = vpop.xlane.xlu0 %3316
        %v3318 = vsel %vm2966, %v2955, -inf
        %3319 = vmax.xlane.f32.xlu0 %v3318
        %v3320 = vpop.xlane.xlu0 %3319
        %v3321 = vsel %vm2966, %v2956, -inf
        %3322 = vmax.xlane.f32.xlu0 %v3321
        %v3323 = vpop.xlane.xlu0 %3322
        %v3324 = vsel %vm2966, %v2957, -inf
        %3325 = vmax.xlane.f32.xlu0 %v3324
        %v3326 = vpop.xlane.xlu0 %3325
        %v3327 = vsel %vm2966, %v2958, -inf
        %3328 = vmax.xlane.f32.xlu0 %v3327
        %v3329 = vpop.xlane.xlu0 %3328
        %v3330 = vsel %vm2966, %v2959, -inf
        %3331 = vmax.xlane.f32.xlu0 %v3330
        %v3332 = vpop.xlane.xlu0 %3331
        %v3333 = vsel %vm2966, %v2960, -inf
        %3334 = vmax.xlane.f32.xlu0 %v3333
        %v3335 = vpop.xlane.xlu0 %3334
        %v3336 = vsel %vm2966, %v2961, -inf
        %3337 = vmax.xlane.f32.xlu0 %v3336
        %v3338 = vpop.xlane.xlu0 %3337
        %v3339 = vsel %vm2966, %v2962, -inf
        %3340 = vmax.xlane.f32.xlu0 %v3339
        %v3341 = vpop.xlane.xlu0 %3340
        %v3342 = vsel %vm2966, %v2963, -inf
        %3343 = vmax.xlane.f32.xlu0 %v3342
        %v3344 = vpop.xlane.xlu0 %3343
        %v3345 = vsel %vm2966, %v2964, -inf
        %3346 = vmax.xlane.f32.xlu0 %v3345
        %v3347 = vpop.xlane.xlu0 %3346
        %v3348 = vsel %vm2966, %v2965, -inf
        %3349 = vmax.xlane.f32.xlu0 %v3348
        %v3350 = vpop.xlane.xlu0 %3349
        %v3351 = vsub.f32 %v2838, %v2969
        %v3352 = vsub.f32 %v2839, %v2972
        %v3353 = vsub.f32 %v2840, %v2975
        %v3354 = vsub.f32 %v2841, %v2978
        %v3355 = vsub.f32 %v2842, %v2981
        %v3356 = vsub.f32 %v2843, %v2984
        %v3357 = vsub.f32 %v2844, %v2987
        %v3358 = vsub.f32 %v2845, %v2990
        %v3359 = vsub.f32 %v2846, %v2993
        %v3360 = vsub.f32 %v2847, %v2996
        %v3361 = vsub.f32 %v2848, %v2999
        %v3362 = vsub.f32 %v2849, %v3002
        %v3363 = vsub.f32 %v2850, %v3005
        %v3364 = vsub.f32 %v2851, %v3008
        %v3365 = vsub.f32 %v2852, %v3011
        %v3366 = vsub.f32 %v2853, %v3014
        %v3367 = vsub.f32 %v2854, %v3017
        %v3368 = vsub.f32 %v2855, %v3020
        %v3369 = vsub.f32 %v2856, %v3023
        %v3370 = vsub.f32 %v2857, %v3026
        %v3371 = vsub.f32 %v2858, %v3029
        %v3372 = vsub.f32 %v2859, %v3032
        %v3373 = vsub.f32 %v2860, %v3035
        %v3374 = vsub.f32 %v2861, %v3038
        %v3375 = vsub.f32 %v2862, %v3041
        %v3376 = vsub.f32 %v2863, %v3044
        %v3377 = vsub.f32 %v2864, %v3047
        %v3378 = vsub.f32 %v2865, %v3050
        %v3379 = vsub.f32 %v2866, %v3053
        %v3380 = vsub.f32 %v2867, %v3056
        %v3381 = vsub.f32 %v2868, %v3059
        %v3382 = vsub.f32 %v2869, %v3062
        %v3383 = vsub.f32 %v2870, %v3065
        %v3384 = vsub.f32 %v2871, %v3068
        %v3385 = vsub.f32 %v2872, %v3071
        %v3386 = vsub.f32 %v2873, %v3074
        %v3387 = vsub.f32 %v2874, %v3077
        %v3388 = vsub.f32 %v2875, %v3080
        %v3389 = vsub.f32 %v2876, %v3083
        %v3390 = vsub.f32 %v2877, %v3086
        %v3391 = vsub.f32 %v2878, %v3089
        %v3392 = vsub.f32 %v2879, %v3092
        %v3393 = vsub.f32 %v2880, %v3095
        %v3394 = vsub.f32 %v2881, %v3098
        %v3395 = vsub.f32 %v2882, %v3101
        %v3396 = vsub.f32 %v2883, %v3104
        %v3397 = vsub.f32 %v2884, %v3107
        %v3398 = vsub.f32 %v2885, %v3110
        %v3399 = vsub.f32 %v2886, %v3113
        %v3400 = vsub.f32 %v2887, %v3116
        %v3401 = vsub.f32 %v2888, %v3119
        %v3402 = vsub.f32 %v2889, %v3122
        %v3403 = vsub.f32 %v2890, %v3125
        %v3404 = vsub.f32 %v2891, %v3128
        %v3405 = vsub.f32 %v2892, %v3131
        %v3406 = vsub.f32 %v2893, %v3134
        %v3407 = vsub.f32 %v2894, %v3137
        %v3408 = vsub.f32 %v2895, %v3140
        %v3409 = vsub.f32 %v2896, %v3143
        %v3410 = vsub.f32 %v2897, %v3146
        %v3411 = vsub.f32 %v2898, %v3149
        %v3412 = vsub.f32 %v2899, %v3152
        %v3413 = vsub.f32 %v2900, %v3155
        %v3414 = vsub.f32 %v2901, %v3158
        %v3415 = vsub.f32 %v2902, %v3161
        %v3416 = vsub.f32 %v2903, %v3164
        %v3417 = vsub.f32 %v2904, %v3167
        %v3418 = vsub.f32 %v2905, %v3170
        %v3419 = vsub.f32 %v2906, %v3173
        %v3420 = vsub.f32 %v2907, %v3176
        %v3421 = vsub.f32 %v2908, %v3179
        %v3422 = vsub.f32 %v2909, %v3182
        %v3423 = vsub.f32 %v2910, %v3185
        %v3424 = vsub.f32 %v2911, %v3188
        %v3425 = vsub.f32 %v2912, %v3191
        %v3426 = vsub.f32 %v2913, %v3194
        %v3427 = vsub.f32 %v2914, %v3197
        %v3428 = vsub.f32 %v2915, %v3200
        %v3429 = vsub.f32 %v2916, %v3203
        %v3430 = vsub.f32 %v2917, %v3206
        %v3431 = vsub.f32 %v2918, %v3209
        %v3432 = vsub.f32 %v2919, %v3212
        %v3433 = vsub.f32 %v2920, %v3215
        %v3434 = vsub.f32 %v2921, %v3218
        %v3435 = vsub.f32 %v2922, %v3221
        %v3436 = vsub.f32 %v2923, %v3224
        %v3437 = vsub.f32 %v2924, %v3227
        %v3438 = vsub.f32 %v2925, %v3230
        %v3439 = vsub.f32 %v2926, %v3233
        %v3440 = vsub.f32 %v2927, %v3236
        %v3441 = vsub.f32 %v2928, %v3239
        %v3442 = vsub.f32 %v2929, %v3242
        %v3443 = vsub.f32 %v2930, %v3245
        %v3444 = vsub.f32 %v2931, %v3248
        %v3445 = vsub.f32 %v2932, %v3251
        %v3446 = vsub.f32 %v2933, %v3254
        %v3447 = vsub.f32 %v2934, %v3257
        %v3448 = vsub.f32 %v2935, %v3260
        %v3449 = vsub.f32 %v2936, %v3263
        %v3450 = vsub.f32 %v2937, %v3266
        %v3451 = vsub.f32 %v2938, %v3269
        %v3452 = vsub.f32 %v2939, %v3272
        %v3453 = vsub.f32 %v2940, %v3275
        %v3454 = vsub.f32 %v2941, %v3278
        %v3455 = vsub.f32 %v2942, %v3281
        %v3456 = vsub.f32 %v2943, %v3284
        %v3457 = vsub.f32 %v2944, %v3287
        %v3458 = vsub.f32 %v2945, %v3290
        %v3459 = vsub.f32 %v2946, %v3293
        %v3460 = vsub.f32 %v2947, %v3296
        %v3461 = vsub.f32 %v2948, %v3299
        %v3462 = vsub.f32 %v2949, %v3302
        %v3463 = vsub.f32 %v2950, %v3305
        %v3464 = vsub.f32 %v2951, %v3308
        %v3465 = vsub.f32 %v2952, %v3311
        %v3466 = vsub.f32 %v2953, %v3314
        %v3467 = vsub.f32 %v2954, %v3317
        %v3468 = vsub.f32 %v2955, %v3320
        %v3469 = vsub.f32 %v2956, %v3323
        %v3470 = vsub.f32 %v2957, %v3326
        %v3471 = vsub.f32 %v2958, %v3329
        %v3472 = vsub.f32 %v2959, %v3332
        %v3473 = vsub.f32 %v2960, %v3335
        %v3474 = vsub.f32 %v2961, %v3338
        %v3475 = vsub.f32 %v2962, %v3341
        %v3476 = vsub.f32 %v2963, %v3344
        %v3477 = vsub.f32 %v2964, %v3347
        %v3478 = vsub.f32 %v2965, %v3350
        %v3479 = vmul.f32 %v3351, 1.442695
        %v3480 = vpow.pop %v3479
        %v3481 = vmul.f32 %v3352, 1.442695
        %v3482 = vpow.pop %v3481
        %v3483 = vmul.f32 %v3353, 1.442695
        %v3484 = vpow.pop %v3483
        %v3485 = vmul.f32 %v3354, 1.442695
        %v3486 = vpow.pop %v3485
        %v3487 = vmul.f32 %v3355, 1.442695
        %v3488 = vpow.pop %v3487
        %v3489 = vmul.f32 %v3356, 1.442695
        %v3490 = vpow.pop %v3489
        %v3491 = vmul.f32 %v3357, 1.442695
        %v3492 = vpow.pop %v3491
        %v3493 = vmul.f32 %v3358, 1.442695
        %v3494 = vpow.pop %v3493
        %v3495 = vmul.f32 %v3359, 1.442695
        %v3496 = vpow.pop %v3495
        %v3497 = vmul.f32 %v3360, 1.442695
        %v3498 = vpow.pop %v3497
        %v3499 = vmul.f32 %v3361, 1.442695
        %v3500 = vpow.pop %v3499
        %v3501 = vmul.f32 %v3362, 1.442695
        %v3502 = vpow.pop %v3501
        %v3503 = vmul.f32 %v3363, 1.442695
        %v3504 = vpow.pop %v3503
        %v3505 = vmul.f32 %v3364, 1.442695
        %v3506 = vpow.pop %v3505
        %v3507 = vmul.f32 %v3365, 1.442695
        %v3508 = vpow.pop %v3507
        %v3509 = vmul.f32 %v3366, 1.442695
        %v3510 = vpow.pop %v3509
        %v3511 = vmul.f32 %v3367, 1.442695
        %v3512 = vpow.pop %v3511
        %v3513 = vmul.f32 %v3368, 1.442695
        %v3514 = vpow.pop %v3513
        %v3515 = vmul.f32 %v3369, 1.442695
        %v3516 = vpow.pop %v3515
        %v3517 = vmul.f32 %v3370, 1.442695
        %v3518 = vpow.pop %v3517
        %v3519 = vmul.f32 %v3371, 1.442695
        %v3520 = vpow.pop %v3519
        %v3521 = vmul.f32 %v3372, 1.442695
        %v3522 = vpow.pop %v3521
        %v3523 = vmul.f32 %v3373, 1.442695
        %v3524 = vpow.pop %v3523
        %v3525 = vmul.f32 %v3374, 1.442695
        %v3526 = vpow.pop %v3525
        %v3527 = vmul.f32 %v3375, 1.442695
        %v3528 = vpow.pop %v3527
        %v3529 = vmul.f32 %v3376, 1.442695
        %v3530 = vpow.pop %v3529
        %v3531 = vmul.f32 %v3377, 1.442695
        %v3532 = vpow.pop %v3531
        %v3533 = vmul.f32 %v3378, 1.442695
        %v3534 = vpow.pop %v3533
        %v3535 = vmul.f32 %v3379, 1.442695
        %v3536 = vpow.pop %v3535
        %v3537 = vmul.f32 %v3380, 1.442695
        %v3538 = vpow.pop %v3537
        %v3539 = vmul.f32 %v3381, 1.442695
        %v3540 = vpow.pop %v3539
        %v3541 = vmul.f32 %v3382, 1.442695
        %v3542 = vpow.pop %v3541
        %v3543 = vmul.f32 %v3383, 1.442695
        %v3544 = vpow.pop %v3543
        %v3545 = vmul.f32 %v3384, 1.442695
        %v3546 = vpow.pop %v3545
        %v3547 = vmul.f32 %v3385, 1.442695
        %v3548 = vpow.pop %v3547
        %v3549 = vmul.f32 %v3386, 1.442695
        %v3550 = vpow.pop %v3549
        %v3551 = vmul.f32 %v3387, 1.442695
        %v3552 = vpow.pop %v3551
        %v3553 = vmul.f32 %v3388, 1.442695
        %v3554 = vpow.pop %v3553
        %v3555 = vmul.f32 %v3389, 1.442695
        %v3556 = vpow.pop %v3555
        %v3557 = vmul.f32 %v3390, 1.442695
        %v3558 = vpow.pop %v3557
        %v3559 = vmul.f32 %v3391, 1.442695
        %v3560 = vpow.pop %v3559
        %v3561 = vmul.f32 %v3392, 1.442695
        %v3562 = vpow.pop %v3561
        %v3563 = vmul.f32 %v3393, 1.442695
        %v3564 = vpow.pop %v3563
        %v3565 = vmul.f32 %v3394, 1.442695
        %v3566 = vpow.pop %v3565
        %v3567 = vmul.f32 %v3395, 1.442695
        %v3568 = vpow.pop %v3567
        %v3569 = vmul.f32 %v3396, 1.442695
        %v3570 = vpow.pop %v3569
        %v3571 = vmul.f32 %v3397, 1.442695
        %v3572 = vpow.pop %v3571
        %v3573 = vmul.f32 %v3398, 1.442695
        %v3574 = vpow.pop %v3573
        %v3575 = vmul.f32 %v3399, 1.442695
        %v3576 = vpow.pop %v3575
        %v3577 = vmul.f32 %v3400, 1.442695
        %v3578 = vpow.pop %v3577
        %v3579 = vmul.f32 %v3401, 1.442695
        %v3580 = vpow.pop %v3579
        %v3581 = vmul.f32 %v3402, 1.442695
        %v3582 = vpow.pop %v3581
        %v3583 = vmul.f32 %v3403, 1.442695
        %v3584 = vpow.pop %v3583
        %v3585 = vmul.f32 %v3404, 1.442695
        %v3586 = vpow.pop %v3585
        %v3587 = vmul.f32 %v3405, 1.442695
        %v3588 = vpow.pop %v3587
        %v3589 = vmul.f32 %v3406, 1.442695
        %v3590 = vpow.pop %v3589
        %v3591 = vmul.f32 %v3407, 1.442695
        %v3592 = vpow.pop %v3591
        %v3593 = vmul.f32 %v3408, 1.442695
        %v3594 = vpow.pop %v3593
        %v3595 = vmul.f32 %v3409, 1.442695
        %v3596 = vpow.pop %v3595
        %v3597 = vmul.f32 %v3410, 1.442695
        %v3598 = vpow.pop %v3597
        %v3599 = vmul.f32 %v3411, 1.442695
        %v3600 = vpow.pop %v3599
        %v3601 = vmul.f32 %v3412, 1.442695
        %v3602 = vpow.pop %v3601
        %v3603 = vmul.f32 %v3413, 1.442695
        %v3604 = vpow.pop %v3603
        %v3605 = vmul.f32 %v3414, 1.442695
        %v3606 = vpow.pop %v3605
        %v3607 = vmul.f32 %v3415, 1.442695
        %v3608 = vpow.pop %v3607
        %v3609 = vmul.f32 %v3416, 1.442695
        %v3610 = vpow.pop %v3609
        %v3611 = vmul.f32 %v3417, 1.442695
        %v3612 = vpow.pop %v3611
        %v3613 = vmul.f32 %v3418, 1.442695
        %v3614 = vpow.pop %v3613
        %v3615 = vmul.f32 %v3419, 1.442695
        %v3616 = vpow.pop %v3615
        %v3617 = vmul.f32 %v3420, 1.442695
        %v3618 = vpow.pop %v3617
        %v3619 = vmul.f32 %v3421, 1.442695
        %v3620 = vpow.pop %v3619
        %v3621 = vmul.f32 %v3422, 1.442695
        %v3622 = vpow.pop %v3621
        %v3623 = vmul.f32 %v3423, 1.442695
        %v3624 = vpow.pop %v3623
        %v3625 = vmul.f32 %v3424, 1.442695
        %v3626 = vpow.pop %v3625
        %v3627 = vmul.f32 %v3425, 1.442695
        %v3628 = vpow.pop %v3627
        %v3629 = vmul.f32 %v3426, 1.442695
        %v3630 = vpow.pop %v3629
        %v3631 = vmul.f32 %v3427, 1.442695
        %v3632 = vpow.pop %v3631
        %v3633 = vmul.f32 %v3428, 1.442695
        %v3634 = vpow.pop %v3633
        %v3635 = vmul.f32 %v3429, 1.442695
        %v3636 = vpow.pop %v3635
        %v3637 = vmul.f32 %v3430, 1.442695
        %v3638 = vpow.pop %v3637
        %v3639 = vmul.f32 %v3431, 1.442695
        %v3640 = vpow.pop %v3639
        %v3641 = vmul.f32 %v3432, 1.442695
        %v3642 = vpow.pop %v3641
        %v3643 = vmul.f32 %v3433, 1.442695
        %v3644 = vpow.pop %v3643
        %v3645 = vmul.f32 %v3434, 1.442695
        %v3646 = vpow.pop %v3645
        %v3647 = vmul.f32 %v3435, 1.442695
        %v3648 = vpow.pop %v3647
        %v3649 = vmul.f32 %v3436, 1.442695
        %v3650 = vpow.pop %v3649
        %v3651 = vmul.f32 %v3437, 1.442695
        %v3652 = vpow.pop %v3651
        %v3653 = vmul.f32 %v3438, 1.442695
        %v3654 = vpow.pop %v3653
        %v3655 = vmul.f32 %v3439, 1.442695
        %v3656 = vpow.pop %v3655
        %v3657 = vmul.f32 %v3440, 1.442695
        %v3658 = vpow.pop %v3657
        %v3659 = vmul.f32 %v3441, 1.442695
        %v3660 = vpow.pop %v3659
        %v3661 = vmul.f32 %v3442, 1.442695
        %v3662 = vpow.pop %v3661
        %v3663 = vmul.f32 %v3443, 1.442695
        %v3664 = vpow.pop %v3663
        %v3665 = vmul.f32 %v3444, 1.442695
        %v3666 = vpow.pop %v3665
        %v3667 = vmul.f32 %v3445, 1.442695
        %v3668 = vpow.pop %v3667
        %v3669 = vmul.f32 %v3446, 1.442695
        %v3670 = vpow.pop %v3669
        %v3671 = vmul.f32 %v3447, 1.442695
        %v3672 = vpow.pop %v3671
        %v3673 = vmul.f32 %v3448, 1.442695
        %v3674 = vpow.pop %v3673
        %v3675 = vmul.f32 %v3449, 1.442695
        %v3676 = vpow.pop %v3675
        %v3677 = vmul.f32 %v3450, 1.442695
        %v3678 = vpow.pop %v3677
        %v3679 = vmul.f32 %v3451, 1.442695
        %v3680 = vpow.pop %v3679
        %v3681 = vmul.f32 %v3452, 1.442695
        %v3682 = vpow.pop %v3681
        %v3683 = vmul.f32 %v3453, 1.442695
        %v3684 = vpow.pop %v3683
        %v3685 = vmul.f32 %v3454, 1.442695
        %v3686 = vpow.pop %v3685
        %v3687 = vmul.f32 %v3455, 1.442695
        %v3688 = vpow.pop %v3687
        %v3689 = vmul.f32 %v3456, 1.442695
        %v3690 = vpow.pop %v3689
        %v3691 = vmul.f32 %v3457, 1.442695
        %v3692 = vpow.pop %v3691
        %v3693 = vmul.f32 %v3458, 1.442695
        %v3694 = vpow.pop %v3693
        %v3695 = vmul.f32 %v3459, 1.442695
        %v3696 = vpow.pop %v3695
        %v3697 = vmul.f32 %v3460, 1.442695
        %v3698 = vpow.pop %v3697
        %v3699 = vmul.f32 %v3461, 1.442695
        %v3700 = vpow.pop %v3699
        %v3701 = vmul.f32 %v3462, 1.442695
        %v3702 = vpow.pop %v3701
        %v3703 = vmul.f32 %v3463, 1.442695
        %v3704 = vpow.pop %v3703
        %v3705 = vmul.f32 %v3464, 1.442695
        %v3706 = vpow.pop %v3705
        %v3707 = vmul.f32 %v3465, 1.442695
        %v3708 = vpow.pop %v3707
        %v3709 = vmul.f32 %v3466, 1.442695
        %v3710 = vpow.pop %v3709
        %v3711 = vmul.f32 %v3467, 1.442695
        %v3712 = vpow.pop %v3711
        %v3713 = vmul.f32 %v3468, 1.442695
        %v3714 = vpow.pop %v3713
        %v3715 = vmul.f32 %v3469, 1.442695
        %v3716 = vpow.pop %v3715
        %v3717 = vmul.f32 %v3470, 1.442695
        %v3718 = vpow.pop %v3717
        %v3719 = vmul.f32 %v3471, 1.442695
        %v3720 = vpow.pop %v3719
        %v3721 = vmul.f32 %v3472, 1.442695
        %v3722 = vpow.pop %v3721
        %v3723 = vmul.f32 %v3473, 1.442695
        %v3724 = vpow.pop %v3723
        %v3725 = vmul.f32 %v3474, 1.442695
        %v3726 = vpow.pop %v3725
        %v3727 = vmul.f32 %v3475, 1.442695
        %v3728 = vpow.pop %v3727
        %v3729 = vmul.f32 %v3476, 1.442695
        %v3730 = vpow.pop %v3729
        %v3731 = vmul.f32 %v3477, 1.442695
        %v3732 = vpow.pop %v3731
        %v3733 = vmul.f32 %v3478, 1.442695
        %v3734 = vpow.pop %v3733
        %v3735 = vsel %vm2966, %v3480, 0.0
        %3736 = vadd.xlane.f32.xlu0 %v3735
        %v3737 = vpop.xlane.xlu0 %3736
        %v3738 = vsel %vm2966, %v3482, 0.0
        %3739 = vadd.xlane.f32.xlu0 %v3738
        %v3740 = vpop.xlane.xlu0 %3739
        %v3741 = vsel %vm2966, %v3484, 0.0
        %3742 = vadd.xlane.f32.xlu0 %v3741
        %v3743 = vpop.xlane.xlu0 %3742
        %v3744 = vsel %vm2966, %v3486, 0.0
        %3745 = vadd.xlane.f32.xlu0 %v3744
        %v3746 = vpop.xlane.xlu0 %3745
        %v3747 = vsel %vm2966, %v3488, 0.0
        %3748 = vadd.xlane.f32.xlu0 %v3747
        %v3749 = vpop.xlane.xlu0 %3748
        %v3750 = vsel %vm2966, %v3490, 0.0
        %3751 = vadd.xlane.f32.xlu0 %v3750
        %v3752 = vpop.xlane.xlu0 %3751
        %v3753 = vsel %vm2966, %v3492, 0.0
        %3754 = vadd.xlane.f32.xlu0 %v3753
        %v3755 = vpop.xlane.xlu0 %3754
        %v3756 = vsel %vm2966, %v3494, 0.0
        %3757 = vadd.xlane.f32.xlu0 %v3756
        %v3758 = vpop.xlane.xlu0 %3757
        %v3759 = vsel %vm2966, %v3496, 0.0
        %3760 = vadd.xlane.f32.xlu0 %v3759
        %v3761 = vpop.xlane.xlu0 %3760
        %v3762 = vsel %vm2966, %v3498, 0.0
        %3763 = vadd.xlane.f32.xlu0 %v3762
        %v3764 = vpop.xlane.xlu0 %3763
        %v3765 = vsel %vm2966, %v3500, 0.0
        %3766 = vadd.xlane.f32.xlu0 %v3765
        %v3767 = vpop.xlane.xlu0 %3766
        %v3768 = vsel %vm2966, %v3502, 0.0
        %3769 = vadd.xlane.f32.xlu0 %v3768
        %v3770 = vpop.xlane.xlu0 %3769
        %v3771 = vsel %vm2966, %v3504, 0.0
        %3772 = vadd.xlane.f32.xlu0 %v3771
        %v3773 = vpop.xlane.xlu0 %3772
        %v3774 = vsel %vm2966, %v3506, 0.0
        %3775 = vadd.xlane.f32.xlu0 %v3774
        %v3776 = vpop.xlane.xlu0 %3775
        %v3777 = vsel %vm2966, %v3508, 0.0
        %3778 = vadd.xlane.f32.xlu0 %v3777
        %v3779 = vpop.xlane.xlu0 %3778
        %v3780 = vsel %vm2966, %v3510, 0.0
        %3781 = vadd.xlane.f32.xlu0 %v3780
        %v3782 = vpop.xlane.xlu0 %3781
        %v3783 = vsel %vm2966, %v3512, 0.0
        %3784 = vadd.xlane.f32.xlu0 %v3783
        %v3785 = vpop.xlane.xlu0 %3784
        %v3786 = vsel %vm2966, %v3514, 0.0
        %3787 = vadd.xlane.f32.xlu0 %v3786
        %v3788 = vpop.xlane.xlu0 %3787
        %v3789 = vsel %vm2966, %v3516, 0.0
        %3790 = vadd.xlane.f32.xlu0 %v3789
        %v3791 = vpop.xlane.xlu0 %3790
        %v3792 = vsel %vm2966, %v3518, 0.0
        %3793 = vadd.xlane.f32.xlu0 %v3792
        %v3794 = vpop.xlane.xlu0 %3793
        %v3795 = vsel %vm2966, %v3520, 0.0
        %3796 = vadd.xlane.f32.xlu0 %v3795
        %v3797 = vpop.xlane.xlu0 %3796
        %v3798 = vsel %vm2966, %v3522, 0.0
        %3799 = vadd.xlane.f32.xlu0 %v3798
        %v3800 = vpop.xlane.xlu0 %3799
        %v3801 = vsel %vm2966, %v3524, 0.0
        %3802 = vadd.xlane.f32.xlu0 %v3801
        %v3803 = vpop.xlane.xlu0 %3802
        %v3804 = vsel %vm2966, %v3526, 0.0
        %3805 = vadd.xlane.f32.xlu0 %v3804
        %v3806 = vpop.xlane.xlu0 %3805
        %v3807 = vsel %vm2966, %v3528, 0.0
        %3808 = vadd.xlane.f32.xlu0 %v3807
        %v3809 = vpop.xlane.xlu0 %3808
        %v3810 = vsel %vm2966, %v3530, 0.0
        %3811 = vadd.xlane.f32.xlu0 %v3810
        %v3812 = vpop.xlane.xlu0 %3811
        %v3813 = vsel %vm2966, %v3532, 0.0
        %3814 = vadd.xlane.f32.xlu0 %v3813
        %v3815 = vpop.xlane.xlu0 %3814
        %v3816 = vsel %vm2966, %v3534, 0.0
        %3817 = vadd.xlane.f32.xlu0 %v3816
        %v3818 = vpop.xlane.xlu0 %3817
        %v3819 = vsel %vm2966, %v3536, 0.0
        %3820 = vadd.xlane.f32.xlu0 %v3819
        %v3821 = vpop.xlane.xlu0 %3820
        %v3822 = vsel %vm2966, %v3538, 0.0
        %3823 = vadd.xlane.f32.xlu0 %v3822
        %v3824 = vpop.xlane.xlu0 %3823
        %v3825 = vsel %vm2966, %v3540, 0.0
        %3826 = vadd.xlane.f32.xlu0 %v3825
        %v3827 = vpop.xlane.xlu0 %3826
        %v3828 = vsel %vm2966, %v3542, 0.0
        %3829 = vadd.xlane.f32.xlu0 %v3828
        %v3830 = vpop.xlane.xlu0 %3829
        %v3831 = vsel %vm2966, %v3544, 0.0
        %3832 = vadd.xlane.f32.xlu0 %v3831
        %v3833 = vpop.xlane.xlu0 %3832
        %v3834 = vsel %vm2966, %v3546, 0.0
        %3835 = vadd.xlane.f32.xlu0 %v3834
        %v3836 = vpop.xlane.xlu0 %3835
        %v3837 = vsel %vm2966, %v3548, 0.0
        %3838 = vadd.xlane.f32.xlu0 %v3837
        %v3839 = vpop.xlane.xlu0 %3838
        %v3840 = vsel %vm2966, %v3550, 0.0
        %3841 = vadd.xlane.f32.xlu0 %v3840
        %v3842 = vpop.xlane.xlu0 %3841
        %v3843 = vsel %vm2966, %v3552, 0.0
        %3844 = vadd.xlane.f32.xlu0 %v3843
        %v3845 = vpop.xlane.xlu0 %3844
        %v3846 = vsel %vm2966, %v3554, 0.0
        %3847 = vadd.xlane.f32.xlu0 %v3846
        %v3848 = vpop.xlane.xlu0 %3847
        %v3849 = vsel %vm2966, %v3556, 0.0
        %3850 = vadd.xlane.f32.xlu0 %v3849
        %v3851 = vpop.xlane.xlu0 %3850
        %v3852 = vsel %vm2966, %v3558, 0.0
        %3853 = vadd.xlane.f32.xlu0 %v3852
        %v3854 = vpop.xlane.xlu0 %3853
        %v3855 = vsel %vm2966, %v3560, 0.0
        %3856 = vadd.xlane.f32.xlu0 %v3855
        %v3857 = vpop.xlane.xlu0 %3856
        %v3858 = vsel %vm2966, %v3562, 0.0
        %3859 = vadd.xlane.f32.xlu0 %v3858
        %v3860 = vpop.xlane.xlu0 %3859
        %v3861 = vsel %vm2966, %v3564, 0.0
        %3862 = vadd.xlane.f32.xlu0 %v3861
        %v3863 = vpop.xlane.xlu0 %3862
        %v3864 = vsel %vm2966, %v3566, 0.0
        %3865 = vadd.xlane.f32.xlu0 %v3864
        %v3866 = vpop.xlane.xlu0 %3865
        %v3867 = vsel %vm2966, %v3568, 0.0
        %3868 = vadd.xlane.f32.xlu0 %v3867
        %v3869 = vpop.xlane.xlu0 %3868
        %v3870 = vsel %vm2966, %v3570, 0.0
        %3871 = vadd.xlane.f32.xlu0 %v3870
        %v3872 = vpop.xlane.xlu0 %3871
        %v3873 = vsel %vm2966, %v3572, 0.0
        %3874 = vadd.xlane.f32.xlu0 %v3873
        %v3875 = vpop.xlane.xlu0 %3874
        %v3876 = vsel %vm2966, %v3574, 0.0
        %3877 = vadd.xlane.f32.xlu0 %v3876
        %v3878 = vpop.xlane.xlu0 %3877
        %v3879 = vsel %vm2966, %v3576, 0.0
        %3880 = vadd.xlane.f32.xlu0 %v3879
        %v3881 = vpop.xlane.xlu0 %3880
        %v3882 = vsel %vm2966, %v3578, 0.0
        %3883 = vadd.xlane.f32.xlu0 %v3882
        %v3884 = vpop.xlane.xlu0 %3883
        %v3885 = vsel %vm2966, %v3580, 0.0
        %3886 = vadd.xlane.f32.xlu0 %v3885
        %v3887 = vpop.xlane.xlu0 %3886
        %v3888 = vsel %vm2966, %v3582, 0.0
        %3889 = vadd.xlane.f32.xlu0 %v3888
        %v3890 = vpop.xlane.xlu0 %3889
        %v3891 = vsel %vm2966, %v3584, 0.0
        %3892 = vadd.xlane.f32.xlu0 %v3891
        %v3893 = vpop.xlane.xlu0 %3892
        %v3894 = vsel %vm2966, %v3586, 0.0
        %3895 = vadd.xlane.f32.xlu0 %v3894
        %v3896 = vpop.xlane.xlu0 %3895
        %v3897 = vsel %vm2966, %v3588, 0.0
        %3898 = vadd.xlane.f32.xlu0 %v3897
        %v3899 = vpop.xlane.xlu0 %3898
        %v3900 = vsel %vm2966, %v3590, 0.0
        %3901 = vadd.xlane.f32.xlu0 %v3900
        %v3902 = vpop.xlane.xlu0 %3901
        %v3903 = vsel %vm2966, %v3592, 0.0
        %3904 = vadd.xlane.f32.xlu0 %v3903
        %v3905 = vpop.xlane.xlu0 %3904
        %v3906 = vsel %vm2966, %v3594, 0.0
        %3907 = vadd.xlane.f32.xlu0 %v3906
        %v3908 = vpop.xlane.xlu0 %3907
        %v3909 = vsel %vm2966, %v3596, 0.0
        %3910 = vadd.xlane.f32.xlu0 %v3909
        %v3911 = vpop.xlane.xlu0 %3910
        %v3912 = vsel %vm2966, %v3598, 0.0
        %3913 = vadd.xlane.f32.xlu0 %v3912
        %v3914 = vpop.xlane.xlu0 %3913
        %v3915 = vsel %vm2966, %v3600, 0.0
        %3916 = vadd.xlane.f32.xlu0 %v3915
        %v3917 = vpop.xlane.xlu0 %3916
        %v3918 = vsel %vm2966, %v3602, 0.0
        %3919 = vadd.xlane.f32.xlu0 %v3918
        %v3920 = vpop.xlane.xlu0 %3919
        %v3921 = vsel %vm2966, %v3604, 0.0
        %3922 = vadd.xlane.f32.xlu0 %v3921
        %v3923 = vpop.xlane.xlu0 %3922
        %v3924 = vsel %vm2966, %v3606, 0.0
        %3925 = vadd.xlane.f32.xlu0 %v3924
        %v3926 = vpop.xlane.xlu0 %3925
        %v3927 = vsel %vm2966, %v3608, 0.0
        %3928 = vadd.xlane.f32.xlu0 %v3927
        %v3929 = vpop.xlane.xlu0 %3928
        %v3930 = vsel %vm2966, %v3610, 0.0
        %3931 = vadd.xlane.f32.xlu0 %v3930
        %v3932 = vpop.xlane.xlu0 %3931
        %v3933 = vsel %vm2966, %v3612, 0.0
        %3934 = vadd.xlane.f32.xlu0 %v3933
        %v3935 = vpop.xlane.xlu0 %3934
        %v3936 = vsel %vm2966, %v3614, 0.0
        %3937 = vadd.xlane.f32.xlu0 %v3936
        %v3938 = vpop.xlane.xlu0 %3937
        %v3939 = vsel %vm2966, %v3616, 0.0
        %3940 = vadd.xlane.f32.xlu0 %v3939
        %v3941 = vpop.xlane.xlu0 %3940
        %v3942 = vsel %vm2966, %v3618, 0.0
        %3943 = vadd.xlane.f32.xlu0 %v3942
        %v3944 = vpop.xlane.xlu0 %3943
        %v3945 = vsel %vm2966, %v3620, 0.0
        %3946 = vadd.xlane.f32.xlu0 %v3945
        %v3947 = vpop.xlane.xlu0 %3946
        %v3948 = vsel %vm2966, %v3622, 0.0
        %3949 = vadd.xlane.f32.xlu0 %v3948
        %v3950 = vpop.xlane.xlu0 %3949
        %v3951 = vsel %vm2966, %v3624, 0.0
        %3952 = vadd.xlane.f32.xlu0 %v3951
        %v3953 = vpop.xlane.xlu0 %3952
        %v3954 = vsel %vm2966, %v3626, 0.0
        %3955 = vadd.xlane.f32.xlu0 %v3954
        %v3956 = vpop.xlane.xlu0 %3955
        %v3957 = vsel %vm2966, %v3628, 0.0
        %3958 = vadd.xlane.f32.xlu0 %v3957
        %v3959 = vpop.xlane.xlu0 %3958
        %v3960 = vsel %vm2966, %v3630, 0.0
        %3961 = vadd.xlane.f32.xlu0 %v3960
        %v3962 = vpop.xlane.xlu0 %3961
        %v3963 = vsel %vm2966, %v3632, 0.0
        %3964 = vadd.xlane.f32.xlu0 %v3963
        %v3965 = vpop.xlane.xlu0 %3964
        %v3966 = vsel %vm2966, %v3634, 0.0
        %3967 = vadd.xlane.f32.xlu0 %v3966
        %v3968 = vpop.xlane.xlu0 %3967
        %v3969 = vsel %vm2966, %v3636, 0.0
        %3970 = vadd.xlane.f32.xlu0 %v3969
        %v3971 = vpop.xlane.xlu0 %3970
        %v3972 = vsel %vm2966, %v3638, 0.0
        %3973 = vadd.xlane.f32.xlu0 %v3972
        %v3974 = vpop.xlane.xlu0 %3973
        %v3975 = vsel %vm2966, %v3640, 0.0
        %3976 = vadd.xlane.f32.xlu0 %v3975
        %v3977 = vpop.xlane.xlu0 %3976
        %v3978 = vsel %vm2966, %v3642, 0.0
        %3979 = vadd.xlane.f32.xlu0 %v3978
        %v3980 = vpop.xlane.xlu0 %3979
        %v3981 = vsel %vm2966, %v3644, 0.0
        %3982 = vadd.xlane.f32.xlu0 %v3981
        %v3983 = vpop.xlane.xlu0 %3982
        %v3984 = vsel %vm2966, %v3646, 0.0
        %3985 = vadd.xlane.f32.xlu0 %v3984
        %v3986 = vpop.xlane.xlu0 %3985
        %v3987 = vsel %vm2966, %v3648, 0.0
        %3988 = vadd.xlane.f32.xlu0 %v3987
        %v3989 = vpop.xlane.xlu0 %3988
        %v3990 = vsel %vm2966, %v3650, 0.0
        %3991 = vadd.xlane.f32.xlu0 %v3990
        %v3992 = vpop.xlane.xlu0 %3991
        %v3993 = vsel %vm2966, %v3652, 0.0
        %3994 = vadd.xlane.f32.xlu0 %v3993
        %v3995 = vpop.xlane.xlu0 %3994
        %v3996 = vsel %vm2966, %v3654, 0.0
        %3997 = vadd.xlane.f32.xlu0 %v3996
        %v3998 = vpop.xlane.xlu0 %3997
        %v3999 = vsel %vm2966, %v3656, 0.0
        %4000 = vadd.xlane.f32.xlu0 %v3999
        %v4001 = vpop.xlane.xlu0 %4000
        %v4002 = vsel %vm2966, %v3658, 0.0
        %4003 = vadd.xlane.f32.xlu0 %v4002
        %v4004 = vpop.xlane.xlu0 %4003
        %v4005 = vsel %vm2966, %v3660, 0.0
        %4006 = vadd.xlane.f32.xlu0 %v4005
        %v4007 = vpop.xlane.xlu0 %4006
        %v4008 = vsel %vm2966, %v3662, 0.0
        %4009 = vadd.xlane.f32.xlu0 %v4008
        %v4010 = vpop.xlane.xlu0 %4009
        %v4011 = vsel %vm2966, %v3664, 0.0
        %4012 = vadd.xlane.f32.xlu0 %v4011
        %v4013 = vpop.xlane.xlu0 %4012
        %v4014 = vsel %vm2966, %v3666, 0.0
        %4015 = vadd.xlane.f32.xlu0 %v4014
        %v4016 = vpop.xlane.xlu0 %4015
        %v4017 = vsel %vm2966, %v3668, 0.0
        %4018 = vadd.xlane.f32.xlu0 %v4017
        %v4019 = vpop.xlane.xlu0 %4018
        %v4020 = vsel %vm2966, %v3670, 0.0
        %4021 = vadd.xlane.f32.xlu0 %v4020
        %v4022 = vpop.xlane.xlu0 %4021
        %v4023 = vsel %vm2966, %v3672, 0.0
        %4024 = vadd.xlane.f32.xlu0 %v4023
        %v4025 = vpop.xlane.xlu0 %4024
        %v4026 = vsel %vm2966, %v3674, 0.0
        %4027 = vadd.xlane.f32.xlu0 %v4026
        %v4028 = vpop.xlane.xlu0 %4027
        %v4029 = vsel %vm2966, %v3676, 0.0
        %4030 = vadd.xlane.f32.xlu0 %v4029
        %v4031 = vpop.xlane.xlu0 %4030
        %v4032 = vsel %vm2966, %v3678, 0.0
        %4033 = vadd.xlane.f32.xlu0 %v4032
        %v4034 = vpop.xlane.xlu0 %4033
        %v4035 = vsel %vm2966, %v3680, 0.0
        %4036 = vadd.xlane.f32.xlu0 %v4035
        %v4037 = vpop.xlane.xlu0 %4036
        %v4038 = vsel %vm2966, %v3682, 0.0
        %4039 = vadd.xlane.f32.xlu0 %v4038
        %v4040 = vpop.xlane.xlu0 %4039
        %v4041 = vsel %vm2966, %v3684, 0.0
        %4042 = vadd.xlane.f32.xlu0 %v4041
        %v4043 = vpop.xlane.xlu0 %4042
        %v4044 = vsel %vm2966, %v3686, 0.0
        %4045 = vadd.xlane.f32.xlu0 %v4044
        %v4046 = vpop.xlane.xlu0 %4045
        %v4047 = vsel %vm2966, %v3688, 0.0
        %4048 = vadd.xlane.f32.xlu0 %v4047
        %v4049 = vpop.xlane.xlu0 %4048
        %v4050 = vsel %vm2966, %v3690, 0.0
        %4051 = vadd.xlane.f32.xlu0 %v4050
        %v4052 = vpop.xlane.xlu0 %4051
        %v4053 = vsel %vm2966, %v3692, 0.0
        %4054 = vadd.xlane.f32.xlu0 %v4053
        %v4055 = vpop.xlane.xlu0 %4054
        %v4056 = vsel %vm2966, %v3694, 0.0
        %4057 = vadd.xlane.f32.xlu0 %v4056
        %v4058 = vpop.xlane.xlu0 %4057
        %v4059 = vsel %vm2966, %v3696, 0.0
        %4060 = vadd.xlane.f32.xlu0 %v4059
        %v4061 = vpop.xlane.xlu0 %4060
        %v4062 = vsel %vm2966, %v3698, 0.0
        %4063 = vadd.xlane.f32.xlu0 %v4062
        %v4064 = vpop.xlane.xlu0 %4063
        %v4065 = vsel %vm2966, %v3700, 0.0
        %4066 = vadd.xlane.f32.xlu0 %v4065
        %v4067 = vpop.xlane.xlu0 %4066
        %v4068 = vsel %vm2966, %v3702, 0.0
        %4069 = vadd.xlane.f32.xlu0 %v4068
        %v4070 = vpop.xlane.xlu0 %4069
        %v4071 = vsel %vm2966, %v3704, 0.0
        %4072 = vadd.xlane.f32.xlu0 %v4071
        %v4073 = vpop.xlane.xlu0 %4072
        %v4074 = vsel %vm2966, %v3706, 0.0
        %4075 = vadd.xlane.f32.xlu0 %v4074
        %v4076 = vpop.xlane.xlu0 %4075
        %v4077 = vsel %vm2966, %v3708, 0.0
        %4078 = vadd.xlane.f32.xlu0 %v4077
        %v4079 = vpop.xlane.xlu0 %4078
        %v4080 = vsel %vm2966, %v3710, 0.0
        %4081 = vadd.xlane.f32.xlu0 %v4080
        %v4082 = vpop.xlane.xlu0 %4081
        %v4083 = vsel %vm2966, %v3712, 0.0
        %4084 = vadd.xlane.f32.xlu0 %v4083
        %v4085 = vpop.xlane.xlu0 %4084
        %v4086 = vsel %vm2966, %v3714, 0.0
        %4087 = vadd.xlane.f32.xlu0 %v4086
        %v4088 = vpop.xlane.xlu0 %4087
        %v4089 = vsel %vm2966, %v3716, 0.0
        %4090 = vadd.xlane.f32.xlu0 %v4089
        %v4091 = vpop.xlane.xlu0 %4090
        %v4092 = vsel %vm2966, %v3718, 0.0
        %4093 = vadd.xlane.f32.xlu0 %v4092
        %v4094 = vpop.xlane.xlu0 %4093
        %v4095 = vsel %vm2966, %v3720, 0.0
        %4096 = vadd.xlane.f32.xlu0 %v4095
        %v4097 = vpop.xlane.xlu0 %4096
        %v4098 = vsel %vm2966, %v3722, 0.0
        %4099 = vadd.xlane.f32.xlu0 %v4098
        %v4100 = vpop.xlane.xlu0 %4099
        %v4101 = vsel %vm2966, %v3724, 0.0
        %4102 = vadd.xlane.f32.xlu0 %v4101
        %v4103 = vpop.xlane.xlu0 %4102
        %v4104 = vsel %vm2966, %v3726, 0.0
        %4105 = vadd.xlane.f32.xlu0 %v4104
        %v4106 = vpop.xlane.xlu0 %4105
        %v4107 = vsel %vm2966, %v3728, 0.0
        %4108 = vadd.xlane.f32.xlu0 %v4107
        %v4109 = vpop.xlane.xlu0 %4108
        %v4110 = vsel %vm2966, %v3730, 0.0
        %4111 = vadd.xlane.f32.xlu0 %v4110
        %v4112 = vpop.xlane.xlu0 %4111
        %v4113 = vsel %vm2966, %v3732, 0.0
        %4114 = vadd.xlane.f32.xlu0 %v4113
        %v4115 = vpop.xlane.xlu0 %4114
        %v4116 = vsel %vm2966, %v3734, 0.0
        %4117 = vadd.xlane.f32.xlu0 %v4116
        %v4118 = vpop.xlane.xlu0 %4117
        %v4119 = vrcp.pop %v3737
        %v4120 = vrcp.pop %v3740
        %v4121 = vrcp.pop %v3743
        %v4122 = vrcp.pop %v3746
        %v4123 = vrcp.pop %v3749
        %v4124 = vrcp.pop %v3752
        %v4125 = vrcp.pop %v3755
        %v4126 = vrcp.pop %v3758
        %v4127 = vrcp.pop %v3761
        %v4128 = vrcp.pop %v3764
        %v4129 = vrcp.pop %v3767
        %v4130 = vrcp.pop %v3770
        %v4131 = vrcp.pop %v3773
        %v4132 = vrcp.pop %v3776
        %v4133 = vrcp.pop %v3779
        %v4134 = vrcp.pop %v3782
        %v4135 = vrcp.pop %v3785
        %v4136 = vrcp.pop %v3788
        %v4137 = vrcp.pop %v3791
        %v4138 = vrcp.pop %v3794
        %v4139 = vrcp.pop %v3797
        %v4140 = vrcp.pop %v3800
        %v4141 = vrcp.pop %v3803
        %v4142 = vrcp.pop %v3806
        %v4143 = vrcp.pop %v3809
        %v4144 = vrcp.pop %v3812
        %v4145 = vrcp.pop %v3815
        %v4146 = vrcp.pop %v3818
        %v4147 = vrcp.pop %v3821
        %v4148 = vrcp.pop %v3824
        %v4149 = vrcp.pop %v3827
        %v4150 = vrcp.pop %v3830
        %v4151 = vrcp.pop %v3833
        %v4152 = vrcp.pop %v3836
        %v4153 = vrcp.pop %v3839
        %v4154 = vrcp.pop %v3842
        %v4155 = vrcp.pop %v3845
        %v4156 = vrcp.pop %v3848
        %v4157 = vrcp.pop %v3851
        %v4158 = vrcp.pop %v3854
        %v4159 = vrcp.pop %v3857
        %v4160 = vrcp.pop %v3860
        %v4161 = vrcp.pop %v3863
        %v4162 = vrcp.pop %v3866
        %v4163 = vrcp.pop %v3869
        %v4164 = vrcp.pop %v3872
        %v4165 = vrcp.pop %v3875
        %v4166 = vrcp.pop %v3878
        %v4167 = vrcp.pop %v3881
        %v4168 = vrcp.pop %v3884
        %v4169 = vrcp.pop %v3887
        %v4170 = vrcp.pop %v3890
        %v4171 = vrcp.pop %v3893
        %v4172 = vrcp.pop %v3896
        %v4173 = vrcp.pop %v3899
        %v4174 = vrcp.pop %v3902
        %v4175 = vrcp.pop %v3905
        %v4176 = vrcp.pop %v3908
        %v4177 = vrcp.pop %v3911
        %v4178 = vrcp.pop %v3914
        %v4179 = vrcp.pop %v3917
        %v4180 = vrcp.pop %v3920
        %v4181 = vrcp.pop %v3923
        %v4182 = vrcp.pop %v3926
        %v4183 = vrcp.pop %v3929
        %v4184 = vrcp.pop %v3932
        %v4185 = vrcp.pop %v3935
        %v4186 = vrcp.pop %v3938
        %v4187 = vrcp.pop %v3941
        %v4188 = vrcp.pop %v3944
        %v4189 = vrcp.pop %v3947
        %v4190 = vrcp.pop %v3950
        %v4191 = vrcp.pop %v3953
        %v4192 = vrcp.pop %v3956
        %v4193 = vrcp.pop %v3959
        %v4194 = vrcp.pop %v3962
        %v4195 = vrcp.pop %v3965
        %v4196 = vrcp.pop %v3968
        %v4197 = vrcp.pop %v3971
        %v4198 = vrcp.pop %v3974
        %v4199 = vrcp.pop %v3977
        %v4200 = vrcp.pop %v3980
        %v4201 = vrcp.pop %v3983
        %v4202 = vrcp.pop %v3986
        %v4203 = vrcp.pop %v3989
        %v4204 = vrcp.pop %v3992
        %v4205 = vrcp.pop %v3995
        %v4206 = vrcp.pop %v3998
        %v4207 = vrcp.pop %v4001
        %v4208 = vrcp.pop %v4004
        %v4209 = vrcp.pop %v4007
        %v4210 = vrcp.pop %v4010
        %v4211 = vrcp.pop %v4013
        %v4212 = vrcp.pop %v4016
        %v4213 = vrcp.pop %v4019
        %v4214 = vrcp.pop %v4022
        %v4215 = vrcp.pop %v4025
        %v4216 = vrcp.pop %v4028
        %v4217 = vrcp.pop %v4031
        %v4218 = vrcp.pop %v4034
        %v4219 = vrcp.pop %v4037
        %v4220 = vrcp.pop %v4040
        %v4221 = vrcp.pop %v4043
        %v4222 = vrcp.pop %v4046
        %v4223 = vrcp.pop %v4049
        %v4224 = vrcp.pop %v4052
        %v4225 = vrcp.pop %v4055
        %v4226 = vrcp.pop %v4058
        %v4227 = vrcp.pop %v4061
        %v4228 = vrcp.pop %v4064
        %v4229 = vrcp.pop %v4067
        %v4230 = vrcp.pop %v4070
        %v4231 = vrcp.pop %v4073
        %v4232 = vrcp.pop %v4076
        %v4233 = vrcp.pop %v4079
        %v4234 = vrcp.pop %v4082
        %v4235 = vrcp.pop %v4085
        %v4236 = vrcp.pop %v4088
        %v4237 = vrcp.pop %v4091
        %v4238 = vrcp.pop %v4094
        %v4239 = vrcp.pop %v4097
        %v4240 = vrcp.pop %v4100
        %v4241 = vrcp.pop %v4103
        %v4242 = vrcp.pop %v4106
        %v4243 = vrcp.pop %v4109
        %v4244 = vrcp.pop %v4112
        %v4245 = vrcp.pop %v4115
        %v4246 = vrcp.pop %v4118
        %v4247 = vmul.f32 %v3480, %v4119
        %v4248 = vmul.f32 %v3482, %v4120
        %v4249 = vmul.f32 %v3484, %v4121
        %v4250 = vmul.f32 %v3486, %v4122
        %v4251 = vmul.f32 %v3488, %v4123
        %v4252 = vmul.f32 %v3490, %v4124
        %v4253 = vmul.f32 %v3492, %v4125
        %v4254 = vmul.f32 %v3494, %v4126
        %v4255 = vmul.f32 %v3496, %v4127
        %v4256 = vmul.f32 %v3498, %v4128
        %v4257 = vmul.f32 %v3500, %v4129
        %v4258 = vmul.f32 %v3502, %v4130
        %v4259 = vmul.f32 %v3504, %v4131
        %v4260 = vmul.f32 %v3506, %v4132
        %v4261 = vmul.f32 %v3508, %v4133
        %v4262 = vmul.f32 %v3510, %v4134
        %v4263 = vmul.f32 %v3512, %v4135
        %v4264 = vmul.f32 %v3514, %v4136
        %v4265 = vmul.f32 %v3516, %v4137
        %v4266 = vmul.f32 %v3518, %v4138
        %v4267 = vmul.f32 %v3520, %v4139
        %v4268 = vmul.f32 %v3522, %v4140
        %v4269 = vmul.f32 %v3524, %v4141
        %v4270 = vmul.f32 %v3526, %v4142
        %v4271 = vmul.f32 %v3528, %v4143
        %v4272 = vmul.f32 %v3530, %v4144
        %v4273 = vmul.f32 %v3532, %v4145
        %v4274 = vmul.f32 %v3534, %v4146
        %v4275 = vmul.f32 %v3536, %v4147
        %v4276 = vmul.f32 %v3538, %v4148
        %v4277 = vmul.f32 %v3540, %v4149
        %v4278 = vmul.f32 %v3542, %v4150
        %v4279 = vmul.f32 %v3544, %v4151
        %v4280 = vmul.f32 %v3546, %v4152
        %v4281 = vmul.f32 %v3548, %v4153
        %v4282 = vmul.f32 %v3550, %v4154
        %v4283 = vmul.f32 %v3552, %v4155
        %v4284 = vmul.f32 %v3554, %v4156
        %v4285 = vmul.f32 %v3556, %v4157
        %v4286 = vmul.f32 %v3558, %v4158
        %v4287 = vmul.f32 %v3560, %v4159
        %v4288 = vmul.f32 %v3562, %v4160
        %v4289 = vmul.f32 %v3564, %v4161
        %v4290 = vmul.f32 %v3566, %v4162
        %v4291 = vmul.f32 %v3568, %v4163
        %v4292 = vmul.f32 %v3570, %v4164
        %v4293 = vmul.f32 %v3572, %v4165
        %v4294 = vmul.f32 %v3574, %v4166
        %v4295 = vmul.f32 %v3576, %v4167
        %v4296 = vmul.f32 %v3578, %v4168
        %v4297 = vmul.f32 %v3580, %v4169
        %v4298 = vmul.f32 %v3582, %v4170
        %v4299 = vmul.f32 %v3584, %v4171
        %v4300 = vmul.f32 %v3586, %v4172
        %v4301 = vmul.f32 %v3588, %v4173
        %v4302 = vmul.f32 %v3590, %v4174
        %v4303 = vmul.f32 %v3592, %v4175
        %v4304 = vmul.f32 %v3594, %v4176
        %v4305 = vmul.f32 %v3596, %v4177
        %v4306 = vmul.f32 %v3598, %v4178
        %v4307 = vmul.f32 %v3600, %v4179
        %v4308 = vmul.f32 %v3602, %v4180
        %v4309 = vmul.f32 %v3604, %v4181
        %v4310 = vmul.f32 %v3606, %v4182
        %v4311 = vmul.f32 %v3608, %v4183
        %v4312 = vmul.f32 %v3610, %v4184
        %v4313 = vmul.f32 %v3612, %v4185
        %v4314 = vmul.f32 %v3614, %v4186
        %v4315 = vmul.f32 %v3616, %v4187
        %v4316 = vmul.f32 %v3618, %v4188
        %v4317 = vmul.f32 %v3620, %v4189
        %v4318 = vmul.f32 %v3622, %v4190
        %v4319 = vmul.f32 %v3624, %v4191
        %v4320 = vmul.f32 %v3626, %v4192
        %v4321 = vmul.f32 %v3628, %v4193
        %v4322 = vmul.f32 %v3630, %v4194
        %v4323 = vmul.f32 %v3632, %v4195
        %v4324 = vmul.f32 %v3634, %v4196
        %v4325 = vmul.f32 %v3636, %v4197
        %v4326 = vmul.f32 %v3638, %v4198
        %v4327 = vmul.f32 %v3640, %v4199
        %v4328 = vmul.f32 %v3642, %v4200
        %v4329 = vmul.f32 %v3644, %v4201
        %v4330 = vmul.f32 %v3646, %v4202
        %v4331 = vmul.f32 %v3648, %v4203
        %v4332 = vmul.f32 %v3650, %v4204
        %v4333 = vmul.f32 %v3652, %v4205
        %v4334 = vmul.f32 %v3654, %v4206
        %v4335 = vmul.f32 %v3656, %v4207
        %v4336 = vmul.f32 %v3658, %v4208
        %v4337 = vmul.f32 %v3660, %v4209
        %v4338 = vmul.f32 %v3662, %v4210
        %v4339 = vmul.f32 %v3664, %v4211
        %v4340 = vmul.f32 %v3666, %v4212
        %v4341 = vmul.f32 %v3668, %v4213
        %v4342 = vmul.f32 %v3670, %v4214
        %v4343 = vmul.f32 %v3672, %v4215
        %v4344 = vmul.f32 %v3674, %v4216
        %v4345 = vmul.f32 %v3676, %v4217
        %v4346 = vmul.f32 %v3678, %v4218
        %v4347 = vmul.f32 %v3680, %v4219
        %v4348 = vmul.f32 %v3682, %v4220
        %v4349 = vmul.f32 %v3684, %v4221
        %v4350 = vmul.f32 %v3686, %v4222
        %v4351 = vmul.f32 %v3688, %v4223
        %v4352 = vmul.f32 %v3690, %v4224
        %v4353 = vmul.f32 %v3692, %v4225
        %v4354 = vmul.f32 %v3694, %v4226
        %v4355 = vmul.f32 %v3696, %v4227
        %v4356 = vmul.f32 %v3698, %v4228
        %v4357 = vmul.f32 %v3700, %v4229
        %v4358 = vmul.f32 %v3702, %v4230
        %v4359 = vmul.f32 %v3704, %v4231
        %v4360 = vmul.f32 %v3706, %v4232
        %v4361 = vmul.f32 %v3708, %v4233
        %v4362 = vmul.f32 %v3710, %v4234
        %v4363 = vmul.f32 %v3712, %v4235
        %v4364 = vmul.f32 %v3714, %v4236
        %v4365 = vmul.f32 %v3716, %v4237
        %v4366 = vmul.f32 %v3718, %v4238
        %v4367 = vmul.f32 %v3720, %v4239
        %v4368 = vmul.f32 %v3722, %v4240
        %v4369 = vmul.f32 %v3724, %v4241
        %v4370 = vmul.f32 %v3726, %v4242
        %v4371 = vmul.f32 %v3728, %v4243
        %v4372 = vmul.f32 %v3730, %v4244
        %v4373 = vmul.f32 %v3732, %v4245
        %v4374 = vmul.f32 %v3734, %v4246
        %v4375 = vpack.c.bf16 %v4248, %v4247
        %v4376 = vpack.c.bf16 %v4250, %v4249
        %v4377 = vpack.c.bf16 %v4252, %v4251
        %v4378 = vpack.c.bf16 %v4254, %v4253
        %v4379 = vpack.c.bf16 %v4256, %v4255
        %v4380 = vpack.c.bf16 %v4258, %v4257
        %v4381 = vpack.c.bf16 %v4260, %v4259
        %v4382 = vpack.c.bf16 %v4262, %v4261
        %v4383 = vpack.c.bf16 %v4264, %v4263
        %v4384 = vpack.c.bf16 %v4266, %v4265
        %v4385 = vpack.c.bf16 %v4268, %v4267
        %v4386 = vpack.c.bf16 %v4270, %v4269
        %v4387 = vpack.c.bf16 %v4272, %v4271
        %v4388 = vpack.c.bf16 %v4274, %v4273
        %v4389 = vpack.c.bf16 %v4276, %v4275
        %v4390 = vpack.c.bf16 %v4278, %v4277
        %v4391 = vpack.c.bf16 %v4280, %v4279
        %v4392 = vpack.c.bf16 %v4282, %v4281
        %v4393 = vpack.c.bf16 %v4284, %v4283
        %v4394 = vpack.c.bf16 %v4286, %v4285
        %v4395 = vpack.c.bf16 %v4288, %v4287
        %v4396 = vpack.c.bf16 %v4290, %v4289
        %v4397 = vpack.c.bf16 %v4292, %v4291
        %v4398 = vpack.c.bf16 %v4294, %v4293
        %v4399 = vpack.c.bf16 %v4296, %v4295
        %v4400 = vpack.c.bf16 %v4298, %v4297
        %v4401 = vpack.c.bf16 %v4300, %v4299
        %v4402 = vpack.c.bf16 %v4302, %v4301
        %v4403 = vpack.c.bf16 %v4304, %v4303
        %v4404 = vpack.c.bf16 %v4306, %v4305
        %v4405 = vpack.c.bf16 %v4308, %v4307
        %v4406 = vpack.c.bf16 %v4310, %v4309
        %v4407 = vpack.c.bf16 %v4312, %v4311
        %v4408 = vpack.c.bf16 %v4314, %v4313
        %v4409 = vpack.c.bf16 %v4316, %v4315
        %v4410 = vpack.c.bf16 %v4318, %v4317
        %v4411 = vpack.c.bf16 %v4320, %v4319
        %v4412 = vpack.c.bf16 %v4322, %v4321
        %v4413 = vpack.c.bf16 %v4324, %v4323
        %v4414 = vpack.c.bf16 %v4326, %v4325
        %v4415 = vpack.c.bf16 %v4328, %v4327
        %v4416 = vpack.c.bf16 %v4330, %v4329
        %v4417 = vpack.c.bf16 %v4332, %v4331
        %v4418 = vpack.c.bf16 %v4334, %v4333
        %v4419 = vpack.c.bf16 %v4336, %v4335
        %v4420 = vpack.c.bf16 %v4338, %v4337
        %v4421 = vpack.c.bf16 %v4340, %v4339
        %v4422 = vpack.c.bf16 %v4342, %v4341
        %v4423 = vpack.c.bf16 %v4344, %v4343
        %v4424 = vpack.c.bf16 %v4346, %v4345
        %v4425 = vpack.c.bf16 %v4348, %v4347
        %v4426 = vpack.c.bf16 %v4350, %v4349
        %v4427 = vpack.c.bf16 %v4352, %v4351
        %v4428 = vpack.c.bf16 %v4354, %v4353
        %v4429 = vpack.c.bf16 %v4356, %v4355
        %v4430 = vpack.c.bf16 %v4358, %v4357
        %v4431 = vpack.c.bf16 %v4360, %v4359
        %v4432 = vpack.c.bf16 %v4362, %v4361
        %v4433 = vpack.c.bf16 %v4364, %v4363
        %v4434 = vpack.c.bf16 %v4366, %v4365
        %v4435 = vpack.c.bf16 %v4368, %v4367
        %v4436 = vpack.c.bf16 %v4370, %v4369
        %v4437 = vpack.c.bf16 %v4372, %v4371
        %v4438 = vpack.c.bf16 %v4374, %v4373
        %4439 = vrot.lane.b32.xlu0 %v1125, 64
        %v4440 = vpop.permute.xlu0 %4439
        %4441 = vrot.lane.b32.xlu0 %v1126, 64
        %v4442 = vpop.permute.xlu0 %4441
        %4443 = vrot.lane.b32.xlu0 %v1127, 64
        %v4444 = vpop.permute.xlu0 %4443
        %4445 = vrot.lane.b32.xlu0 %v1128, 64
        %v4446 = vpop.permute.xlu0 %4445
        %v4452 = vsel %vm2966, %v4375, 0
        %v4455 = vsel %vm2966, %v4376, 0
        %v4458 = vsel %vm2966, %v4377, 0
        %v4461 = vsel %vm2966, %v4378, 0
        %4463 = vmatprep.subr.bf16.mxu0 0
        %4464 = vmatpush1.bf16.msra.mxu0 0
        %4465 = vmatprep.subr.bf16.mxu0 0
        %4466 = vmatpush1.bf16.msra.mxu0 0
        %4467 = vmatprep.subr.bf16.mxu0 0
        %4468 = vmatpush1.bf16.msra.mxu0 0
        %4469 = vmatprep.subr.bf16.mxu0 0
        %4470 = vmatpush1.bf16.msra.mxu0 0
        %4471 = vmatprep.subr.bf16.mxu0 0
        %4472 = vmatpush1.bf16.msra.mxu0 %v4446
        %4473 = vmatprep.subr.bf16.mxu0 0
        %4474 = vmatpush1.bf16.msra.mxu0 %v4444
        %4475 = vmatprep.subr.bf16.mxu0 0
        %4476 = vmatpush1.bf16.msra.mxu0 %v4442
        %4477 = vmatprep.subr.bf16.mxu0 0
        %4478 = vmatpush1.bf16.msra.mxu0 %v4440
        %4479 = vmatprep.subr.bf16.mxu0 0
        %4480 = vmatpush2.bf16.msra.mxu0 0
        %4481 = vmatprep.subr.bf16.mxu0 0
        %4482 = vmatpush2.bf16.msra.mxu0 0
        %4483 = vmatprep.subr.bf16.mxu0 0
        %4484 = vmatpush2.bf16.msra.mxu0 0
        %4485 = vmatprep.subr.bf16.mxu0 0
        %4486 = vmatpush2.bf16.msra.mxu0 0
        %4487 = vmatprep.subr.bf16.mxu0 0
        %4488 = vmatpush2.bf16.msra.mxu0 0
        %4489 = vmatprep.subr.bf16.mxu0 0
        %4490 = vmatpush2.bf16.msra.mxu0 0
        %4491 = vmatprep.subr.bf16.mxu0 0
        %4492 = vmatpush2.bf16.msra.mxu0 0
        %4493 = vmatprep.subr.bf16.mxu0 0
        %4494 = vmatpush2.bf16.msra.mxu0 0
        %4495 = vmatprep.mubr.bf16.mxu0 0
        %4496 = vmatmul.mubr.bf16.gmra.mxu0 %v4452
        %v4497 = vpop.f32.mrf.mxu0
        %v4498 = vadd.f32 0.0, %v4497
        %v4499 = vpop.f32.mrf.mxu0
        %v4500 = vpop.f32.mrf.mxu0
        %v4501 = vadd.f32 0.0, %v4500
        %v4502 = vpop.f32.mrf.mxu0
        %4503 = vmatprep.mubr.bf16.mxu0 0
        %4504 = vmatmul.mubr.bf16.gmra.mxu0 %v4455
        %v4505 = vpop.f32.mrf.mxu0
        %v4506 = vadd.f32 0.0, %v4505
        %v4507 = vpop.f32.mrf.mxu0
        %v4508 = vpop.f32.mrf.mxu0
        %v4509 = vadd.f32 0.0, %v4508
        %v4510 = vpop.f32.mrf.mxu0
        %4511 = vmatprep.mubr.bf16.mxu0 0
        %4512 = vmatmul.mubr.bf16.gmra.mxu0 %v4458
        %v4513 = vpop.f32.mrf.mxu0
        %v4514 = vadd.f32 0.0, %v4513
        %v4515 = vpop.f32.mrf.mxu0
        %v4516 = vpop.f32.mrf.mxu0
        %v4517 = vadd.f32 0.0, %v4516
        %v4518 = vpop.f32.mrf.mxu0
        %4519 = vmatprep.mubr.bf16.mxu0 0
        %4520 = vmatmul.mubr.bf16.gmra.mxu0 %v4461
        %v4521 = vpop.f32.mrf.mxu0
        %v4522 = vadd.f32 0.0, %v4521
        %v4523 = vpop.f32.mrf.mxu0
        %v4524 = vpop.f32.mrf.mxu0
        %v4525 = vadd.f32 0.0, %v4524
        %v4526 = vpop.f32.mrf.mxu0
        %4527 = vdwg.mxu0
        %4528 = vrot.lane.b32.xlu0 %v1129, 64
        %v4529 = vpop.permute.xlu0 %4528
        %4530 = vrot.lane.b32.xlu0 %v1130, 64
        %v4531 = vpop.permute.xlu0 %4530
        %4532 = vrot.lane.b32.xlu0 %v1131, 64
        %v4533 = vpop.permute.xlu0 %4532
        %4534 = vrot.lane.b32.xlu0 %v1132, 64
        %v4535 = vpop.permute.xlu0 %4534
        %v4541 = vsel %vm2966, %v4379, 0
        %v4544 = vsel %vm2966, %v4380, 0
        %v4547 = vsel %vm2966, %v4381, 0
        %v4550 = vsel %vm2966, %v4382, 0
        %4552 = vmatprep.subr.bf16.mxu0 0
        %4553 = vmatpush1.bf16.msra.mxu0 0
        %4554 = vmatprep.subr.bf16.mxu0 0
        %4555 = vmatpush1.bf16.msra.mxu0 0
        %4556 = vmatprep.subr.bf16.mxu0 0
        %4557 = vmatpush1.bf16.msra.mxu0 0
        %4558 = vmatprep.subr.bf16.mxu0 0
        %4559 = vmatpush1.bf16.msra.mxu0 0
        %4560 = vmatprep.subr.bf16.mxu0 0
        %4561 = vmatpush1.bf16.msra.mxu0 %v4535
        %4562 = vmatprep.subr.bf16.mxu0 0
        %4563 = vmatpush1.bf16.msra.mxu0 %v4533
        %4564 = vmatprep.subr.bf16.mxu0 0
        %4565 = vmatpush1.bf16.msra.mxu0 %v4531
        %4566 = vmatprep.subr.bf16.mxu0 0
        %4567 = vmatpush1.bf16.msra.mxu0 %v4529
        %4568 = vmatprep.subr.bf16.mxu0 0
        %4569 = vmatpush2.bf16.msra.mxu0 0
        %4570 = vmatprep.subr.bf16.mxu0 0
        %4571 = vmatpush2.bf16.msra.mxu0 0
        %4572 = vmatprep.subr.bf16.mxu0 0
        %4573 = vmatpush2.bf16.msra.mxu0 0
        %4574 = vmatprep.subr.bf16.mxu0 0
        %4575 = vmatpush2.bf16.msra.mxu0 0
        %4576 = vmatprep.subr.bf16.mxu0 0
        %4577 = vmatpush2.bf16.msra.mxu0 0
        %4578 = vmatprep.subr.bf16.mxu0 0
        %4579 = vmatpush2.bf16.msra.mxu0 0
        %4580 = vmatprep.subr.bf16.mxu0 0
        %4581 = vmatpush2.bf16.msra.mxu0 0
        %4582 = vmatprep.subr.bf16.mxu0 0
        %4583 = vmatpush2.bf16.msra.mxu0 0
        %4584 = vmatprep.mubr.bf16.mxu0 0
        %4585 = vmatmul.mubr.bf16.gmra.mxu0 %v4541
        %v4586 = vpop.f32.mrf.mxu0
        %v4587 = vadd.f32 0.0, %v4586
        %v4588 = vpop.f32.mrf.mxu0
        %v4589 = vpop.f32.mrf.mxu0
        %v4590 = vadd.f32 0.0, %v4589
        %v4591 = vpop.f32.mrf.mxu0
        %4592 = vmatprep.mubr.bf16.mxu0 0
        %4593 = vmatmul.mubr.bf16.gmra.mxu0 %v4544
        %v4594 = vpop.f32.mrf.mxu0
        %v4595 = vadd.f32 0.0, %v4594
        %v4596 = vpop.f32.mrf.mxu0
        %v4597 = vpop.f32.mrf.mxu0
        %v4598 = vadd.f32 0.0, %v4597
        %v4599 = vpop.f32.mrf.mxu0
        %4600 = vmatprep.mubr.bf16.mxu0 0
        %4601 = vmatmul.mubr.bf16.gmra.mxu0 %v4547
        %v4602 = vpop.f32.mrf.mxu0
        %v4603 = vadd.f32 0.0, %v4602
        %v4604 = vpop.f32.mrf.mxu0
        %v4605 = vpop.f32.mrf.mxu0
        %v4606 = vadd.f32 0.0, %v4605
        %v4607 = vpop.f32.mrf.mxu0
        %4608 = vmatprep.mubr.bf16.mxu0 0
        %4609 = vmatmul.mubr.bf16.gmra.mxu0 %v4550
        %v4610 = vpop.f32.mrf.mxu0
        %v4611 = vadd.f32 0.0, %v4610
        %v4612 = vpop.f32.mrf.mxu0
        %v4613 = vpop.f32.mrf.mxu0
        %v4614 = vadd.f32 0.0, %v4613
        %v4615 = vpop.f32.mrf.mxu0
        %4616 = vdwg.mxu0
        %4617 = vrot.lane.b32.xlu0 %v1133, 64
        %v4618 = vpop.permute.xlu0 %4617
        %4619 = vrot.lane.b32.xlu0 %v1134, 64
        %v4620 = vpop.permute.xlu0 %4619
        %4621 = vrot.lane.b32.xlu0 %v1135, 64
        %v4622 = vpop.permute.xlu0 %4621
        %4623 = vrot.lane.b32.xlu0 %v1136, 64
        %v4624 = vpop.permute.xlu0 %4623
        %v4630 = vsel %vm2966, %v4383, 0
        %v4633 = vsel %vm2966, %v4384, 0
        %v4636 = vsel %vm2966, %v4385, 0
        %v4639 = vsel %vm2966, %v4386, 0
        %4641 = vmatprep.subr.bf16.mxu0 0
        %4642 = vmatpush1.bf16.msra.mxu0 0
        %4643 = vmatprep.subr.bf16.mxu0 0
        %4644 = vmatpush1.bf16.msra.mxu0 0
        %4645 = vmatprep.subr.bf16.mxu0 0
        %4646 = vmatpush1.bf16.msra.mxu0 0
        %4647 = vmatprep.subr.bf16.mxu0 0
        %4648 = vmatpush1.bf16.msra.mxu0 0
        %4649 = vmatprep.subr.bf16.mxu0 0
        %4650 = vmatpush1.bf16.msra.mxu0 %v4624
        %4651 = vmatprep.subr.bf16.mxu0 0
        %4652 = vmatpush1.bf16.msra.mxu0 %v4622
        %4653 = vmatprep.subr.bf16.mxu0 0
        %4654 = vmatpush1.bf16.msra.mxu0 %v4620
        %4655 = vmatprep.subr.bf16.mxu0 0
        %4656 = vmatpush1.bf16.msra.mxu0 %v4618
        %4657 = vmatprep.subr.bf16.mxu0 0
        %4658 = vmatpush2.bf16.msra.mxu0 0
        %4659 = vmatprep.subr.bf16.mxu0 0
        %4660 = vmatpush2.bf16.msra.mxu0 0
        %4661 = vmatprep.subr.bf16.mxu0 0
        %4662 = vmatpush2.bf16.msra.mxu0 0
        %4663 = vmatprep.subr.bf16.mxu0 0
        %4664 = vmatpush2.bf16.msra.mxu0 0
        %4665 = vmatprep.subr.bf16.mxu0 0
        %4666 = vmatpush2.bf16.msra.mxu0 0
        %4667 = vmatprep.subr.bf16.mxu0 0
        %4668 = vmatpush2.bf16.msra.mxu0 0
        %4669 = vmatprep.subr.bf16.mxu0 0
        %4670 = vmatpush2.bf16.msra.mxu0 0
        %4671 = vmatprep.subr.bf16.mxu0 0
        %4672 = vmatpush2.bf16.msra.mxu0 0
        %4673 = vmatprep.mubr.bf16.mxu0 0
        %4674 = vmatmul.mubr.bf16.gmra.mxu0 %v4630
        %v4675 = vpop.f32.mrf.mxu0
        %v4676 = vadd.f32 0.0, %v4675
        %v4677 = vpop.f32.mrf.mxu0
        %v4678 = vpop.f32.mrf.mxu0
        %v4679 = vadd.f32 0.0, %v4678
        %v4680 = vpop.f32.mrf.mxu0
        %4681 = vmatprep.mubr.bf16.mxu0 0
        %4682 = vmatmul.mubr.bf16.gmra.mxu0 %v4633
        %v4683 = vpop.f32.mrf.mxu0
        %v4684 = vadd.f32 0.0, %v4683
        %v4685 = vpop.f32.mrf.mxu0
        %v4686 = vpop.f32.mrf.mxu0
        %v4687 = vadd.f32 0.0, %v4686
        %v4688 = vpop.f32.mrf.mxu0
        %4689 = vmatprep.mubr.bf16.mxu0 0
        %4690 = vmatmul.mubr.bf16.gmra.mxu0 %v4636
        %v4691 = vpop.f32.mrf.mxu0
        %v4692 = vadd.f32 0.0, %v4691
        %v4693 = vpop.f32.mrf.mxu0
        %v4694 = vpop.f32.mrf.mxu0
        %v4695 = vadd.f32 0.0, %v4694
        %v4696 = vpop.f32.mrf.mxu0
        %4697 = vmatprep.mubr.bf16.mxu0 0
        %4698 = vmatmul.mubr.bf16.gmra.mxu0 %v4639
        %v4699 = vpop.f32.mrf.mxu0
        %v4700 = vadd.f32 0.0, %v4699
        %v4701 = vpop.f32.mrf.mxu0
        %v4702 = vpop.f32.mrf.mxu0
        %v4703 = vadd.f32 0.0, %v4702
        %v4704 = vpop.f32.mrf.mxu0
        %4705 = vdwg.mxu0
        %4706 = vrot.lane.b32.xlu0 %v1137, 64
        %v4707 = vpop.permute.xlu0 %4706
        %4708 = vrot.lane.b32.xlu0 %v1138, 64
        %v4709 = vpop.permute.xlu0 %4708
        %4710 = vrot.lane.b32.xlu0 %v1139, 64
        %v4711 = vpop.permute.xlu0 %4710
        %4712 = vrot.lane.b32.xlu0 %v1140, 64
        %v4713 = vpop.permute.xlu0 %4712
        %v4719 = vsel %vm2966, %v4387, 0
        %v4722 = vsel %vm2966, %v4388, 0
        %v4725 = vsel %vm2966, %v4389, 0
        %v4728 = vsel %vm2966, %v4390, 0
        %4730 = vmatprep.subr.bf16.mxu0 0
        %4731 = vmatpush1.bf16.msra.mxu0 0
        %4732 = vmatprep.subr.bf16.mxu0 0
        %4733 = vmatpush1.bf16.msra.mxu0 0
        %4734 = vmatprep.subr.bf16.mxu0 0
        %4735 = vmatpush1.bf16.msra.mxu0 0
        %4736 = vmatprep.subr.bf16.mxu0 0
        %4737 = vmatpush1.bf16.msra.mxu0 0
        %4738 = vmatprep.subr.bf16.mxu0 0
        %4739 = vmatpush1.bf16.msra.mxu0 %v4713
        %4740 = vmatprep.subr.bf16.mxu0 0
        %4741 = vmatpush1.bf16.msra.mxu0 %v4711
        %4742 = vmatprep.subr.bf16.mxu0 0
        %4743 = vmatpush1.bf16.msra.mxu0 %v4709
        %4744 = vmatprep.subr.bf16.mxu0 0
        %4745 = vmatpush1.bf16.msra.mxu0 %v4707
        %4746 = vmatprep.subr.bf16.mxu0 0
        %4747 = vmatpush2.bf16.msra.mxu0 0
        %4748 = vmatprep.subr.bf16.mxu0 0
        %4749 = vmatpush2.bf16.msra.mxu0 0
        %4750 = vmatprep.subr.bf16.mxu0 0
        %4751 = vmatpush2.bf16.msra.mxu0 0
        %4752 = vmatprep.subr.bf16.mxu0 0
        %4753 = vmatpush2.bf16.msra.mxu0 0
        %4754 = vmatprep.subr.bf16.mxu0 0
        %4755 = vmatpush2.bf16.msra.mxu0 0
        %4756 = vmatprep.subr.bf16.mxu0 0
        %4757 = vmatpush2.bf16.msra.mxu0 0
        %4758 = vmatprep.subr.bf16.mxu0 0
        %4759 = vmatpush2.bf16.msra.mxu0 0
        %4760 = vmatprep.subr.bf16.mxu0 0
        %4761 = vmatpush2.bf16.msra.mxu0 0
        %4762 = vmatprep.mubr.bf16.mxu0 0
        %4763 = vmatmul.mubr.bf16.gmra.mxu0 %v4719
        %v4764 = vpop.f32.mrf.mxu0
        %v4765 = vadd.f32 0.0, %v4764
        %v4766 = vpop.f32.mrf.mxu0
        %v4767 = vpop.f32.mrf.mxu0
        %v4768 = vadd.f32 0.0, %v4767
        %v4769 = vpop.f32.mrf.mxu0
        %4770 = vmatprep.mubr.bf16.mxu0 0
        %4771 = vmatmul.mubr.bf16.gmra.mxu0 %v4722
        %v4772 = vpop.f32.mrf.mxu0
        %v4773 = vadd.f32 0.0, %v4772
        %v4774 = vpop.f32.mrf.mxu0
        %v4775 = vpop.f32.mrf.mxu0
        %v4776 = vadd.f32 0.0, %v4775
        %v4777 = vpop.f32.mrf.mxu0
        %4778 = vmatprep.mubr.bf16.mxu0 0
        %4779 = vmatmul.mubr.bf16.gmra.mxu0 %v4725
        %v4780 = vpop.f32.mrf.mxu0
        %v4781 = vadd.f32 0.0, %v4780
        %v4782 = vpop.f32.mrf.mxu0
        %v4783 = vpop.f32.mrf.mxu0
        %v4784 = vadd.f32 0.0, %v4783
        %v4785 = vpop.f32.mrf.mxu0
        %4786 = vmatprep.mubr.bf16.mxu0 0
        %4787 = vmatmul.mubr.bf16.gmra.mxu0 %v4728
        %v4788 = vpop.f32.mrf.mxu0
        %v4789 = vadd.f32 0.0, %v4788
        %v4790 = vpop.f32.mrf.mxu0
        %v4791 = vpop.f32.mrf.mxu0
        %v4792 = vadd.f32 0.0, %v4791
        %v4793 = vpop.f32.mrf.mxu0
        %4794 = vdwg.mxu0
        %4795 = vrot.lane.b32.xlu0 %v1158, 64
        %v4796 = vpop.permute.xlu0 %4795
        %4797 = vrot.lane.b32.xlu0 %v1160, 64
        %v4798 = vpop.permute.xlu0 %4797
        %4799 = vrot.lane.b32.xlu0 %v1162, 64
        %v4800 = vpop.permute.xlu0 %4799
        %4801 = vrot.lane.b32.xlu0 %v1164, 64
        %v4802 = vpop.permute.xlu0 %4801
        %v4808 = vsel %vm2966, %v4391, 0
        %v4811 = vsel %vm2966, %v4392, 0
        %v4814 = vsel %vm2966, %v4393, 0
        %v4817 = vsel %vm2966, %v4394, 0
        %4819 = vmatprep.subr.bf16.mxu0 0
        %4820 = vmatpush1.bf16.msra.mxu0 0
        %4821 = vmatprep.subr.bf16.mxu0 0
        %4822 = vmatpush1.bf16.msra.mxu0 0
        %4823 = vmatprep.subr.bf16.mxu0 0
        %4824 = vmatpush1.bf16.msra.mxu0 0
        %4825 = vmatprep.subr.bf16.mxu0 0
        %4826 = vmatpush1.bf16.msra.mxu0 0
        %4827 = vmatprep.subr.bf16.mxu0 0
        %4828 = vmatpush1.bf16.msra.mxu0 %v4802
        %4829 = vmatprep.subr.bf16.mxu0 0
        %4830 = vmatpush1.bf16.msra.mxu0 %v4800
        %4831 = vmatprep.subr.bf16.mxu0 0
        %4832 = vmatpush1.bf16.msra.mxu0 %v4798
        %4833 = vmatprep.subr.bf16.mxu0 0
        %4834 = vmatpush1.bf16.msra.mxu0 %v4796
        %4835 = vmatprep.subr.bf16.mxu0 0
        %4836 = vmatpush2.bf16.msra.mxu0 0
        %4837 = vmatprep.subr.bf16.mxu0 0
        %4838 = vmatpush2.bf16.msra.mxu0 0
        %4839 = vmatprep.subr.bf16.mxu0 0
        %4840 = vmatpush2.bf16.msra.mxu0 0
        %4841 = vmatprep.subr.bf16.mxu0 0
        %4842 = vmatpush2.bf16.msra.mxu0 0
        %4843 = vmatprep.subr.bf16.mxu0 0
        %4844 = vmatpush2.bf16.msra.mxu0 0
        %4845 = vmatprep.subr.bf16.mxu0 0
        %4846 = vmatpush2.bf16.msra.mxu0 0
        %4847 = vmatprep.subr.bf16.mxu0 0
        %4848 = vmatpush2.bf16.msra.mxu0 0
        %4849 = vmatprep.subr.bf16.mxu0 0
        %4850 = vmatpush2.bf16.msra.mxu0 0
        %4851 = vmatprep.mubr.bf16.mxu0 0
        %4852 = vmatmul.mubr.bf16.gmra.mxu0 %v4808
        %v4853 = vpop.f32.mrf.mxu0
        %v4854 = vadd.f32 0.0, %v4853
        %v4855 = vpop.f32.mrf.mxu0
        %v4856 = vpop.f32.mrf.mxu0
        %v4857 = vadd.f32 0.0, %v4856
        %v4858 = vpop.f32.mrf.mxu0
        %4859 = vmatprep.mubr.bf16.mxu0 0
        %4860 = vmatmul.mubr.bf16.gmra.mxu0 %v4811
        %v4861 = vpop.f32.mrf.mxu0
        %v4862 = vadd.f32 0.0, %v4861
        %v4863 = vpop.f32.mrf.mxu0
        %v4864 = vpop.f32.mrf.mxu0
        %v4865 = vadd.f32 0.0, %v4864
        %v4866 = vpop.f32.mrf.mxu0
        %4867 = vmatprep.mubr.bf16.mxu0 0
        %4868 = vmatmul.mubr.bf16.gmra.mxu0 %v4814
        %v4869 = vpop.f32.mrf.mxu0
        %v4870 = vadd.f32 0.0, %v4869
        %v4871 = vpop.f32.mrf.mxu0
        %v4872 = vpop.f32.mrf.mxu0
        %v4873 = vadd.f32 0.0, %v4872
        %v4874 = vpop.f32.mrf.mxu0
        %4875 = vmatprep.mubr.bf16.mxu0 0
        %4876 = vmatmul.mubr.bf16.gmra.mxu0 %v4817
        %v4877 = vpop.f32.mrf.mxu0
        %v4878 = vadd.f32 0.0, %v4877
        %v4879 = vpop.f32.mrf.mxu0
        %v4880 = vpop.f32.mrf.mxu0
        %v4881 = vadd.f32 0.0, %v4880
        %v4882 = vpop.f32.mrf.mxu0
        %4883 = vdwg.mxu0
        %4884 = vrot.lane.b32.xlu0 %v1166, 64
        %v4885 = vpop.permute.xlu0 %4884
        %4886 = vrot.lane.b32.xlu0 %v1168, 64
        %v4887 = vpop.permute.xlu0 %4886
        %4888 = vrot.lane.b32.xlu0 %v1170, 64
        %v4889 = vpop.permute.xlu0 %4888
        %4890 = vrot.lane.b32.xlu0 %v1172, 64
        %v4891 = vpop.permute.xlu0 %4890
        %v4897 = vsel %vm2966, %v4395, 0
        %v4900 = vsel %vm2966, %v4396, 0
        %v4903 = vsel %vm2966, %v4397, 0
        %v4906 = vsel %vm2966, %v4398, 0
        %4908 = vmatprep.subr.bf16.mxu0 0
        %4909 = vmatpush1.bf16.msra.mxu0 0
        %4910 = vmatprep.subr.bf16.mxu0 0
        %4911 = vmatpush1.bf16.msra.mxu0 0
        %4912 = vmatprep.subr.bf16.mxu0 0
        %4913 = vmatpush1.bf16.msra.mxu0 0
        %4914 = vmatprep.subr.bf16.mxu0 0
        %4915 = vmatpush1.bf16.msra.mxu0 0
        %4916 = vmatprep.subr.bf16.mxu0 0
        %4917 = vmatpush1.bf16.msra.mxu0 %v4891
        %4918 = vmatprep.subr.bf16.mxu0 0
        %4919 = vmatpush1.bf16.msra.mxu0 %v4889
        %4920 = vmatprep.subr.bf16.mxu0 0
        %4921 = vmatpush1.bf16.msra.mxu0 %v4887
        %4922 = vmatprep.subr.bf16.mxu0 0
        %4923 = vmatpush1.bf16.msra.mxu0 %v4885
        %4924 = vmatprep.subr.bf16.mxu0 0
        %4925 = vmatpush2.bf16.msra.mxu0 0
        %4926 = vmatprep.subr.bf16.mxu0 0
        %4927 = vmatpush2.bf16.msra.mxu0 0
        %4928 = vmatprep.subr.bf16.mxu0 0
        %4929 = vmatpush2.bf16.msra.mxu0 0
        %4930 = vmatprep.subr.bf16.mxu0 0
        %4931 = vmatpush2.bf16.msra.mxu0 0
        %4932 = vmatprep.subr.bf16.mxu0 0
        %4933 = vmatpush2.bf16.msra.mxu0 0
        %4934 = vmatprep.subr.bf16.mxu0 0
        %4935 = vmatpush2.bf16.msra.mxu0 0
        %4936 = vmatprep.subr.bf16.mxu0 0
        %4937 = vmatpush2.bf16.msra.mxu0 0
        %4938 = vmatprep.subr.bf16.mxu0 0
        %4939 = vmatpush2.bf16.msra.mxu0 0
        %4940 = vmatprep.mubr.bf16.mxu0 0
        %4941 = vmatmul.mubr.bf16.gmra.mxu0 %v4897
        %v4942 = vpop.f32.mrf.mxu0
        %v4943 = vadd.f32 0.0, %v4942
        %v4944 = vpop.f32.mrf.mxu0
        %v4945 = vpop.f32.mrf.mxu0
        %v4946 = vadd.f32 0.0, %v4945
        %v4947 = vpop.f32.mrf.mxu0
        %4948 = vmatprep.mubr.bf16.mxu0 0
        %4949 = vmatmul.mubr.bf16.gmra.mxu0 %v4900
        %v4950 = vpop.f32.mrf.mxu0
        %v4951 = vadd.f32 0.0, %v4950
        %v4952 = vpop.f32.mrf.mxu0
        %v4953 = vpop.f32.mrf.mxu0
        %v4954 = vadd.f32 0.0, %v4953
        %v4955 = vpop.f32.mrf.mxu0
        %4956 = vmatprep.mubr.bf16.mxu0 0
        %4957 = vmatmul.mubr.bf16.gmra.mxu0 %v4903
        %v4958 = vpop.f32.mrf.mxu0
        %v4959 = vadd.f32 0.0, %v4958
        %v4960 = vpop.f32.mrf.mxu0
        %v4961 = vpop.f32.mrf.mxu0
        %v4962 = vadd.f32 0.0, %v4961
        %v4963 = vpop.f32.mrf.mxu0
        %4964 = vmatprep.mubr.bf16.mxu0 0
        %4965 = vmatmul.mubr.bf16.gmra.mxu0 %v4906
        %v4966 = vpop.f32.mrf.mxu0
        %v4967 = vadd.f32 0.0, %v4966
        %v4968 = vpop.f32.mrf.mxu0
        %v4969 = vpop.f32.mrf.mxu0
        %v4970 = vadd.f32 0.0, %v4969
        %v4971 = vpop.f32.mrf.mxu0
        %4972 = vdwg.mxu0
        %4973 = vrot.lane.b32.xlu0 %v1174, 64
        %v4974 = vpop.permute.xlu0 %4973
        %4975 = vrot.lane.b32.xlu0 %v1176, 64
        %v4976 = vpop.permute.xlu0 %4975
        %4977 = vrot.lane.b32.xlu0 %v1178, 64
        %v4978 = vpop.permute.xlu0 %4977
        %4979 = vrot.lane.b32.xlu0 %v1180, 64
        %v4980 = vpop.permute.xlu0 %4979
        %v4986 = vsel %vm2966, %v4399, 0
        %v4989 = vsel %vm2966, %v4400, 0
        %v4992 = vsel %vm2966, %v4401, 0
        %v4995 = vsel %vm2966, %v4402, 0
        %4997 = vmatprep.subr.bf16.mxu0 0
        %4998 = vmatpush1.bf16.msra.mxu0 0
        %4999 = vmatprep.subr.bf16.mxu0 0
        %5000 = vmatpush1.bf16.msra.mxu0 0
        %5001 = vmatprep.subr.bf16.mxu0 0
        %5002 = vmatpush1.bf16.msra.mxu0 0
        %5003 = vmatprep.subr.bf16.mxu0 0
        %5004 = vmatpush1.bf16.msra.mxu0 0
        %5005 = vmatprep.subr.bf16.mxu0 0
        %5006 = vmatpush1.bf16.msra.mxu0 %v4980
        %5007 = vmatprep.subr.bf16.mxu0 0
        %5008 = vmatpush1.bf16.msra.mxu0 %v4978
        %5009 = vmatprep.subr.bf16.mxu0 0
        %5010 = vmatpush1.bf16.msra.mxu0 %v4976
        %5011 = vmatprep.subr.bf16.mxu0 0
        %5012 = vmatpush1.bf16.msra.mxu0 %v4974
        %5013 = vmatprep.subr.bf16.mxu0 0
        %5014 = vmatpush2.bf16.msra.mxu0 0
        %5015 = vmatprep.subr.bf16.mxu0 0
        %5016 = vmatpush2.bf16.msra.mxu0 0
        %5017 = vmatprep.subr.bf16.mxu0 0
        %5018 = vmatpush2.bf16.msra.mxu0 0
        %5019 = vmatprep.subr.bf16.mxu0 0
        %5020 = vmatpush2.bf16.msra.mxu0 0
        %5021 = vmatprep.subr.bf16.mxu0 0
        %5022 = vmatpush2.bf16.msra.mxu0 0
        %5023 = vmatprep.subr.bf16.mxu0 0
        %5024 = vmatpush2.bf16.msra.mxu0 0
        %5025 = vmatprep.subr.bf16.mxu0 0
        %5026 = vmatpush2.bf16.msra.mxu0 0
        %5027 = vmatprep.subr.bf16.mxu0 0
        %5028 = vmatpush2.bf16.msra.mxu0 0
        %5029 = vmatprep.mubr.bf16.mxu0 0
        %5030 = vmatmul.mubr.bf16.gmra.mxu0 %v4986
        %v5031 = vpop.f32.mrf.mxu0
        %v5032 = vadd.f32 0.0, %v5031
        %v5033 = vpop.f32.mrf.mxu0
        %v5034 = vpop.f32.mrf.mxu0
        %v5035 = vadd.f32 0.0, %v5034
        %v5036 = vpop.f32.mrf.mxu0
        %5037 = vmatprep.mubr.bf16.mxu0 0
        %5038 = vmatmul.mubr.bf16.gmra.mxu0 %v4989
        %v5039 = vpop.f32.mrf.mxu0
        %v5040 = vadd.f32 0.0, %v5039
        %v5041 = vpop.f32.mrf.mxu0
        %v5042 = vpop.f32.mrf.mxu0
        %v5043 = vadd.f32 0.0, %v5042
        %v5044 = vpop.f32.mrf.mxu0
        %5045 = vmatprep.mubr.bf16.mxu0 0
        %5046 = vmatmul.mubr.bf16.gmra.mxu0 %v4992
        %v5047 = vpop.f32.mrf.mxu0
        %v5048 = vadd.f32 0.0, %v5047
        %v5049 = vpop.f32.mrf.mxu0
        %v5050 = vpop.f32.mrf.mxu0
        %v5051 = vadd.f32 0.0, %v5050
        %v5052 = vpop.f32.mrf.mxu0
        %5053 = vmatprep.mubr.bf16.mxu0 0
        %5054 = vmatmul.mubr.bf16.gmra.mxu0 %v4995
        %v5055 = vpop.f32.mrf.mxu0
        %v5056 = vadd.f32 0.0, %v5055
        %v5057 = vpop.f32.mrf.mxu0
        %v5058 = vpop.f32.mrf.mxu0
        %v5059 = vadd.f32 0.0, %v5058
        %v5060 = vpop.f32.mrf.mxu0
        %5061 = vdwg.mxu0
        %5062 = vrot.lane.b32.xlu0 %v1182, 64
        %v5063 = vpop.permute.xlu0 %5062
        %5064 = vrot.lane.b32.xlu0 %v1184, 64
        %v5065 = vpop.permute.xlu0 %5064
        %5066 = vrot.lane.b32.xlu0 %v1186, 64
        %v5067 = vpop.permute.xlu0 %5066
        %5068 = vrot.lane.b32.xlu0 %v1188, 64
        %v5069 = vpop.permute.xlu0 %5068
        %v5075 = vsel %vm2966, %v4403, 0
        %v5078 = vsel %vm2966, %v4404, 0
        %v5081 = vsel %vm2966, %v4405, 0
        %v5084 = vsel %vm2966, %v4406, 0
        %5086 = vmatprep.subr.bf16.mxu0 0
        %5087 = vmatpush1.bf16.msra.mxu0 0
        %5088 = vmatprep.subr.bf16.mxu0 0
        %5089 = vmatpush1.bf16.msra.mxu0 0
        %5090 = vmatprep.subr.bf16.mxu0 0
        %5091 = vmatpush1.bf16.msra.mxu0 0
        %5092 = vmatprep.subr.bf16.mxu0 0
        %5093 = vmatpush1.bf16.msra.mxu0 0
        %5094 = vmatprep.subr.bf16.mxu0 0
        %5095 = vmatpush1.bf16.msra.mxu0 %v5069
        %5096 = vmatprep.subr.bf16.mxu0 0
        %5097 = vmatpush1.bf16.msra.mxu0 %v5067
        %5098 = vmatprep.subr.bf16.mxu0 0
        %5099 = vmatpush1.bf16.msra.mxu0 %v5065
        %5100 = vmatprep.subr.bf16.mxu0 0
        %5101 = vmatpush1.bf16.msra.mxu0 %v5063
        %5102 = vmatprep.subr.bf16.mxu0 0
        %5103 = vmatpush2.bf16.msra.mxu0 0
        %5104 = vmatprep.subr.bf16.mxu0 0
        %5105 = vmatpush2.bf16.msra.mxu0 0
        %5106 = vmatprep.subr.bf16.mxu0 0
        %5107 = vmatpush2.bf16.msra.mxu0 0
        %5108 = vmatprep.subr.bf16.mxu0 0
        %5109 = vmatpush2.bf16.msra.mxu0 0
        %5110 = vmatprep.subr.bf16.mxu0 0
        %5111 = vmatpush2.bf16.msra.mxu0 0
        %5112 = vmatprep.subr.bf16.mxu0 0
        %5113 = vmatpush2.bf16.msra.mxu0 0
        %5114 = vmatprep.subr.bf16.mxu0 0
        %5115 = vmatpush2.bf16.msra.mxu0 0
        %5116 = vmatprep.subr.bf16.mxu0 0
        %5117 = vmatpush2.bf16.msra.mxu0 0
        %5118 = vmatprep.mubr.bf16.mxu0 0
        %5119 = vmatmul.mubr.bf16.gmra.mxu0 %v5075
        %v5120 = vpop.f32.mrf.mxu0
        %v5121 = vadd.f32 0.0, %v5120
        %v5122 = vpop.f32.mrf.mxu0
        %v5123 = vpop.f32.mrf.mxu0
        %v5124 = vadd.f32 0.0, %v5123
        %v5125 = vpop.f32.mrf.mxu0
        %5126 = vmatprep.mubr.bf16.mxu0 0
        %5127 = vmatmul.mubr.bf16.gmra.mxu0 %v5078
        %v5128 = vpop.f32.mrf.mxu0
        %v5129 = vadd.f32 0.0, %v5128
        %v5130 = vpop.f32.mrf.mxu0
        %v5131 = vpop.f32.mrf.mxu0
        %v5132 = vadd.f32 0.0, %v5131
        %v5133 = vpop.f32.mrf.mxu0
        %5134 = vmatprep.mubr.bf16.mxu0 0
        %5135 = vmatmul.mubr.bf16.gmra.mxu0 %v5081
        %v5136 = vpop.f32.mrf.mxu0
        %v5137 = vadd.f32 0.0, %v5136
        %v5138 = vpop.f32.mrf.mxu0
        %v5139 = vpop.f32.mrf.mxu0
        %v5140 = vadd.f32 0.0, %v5139
        %v5141 = vpop.f32.mrf.mxu0
        %5142 = vmatprep.mubr.bf16.mxu0 0
        %5143 = vmatmul.mubr.bf16.gmra.mxu0 %v5084
        %v5144 = vpop.f32.mrf.mxu0
        %v5145 = vadd.f32 0.0, %v5144
        %v5146 = vpop.f32.mrf.mxu0
        %v5147 = vpop.f32.mrf.mxu0
        %v5148 = vadd.f32 0.0, %v5147
        %v5149 = vpop.f32.mrf.mxu0
        %5150 = vdwg.mxu0
        %5151 = vrot.lane.b32.xlu0 %v1190, 64
        %v5152 = vpop.permute.xlu0 %5151
        %5153 = vrot.lane.b32.xlu0 %v1192, 64
        %v5154 = vpop.permute.xlu0 %5153
        %5155 = vrot.lane.b32.xlu0 %v1194, 64
        %v5156 = vpop.permute.xlu0 %5155
        %5157 = vrot.lane.b32.xlu0 %v1196, 64
        %v5158 = vpop.permute.xlu0 %5157
        %v5164 = vsel %vm2966, %v4407, 0
        %v5167 = vsel %vm2966, %v4408, 0
        %v5170 = vsel %vm2966, %v4409, 0
        %v5173 = vsel %vm2966, %v4410, 0
        %5175 = vmatprep.subr.bf16.mxu0 0
        %5176 = vmatpush1.bf16.msra.mxu0 0
        %5177 = vmatprep.subr.bf16.mxu0 0
        %5178 = vmatpush1.bf16.msra.mxu0 0
        %5179 = vmatprep.subr.bf16.mxu0 0
        %5180 = vmatpush1.bf16.msra.mxu0 0
        %5181 = vmatprep.subr.bf16.mxu0 0
        %5182 = vmatpush1.bf16.msra.mxu0 0
        %5183 = vmatprep.subr.bf16.mxu0 0
        %5184 = vmatpush1.bf16.msra.mxu0 %v5158
        %5185 = vmatprep.subr.bf16.mxu0 0
        %5186 = vmatpush1.bf16.msra.mxu0 %v5156
        %5187 = vmatprep.subr.bf16.mxu0 0
        %5188 = vmatpush1.bf16.msra.mxu0 %v5154
        %5189 = vmatprep.subr.bf16.mxu0 0
        %5190 = vmatpush1.bf16.msra.mxu0 %v5152
        %5191 = vmatprep.subr.bf16.mxu0 0
        %5192 = vmatpush2.bf16.msra.mxu0 0
        %5193 = vmatprep.subr.bf16.mxu0 0
        %5194 = vmatpush2.bf16.msra.mxu0 0
        %5195 = vmatprep.subr.bf16.mxu0 0
        %5196 = vmatpush2.bf16.msra.mxu0 0
        %5197 = vmatprep.subr.bf16.mxu0 0
        %5198 = vmatpush2.bf16.msra.mxu0 0
        %5199 = vmatprep.subr.bf16.mxu0 0
        %5200 = vmatpush2.bf16.msra.mxu0 0
        %5201 = vmatprep.subr.bf16.mxu0 0
        %5202 = vmatpush2.bf16.msra.mxu0 0
        %5203 = vmatprep.subr.bf16.mxu0 0
        %5204 = vmatpush2.bf16.msra.mxu0 0
        %5205 = vmatprep.subr.bf16.mxu0 0
        %5206 = vmatpush2.bf16.msra.mxu0 0
        %5207 = vmatprep.mubr.bf16.mxu0 0
        %5208 = vmatmul.mubr.bf16.gmra.mxu0 %v5164
        %v5209 = vpop.f32.mrf.mxu0
        %v5210 = vadd.f32 0.0, %v5209
        %v5211 = vpop.f32.mrf.mxu0
        %v5212 = vpop.f32.mrf.mxu0
        %v5213 = vadd.f32 0.0, %v5212
        %v5214 = vpop.f32.mrf.mxu0
        %5215 = vmatprep.mubr.bf16.mxu0 0
        %5216 = vmatmul.mubr.bf16.gmra.mxu0 %v5167
        %v5217 = vpop.f32.mrf.mxu0
        %v5218 = vadd.f32 0.0, %v5217
        %v5219 = vpop.f32.mrf.mxu0
        %v5220 = vpop.f32.mrf.mxu0
        %v5221 = vadd.f32 0.0, %v5220
        %v5222 = vpop.f32.mrf.mxu0
        %5223 = vmatprep.mubr.bf16.mxu0 0
        %5224 = vmatmul.mubr.bf16.gmra.mxu0 %v5170
        %v5225 = vpop.f32.mrf.mxu0
        %v5226 = vadd.f32 0.0, %v5225
        %v5227 = vpop.f32.mrf.mxu0
        %v5228 = vpop.f32.mrf.mxu0
        %v5229 = vadd.f32 0.0, %v5228
        %v5230 = vpop.f32.mrf.mxu0
        %5231 = vmatprep.mubr.bf16.mxu0 0
        %5232 = vmatmul.mubr.bf16.gmra.mxu0 %v5173
        %v5233 = vpop.f32.mrf.mxu0
        %v5234 = vadd.f32 0.0, %v5233
        %v5235 = vpop.f32.mrf.mxu0
        %v5236 = vpop.f32.mrf.mxu0
        %v5237 = vadd.f32 0.0, %v5236
        %v5238 = vpop.f32.mrf.mxu0
        %5239 = vdwg.mxu0
        %5240 = vrot.lane.b32.xlu0 %v1198, 64
        %v5241 = vpop.permute.xlu0 %5240
        %5242 = vrot.lane.b32.xlu0 %v1200, 64
        %v5243 = vpop.permute.xlu0 %5242
        %5244 = vrot.lane.b32.xlu0 %v1202, 64
        %v5245 = vpop.permute.xlu0 %5244
        %5246 = vrot.lane.b32.xlu0 %v1204, 64
        %v5247 = vpop.permute.xlu0 %5246
        %v5253 = vsel %vm2966, %v4411, 0
        %v5256 = vsel %vm2966, %v4412, 0
        %v5259 = vsel %vm2966, %v4413, 0
        %v5262 = vsel %vm2966, %v4414, 0
        %5264 = vmatprep.subr.bf16.mxu0 0
        %5265 = vmatpush1.bf16.msra.mxu0 0
        %5266 = vmatprep.subr.bf16.mxu0 0
        %5267 = vmatpush1.bf16.msra.mxu0 0
        %5268 = vmatprep.subr.bf16.mxu0 0
        %5269 = vmatpush1.bf16.msra.mxu0 0
        %5270 = vmatprep.subr.bf16.mxu0 0
        %5271 = vmatpush1.bf16.msra.mxu0 0
        %5272 = vmatprep.subr.bf16.mxu0 0
        %5273 = vmatpush1.bf16.msra.mxu0 %v5247
        %5274 = vmatprep.subr.bf16.mxu0 0
        %5275 = vmatpush1.bf16.msra.mxu0 %v5245
        %5276 = vmatprep.subr.bf16.mxu0 0
        %5277 = vmatpush1.bf16.msra.mxu0 %v5243
        %5278 = vmatprep.subr.bf16.mxu0 0
        %5279 = vmatpush1.bf16.msra.mxu0 %v5241
        %5280 = vmatprep.subr.bf16.mxu0 0
        %5281 = vmatpush2.bf16.msra.mxu0 0
        %5282 = vmatprep.subr.bf16.mxu0 0
        %5283 = vmatpush2.bf16.msra.mxu0 0
        %5284 = vmatprep.subr.bf16.mxu0 0
        %5285 = vmatpush2.bf16.msra.mxu0 0
        %5286 = vmatprep.subr.bf16.mxu0 0
        %5287 = vmatpush2.bf16.msra.mxu0 0
        %5288 = vmatprep.subr.bf16.mxu0 0
        %5289 = vmatpush2.bf16.msra.mxu0 0
        %5290 = vmatprep.subr.bf16.mxu0 0
        %5291 = vmatpush2.bf16.msra.mxu0 0
        %5292 = vmatprep.subr.bf16.mxu0 0
        %5293 = vmatpush2.bf16.msra.mxu0 0
        %5294 = vmatprep.subr.bf16.mxu0 0
        %5295 = vmatpush2.bf16.msra.mxu0 0
        %5296 = vmatprep.mubr.bf16.mxu0 0
        %5297 = vmatmul.mubr.bf16.gmra.mxu0 %v5253
        %v5298 = vpop.f32.mrf.mxu0
        %v5299 = vadd.f32 0.0, %v5298
        %v5300 = vpop.f32.mrf.mxu0
        %v5301 = vpop.f32.mrf.mxu0
        %v5302 = vadd.f32 0.0, %v5301
        %v5303 = vpop.f32.mrf.mxu0
        %5304 = vmatprep.mubr.bf16.mxu0 0
        %5305 = vmatmul.mubr.bf16.gmra.mxu0 %v5256
        %v5306 = vpop.f32.mrf.mxu0
        %v5307 = vadd.f32 0.0, %v5306
        %v5308 = vpop.f32.mrf.mxu0
        %v5309 = vpop.f32.mrf.mxu0
        %v5310 = vadd.f32 0.0, %v5309
        %v5311 = vpop.f32.mrf.mxu0
        %5312 = vmatprep.mubr.bf16.mxu0 0
        %5313 = vmatmul.mubr.bf16.gmra.mxu0 %v5259
        %v5314 = vpop.f32.mrf.mxu0
        %v5315 = vadd.f32 0.0, %v5314
        %v5316 = vpop.f32.mrf.mxu0
        %v5317 = vpop.f32.mrf.mxu0
        %v5318 = vadd.f32 0.0, %v5317
        %v5319 = vpop.f32.mrf.mxu0
        %5320 = vmatprep.mubr.bf16.mxu0 0
        %5321 = vmatmul.mubr.bf16.gmra.mxu0 %v5262
        %v5322 = vpop.f32.mrf.mxu0
        %v5323 = vadd.f32 0.0, %v5322
        %v5324 = vpop.f32.mrf.mxu0
        %v5325 = vpop.f32.mrf.mxu0
        %v5326 = vadd.f32 0.0, %v5325
        %v5327 = vpop.f32.mrf.mxu0
        %5328 = vdwg.mxu0
        %5329 = vrot.lane.b32.xlu0 %v1206, 64
        %v5330 = vpop.permute.xlu0 %5329
        %5331 = vrot.lane.b32.xlu0 %v1208, 64
        %v5332 = vpop.permute.xlu0 %5331
        %5333 = vrot.lane.b32.xlu0 %v1210, 64
        %v5334 = vpop.permute.xlu0 %5333
        %5335 = vrot.lane.b32.xlu0 %v1212, 64
        %v5336 = vpop.permute.xlu0 %5335
        %v5342 = vsel %vm2966, %v4415, 0
        %v5345 = vsel %vm2966, %v4416, 0
        %v5348 = vsel %vm2966, %v4417, 0
        %v5351 = vsel %vm2966, %v4418, 0
        %5353 = vmatprep.subr.bf16.mxu0 0
        %5354 = vmatpush1.bf16.msra.mxu0 0
        %5355 = vmatprep.subr.bf16.mxu0 0
        %5356 = vmatpush1.bf16.msra.mxu0 0
        %5357 = vmatprep.subr.bf16.mxu0 0
        %5358 = vmatpush1.bf16.msra.mxu0 0
        %5359 = vmatprep.subr.bf16.mxu0 0
        %5360 = vmatpush1.bf16.msra.mxu0 0
        %5361 = vmatprep.subr.bf16.mxu0 0
        %5362 = vmatpush1.bf16.msra.mxu0 %v5336
        %5363 = vmatprep.subr.bf16.mxu0 0
        %5364 = vmatpush1.bf16.msra.mxu0 %v5334
        %5365 = vmatprep.subr.bf16.mxu0 0
        %5366 = vmatpush1.bf16.msra.mxu0 %v5332
        %5367 = vmatprep.subr.bf16.mxu0 0
        %5368 = vmatpush1.bf16.msra.mxu0 %v5330
        %5369 = vmatprep.subr.bf16.mxu0 0
        %5370 = vmatpush2.bf16.msra.mxu0 0
        %5371 = vmatprep.subr.bf16.mxu0 0
        %5372 = vmatpush2.bf16.msra.mxu0 0
        %5373 = vmatprep.subr.bf16.mxu0 0
        %5374 = vmatpush2.bf16.msra.mxu0 0
        %5375 = vmatprep.subr.bf16.mxu0 0
        %5376 = vmatpush2.bf16.msra.mxu0 0
        %5377 = vmatprep.subr.bf16.mxu0 0
        %5378 = vmatpush2.bf16.msra.mxu0 0
        %5379 = vmatprep.subr.bf16.mxu0 0
        %5380 = vmatpush2.bf16.msra.mxu0 0
        %5381 = vmatprep.subr.bf16.mxu0 0
        %5382 = vmatpush2.bf16.msra.mxu0 0
        %5383 = vmatprep.subr.bf16.mxu0 0
        %5384 = vmatpush2.bf16.msra.mxu0 0
        %5385 = vmatprep.mubr.bf16.mxu0 0
        %5386 = vmatmul.mubr.bf16.gmra.mxu0 %v5342
        %v5387 = vpop.f32.mrf.mxu0
        %v5388 = vadd.f32 0.0, %v5387
        %v5389 = vpop.f32.mrf.mxu0
        %v5390 = vpop.f32.mrf.mxu0
        %v5391 = vadd.f32 0.0, %v5390
        %v5392 = vpop.f32.mrf.mxu0
        %5393 = vmatprep.mubr.bf16.mxu0 0
        %5394 = vmatmul.mubr.bf16.gmra.mxu0 %v5345
        %v5395 = vpop.f32.mrf.mxu0
        %v5396 = vadd.f32 0.0, %v5395
        %v5397 = vpop.f32.mrf.mxu0
        %v5398 = vpop.f32.mrf.mxu0
        %v5399 = vadd.f32 0.0, %v5398
        %v5400 = vpop.f32.mrf.mxu0
        %5401 = vmatprep.mubr.bf16.mxu0 0
        %5402 = vmatmul.mubr.bf16.gmra.mxu0 %v5348
        %v5403 = vpop.f32.mrf.mxu0
        %v5404 = vadd.f32 0.0, %v5403
        %v5405 = vpop.f32.mrf.mxu0
        %v5406 = vpop.f32.mrf.mxu0
        %v5407 = vadd.f32 0.0, %v5406
        %v5408 = vpop.f32.mrf.mxu0
        %5409 = vmatprep.mubr.bf16.mxu0 0
        %5410 = vmatmul.mubr.bf16.gmra.mxu0 %v5351
        %v5411 = vpop.f32.mrf.mxu0
        %v5412 = vadd.f32 0.0, %v5411
        %v5413 = vpop.f32.mrf.mxu0
        %v5414 = vpop.f32.mrf.mxu0
        %v5415 = vadd.f32 0.0, %v5414
        %v5416 = vpop.f32.mrf.mxu0
        %5417 = vdwg.mxu0
        %5418 = vrot.lane.b32.xlu0 %v1214, 64
        %v5419 = vpop.permute.xlu0 %5418
        %5420 = vrot.lane.b32.xlu0 %v1216, 64
        %v5421 = vpop.permute.xlu0 %5420
        %5422 = vrot.lane.b32.xlu0 %v1218, 64
        %v5423 = vpop.permute.xlu0 %5422
        %5424 = vrot.lane.b32.xlu0 %v1220, 64
        %v5425 = vpop.permute.xlu0 %5424
        %v5431 = vsel %vm2966, %v4419, 0
        %v5434 = vsel %vm2966, %v4420, 0
        %v5437 = vsel %vm2966, %v4421, 0
        %v5440 = vsel %vm2966, %v4422, 0
        %5442 = vmatprep.subr.bf16.mxu0 0
        %5443 = vmatpush1.bf16.msra.mxu0 0
        %5444 = vmatprep.subr.bf16.mxu0 0
        %5445 = vmatpush1.bf16.msra.mxu0 0
        %5446 = vmatprep.subr.bf16.mxu0 0
        %5447 = vmatpush1.bf16.msra.mxu0 0
        %5448 = vmatprep.subr.bf16.mxu0 0
        %5449 = vmatpush1.bf16.msra.mxu0 0
        %5450 = vmatprep.subr.bf16.mxu0 0
        %5451 = vmatpush1.bf16.msra.mxu0 %v5425
        %5452 = vmatprep.subr.bf16.mxu0 0
        %5453 = vmatpush1.bf16.msra.mxu0 %v5423
        %5454 = vmatprep.subr.bf16.mxu0 0
        %5455 = vmatpush1.bf16.msra.mxu0 %v5421
        %5456 = vmatprep.subr.bf16.mxu0 0
        %5457 = vmatpush1.bf16.msra.mxu0 %v5419
        %5458 = vmatprep.subr.bf16.mxu0 0
        %5459 = vmatpush2.bf16.msra.mxu0 0
        %5460 = vmatprep.subr.bf16.mxu0 0
        %5461 = vmatpush2.bf16.msra.mxu0 0
        %5462 = vmatprep.subr.bf16.mxu0 0
        %5463 = vmatpush2.bf16.msra.mxu0 0
        %5464 = vmatprep.subr.bf16.mxu0 0
        %5465 = vmatpush2.bf16.msra.mxu0 0
        %5466 = vmatprep.subr.bf16.mxu0 0
        %5467 = vmatpush2.bf16.msra.mxu0 0
        %5468 = vmatprep.subr.bf16.mxu0 0
        %5469 = vmatpush2.bf16.msra.mxu0 0
        %5470 = vmatprep.subr.bf16.mxu0 0
        %5471 = vmatpush2.bf16.msra.mxu0 0
        %5472 = vmatprep.subr.bf16.mxu0 0
        %5473 = vmatpush2.bf16.msra.mxu0 0
        %5474 = vmatprep.mubr.bf16.mxu0 0
        %5475 = vmatmul.mubr.bf16.gmra.mxu0 %v5431
        %v5476 = vpop.f32.mrf.mxu0
        %v5477 = vadd.f32 0.0, %v5476
        %v5478 = vpop.f32.mrf.mxu0
        %v5479 = vpop.f32.mrf.mxu0
        %v5480 = vadd.f32 0.0, %v5479
        %v5481 = vpop.f32.mrf.mxu0
        %5482 = vmatprep.mubr.bf16.mxu0 0
        %5483 = vmatmul.mubr.bf16.gmra.mxu0 %v5434
        %v5484 = vpop.f32.mrf.mxu0
        %v5485 = vadd.f32 0.0, %v5484
        %v5486 = vpop.f32.mrf.mxu0
        %v5487 = vpop.f32.mrf.mxu0
        %v5488 = vadd.f32 0.0, %v5487
        %v5489 = vpop.f32.mrf.mxu0
        %5490 = vmatprep.mubr.bf16.mxu0 0
        %5491 = vmatmul.mubr.bf16.gmra.mxu0 %v5437
        %v5492 = vpop.f32.mrf.mxu0
        %v5493 = vadd.f32 0.0, %v5492
        %v5494 = vpop.f32.mrf.mxu0
        %v5495 = vpop.f32.mrf.mxu0
        %v5496 = vadd.f32 0.0, %v5495
        %v5497 = vpop.f32.mrf.mxu0
        %5498 = vmatprep.mubr.bf16.mxu0 0
        %5499 = vmatmul.mubr.bf16.gmra.mxu0 %v5440
        %v5500 = vpop.f32.mrf.mxu0
        %v5501 = vadd.f32 0.0, %v5500
        %v5502 = vpop.f32.mrf.mxu0
        %v5503 = vpop.f32.mrf.mxu0
        %v5504 = vadd.f32 0.0, %v5503
        %v5505 = vpop.f32.mrf.mxu0
        %5506 = vdwg.mxu0
        %5507 = vrot.lane.b32.xlu0 %v1222, 64
        %v5508 = vpop.permute.xlu0 %5507
        %5509 = vrot.lane.b32.xlu0 %v1224, 64
        %v5510 = vpop.permute.xlu0 %5509
        %5511 = vrot.lane.b32.xlu0 %v1226, 64
        %v5512 = vpop.permute.xlu0 %5511
        %5513 = vrot.lane.b32.xlu0 %v1228, 64
        %v5514 = vpop.permute.xlu0 %5513
        %v5520 = vsel %vm2966, %v4423, 0
        %v5523 = vsel %vm2966, %v4424, 0
        %v5526 = vsel %vm2966, %v4425, 0
        %v5529 = vsel %vm2966, %v4426, 0
        %5531 = vmatprep.subr.bf16.mxu0 0
        %5532 = vmatpush1.bf16.msra.mxu0 0
        %5533 = vmatprep.subr.bf16.mxu0 0
        %5534 = vmatpush1.bf16.msra.mxu0 0
        %5535 = vmatprep.subr.bf16.mxu0 0
        %5536 = vmatpush1.bf16.msra.mxu0 0
        %5537 = vmatprep.subr.bf16.mxu0 0
        %5538 = vmatpush1.bf16.msra.mxu0 0
        %5539 = vmatprep.subr.bf16.mxu0 0
        %5540 = vmatpush1.bf16.msra.mxu0 %v5514
        %5541 = vmatprep.subr.bf16.mxu0 0
        %5542 = vmatpush1.bf16.msra.mxu0 %v5512
        %5543 = vmatprep.subr.bf16.mxu0 0
        %5544 = vmatpush1.bf16.msra.mxu0 %v5510
        %5545 = vmatprep.subr.bf16.mxu0 0
        %5546 = vmatpush1.bf16.msra.mxu0 %v5508
        %5547 = vmatprep.subr.bf16.mxu0 0
        %5548 = vmatpush2.bf16.msra.mxu0 0
        %5549 = vmatprep.subr.bf16.mxu0 0
        %5550 = vmatpush2.bf16.msra.mxu0 0
        %5551 = vmatprep.subr.bf16.mxu0 0
        %5552 = vmatpush2.bf16.msra.mxu0 0
        %5553 = vmatprep.subr.bf16.mxu0 0
        %5554 = vmatpush2.bf16.msra.mxu0 0
        %5555 = vmatprep.subr.bf16.mxu0 0
        %5556 = vmatpush2.bf16.msra.mxu0 0
        %5557 = vmatprep.subr.bf16.mxu0 0
        %5558 = vmatpush2.bf16.msra.mxu0 0
        %5559 = vmatprep.subr.bf16.mxu0 0
        %5560 = vmatpush2.bf16.msra.mxu0 0
        %5561 = vmatprep.subr.bf16.mxu0 0
        %5562 = vmatpush2.bf16.msra.mxu0 0
        %5563 = vmatprep.mubr.bf16.mxu0 0
        %5564 = vmatmul.mubr.bf16.gmra.mxu0 %v5520
        %v5565 = vpop.f32.mrf.mxu0
        %v5566 = vadd.f32 0.0, %v5565
        %v5567 = vpop.f32.mrf.mxu0
        %v5568 = vpop.f32.mrf.mxu0
        %v5569 = vadd.f32 0.0, %v5568
        %v5570 = vpop.f32.mrf.mxu0
        %5571 = vmatprep.mubr.bf16.mxu0 0
        %5572 = vmatmul.mubr.bf16.gmra.mxu0 %v5523
        %v5573 = vpop.f32.mrf.mxu0
        %v5574 = vadd.f32 0.0, %v5573
        %v5575 = vpop.f32.mrf.mxu0
        %v5576 = vpop.f32.mrf.mxu0
        %v5577 = vadd.f32 0.0, %v5576
        %v5578 = vpop.f32.mrf.mxu0
        %5579 = vmatprep.mubr.bf16.mxu0 0
        %5580 = vmatmul.mubr.bf16.gmra.mxu0 %v5526
        %v5581 = vpop.f32.mrf.mxu0
        %v5582 = vadd.f32 0.0, %v5581
        %v5583 = vpop.f32.mrf.mxu0
        %v5584 = vpop.f32.mrf.mxu0
        %v5585 = vadd.f32 0.0, %v5584
        %v5586 = vpop.f32.mrf.mxu0
        %5587 = vmatprep.mubr.bf16.mxu0 0
        %5588 = vmatmul.mubr.bf16.gmra.mxu0 %v5529
        %v5589 = vpop.f32.mrf.mxu0
        %v5590 = vadd.f32 0.0, %v5589
        %v5591 = vpop.f32.mrf.mxu0
        %v5592 = vpop.f32.mrf.mxu0
        %v5593 = vadd.f32 0.0, %v5592
        %v5594 = vpop.f32.mrf.mxu0
        %5595 = vdwg.mxu0
        %5596 = vrot.lane.b32.xlu0 %v1230, 64
        %v5597 = vpop.permute.xlu0 %5596
        %5598 = vrot.lane.b32.xlu0 %v1232, 64
        %v5599 = vpop.permute.xlu0 %5598
        %5600 = vrot.lane.b32.xlu0 %v1234, 64
        %v5601 = vpop.permute.xlu0 %5600
        %5602 = vrot.lane.b32.xlu0 %v1236, 64
        %v5603 = vpop.permute.xlu0 %5602
        %v5609 = vsel %vm2966, %v4427, 0
        %v5612 = vsel %vm2966, %v4428, 0
        %v5615 = vsel %vm2966, %v4429, 0
        %v5618 = vsel %vm2966, %v4430, 0
        %5620 = vmatprep.subr.bf16.mxu0 0
        %5621 = vmatpush1.bf16.msra.mxu0 0
        %5622 = vmatprep.subr.bf16.mxu0 0
        %5623 = vmatpush1.bf16.msra.mxu0 0
        %5624 = vmatprep.subr.bf16.mxu0 0
        %5625 = vmatpush1.bf16.msra.mxu0 0
        %5626 = vmatprep.subr.bf16.mxu0 0
        %5627 = vmatpush1.bf16.msra.mxu0 0
        %5628 = vmatprep.subr.bf16.mxu0 0
        %5629 = vmatpush1.bf16.msra.mxu0 %v5603
        %5630 = vmatprep.subr.bf16.mxu0 0
        %5631 = vmatpush1.bf16.msra.mxu0 %v5601
        %5632 = vmatprep.subr.bf16.mxu0 0
        %5633 = vmatpush1.bf16.msra.mxu0 %v5599
        %5634 = vmatprep.subr.bf16.mxu0 0
        %5635 = vmatpush1.bf16.msra.mxu0 %v5597
        %5636 = vmatprep.subr.bf16.mxu0 0
        %5637 = vmatpush2.bf16.msra.mxu0 0
        %5638 = vmatprep.subr.bf16.mxu0 0
        %5639 = vmatpush2.bf16.msra.mxu0 0
        %5640 = vmatprep.subr.bf16.mxu0 0
        %5641 = vmatpush2.bf16.msra.mxu0 0
        %5642 = vmatprep.subr.bf16.mxu0 0
        %5643 = vmatpush2.bf16.msra.mxu0 0
        %5644 = vmatprep.subr.bf16.mxu0 0
        %5645 = vmatpush2.bf16.msra.mxu0 0
        %5646 = vmatprep.subr.bf16.mxu0 0
        %5647 = vmatpush2.bf16.msra.mxu0 0
        %5648 = vmatprep.subr.bf16.mxu0 0
        %5649 = vmatpush2.bf16.msra.mxu0 0
        %5650 = vmatprep.subr.bf16.mxu0 0
        %5651 = vmatpush2.bf16.msra.mxu0 0
        %5652 = vmatprep.mubr.bf16.mxu0 0
        %5653 = vmatmul.mubr.bf16.gmra.mxu0 %v5609
        %v5654 = vpop.f32.mrf.mxu0
        %v5655 = vadd.f32 0.0, %v5654
        %v5656 = vpop.f32.mrf.mxu0
        %v5657 = vpop.f32.mrf.mxu0
        %v5658 = vadd.f32 0.0, %v5657
        %v5659 = vpop.f32.mrf.mxu0
        %5660 = vmatprep.mubr.bf16.mxu0 0
        %5661 = vmatmul.mubr.bf16.gmra.mxu0 %v5612
        %v5662 = vpop.f32.mrf.mxu0
        %v5663 = vadd.f32 0.0, %v5662
        %v5664 = vpop.f32.mrf.mxu0
        %v5665 = vpop.f32.mrf.mxu0
        %v5666 = vadd.f32 0.0, %v5665
        %v5667 = vpop.f32.mrf.mxu0
        %5668 = vmatprep.mubr.bf16.mxu0 0
        %5669 = vmatmul.mubr.bf16.gmra.mxu0 %v5615
        %v5670 = vpop.f32.mrf.mxu0
        %v5671 = vadd.f32 0.0, %v5670
        %v5672 = vpop.f32.mrf.mxu0
        %v5673 = vpop.f32.mrf.mxu0
        %v5674 = vadd.f32 0.0, %v5673
        %v5675 = vpop.f32.mrf.mxu0
        %5676 = vmatprep.mubr.bf16.mxu0 0
        %5677 = vmatmul.mubr.bf16.gmra.mxu0 %v5618
        %v5678 = vpop.f32.mrf.mxu0
        %v5679 = vadd.f32 0.0, %v5678
        %v5680 = vpop.f32.mrf.mxu0
        %v5681 = vpop.f32.mrf.mxu0
        %v5682 = vadd.f32 0.0, %v5681
        %v5683 = vpop.f32.mrf.mxu0
        %5684 = vdwg.mxu0
        %5685 = vrot.lane.b32.xlu0 %v1238, 64
        %v5686 = vpop.permute.xlu0 %5685
        %5687 = vrot.lane.b32.xlu0 %v1240, 64
        %v5688 = vpop.permute.xlu0 %5687
        %5689 = vrot.lane.b32.xlu0 %v1242, 64
        %v5690 = vpop.permute.xlu0 %5689
        %5691 = vrot.lane.b32.xlu0 %v1244, 64
        %v5692 = vpop.permute.xlu0 %5691
        %v5698 = vsel %vm2966, %v4431, 0
        %v5701 = vsel %vm2966, %v4432, 0
        %v5704 = vsel %vm2966, %v4433, 0
        %v5707 = vsel %vm2966, %v4434, 0
        %5709 = vmatprep.subr.bf16.mxu0 0
        %5710 = vmatpush1.bf16.msra.mxu0 0
        %5711 = vmatprep.subr.bf16.mxu0 0
        %5712 = vmatpush1.bf16.msra.mxu0 0
        %5713 = vmatprep.subr.bf16.mxu0 0
        %5714 = vmatpush1.bf16.msra.mxu0 0
        %5715 = vmatprep.subr.bf16.mxu0 0
        %5716 = vmatpush1.bf16.msra.mxu0 0
        %5717 = vmatprep.subr.bf16.mxu0 0
        %5718 = vmatpush1.bf16.msra.mxu0 %v5692
        %5719 = vmatprep.subr.bf16.mxu0 0
        %5720 = vmatpush1.bf16.msra.mxu0 %v5690
        %5721 = vmatprep.subr.bf16.mxu0 0
        %5722 = vmatpush1.bf16.msra.mxu0 %v5688
        %5723 = vmatprep.subr.bf16.mxu0 0
        %5724 = vmatpush1.bf16.msra.mxu0 %v5686
        %5725 = vmatprep.subr.bf16.mxu0 0
        %5726 = vmatpush2.bf16.msra.mxu0 0
        %5727 = vmatprep.subr.bf16.mxu0 0
        %5728 = vmatpush2.bf16.msra.mxu0 0
        %5729 = vmatprep.subr.bf16.mxu0 0
        %5730 = vmatpush2.bf16.msra.mxu0 0
        %5731 = vmatprep.subr.bf16.mxu0 0
        %5732 = vmatpush2.bf16.msra.mxu0 0
        %5733 = vmatprep.subr.bf16.mxu0 0
        %5734 = vmatpush2.bf16.msra.mxu0 0
        %5735 = vmatprep.subr.bf16.mxu0 0
        %5736 = vmatpush2.bf16.msra.mxu0 0
        %5737 = vmatprep.subr.bf16.mxu0 0
        %5738 = vmatpush2.bf16.msra.mxu0 0
        %5739 = vmatprep.subr.bf16.mxu0 0
        %5740 = vmatpush2.bf16.msra.mxu0 0
        %5741 = vmatprep.mubr.bf16.mxu0 0
        %5742 = vmatmul.mubr.bf16.gmra.mxu0 %v5698
        %v5743 = vpop.f32.mrf.mxu0
        %v5744 = vadd.f32 0.0, %v5743
        %v5745 = vpop.f32.mrf.mxu0
        %v5746 = vpop.f32.mrf.mxu0
        %v5747 = vadd.f32 0.0, %v5746
        %v5748 = vpop.f32.mrf.mxu0
        %5749 = vmatprep.mubr.bf16.mxu0 0
        %5750 = vmatmul.mubr.bf16.gmra.mxu0 %v5701
        %v5751 = vpop.f32.mrf.mxu0
        %v5752 = vadd.f32 0.0, %v5751
        %v5753 = vpop.f32.mrf.mxu0
        %v5754 = vpop.f32.mrf.mxu0
        %v5755 = vadd.f32 0.0, %v5754
        %v5756 = vpop.f32.mrf.mxu0
        %5757 = vmatprep.mubr.bf16.mxu0 0
        %5758 = vmatmul.mubr.bf16.gmra.mxu0 %v5704
        %v5759 = vpop.f32.mrf.mxu0
        %v5760 = vadd.f32 0.0, %v5759
        %v5761 = vpop.f32.mrf.mxu0
        %v5762 = vpop.f32.mrf.mxu0
        %v5763 = vadd.f32 0.0, %v5762
        %v5764 = vpop.f32.mrf.mxu0
        %5765 = vmatprep.mubr.bf16.mxu0 0
        %5766 = vmatmul.mubr.bf16.gmra.mxu0 %v5707
        %v5767 = vpop.f32.mrf.mxu0
        %v5768 = vadd.f32 0.0, %v5767
        %v5769 = vpop.f32.mrf.mxu0
        %v5770 = vpop.f32.mrf.mxu0
        %v5771 = vadd.f32 0.0, %v5770
        %v5772 = vpop.f32.mrf.mxu0
        %5773 = vdwg.mxu0
        %5774 = vrot.lane.b32.xlu0 %v1246, 64
        %v5775 = vpop.permute.xlu0 %5774
        %5776 = vrot.lane.b32.xlu0 %v1248, 64
        %v5777 = vpop.permute.xlu0 %5776
        %5778 = vrot.lane.b32.xlu0 %v1250, 64
        %v5779 = vpop.permute.xlu0 %5778
        %5780 = vrot.lane.b32.xlu0 %v1252, 64
        %v5781 = vpop.permute.xlu0 %5780
        %v5787 = vsel %vm2966, %v4435, 0
        %v5790 = vsel %vm2966, %v4436, 0
        %v5793 = vsel %vm2966, %v4437, 0
        %v5796 = vsel %vm2966, %v4438, 0
        %5798 = vmatprep.subr.bf16.mxu0 0
        %5799 = vmatpush1.bf16.msra.mxu0 0
        %5800 = vmatprep.subr.bf16.mxu0 0
        %5801 = vmatpush1.bf16.msra.mxu0 0
        %5802 = vmatprep.subr.bf16.mxu0 0
        %5803 = vmatpush1.bf16.msra.mxu0 0
        %5804 = vmatprep.subr.bf16.mxu0 0
        %5805 = vmatpush1.bf16.msra.mxu0 0
        %5806 = vmatprep.subr.bf16.mxu0 0
        %5807 = vmatpush1.bf16.msra.mxu0 %v5781
        %5808 = vmatprep.subr.bf16.mxu0 0
        %5809 = vmatpush1.bf16.msra.mxu0 %v5779
        %5810 = vmatprep.subr.bf16.mxu0 0
        %5811 = vmatpush1.bf16.msra.mxu0 %v5777
        %5812 = vmatprep.subr.bf16.mxu0 0
        %5813 = vmatpush1.bf16.msra.mxu0 %v5775
        %5814 = vmatprep.subr.bf16.mxu0 0
        %5815 = vmatpush2.bf16.msra.mxu0 0
        %5816 = vmatprep.subr.bf16.mxu0 0
        %5817 = vmatpush2.bf16.msra.mxu0 0
        %5818 = vmatprep.subr.bf16.mxu0 0
        %5819 = vmatpush2.bf16.msra.mxu0 0
        %5820 = vmatprep.subr.bf16.mxu0 0
        %5821 = vmatpush2.bf16.msra.mxu0 0
        %5822 = vmatprep.subr.bf16.mxu0 0
        %5823 = vmatpush2.bf16.msra.mxu0 0
        %5824 = vmatprep.subr.bf16.mxu0 0
        %5825 = vmatpush2.bf16.msra.mxu0 0
        %5826 = vmatprep.subr.bf16.mxu0 0
        %5827 = vmatpush2.bf16.msra.mxu0 0
        %5828 = vmatprep.subr.bf16.mxu0 0
        %5829 = vmatpush2.bf16.msra.mxu0 0
        %5830 = vmatprep.mubr.bf16.mxu0 0
        %5831 = vmatmul.mubr.bf16.gmra.mxu0 %v5787
        %v5832 = vpop.f32.mrf.mxu0
        %v5833 = vadd.f32 0.0, %v5832
        %v5834 = vpop.f32.mrf.mxu0
        %v5835 = vpop.f32.mrf.mxu0
        %v5836 = vadd.f32 0.0, %v5835
        %v5837 = vpop.f32.mrf.mxu0
        %5838 = vmatprep.mubr.bf16.mxu0 0
        %5839 = vmatmul.mubr.bf16.gmra.mxu0 %v5790
        %v5840 = vpop.f32.mrf.mxu0
        %v5841 = vadd.f32 0.0, %v5840
        %v5842 = vpop.f32.mrf.mxu0
        %v5843 = vpop.f32.mrf.mxu0
        %v5844 = vadd.f32 0.0, %v5843
        %v5845 = vpop.f32.mrf.mxu0
        %5846 = vmatprep.mubr.bf16.mxu0 0
        %5847 = vmatmul.mubr.bf16.gmra.mxu0 %v5793
        %v5848 = vpop.f32.mrf.mxu0
        %v5849 = vadd.f32 0.0, %v5848
        %v5850 = vpop.f32.mrf.mxu0
        %v5851 = vpop.f32.mrf.mxu0
        %v5852 = vadd.f32 0.0, %v5851
        %v5853 = vpop.f32.mrf.mxu0
        %5854 = vmatprep.mubr.bf16.mxu0 0
        %5855 = vmatmul.mubr.bf16.gmra.mxu0 %v5796
        %v5856 = vpop.f32.mrf.mxu0
        %v5857 = vadd.f32 0.0, %v5856
        %v5858 = vpop.f32.mrf.mxu0
        %v5859 = vpop.f32.mrf.mxu0
        %v5860 = vadd.f32 0.0, %v5859
        %v5861 = vpop.f32.mrf.mxu0
        %5862 = vdwg.mxu0
        %v5863 = vld [vmem:[%s3] sm:$0xf]
        %v5864 = vld [vmem:[%s3 + $0x4] sm:$0xf]
        %v5865 = vld [vmem:[%s3 + $0x8] sm:$0xf]
        %v5866 = vld [vmem:[%s3 + $0xc] sm:$0xf]
        %v5867 = vld [vmem:[%s3 + $0x10] sm:$0xf]
        %v5868 = vld [vmem:[%s3 + $0x14] sm:$0xf]
        %v5869 = vld [vmem:[%s3 + $0x18] sm:$0xf]
        %v5870 = vld [vmem:[%s3 + $0x1c] sm:$0xf]
        %v5871 = vld [vmem:[%s3 + $0x20] sm:$0xf]
        %v5872 = vld [vmem:[%s3 + $0x24] sm:$0xf]
        %v5873 = vld [vmem:[%s3 + $0x28] sm:$0xf]
        %v5874 = vld [vmem:[%s3 + $0x2c] sm:$0xf]
        %v5875 = vld [vmem:[%s4] sm:$0x7]
        %5876 = vst.msk [vmem:[#allocation2] sm:$0xff] %vm1261, %v4498
        %5877 = vst.msk [vmem:[#allocation2 + $0x8] sm:$0xff] %vm1261, %v4501
        %5878 = vst.msk [vmem:[#allocation2 + $0x10] sm:$0xff] %vm1261, %v4506
        %5879 = vst.msk [vmem:[#allocation2 + $0x18] sm:$0xff] %vm1261, %v4509
        %5880 = vst.msk [vmem:[#allocation2 + $0x20] sm:$0xff] %vm1261, %v4514
        %5881 = vst.msk [vmem:[#allocation2 + $0x28] sm:$0xff] %vm1261, %v4517
        %5882 = vst.msk [vmem:[#allocation2 + $0x30] sm:$0xff] %vm1261, %v4522
        %5883 = vst.msk [vmem:[#allocation2 + $0x38] sm:$0xff] %vm1261, %v4525
        %5884 = vst.msk [vmem:[#allocation2 + $0x40] sm:$0xff] %vm1261, %v4587
        %5885 = vst.msk [vmem:[#allocation2 + $0x48] sm:$0xff] %vm1261, %v4590
        %5886 = vst.msk [vmem:[#allocation2 + $0x50] sm:$0xff] %vm1261, %v4595
        %5887 = vst.msk [vmem:[#allocation2 + $0x58] sm:$0xff] %vm1261, %v4598
        %5888 = vst.msk [vmem:[#allocation2 + $0x60] sm:$0xff] %vm1261, %v4603
        %5889 = vst.msk [vmem:[#allocation2 + $0x68] sm:$0xff] %vm1261, %v4606
        %5890 = vst.msk [vmem:[#allocation2 + $0x70] sm:$0xff] %vm1261, %v4611
        %5891 = vst.msk [vmem:[#allocation2 + $0x78] sm:$0xff] %vm1261, %v4614
        %5892 = vst.msk [vmem:[#allocation2 + $0x80] sm:$0xff] %vm1261, %v4676
        %5893 = vst.msk [vmem:[#allocation2 + $0x88] sm:$0xff] %vm1261, %v4679
        %5894 = vst.msk [vmem:[#allocation2 + $0x90] sm:$0xff] %vm1261, %v4684
        %5895 = vst.msk [vmem:[#allocation2 + $0x98] sm:$0xff] %vm1261, %v4687
        %5896 = vst.msk [vmem:[#allocation2 + $0xa0] sm:$0xff] %vm1261, %v4692
        %5897 = vst.msk [vmem:[#allocation2 + $0xa8] sm:$0xff] %vm1261, %v4695
        %5898 = vst.msk [vmem:[#allocation2 + $0xb0] sm:$0xff] %vm1261, %v4700
        %5899 = vst.msk [vmem:[#allocation2 + $0xb8] sm:$0xff] %vm1261, %v4703
        %5900 = vst.msk [vmem:[#allocation2 + $0xc0] sm:$0xff] %vm1261, %v4765
        %5901 = vst.msk [vmem:[#allocation2 + $0xc8] sm:$0xff] %vm1261, %v4768
        %5902 = vst.msk [vmem:[#allocation2 + $0xd0] sm:$0xff] %vm1261, %v4773
        %5903 = vst.msk [vmem:[#allocation2 + $0xd8] sm:$0xff] %vm1261, %v4776
        %5904 = vst.msk [vmem:[#allocation2 + $0xe0] sm:$0xff] %vm1261, %v4781
        %5905 = vst.msk [vmem:[#allocation2 + $0xe8] sm:$0xff] %vm1261, %v4784
        %5906 = vst.msk [vmem:[#allocation2 + $0xf0] sm:$0xff] %vm1261, %v4789
        %5907 = vst.msk [vmem:[#allocation2 + $0xf8] sm:$0xff] %vm1261, %v4792
        %5940 = vrot.lane.b32.xlu0 %v4854, 8
        %v5941 = vpop.permute.xlu0 %5940
        %5942 = vrot.lane.b32.xlu0 %v4857, 8
        %v5943 = vpop.permute.xlu0 %5942
        %5944 = vrot.lane.b32.xlu0 %v4862, 8
        %v5945 = vpop.permute.xlu0 %5944
        %5946 = vrot.lane.b32.xlu0 %v4865, 8
        %v5947 = vpop.permute.xlu0 %5946
        %5948 = vrot.lane.b32.xlu0 %v4870, 8
        %v5949 = vpop.permute.xlu0 %5948
        %5950 = vrot.lane.b32.xlu0 %v4873, 8
        %v5951 = vpop.permute.xlu0 %5950
        %5952 = vrot.lane.b32.xlu0 %v4878, 8
        %v5953 = vpop.permute.xlu0 %5952
        %5954 = vrot.lane.b32.xlu0 %v4881, 8
        %v5955 = vpop.permute.xlu0 %5954
        %5956 = vrot.lane.b32.xlu0 %v4943, 8
        %v5957 = vpop.permute.xlu0 %5956
        %5958 = vrot.lane.b32.xlu0 %v4946, 8
        %v5959 = vpop.permute.xlu0 %5958
        %5960 = vrot.lane.b32.xlu0 %v4951, 8
        %v5961 = vpop.permute.xlu0 %5960
        %5962 = vrot.lane.b32.xlu0 %v4954, 8
        %v5963 = vpop.permute.xlu0 %5962
        %5964 = vrot.lane.b32.xlu0 %v4959, 8
        %v5965 = vpop.permute.xlu0 %5964
        %5966 = vrot.lane.b32.xlu0 %v4962, 8
        %v5967 = vpop.permute.xlu0 %5966
        %5968 = vrot.lane.b32.xlu0 %v4967, 8
        %v5969 = vpop.permute.xlu0 %5968
        %5970 = vrot.lane.b32.xlu0 %v4970, 8
        %v5971 = vpop.permute.xlu0 %5970
        %5972 = vrot.lane.b32.xlu0 %v5032, 8
        %v5973 = vpop.permute.xlu0 %5972
        %5974 = vrot.lane.b32.xlu0 %v5035, 8
        %v5975 = vpop.permute.xlu0 %5974
        %5976 = vrot.lane.b32.xlu0 %v5040, 8
        %v5977 = vpop.permute.xlu0 %5976
        %5978 = vrot.lane.b32.xlu0 %v5043, 8
        %v5979 = vpop.permute.xlu0 %5978
        %5980 = vrot.lane.b32.xlu0 %v5048, 8
        %v5981 = vpop.permute.xlu0 %5980
        %5982 = vrot.lane.b32.xlu0 %v5051, 8
        %v5983 = vpop.permute.xlu0 %5982
        %5984 = vrot.lane.b32.xlu0 %v5056, 8
        %v5985 = vpop.permute.xlu0 %5984
        %5986 = vrot.lane.b32.xlu0 %v5059, 8
        %v5987 = vpop.permute.xlu0 %5986
        %5988 = vrot.lane.b32.xlu0 %v5121, 8
        %v5989 = vpop.permute.xlu0 %5988
        %5990 = vrot.lane.b32.xlu0 %v5124, 8
        %v5991 = vpop.permute.xlu0 %5990
        %5992 = vrot.lane.b32.xlu0 %v5129, 8
        %v5993 = vpop.permute.xlu0 %5992
        %5994 = vrot.lane.b32.xlu0 %v5132, 8
        %v5995 = vpop.permute.xlu0 %5994
        %5996 = vrot.lane.b32.xlu0 %v5137, 8
        %v5997 = vpop.permute.xlu0 %5996
        %5998 = vrot.lane.b32.xlu0 %v5140, 8
        %v5999 = vpop.permute.xlu0 %5998
        %6000 = vrot.lane.b32.xlu0 %v5145, 8
        %v6001 = vpop.permute.xlu0 %6000
        %6002 = vrot.lane.b32.xlu0 %v5148, 8
        %v6003 = vpop.permute.xlu0 %6002
        %vm6036 = vcmask 130112
        %6037 = vst.msk [vmem:[#allocation2] sm:$0xff] %vm6036, %v5941
        %6038 = vst.msk [vmem:[#allocation2 + $0x8] sm:$0xff] %vm6036, %v5943
        %6039 = vst.msk [vmem:[#allocation2 + $0x10] sm:$0xff] %vm6036, %v5945
        %6040 = vst.msk [vmem:[#allocation2 + $0x18] sm:$0xff] %vm6036, %v5947
        %6041 = vst.msk [vmem:[#allocation2 + $0x20] sm:$0xff] %vm6036, %v5949
        %6042 = vst.msk [vmem:[#allocation2 + $0x28] sm:$0xff] %vm6036, %v5951
        %6043 = vst.msk [vmem:[#allocation2 + $0x30] sm:$0xff] %vm6036, %v5953
        %6044 = vst.msk [vmem:[#allocation2 + $0x38] sm:$0xff] %vm6036, %v5955
        %6045 = vst.msk [vmem:[#allocation2 + $0x40] sm:$0xff] %vm6036, %v5957
        %6046 = vst.msk [vmem:[#allocation2 + $0x48] sm:$0xff] %vm6036, %v5959
        %6047 = vst.msk [vmem:[#allocation2 + $0x50] sm:$0xff] %vm6036, %v5961
        %6048 = vst.msk [vmem:[#allocation2 + $0x58] sm:$0xff] %vm6036, %v5963
        %6049 = vst.msk [vmem:[#allocation2 + $0x60] sm:$0xff] %vm6036, %v5965
        %6050 = vst.msk [vmem:[#allocation2 + $0x68] sm:$0xff] %vm6036, %v5967
        %6051 = vst.msk [vmem:[#allocation2 + $0x70] sm:$0xff] %vm6036, %v5969
        %6052 = vst.msk [vmem:[#allocation2 + $0x78] sm:$0xff] %vm6036, %v5971
        %6053 = vst.msk [vmem:[#allocation2 + $0x80] sm:$0xff] %vm6036, %v5973
        %6054 = vst.msk [vmem:[#allocation2 + $0x88] sm:$0xff] %vm6036, %v5975
        %6055 = vst.msk [vmem:[#allocation2 + $0x90] sm:$0xff] %vm6036, %v5977
        %6056 = vst.msk [vmem:[#allocation2 + $0x98] sm:$0xff] %vm6036, %v5979
        %6057 = vst.msk [vmem:[#allocation2 + $0xa0] sm:$0xff] %vm6036, %v5981
        %6058 = vst.msk [vmem:[#allocation2 + $0xa8] sm:$0xff] %vm6036, %v5983
        %6059 = vst.msk [vmem:[#allocation2 + $0xb0] sm:$0xff] %vm6036, %v5985
        %6060 = vst.msk [vmem:[#allocation2 + $0xb8] sm:$0xff] %vm6036, %v5987
        %6061 = vst.msk [vmem:[#allocation2 + $0xc0] sm:$0xff] %vm6036, %v5989
        %6062 = vst.msk [vmem:[#allocation2 + $0xc8] sm:$0xff] %vm6036, %v5991
        %6063 = vst.msk [vmem:[#allocation2 + $0xd0] sm:$0xff] %vm6036, %v5993
        %6064 = vst.msk [vmem:[#allocation2 + $0xd8] sm:$0xff] %vm6036, %v5995
        %6065 = vst.msk [vmem:[#allocation2 + $0xe0] sm:$0xff] %vm6036, %v5997
        %6066 = vst.msk [vmem:[#allocation2 + $0xe8] sm:$0xff] %vm6036, %v5999
        %6067 = vst.msk [vmem:[#allocation2 + $0xf0] sm:$0xff] %vm6036, %v6001
        %6068 = vst.msk [vmem:[#allocation2 + $0xf8] sm:$0xff] %vm6036, %v6003
        %6101 = vrot.lane.b32.xlu0 %v5210, 16
        %v6102 = vpop.permute.xlu0 %6101
        %6103 = vrot.lane.b32.xlu0 %v5213, 16
        %v6104 = vpop.permute.xlu0 %6103
        %6105 = vrot.lane.b32.xlu0 %v5218, 16
        %v6106 = vpop.permute.xlu0 %6105
        %6107 = vrot.lane.b32.xlu0 %v5221, 16
        %v6108 = vpop.permute.xlu0 %6107
        %6109 = vrot.lane.b32.xlu0 %v5226, 16
        %v6110 = vpop.permute.xlu0 %6109
        %6111 = vrot.lane.b32.xlu0 %v5229, 16
        %v6112 = vpop.permute.xlu0 %6111
        %6113 = vrot.lane.b32.xlu0 %v5234, 16
        %v6114 = vpop.permute.xlu0 %6113
        %6115 = vrot.lane.b32.xlu0 %v5237, 16
        %v6116 = vpop.permute.xlu0 %6115
        %6117 = vrot.lane.b32.xlu0 %v5299, 16
        %v6118 = vpop.permute.xlu0 %6117
        %6119 = vrot.lane.b32.xlu0 %v5302, 16
        %v6120 = vpop.permute.xlu0 %6119
        %6121 = vrot.lane.b32.xlu0 %v5307, 16
        %v6122 = vpop.permute.xlu0 %6121
        %6123 = vrot.lane.b32.xlu0 %v5310, 16
        %v6124 = vpop.permute.xlu0 %6123
        %6125 = vrot.lane.b32.xlu0 %v5315, 16
        %v6126 = vpop.permute.xlu0 %6125
        %6127 = vrot.lane.b32.xlu0 %v5318, 16
        %v6128 = vpop.permute.xlu0 %6127
        %6129 = vrot.lane.b32.xlu0 %v5323, 16
        %v6130 = vpop.permute.xlu0 %6129
        %6131 = vrot.lane.b32.xlu0 %v5326, 16
        %v6132 = vpop.permute.xlu0 %6131
        %6133 = vrot.lane.b32.xlu0 %v5388, 16
        %v6134 = vpop.permute.xlu0 %6133
        %6135 = vrot.lane.b32.xlu0 %v5391, 16
        %v6136 = vpop.permute.xlu0 %6135
        %6137 = vrot.lane.b32.xlu0 %v5396, 16
        %v6138 = vpop.permute.xlu0 %6137
        %6139 = vrot.lane.b32.xlu0 %v5399, 16
        %v6140 = vpop.permute.xlu0 %6139
        %6141 = vrot.lane.b32.xlu0 %v5404, 16
        %v6142 = vpop.permute.xlu0 %6141
        %6143 = vrot.lane.b32.xlu0 %v5407, 16
        %v6144 = vpop.permute.xlu0 %6143
        %6145 = vrot.lane.b32.xlu0 %v5412, 16
        %v6146 = vpop.permute.xlu0 %6145
        %6147 = vrot.lane.b32.xlu0 %v5415, 16
        %v6148 = vpop.permute.xlu0 %6147
        %6149 = vrot.lane.b32.xlu0 %v5477, 16
        %v6150 = vpop.permute.xlu0 %6149
        %6151 = vrot.lane.b32.xlu0 %v5480, 16
        %v6152 = vpop.permute.xlu0 %6151
        %6153 = vrot.lane.b32.xlu0 %v5485, 16
        %v6154 = vpop.permute.xlu0 %6153
        %6155 = vrot.lane.b32.xlu0 %v5488, 16
        %v6156 = vpop.permute.xlu0 %6155
        %6157 = vrot.lane.b32.xlu0 %v5493, 16
        %v6158 = vpop.permute.xlu0 %6157
        %6159 = vrot.lane.b32.xlu0 %v5496, 16
        %v6160 = vpop.permute.xlu0 %6159
        %6161 = vrot.lane.b32.xlu0 %v5501, 16
        %v6162 = vpop.permute.xlu0 %6161
        %6163 = vrot.lane.b32.xlu0 %v5504, 16
        %v6164 = vpop.permute.xlu0 %6163
        %vm6197 = vcmask 195712
        %6198 = vst.msk [vmem:[#allocation2] sm:$0xff] %vm6197, %v6102
        %6199 = vst.msk [vmem:[#allocation2 + $0x8] sm:$0xff] %vm6197, %v6104
        %6200 = vst.msk [vmem:[#allocation2 + $0x10] sm:$0xff] %vm6197, %v6106
        %6201 = vst.msk [vmem:[#allocation2 + $0x18] sm:$0xff] %vm6197, %v6108
        %6202 = vst.msk [vmem:[#allocation2 + $0x20] sm:$0xff] %vm6197, %v6110
        %6203 = vst.msk [vmem:[#allocation2 + $0x28] sm:$0xff] %vm6197, %v6112
        %6204 = vst.msk [vmem:[#allocation2 + $0x30] sm:$0xff] %vm6197, %v6114
        %6205 = vst.msk [vmem:[#allocation2 + $0x38] sm:$0xff] %vm6197, %v6116
        %6206 = vst.msk [vmem:[#allocation2 + $0x40] sm:$0xff] %vm6197, %v6118
        %6207 = vst.msk [vmem:[#allocation2 + $0x48] sm:$0xff] %vm6197, %v6120
        %6208 = vst.msk [vmem:[#allocation2 + $0x50] sm:$0xff] %vm6197, %v6122
        %6209 = vst.msk [vmem:[#allocation2 + $0x58] sm:$0xff] %vm6197, %v6124
        %6210 = vst.msk [vmem:[#allocation2 + $0x60] sm:$0xff] %vm6197, %v6126
        %6211 = vst.msk [vmem:[#allocation2 + $0x68] sm:$0xff] %vm6197, %v6128
        %6212 = vst.msk [vmem:[#allocation2 + $0x70] sm:$0xff] %vm6197, %v6130
        %6213 = vst.msk [vmem:[#allocation2 + $0x78] sm:$0xff] %vm6197, %v6132
        %6214 = vst.msk [vmem:[#allocation2 + $0x80] sm:$0xff] %vm6197, %v6134
        %6215 = vst.msk [vmem:[#allocation2 + $0x88] sm:$0xff] %vm6197, %v6136
        %6216 = vst.msk [vmem:[#allocation2 + $0x90] sm:$0xff] %vm6197, %v6138
        %6217 = vst.msk [vmem:[#allocation2 + $0x98] sm:$0xff] %vm6197, %v6140
        %6218 = vst.msk [vmem:[#allocation2 + $0xa0] sm:$0xff] %vm6197, %v6142
        %6219 = vst.msk [vmem:[#allocation2 + $0xa8] sm:$0xff] %vm6197, %v6144
        %6220 = vst.msk [vmem:[#allocation2 + $0xb0] sm:$0xff] %vm6197, %v6146
        %6221 = vst.msk [vmem:[#allocation2 + $0xb8] sm:$0xff] %vm6197, %v6148
        %6222 = vst.msk [vmem:[#allocation2 + $0xc0] sm:$0xff] %vm6197, %v6150
        %6223 = vst.msk [vmem:[#allocation2 + $0xc8] sm:$0xff] %vm6197, %v6152
        %6224 = vst.msk [vmem:[#allocation2 + $0xd0] sm:$0xff] %vm6197, %v6154
        %6225 = vst.msk [vmem:[#allocation2 + $0xd8] sm:$0xff] %vm6197, %v6156
        %6226 = vst.msk [vmem:[#allocation2 + $0xe0] sm:$0xff] %vm6197, %v6158
        %6227 = vst.msk [vmem:[#allocation2 + $0xe8] sm:$0xff] %vm6197, %v6160
        %6228 = vst.msk [vmem:[#allocation2 + $0xf0] sm:$0xff] %vm6197, %v6162
        %6229 = vst.msk [vmem:[#allocation2 + $0xf8] sm:$0xff] %vm6197, %v6164
        %6262 = vrot.lane.b32.xlu0 %v5566, 24
        %v6263 = vpop.permute.xlu0 %6262
        %6264 = vrot.lane.b32.xlu0 %v5569, 24
        %v6265 = vpop.permute.xlu0 %6264
        %6266 = vrot.lane.b32.xlu0 %v5574, 24
        %v6267 = vpop.permute.xlu0 %6266
        %6268 = vrot.lane.b32.xlu0 %v5577, 24
        %v6269 = vpop.permute.xlu0 %6268
        %6270 = vrot.lane.b32.xlu0 %v5582, 24
        %v6271 = vpop.permute.xlu0 %6270
        %6272 = vrot.lane.b32.xlu0 %v5585, 24
        %v6273 = vpop.permute.xlu0 %6272
        %6274 = vrot.lane.b32.xlu0 %v5590, 24
        %v6275 = vpop.permute.xlu0 %6274
        %6276 = vrot.lane.b32.xlu0 %v5593, 24
        %v6277 = vpop.permute.xlu0 %6276
        %6278 = vrot.lane.b32.xlu0 %v5655, 24
        %v6279 = vpop.permute.xlu0 %6278
        %6280 = vrot.lane.b32.xlu0 %v5658, 24
        %v6281 = vpop.permute.xlu0 %6280
        %6282 = vrot.lane.b32.xlu0 %v5663, 24
        %v6283 = vpop.permute.xlu0 %6282
        %6284 = vrot.lane.b32.xlu0 %v5666, 24
        %v6285 = vpop.permute.xlu0 %6284
        %6286 = vrot.lane.b32.xlu0 %v5671, 24
        %v6287 = vpop.permute.xlu0 %6286
        %6288 = vrot.lane.b32.xlu0 %v5674, 24
        %v6289 = vpop.permute.xlu0 %6288
        %6290 = vrot.lane.b32.xlu0 %v5679, 24
        %v6291 = vpop.permute.xlu0 %6290
        %6292 = vrot.lane.b32.xlu0 %v5682, 24
        %v6293 = vpop.permute.xlu0 %6292
        %6294 = vrot.lane.b32.xlu0 %v5744, 24
        %v6295 = vpop.permute.xlu0 %6294
        %6296 = vrot.lane.b32.xlu0 %v5747, 24
        %v6297 = vpop.permute.xlu0 %6296
        %6298 = vrot.lane.b32.xlu0 %v5752, 24
        %v6299 = vpop.permute.xlu0 %6298
        %6300 = vrot.lane.b32.xlu0 %v5755, 24
        %v6301 = vpop.permute.xlu0 %6300
        %6302 = vrot.lane.b32.xlu0 %v5760, 24
        %v6303 = vpop.permute.xlu0 %6302
        %6304 = vrot.lane.b32.xlu0 %v5763, 24
        %v6305 = vpop.permute.xlu0 %6304
        %6306 = vrot.lane.b32.xlu0 %v5768, 24
        %v6307 = vpop.permute.xlu0 %6306
        %6308 = vrot.lane.b32.xlu0 %v5771, 24
        %v6309 = vpop.permute.xlu0 %6308
        %6310 = vrot.lane.b32.xlu0 %v5833, 24
        %v6311 = vpop.permute.xlu0 %6310
        %6312 = vrot.lane.b32.xlu0 %v5836, 24
        %v6313 = vpop.permute.xlu0 %6312
        %6314 = vrot.lane.b32.xlu0 %v5841, 24
        %v6315 = vpop.permute.xlu0 %6314
        %6316 = vrot.lane.b32.xlu0 %v5844, 24
        %v6317 = vpop.permute.xlu0 %6316
        %6318 = vrot.lane.b32.xlu0 %v5849, 24
        %v6319 = vpop.permute.xlu0 %6318
        %6320 = vrot.lane.b32.xlu0 %v5852, 24
        %v6321 = vpop.permute.xlu0 %6320
        %6322 = vrot.lane.b32.xlu0 %v5857, 24
        %v6323 = vpop.permute.xlu0 %6322
        %6324 = vrot.lane.b32.xlu0 %v5860, 24
        %v6325 = vpop.permute.xlu0 %6324
        %vm6358 = vcmask 261312
        %6359 = vst.msk [vmem:[#allocation2] sm:$0xff] %vm6358, %v6263
        %6360 = vst.msk [vmem:[#allocation2 + $0x8] sm:$0xff] %vm6358, %v6265
        %6361 = vst.msk [vmem:[#allocation2 + $0x10] sm:$0xff] %vm6358, %v6267
        %6362 = vst.msk [vmem:[#allocation2 + $0x18] sm:$0xff] %vm6358, %v6269
        %6363 = vst.msk [vmem:[#allocation2 + $0x20] sm:$0xff] %vm6358, %v6271
        %6364 = vst.msk [vmem:[#allocation2 + $0x28] sm:$0xff] %vm6358, %v6273
        %6365 = vst.msk [vmem:[#allocation2 + $0x30] sm:$0xff] %vm6358, %v6275
        %6366 = vst.msk [vmem:[#allocation2 + $0x38] sm:$0xff] %vm6358, %v6277
        %6367 = vst.msk [vmem:[#allocation2 + $0x40] sm:$0xff] %vm6358, %v6279
        %6368 = vst.msk [vmem:[#allocation2 + $0x48] sm:$0xff] %vm6358, %v6281
        %6369 = vst.msk [vmem:[#allocation2 + $0x50] sm:$0xff] %vm6358, %v6283
        %6370 = vst.msk [vmem:[#allocation2 + $0x58] sm:$0xff] %vm6358, %v6285
        %6371 = vst.msk [vmem:[#allocation2 + $0x60] sm:$0xff] %vm6358, %v6287
        %6372 = vst.msk [vmem:[#allocation2 + $0x68] sm:$0xff] %vm6358, %v6289
        %6373 = vst.msk [vmem:[#allocation2 + $0x70] sm:$0xff] %vm6358, %v6291
        %6374 = vst.msk [vmem:[#allocation2 + $0x78] sm:$0xff] %vm6358, %v6293
        %6375 = vst.msk [vmem:[#allocation2 + $0x80] sm:$0xff] %vm6358, %v6295
        %6376 = vst.msk [vmem:[#allocation2 + $0x88] sm:$0xff] %vm6358, %v6297
        %6377 = vst.msk [vmem:[#allocation2 + $0x90] sm:$0xff] %vm6358, %v6299
        %6378 = vst.msk [vmem:[#allocation2 + $0x98] sm:$0xff] %vm6358, %v6301
        %6379 = vst.msk [vmem:[#allocation2 + $0xa0] sm:$0xff] %vm6358, %v6303
        %6380 = vst.msk [vmem:[#allocation2 + $0xa8] sm:$0xff] %vm6358, %v6305
        %6381 = vst.msk [vmem:[#allocation2 + $0xb0] sm:$0xff] %vm6358, %v6307
        %6382 = vst.msk [vmem:[#allocation2 + $0xb8] sm:$0xff] %vm6358, %v6309
        %6383 = vst.msk [vmem:[#allocation2 + $0xc0] sm:$0xff] %vm6358, %v6311
        %6384 = vst.msk [vmem:[#allocation2 + $0xc8] sm:$0xff] %vm6358, %v6313
        %6385 = vst.msk [vmem:[#allocation2 + $0xd0] sm:$0xff] %vm6358, %v6315
        %6386 = vst.msk [vmem:[#allocation2 + $0xd8] sm:$0xff] %vm6358, %v6317
        %6387 = vst.msk [vmem:[#allocation2 + $0xe0] sm:$0xff] %vm6358, %v6319
        %6388 = vst.msk [vmem:[#allocation2 + $0xe8] sm:$0xff] %vm6358, %v6321
        %6389 = vst.msk [vmem:[#allocation2 + $0xf0] sm:$0xff] %vm6358, %v6323
        %6390 = vst.msk [vmem:[#allocation2 + $0xf8] sm:$0xff] %vm6358, %v6325
        %v6391 = vld [vmem:[#allocation2] sm:$0xff]
        %v6392 = vld [vmem:[#allocation2 + $0x8] sm:$0xff]
        %v6393 = vld [vmem:[#allocation2 + $0x10] sm:$0xff]
        %v6394 = vld [vmem:[#allocation2 + $0x18] sm:$0xff]
        %v6395 = vld [vmem:[#allocation2 + $0x20] sm:$0xff]
        %v6396 = vld [vmem:[#allocation2 + $0x28] sm:$0xff]
        %v6397 = vld [vmem:[#allocation2 + $0x30] sm:$0xff]
        %v6398 = vld [vmem:[#allocation2 + $0x38] sm:$0xff]
        %v6399 = vld [vmem:[#allocation2 + $0x40] sm:$0xff]
        %v6400 = vld [vmem:[#allocation2 + $0x48] sm:$0xff]
        %v6401 = vld [vmem:[#allocation2 + $0x50] sm:$0xff]
        %v6402 = vld [vmem:[#allocation2 + $0x58] sm:$0xff]
        %v6403 = vld [vmem:[#allocation2 + $0x60] sm:$0xff]
        %v6404 = vld [vmem:[#allocation2 + $0x68] sm:$0xff]
        %v6405 = vld [vmem:[#allocation2 + $0x70] sm:$0xff]
        %v6406 = vld [vmem:[#allocation2 + $0x78] sm:$0xff]
        %v6407 = vld [vmem:[#allocation2 + $0x80] sm:$0xff]
        %v6408 = vld [vmem:[#allocation2 + $0x88] sm:$0xff]
        %v6409 = vld [vmem:[#allocation2 + $0x90] sm:$0xff]
        %v6410 = vld [vmem:[#allocation2 + $0x98] sm:$0xff]
        %v6411 = vld [vmem:[#allocation2 + $0xa0] sm:$0xff]
        %v6412 = vld [vmem:[#allocation2 + $0xa8] sm:$0xff]
        %v6413 = vld [vmem:[#allocation2 + $0xb0] sm:$0xff]
        %v6414 = vld [vmem:[#allocation2 + $0xb8] sm:$0xff]
        %v6415 = vld [vmem:[#allocation2 + $0xc0] sm:$0xff]
        %v6416 = vld [vmem:[#allocation2 + $0xc8] sm:$0xff]
        %v6417 = vld [vmem:[#allocation2 + $0xd0] sm:$0xff]
        %v6418 = vld [vmem:[#allocation2 + $0xd8] sm:$0xff]
        %v6419 = vld [vmem:[#allocation2 + $0xe0] sm:$0xff]
        %v6420 = vld [vmem:[#allocation2 + $0xe8] sm:$0xff]
        %v6421 = vld [vmem:[#allocation2 + $0xf0] sm:$0xff]
        %v6422 = vld [vmem:[#allocation2 + $0xf8] sm:$0xff]
        %v6423 = vpack.c.bf16 %v6392, %v6391
        %v6424 = vpack.c.bf16 %v6394, %v6393
        %v6425 = vpack.c.bf16 %v6396, %v6395
        %v6426 = vpack.c.bf16 %v6398, %v6397
        %v6427 = vpack.c.bf16 %v6400, %v6399
        %v6428 = vpack.c.bf16 %v6402, %v6401
        %v6429 = vpack.c.bf16 %v6404, %v6403
        %v6430 = vpack.c.bf16 %v6406, %v6405
        %v6431 = vpack.c.bf16 %v6408, %v6407
        %v6432 = vpack.c.bf16 %v6410, %v6409
        %v6433 = vpack.c.bf16 %v6412, %v6411
        %v6434 = vpack.c.bf16 %v6414, %v6413
        %v6435 = vpack.c.bf16 %v6416, %v6415
        %v6436 = vpack.c.bf16 %v6418, %v6417
        %v6437 = vpack.c.bf16 %v6420, %v6419
        %v6438 = vpack.c.bf16 %v6422, %v6421
        %v6439 = vlaneseq
        %v6440 = vshrl.u32 %v6439, 7
        %v6441 = vsub.s32 0, %v6440
        %v6442 = vrot.slane %v5875, %v6441
        %v6447 = vunpack.c.l.b16 %v5863
        %v6448 = vunpack.c.l.b16 %v5864
        %v6449 = vunpack.c.l.b16 %v5865
        %v6450 = vunpack.c.l.b16 %v5866
        %v6451 = vpack.c.b16 %v6448, %v6447
        %v6452 = vpack.c.b16 %v6450, %v6449
        %v6456 = vsel %vm459, %v6423, 0
        %v6459 = vsel %vm459, %v6424, 0
        %v6462 = vsel %vm459, %v6425, 0
        %v6465 = vsel %vm459, %v6426, 0
        %v6468 = vsel %vm459, %v6427, 0
        %v6471 = vsel %vm459, %v6428, 0
        %v6474 = vsel %vm459, %v6429, 0
        %v6477 = vsel %vm459, %v6430, 0
        %v6480 = vsel %vm459, %v6431, 0
        %v6483 = vsel %vm459, %v6432, 0
        %v6486 = vsel %vm459, %v6433, 0
        %v6489 = vsel %vm459, %v6434, 0
        %v6492 = vsel %vm459, %v6435, 0
        %v6495 = vsel %vm459, %v6436, 0
        %v6498 = vsel %vm459, %v6437, 0
        %v6501 = vsel %vm459, %v6438, 0
        %6503 = vmatprep.subr.bf16.mxu0 0
        %6504 = vmatpush1.bf16.msra.mxu0 0
        %6505 = vmatprep.subr.bf16.mxu0 0
        %6506 = vmatpush1.bf16.msra.mxu0 0
        %6507 = vmatprep.subr.bf16.mxu0 0
        %6508 = vmatpush1.bf16.msra.mxu0 0
        %6509 = vmatprep.subr.bf16.mxu0 0
        %6510 = vmatpush1.bf16.msra.mxu0 0
        %6511 = vmatprep.subr.bf16.mxu0 0
        %6512 = vmatpush1.bf16.msra.mxu0 0
        %6513 = vmatprep.subr.bf16.mxu0 0
        %6514 = vmatpush1.bf16.msra.mxu0 0
        %6515 = vmatprep.subr.bf16.mxu0 0
        %6516 = vmatpush1.bf16.msra.mxu0 %v6452
        %6517 = vmatprep.subr.bf16.mxu0 0
        %6518 = vmatpush1.bf16.msra.mxu0 %v6451
        %6519 = vmatprep.subr.bf16.mxu0 0
        %6520 = vmatpush2.bf16.msra.mxu0 0
        %6521 = vmatprep.subr.bf16.mxu0 0
        %6522 = vmatpush2.bf16.msra.mxu0 0
        %6523 = vmatprep.subr.bf16.mxu0 0
        %6524 = vmatpush2.bf16.msra.mxu0 0
        %6525 = vmatprep.subr.bf16.mxu0 0
        %6526 = vmatpush2.bf16.msra.mxu0 0
        %6527 = vmatprep.subr.bf16.mxu0 0
        %6528 = vmatpush2.bf16.msra.mxu0 0
        %6529 = vmatprep.subr.bf16.mxu0 0
        %6530 = vmatpush2.bf16.msra.mxu0 0
        %6531 = vmatprep.subr.bf16.mxu0 0
        %6532 = vmatpush2.bf16.msra.mxu0 0
        %6533 = vmatprep.subr.bf16.mxu0 0
        %6534 = vmatpush2.bf16.msra.mxu0 0
        %6535 = vmatprep.mubr.bf16.mxu0 0
        %6536 = vmatmul.mubr.bf16.gmra.mxu0 %v6456
        %v6537 = vpop.f32.mrf.mxu0
        %v6538 = vadd.f32 %v6442, %v6537
        %v6539 = vpop.f32.mrf.mxu0
        %v6540 = vpop.f32.mrf.mxu0
        %v6541 = vadd.f32 %v6442, %v6540
        %v6542 = vpop.f32.mrf.mxu0
        %6543 = vmatprep.mubr.bf16.mxu0 0
        %6544 = vmatmul.mubr.bf16.gmra.mxu0 %v6459
        %v6545 = vpop.f32.mrf.mxu0
        %v6546 = vadd.f32 %v6442, %v6545
        %v6547 = vpop.f32.mrf.mxu0
        %v6548 = vpop.f32.mrf.mxu0
        %v6549 = vadd.f32 %v6442, %v6548
        %v6550 = vpop.f32.mrf.mxu0
        %6551 = vmatprep.mubr.bf16.mxu0 0
        %6552 = vmatmul.mubr.bf16.gmra.mxu0 %v6462
        %v6553 = vpop.f32.mrf.mxu0
        %v6554 = vadd.f32 %v6442, %v6553
        %v6555 = vpop.f32.mrf.mxu0
        %v6556 = vpop.f32.mrf.mxu0
        %v6557 = vadd.f32 %v6442, %v6556
        %v6558 = vpop.f32.mrf.mxu0
        %6559 = vmatprep.mubr.bf16.mxu0 0
        %6560 = vmatmul.mubr.bf16.gmra.mxu0 %v6465
        %v6561 = vpop.f32.mrf.mxu0
        %v6562 = vadd.f32 %v6442, %v6561
        %v6563 = vpop.f32.mrf.mxu0
        %v6564 = vpop.f32.mrf.mxu0
        %v6565 = vadd.f32 %v6442, %v6564
        %v6566 = vpop.f32.mrf.mxu0
        %6567 = vmatprep.mubr.bf16.mxu0 0
        %6568 = vmatmul.mubr.bf16.gmra.mxu0 %v6468
        %v6569 = vpop.f32.mrf.mxu0
        %v6570 = vadd.f32 %v6442, %v6569
        %v6571 = vpop.f32.mrf.mxu0
        %v6572 = vpop.f32.mrf.mxu0
        %v6573 = vadd.f32 %v6442, %v6572
        %v6574 = vpop.f32.mrf.mxu0
        %6575 = vmatprep.mubr.bf16.mxu0 0
        %6576 = vmatmul.mubr.bf16.gmra.mxu0 %v6471
        %v6577 = vpop.f32.mrf.mxu0
        %v6578 = vadd.f32 %v6442, %v6577
        %v6579 = vpop.f32.mrf.mxu0
        %v6580 = vpop.f32.mrf.mxu0
        %v6581 = vadd.f32 %v6442, %v6580
        %v6582 = vpop.f32.mrf.mxu0
        %6583 = vmatprep.mubr.bf16.mxu0 0
        %6584 = vmatmul.mubr.bf16.gmra.mxu0 %v6474
        %v6585 = vpop.f32.mrf.mxu0
        %v6586 = vadd.f32 %v6442, %v6585
        %v6587 = vpop.f32.mrf.mxu0
        %v6588 = vpop.f32.mrf.mxu0
        %v6589 = vadd.f32 %v6442, %v6588
        %v6590 = vpop.f32.mrf.mxu0
        %6591 = vmatprep.mubr.bf16.mxu0 0
        %6592 = vmatmul.mubr.bf16.gmra.mxu0 %v6477
        %v6593 = vpop.f32.mrf.mxu0
        %v6594 = vadd.f32 %v6442, %v6593
        %v6595 = vpop.f32.mrf.mxu0
        %v6596 = vpop.f32.mrf.mxu0
        %v6597 = vadd.f32 %v6442, %v6596
        %v6598 = vpop.f32.mrf.mxu0
        %6599 = vmatprep.mubr.bf16.mxu0 0
        %6600 = vmatmul.mubr.bf16.gmra.mxu0 %v6480
        %v6601 = vpop.f32.mrf.mxu0
        %v6602 = vadd.f32 %v6442, %v6601
        %v6603 = vpop.f32.mrf.mxu0
        %v6604 = vpop.f32.mrf.mxu0
        %v6605 = vadd.f32 %v6442, %v6604
        %v6606 = vpop.f32.mrf.mxu0
        %6607 = vmatprep.mubr.bf16.mxu0 0
        %6608 = vmatmul.mubr.bf16.gmra.mxu0 %v6483
        %v6609 = vpop.f32.mrf.mxu0
        %v6610 = vadd.f32 %v6442, %v6609
        %v6611 = vpop.f32.mrf.mxu0
        %v6612 = vpop.f32.mrf.mxu0
        %v6613 = vadd.f32 %v6442, %v6612
        %v6614 = vpop.f32.mrf.mxu0
        %6615 = vmatprep.mubr.bf16.mxu0 0
        %6616 = vmatmul.mubr.bf16.gmra.mxu0 %v6486
        %v6617 = vpop.f32.mrf.mxu0
        %v6618 = vadd.f32 %v6442, %v6617
        %v6619 = vpop.f32.mrf.mxu0
        %v6620 = vpop.f32.mrf.mxu0
        %v6621 = vadd.f32 %v6442, %v6620
        %v6622 = vpop.f32.mrf.mxu0
        %6623 = vmatprep.mubr.bf16.mxu0 0
        %6624 = vmatmul.mubr.bf16.gmra.mxu0 %v6489
        %v6625 = vpop.f32.mrf.mxu0
        %v6626 = vadd.f32 %v6442, %v6625
        %v6627 = vpop.f32.mrf.mxu0
        %v6628 = vpop.f32.mrf.mxu0
        %v6629 = vadd.f32 %v6442, %v6628
        %v6630 = vpop.f32.mrf.mxu0
        %6631 = vmatprep.mubr.bf16.mxu0 0
        %6632 = vmatmul.mubr.bf16.gmra.mxu0 %v6492
        %v6633 = vpop.f32.mrf.mxu0
        %v6634 = vadd.f32 %v6442, %v6633
        %v6635 = vpop.f32.mrf.mxu0
        %v6636 = vpop.f32.mrf.mxu0
        %v6637 = vadd.f32 %v6442, %v6636
        %v6638 = vpop.f32.mrf.mxu0
        %6639 = vmatprep.mubr.bf16.mxu0 0
        %6640 = vmatmul.mubr.bf16.gmra.mxu0 %v6495
        %v6641 = vpop.f32.mrf.mxu0
        %v6642 = vadd.f32 %v6442, %v6641
        %v6643 = vpop.f32.mrf.mxu0
        %v6644 = vpop.f32.mrf.mxu0
        %v6645 = vadd.f32 %v6442, %v6644
        %v6646 = vpop.f32.mrf.mxu0
        %6647 = vmatprep.mubr.bf16.mxu0 0
        %6648 = vmatmul.mubr.bf16.gmra.mxu0 %v6498
        %v6649 = vpop.f32.mrf.mxu0
        %v6650 = vadd.f32 %v6442, %v6649
        %v6651 = vpop.f32.mrf.mxu0
        %v6652 = vpop.f32.mrf.mxu0
        %v6653 = vadd.f32 %v6442, %v6652
        %v6654 = vpop.f32.mrf.mxu0
        %6655 = vmatprep.mubr.bf16.mxu0 0
        %6656 = vmatmul.mubr.bf16.gmra.mxu0 %v6501
        %v6657 = vpop.f32.mrf.mxu0
        %v6658 = vadd.f32 %v6442, %v6657
        %v6659 = vpop.f32.mrf.mxu0
        %v6660 = vpop.f32.mrf.mxu0
        %v6661 = vadd.f32 %v6442, %v6660
        %v6662 = vpop.f32.mrf.mxu0
        %6663 = vdwg.mxu0
        %v6664 = vadd.f32 %v427, %v6538
        %v6665 = vadd.f32 %v428, %v6541
        %v6666 = vadd.f32 %v429, %v6546
        %v6667 = vadd.f32 %v430, %v6549
        %v6668 = vadd.f32 %v431, %v6554
        %v6669 = vadd.f32 %v432, %v6557
        %v6670 = vadd.f32 %v433, %v6562
        %v6671 = vadd.f32 %v434, %v6565
        %v6672 = vadd.f32 %v435, %v6570
        %v6673 = vadd.f32 %v436, %v6573
        %v6674 = vadd.f32 %v437, %v6578
        %v6675 = vadd.f32 %v438, %v6581
        %v6676 = vadd.f32 %v439, %v6586
        %v6677 = vadd.f32 %v440, %v6589
        %v6678 = vadd.f32 %v441, %v6594
        %v6679 = vadd.f32 %v442, %v6597
        %v6680 = vadd.f32 %v443, %v6602
        %v6681 = vadd.f32 %v444, %v6605
        %v6682 = vadd.f32 %v445, %v6610
        %v6683 = vadd.f32 %v446, %v6613
        %v6684 = vadd.f32 %v447, %v6618
        %v6685 = vadd.f32 %v448, %v6621
        %v6686 = vadd.f32 %v449, %v6626
        %v6687 = vadd.f32 %v450, %v6629
        %v6688 = vadd.f32 %v451, %v6634
        %v6689 = vadd.f32 %v452, %v6637
        %v6690 = vadd.f32 %v453, %v6642
        %v6691 = vadd.f32 %v454, %v6645
        %v6692 = vadd.f32 %v455, %v6650
        %v6693 = vadd.f32 %v456, %v6653
        %v6694 = vadd.f32 %v457, %v6658
        %v6695 = vadd.f32 %v458, %v6661
        %v6696 = vsel %vm459, %v6664, 0.0
        %6697 = vadd.xlane.f32.xlu0 %v6696
        %v6698 = vpop.xlane.xlu0 %6697
        %v6699 = vsel %vm459, %v6665, 0.0
        %6700 = vadd.xlane.f32.xlu0 %v6699
        %v6701 = vpop.xlane.xlu0 %6700
        %v6702 = vsel %vm459, %v6666, 0.0
        %6703 = vadd.xlane.f32.xlu0 %v6702
        %v6704 = vpop.xlane.xlu0 %6703
        %v6705 = vsel %vm459, %v6667, 0.0
        %6706 = vadd.xlane.f32.xlu0 %v6705
        %v6707 = vpop.xlane.xlu0 %6706
        %v6708 = vsel %vm459, %v6668, 0.0
        %6709 = vadd.xlane.f32.xlu0 %v6708
        %v6710 = vpop.xlane.xlu0 %6709
        %v6711 = vsel %vm459, %v6669, 0.0
        %6712 = vadd.xlane.f32.xlu0 %v6711
        %v6713 = vpop.xlane.xlu0 %6712
        %v6714 = vsel %vm459, %v6670, 0.0
        %6715 = vadd.xlane.f32.xlu0 %v6714
        %v6716 = vpop.xlane.xlu0 %6715
        %v6717 = vsel %vm459, %v6671, 0.0
        %6718 = vadd.xlane.f32.xlu0 %v6717
        %v6719 = vpop.xlane.xlu0 %6718
        %v6720 = vsel %vm459, %v6672, 0.0
        %6721 = vadd.xlane.f32.xlu0 %v6720
        %v6722 = vpop.xlane.xlu0 %6721
        %v6723 = vsel %vm459, %v6673, 0.0
        %6724 = vadd.xlane.f32.xlu0 %v6723
        %v6725 = vpop.xlane.xlu0 %6724
        %v6726 = vsel %vm459, %v6674, 0.0
        %6727 = vadd.xlane.f32.xlu0 %v6726
        %v6728 = vpop.xlane.xlu0 %6727
        %v6729 = vsel %vm459, %v6675, 0.0
        %6730 = vadd.xlane.f32.xlu0 %v6729
        %v6731 = vpop.xlane.xlu0 %6730
        %v6732 = vsel %vm459, %v6676, 0.0
        %6733 = vadd.xlane.f32.xlu0 %v6732
        %v6734 = vpop.xlane.xlu0 %6733
        %v6735 = vsel %vm459, %v6677, 0.0
        %6736 = vadd.xlane.f32.xlu0 %v6735
        %v6737 = vpop.xlane.xlu0 %6736
        %v6738 = vsel %vm459, %v6678, 0.0
        %6739 = vadd.xlane.f32.xlu0 %v6738
        %v6740 = vpop.xlane.xlu0 %6739
        %v6741 = vsel %vm459, %v6679, 0.0
        %6742 = vadd.xlane.f32.xlu0 %v6741
        %v6743 = vpop.xlane.xlu0 %6742
        %v6744 = vsel %vm459, %v6680, 0.0
        %6745 = vadd.xlane.f32.xlu0 %v6744
        %v6746 = vpop.xlane.xlu0 %6745
        %v6747 = vsel %vm459, %v6681, 0.0
        %6748 = vadd.xlane.f32.xlu0 %v6747
        %v6749 = vpop.xlane.xlu0 %6748
        %v6750 = vsel %vm459, %v6682, 0.0
        %6751 = vadd.xlane.f32.xlu0 %v6750
        %v6752 = vpop.xlane.xlu0 %6751
        %v6753 = vsel %vm459, %v6683, 0.0
        %6754 = vadd.xlane.f32.xlu0 %v6753
        %v6755 = vpop.xlane.xlu0 %6754
        %v6756 = vsel %vm459, %v6684, 0.0
        %6757 = vadd.xlane.f32.xlu0 %v6756
        %v6758 = vpop.xlane.xlu0 %6757
        %v6759 = vsel %vm459, %v6685, 0.0
        %6760 = vadd.xlane.f32.xlu0 %v6759
        %v6761 = vpop.xlane.xlu0 %6760
        %v6762 = vsel %vm459, %v6686, 0.0
        %6763 = vadd.xlane.f32.xlu0 %v6762
        %v6764 = vpop.xlane.xlu0 %6763
        %v6765 = vsel %vm459, %v6687, 0.0
        %6766 = vadd.xlane.f32.xlu0 %v6765
        %v6767 = vpop.xlane.xlu0 %6766
        %v6768 = vsel %vm459, %v6688, 0.0
        %6769 = vadd.xlane.f32.xlu0 %v6768
        %v6770 = vpop.xlane.xlu0 %6769
        %v6771 = vsel %vm459, %v6689, 0.0
        %6772 = vadd.xlane.f32.xlu0 %v6771
        %v6773 = vpop.xlane.xlu0 %6772
        %v6774 = vsel %vm459, %v6690, 0.0
        %6775 = vadd.xlane.f32.xlu0 %v6774
        %v6776 = vpop.xlane.xlu0 %6775
        %v6777 = vsel %vm459, %v6691, 0.0
        %6778 = vadd.xlane.f32.xlu0 %v6777
        %v6779 = vpop.xlane.xlu0 %6778
        %v6780 = vsel %vm459, %v6692, 0.0
        %6781 = vadd.xlane.f32.xlu0 %v6780
        %v6782 = vpop.xlane.xlu0 %6781
        %v6783 = vsel %vm459, %v6693, 0.0
        %6784 = vadd.xlane.f32.xlu0 %v6783
        %v6785 = vpop.xlane.xlu0 %6784
        %v6786 = vsel %vm459, %v6694, 0.0
        %6787 = vadd.xlane.f32.xlu0 %v6786
        %v6788 = vpop.xlane.xlu0 %6787
        %v6789 = vsel %vm459, %v6695, 0.0
        %6790 = vadd.xlane.f32.xlu0 %v6789
        %v6791 = vpop.xlane.xlu0 %6790
        %v6792 = vmul.f32 %v6698, %v556
        %v6793 = vmul.f32 %v6701, %v556
        %v6794 = vmul.f32 %v6704, %v556
        %v6795 = vmul.f32 %v6707, %v556
        %v6796 = vmul.f32 %v6710, %v556
        %v6797 = vmul.f32 %v6713, %v556
        %v6798 = vmul.f32 %v6716, %v556
        %v6799 = vmul.f32 %v6719, %v556
        %v6800 = vmul.f32 %v6722, %v556
        %v6801 = vmul.f32 %v6725, %v556
        %v6802 = vmul.f32 %v6728, %v556
        %v6803 = vmul.f32 %v6731, %v556
        %v6804 = vmul.f32 %v6734, %v556
        %v6805 = vmul.f32 %v6737, %v556
        %v6806 = vmul.f32 %v6740, %v556
        %v6807 = vmul.f32 %v6743, %v556
        %v6808 = vmul.f32 %v6746, %v556
        %v6809 = vmul.f32 %v6749, %v556
        %v6810 = vmul.f32 %v6752, %v556
        %v6811 = vmul.f32 %v6755, %v556
        %v6812 = vmul.f32 %v6758, %v556
        %v6813 = vmul.f32 %v6761, %v556
        %v6814 = vmul.f32 %v6764, %v556
        %v6815 = vmul.f32 %v6767, %v556
        %v6816 = vmul.f32 %v6770, %v556
        %v6817 = vmul.f32 %v6773, %v556
        %v6818 = vmul.f32 %v6776, %v556
        %v6819 = vmul.f32 %v6779, %v556
        %v6820 = vmul.f32 %v6782, %v556
        %v6821 = vmul.f32 %v6785, %v556
        %v6822 = vmul.f32 %v6788, %v556
        %v6823 = vmul.f32 %v6791, %v556
        %v6824 = vsub.f32 %v6664, %v6792
        %v6825 = vsub.f32 %v6665, %v6793
        %v6826 = vsub.f32 %v6666, %v6794
        %v6827 = vsub.f32 %v6667, %v6795
        %v6828 = vsub.f32 %v6668, %v6796
        %v6829 = vsub.f32 %v6669, %v6797
        %v6830 = vsub.f32 %v6670, %v6798
        %v6831 = vsub.f32 %v6671, %v6799
        %v6832 = vsub.f32 %v6672, %v6800
        %v6833 = vsub.f32 %v6673, %v6801
        %v6834 = vsub.f32 %v6674, %v6802
        %v6835 = vsub.f32 %v6675, %v6803
        %v6836 = vsub.f32 %v6676, %v6804
        %v6837 = vsub.f32 %v6677, %v6805
        %v6838 = vsub.f32 %v6678, %v6806
        %v6839 = vsub.f32 %v6679, %v6807
        %v6840 = vsub.f32 %v6680, %v6808
        %v6841 = vsub.f32 %v6681, %v6809
        %v6842 = vsub.f32 %v6682, %v6810
        %v6843 = vsub.f32 %v6683, %v6811
        %v6844 = vsub.f32 %v6684, %v6812
        %v6845 = vsub.f32 %v6685, %v6813
        %v6846 = vsub.f32 %v6686, %v6814
        %v6847 = vsub.f32 %v6687, %v6815
        %v6848 = vsub.f32 %v6688, %v6816
        %v6849 = vsub.f32 %v6689, %v6817
        %v6850 = vsub.f32 %v6690, %v6818
        %v6851 = vsub.f32 %v6691, %v6819
        %v6852 = vsub.f32 %v6692, %v6820
        %v6853 = vsub.f32 %v6693, %v6821
        %v6854 = vsub.f32 %v6694, %v6822
        %v6855 = vsub.f32 %v6695, %v6823
        %v6856 = vmul.f32 %v6824, %v6824
        %v6857 = vmul.f32 %v6825, %v6825
        %v6858 = vmul.f32 %v6826, %v6826
        %v6859 = vmul.f32 %v6827, %v6827
        %v6860 = vmul.f32 %v6828, %v6828
        %v6861 = vmul.f32 %v6829, %v6829
        %v6862 = vmul.f32 %v6830, %v6830
        %v6863 = vmul.f32 %v6831, %v6831
        %v6864 = vmul.f32 %v6832, %v6832
        %v6865 = vmul.f32 %v6833, %v6833
        %v6866 = vmul.f32 %v6834, %v6834
        %v6867 = vmul.f32 %v6835, %v6835
        %v6868 = vmul.f32 %v6836, %v6836
        %v6869 = vmul.f32 %v6837, %v6837
        %v6870 = vmul.f32 %v6838, %v6838
        %v6871 = vmul.f32 %v6839, %v6839
        %v6872 = vmul.f32 %v6840, %v6840
        %v6873 = vmul.f32 %v6841, %v6841
        %v6874 = vmul.f32 %v6842, %v6842
        %v6875 = vmul.f32 %v6843, %v6843
        %v6876 = vmul.f32 %v6844, %v6844
        %v6877 = vmul.f32 %v6845, %v6845
        %v6878 = vmul.f32 %v6846, %v6846
        %v6879 = vmul.f32 %v6847, %v6847
        %v6880 = vmul.f32 %v6848, %v6848
        %v6881 = vmul.f32 %v6849, %v6849
        %v6882 = vmul.f32 %v6850, %v6850
        %v6883 = vmul.f32 %v6851, %v6851
        %v6884 = vmul.f32 %v6852, %v6852
        %v6885 = vmul.f32 %v6853, %v6853
        %v6886 = vmul.f32 %v6854, %v6854
        %v6887 = vmul.f32 %v6855, %v6855
        %v6888 = vsel %vm459, %v6856, 0.0
        %6889 = vadd.xlane.f32.xlu0 %v6888
        %v6890 = vpop.xlane.xlu0 %6889
        %v6891 = vsel %vm459, %v6857, 0.0
        %6892 = vadd.xlane.f32.xlu0 %v6891
        %v6893 = vpop.xlane.xlu0 %6892
        %v6894 = vsel %vm459, %v6858, 0.0
        %6895 = vadd.xlane.f32.xlu0 %v6894
        %v6896 = vpop.xlane.xlu0 %6895
        %v6897 = vsel %vm459, %v6859, 0.0
        %6898 = vadd.xlane.f32.xlu0 %v6897
        %v6899 = vpop.xlane.xlu0 %6898
        %v6900 = vsel %vm459, %v6860, 0.0
        %6901 = vadd.xlane.f32.xlu0 %v6900
        %v6902 = vpop.xlane.xlu0 %6901
        %v6903 = vsel %vm459, %v6861, 0.0
        %6904 = vadd.xlane.f32.xlu0 %v6903
        %v6905 = vpop.xlane.xlu0 %6904
        %v6906 = vsel %vm459, %v6862, 0.0
        %6907 = vadd.xlane.f32.xlu0 %v6906
        %v6908 = vpop.xlane.xlu0 %6907
        %v6909 = vsel %vm459, %v6863, 0.0
        %6910 = vadd.xlane.f32.xlu0 %v6909
        %v6911 = vpop.xlane.xlu0 %6910
        %v6912 = vsel %vm459, %v6864, 0.0
        %6913 = vadd.xlane.f32.xlu0 %v6912
        %v6914 = vpop.xlane.xlu0 %6913
        %v6915 = vsel %vm459, %v6865, 0.0
        %6916 = vadd.xlane.f32.xlu0 %v6915
        %v6917 = vpop.xlane.xlu0 %6916
        %v6918 = vsel %vm459, %v6866, 0.0
        %6919 = vadd.xlane.f32.xlu0 %v6918
        %v6920 = vpop.xlane.xlu0 %6919
        %v6921 = vsel %vm459, %v6867, 0.0
        %6922 = vadd.xlane.f32.xlu0 %v6921
        %v6923 = vpop.xlane.xlu0 %6922
        %v6924 = vsel %vm459, %v6868, 0.0
        %6925 = vadd.xlane.f32.xlu0 %v6924
        %v6926 = vpop.xlane.xlu0 %6925
        %v6927 = vsel %vm459, %v6869, 0.0
        %6928 = vadd.xlane.f32.xlu0 %v6927
        %v6929 = vpop.xlane.xlu0 %6928
        %v6930 = vsel %vm459, %v6870, 0.0
        %6931 = vadd.xlane.f32.xlu0 %v6930
        %v6932 = vpop.xlane.xlu0 %6931
        %v6933 = vsel %vm459, %v6871, 0.0
        %6934 = vadd.xlane.f32.xlu0 %v6933
        %v6935 = vpop.xlane.xlu0 %6934
        %v6936 = vsel %vm459, %v6872, 0.0
        %6937 = vadd.xlane.f32.xlu0 %v6936
        %v6938 = vpop.xlane.xlu0 %6937
        %v6939 = vsel %vm459, %v6873, 0.0
        %6940 = vadd.xlane.f32.xlu0 %v6939
        %v6941 = vpop.xlane.xlu0 %6940
        %v6942 = vsel %vm459, %v6874, 0.0
        %6943 = vadd.xlane.f32.xlu0 %v6942
        %v6944 = vpop.xlane.xlu0 %6943
        %v6945 = vsel %vm459, %v6875, 0.0
        %6946 = vadd.xlane.f32.xlu0 %v6945
        %v6947 = vpop.xlane.xlu0 %6946
        %v6948 = vsel %vm459, %v6876, 0.0
        %6949 = vadd.xlane.f32.xlu0 %v6948
        %v6950 = vpop.xlane.xlu0 %6949
        %v6951 = vsel %vm459, %v6877, 0.0
        %6952 = vadd.xlane.f32.xlu0 %v6951
        %v6953 = vpop.xlane.xlu0 %6952
        %v6954 = vsel %vm459, %v6878, 0.0
        %6955 = vadd.xlane.f32.xlu0 %v6954
        %v6956 = vpop.xlane.xlu0 %6955
        %v6957 = vsel %vm459, %v6879, 0.0
        %6958 = vadd.xlane.f32.xlu0 %v6957
        %v6959 = vpop.xlane.xlu0 %6958
        %v6960 = vsel %vm459, %v6880, 0.0
        %6961 = vadd.xlane.f32.xlu0 %v6960
        %v6962 = vpop.xlane.xlu0 %6961
        %v6963 = vsel %vm459, %v6881, 0.0
        %6964 = vadd.xlane.f32.xlu0 %v6963
        %v6965 = vpop.xlane.xlu0 %6964
        %v6966 = vsel %vm459, %v6882, 0.0
        %6967 = vadd.xlane.f32.xlu0 %v6966
        %v6968 = vpop.xlane.xlu0 %6967
        %v6969 = vsel %vm459, %v6883, 0.0
        %6970 = vadd.xlane.f32.xlu0 %v6969
        %v6971 = vpop.xlane.xlu0 %6970
        %v6972 = vsel %vm459, %v6884, 0.0
        %6973 = vadd.xlane.f32.xlu0 %v6972
        %v6974 = vpop.xlane.xlu0 %6973
        %v6975 = vsel %vm459, %v6885, 0.0
        %6976 = vadd.xlane.f32.xlu0 %v6975
        %v6977 = vpop.xlane.xlu0 %6976
        %v6978 = vsel %vm459, %v6886, 0.0
        %6979 = vadd.xlane.f32.xlu0 %v6978
        %v6980 = vpop.xlane.xlu0 %6979
        %v6981 = vsel %vm459, %v6887, 0.0
        %6982 = vadd.xlane.f32.xlu0 %v6981
        %v6983 = vpop.xlane.xlu0 %6982
        %v6984 = vmul.f32 %v6890, %v556
        %v6985 = vmul.f32 %v6893, %v556
        %v6986 = vmul.f32 %v6896, %v556
        %v6987 = vmul.f32 %v6899, %v556
        %v6988 = vmul.f32 %v6902, %v556
        %v6989 = vmul.f32 %v6905, %v556
        %v6990 = vmul.f32 %v6908, %v556
        %v6991 = vmul.f32 %v6911, %v556
        %v6992 = vmul.f32 %v6914, %v556
        %v6993 = vmul.f32 %v6917, %v556
        %v6994 = vmul.f32 %v6920, %v556
        %v6995 = vmul.f32 %v6923, %v556
        %v6996 = vmul.f32 %v6926, %v556
        %v6997 = vmul.f32 %v6929, %v556
        %v6998 = vmul.f32 %v6932, %v556
        %v6999 = vmul.f32 %v6935, %v556
        %v7000 = vmul.f32 %v6938, %v556
        %v7001 = vmul.f32 %v6941, %v556
        %v7002 = vmul.f32 %v6944, %v556
        %v7003 = vmul.f32 %v6947, %v556
        %v7004 = vmul.f32 %v6950, %v556
        %v7005 = vmul.f32 %v6953, %v556
        %v7006 = vmul.f32 %v6956, %v556
        %v7007 = vmul.f32 %v6959, %v556
        %v7008 = vmul.f32 %v6962, %v556
        %v7009 = vmul.f32 %v6965, %v556
        %v7010 = vmul.f32 %v6968, %v556
        %v7011 = vmul.f32 %v6971, %v556
        %v7012 = vmul.f32 %v6974, %v556
        %v7013 = vmul.f32 %v6977, %v556
        %v7014 = vmul.f32 %v6980, %v556
        %v7015 = vmul.f32 %v6983, %v556
        %v7016 = vadd.f32 %v6984, 1e-05
        %v7017 = vadd.f32 %v6985, 1e-05
        %v7018 = vadd.f32 %v6986, 1e-05
        %v7019 = vadd.f32 %v6987, 1e-05
        %v7020 = vadd.f32 %v6988, 1e-05
        %v7021 = vadd.f32 %v6989, 1e-05
        %v7022 = vadd.f32 %v6990, 1e-05
        %v7023 = vadd.f32 %v6991, 1e-05
        %v7024 = vadd.f32 %v6992, 1e-05
        %v7025 = vadd.f32 %v6993, 1e-05
        %v7026 = vadd.f32 %v6994, 1e-05
        %v7027 = vadd.f32 %v6995, 1e-05
        %v7028 = vadd.f32 %v6996, 1e-05
        %v7029 = vadd.f32 %v6997, 1e-05
        %v7030 = vadd.f32 %v6998, 1e-05
        %v7031 = vadd.f32 %v6999, 1e-05
        %v7032 = vadd.f32 %v7000, 1e-05
        %v7033 = vadd.f32 %v7001, 1e-05
        %v7034 = vadd.f32 %v7002, 1e-05
        %v7035 = vadd.f32 %v7003, 1e-05
        %v7036 = vadd.f32 %v7004, 1e-05
        %v7037 = vadd.f32 %v7005, 1e-05
        %v7038 = vadd.f32 %v7006, 1e-05
        %v7039 = vadd.f32 %v7007, 1e-05
        %v7040 = vadd.f32 %v7008, 1e-05
        %v7041 = vadd.f32 %v7009, 1e-05
        %v7042 = vadd.f32 %v7010, 1e-05
        %v7043 = vadd.f32 %v7011, 1e-05
        %v7044 = vadd.f32 %v7012, 1e-05
        %v7045 = vadd.f32 %v7013, 1e-05
        %v7046 = vadd.f32 %v7014, 1e-05
        %v7047 = vadd.f32 %v7015, 1e-05
        %v7048 = vrsqrt.pop %v7016
        %v7049 = vrsqrt.pop %v7017
        %v7050 = vrsqrt.pop %v7018
        %v7051 = vrsqrt.pop %v7019
        %v7052 = vrsqrt.pop %v7020
        %v7053 = vrsqrt.pop %v7021
        %v7054 = vrsqrt.pop %v7022
        %v7055 = vrsqrt.pop %v7023
        %v7056 = vrsqrt.pop %v7024
        %v7057 = vrsqrt.pop %v7025
        %v7058 = vrsqrt.pop %v7026
        %v7059 = vrsqrt.pop %v7027
        %v7060 = vrsqrt.pop %v7028
        %v7061 = vrsqrt.pop %v7029
        %v7062 = vrsqrt.pop %v7030
        %v7063 = vrsqrt.pop %v7031
        %v7064 = vrsqrt.pop %v7032
        %v7065 = vrsqrt.pop %v7033
        %v7066 = vrsqrt.pop %v7034
        %v7067 = vrsqrt.pop %v7035
        %v7068 = vrsqrt.pop %v7036
        %v7069 = vrsqrt.pop %v7037
        %v7070 = vrsqrt.pop %v7038
        %v7071 = vrsqrt.pop %v7039
        %v7072 = vrsqrt.pop %v7040
        %v7073 = vrsqrt.pop %v7041
        %v7074 = vrsqrt.pop %v7042
        %v7075 = vrsqrt.pop %v7043
        %v7076 = vrsqrt.pop %v7044
        %v7077 = vrsqrt.pop %v7045
        %v7078 = vrsqrt.pop %v7046
        %v7079 = vrsqrt.pop %v7047
        %v7080 = vmul.f32 %v6824, %v7048
        %v7081 = vmul.f32 %v6825, %v7049
        %v7082 = vmul.f32 %v6826, %v7050
        %v7083 = vmul.f32 %v6827, %v7051
        %v7084 = vmul.f32 %v6828, %v7052
        %v7085 = vmul.f32 %v6829, %v7053
        %v7086 = vmul.f32 %v6830, %v7054
        %v7087 = vmul.f32 %v6831, %v7055
        %v7088 = vmul.f32 %v6832, %v7056
        %v7089 = vmul.f32 %v6833, %v7057
        %v7090 = vmul.f32 %v6834, %v7058
        %v7091 = vmul.f32 %v6835, %v7059
        %v7092 = vmul.f32 %v6836, %v7060
        %v7093 = vmul.f32 %v6837, %v7061
        %v7094 = vmul.f32 %v6838, %v7062
        %v7095 = vmul.f32 %v6839, %v7063
        %v7096 = vmul.f32 %v6840, %v7064
        %v7097 = vmul.f32 %v6841, %v7065
        %v7098 = vmul.f32 %v6842, %v7066
        %v7099 = vmul.f32 %v6843, %v7067
        %v7100 = vmul.f32 %v6844, %v7068
        %v7101 = vmul.f32 %v6845, %v7069
        %v7102 = vmul.f32 %v6846, %v7070
        %v7103 = vmul.f32 %v6847, %v7071
        %v7104 = vmul.f32 %v6848, %v7072
        %v7105 = vmul.f32 %v6849, %v7073
        %v7106 = vmul.f32 %v6850, %v7074
        %v7107 = vmul.f32 %v6851, %v7075
        %v7108 = vmul.f32 %v6852, %v7076
        %v7109 = vmul.f32 %v6853, %v7077
        %v7110 = vmul.f32 %v6854, %v7078
        %v7111 = vmul.f32 %v6855, %v7079
        %v7112 = vpack.c.bf16 %v7081, %v7080
        %v7113 = vpack.c.bf16 %v7083, %v7082
        %v7114 = vpack.c.bf16 %v7085, %v7084
        %v7115 = vpack.c.bf16 %v7087, %v7086
        %v7116 = vpack.c.bf16 %v7089, %v7088
        %v7117 = vpack.c.bf16 %v7091, %v7090
        %v7118 = vpack.c.bf16 %v7093, %v7092
        %v7119 = vpack.c.bf16 %v7095, %v7094
        %v7120 = vpack.c.bf16 %v7097, %v7096
        %v7121 = vpack.c.bf16 %v7099, %v7098
        %v7122 = vpack.c.bf16 %v7101, %v7100
        %v7123 = vpack.c.bf16 %v7103, %v7102
        %v7124 = vpack.c.bf16 %v7105, %v7104
        %v7125 = vpack.c.bf16 %v7107, %v7106
        %v7126 = vpack.c.bf16 %v7109, %v7108
        %v7127 = vpack.c.bf16 %v7111, %v7110
        %v7128 = vlaneseq
        %v7129 = vshrl.u32 %v7128, 7
        %v7130 = vsub.s32 1, %v7129
        %v7131 = vrot.slane %v5875, %v7130
        %v7136 = vunpack.c.l.b16 %v5867
        %v7137 = vunpack.c.l.b16 %v5868
        %v7138 = vunpack.c.l.b16 %v5869
        %v7139 = vunpack.c.l.b16 %v5870
        %v7140 = vpack.c.b16 %v7137, %v7136
        %v7141 = vpack.c.b16 %v7139, %v7138
        %v7145 = vsel %vm459, %v7112, 0
        %v7148 = vsel %vm459, %v7113, 0
        %v7151 = vsel %vm459, %v7114, 0
        %v7154 = vsel %vm459, %v7115, 0
        %v7157 = vsel %vm459, %v7116, 0
        %v7160 = vsel %vm459, %v7117, 0
        %v7163 = vsel %vm459, %v7118, 0
        %v7166 = vsel %vm459, %v7119, 0
        %v7169 = vsel %vm459, %v7120, 0
        %v7172 = vsel %vm459, %v7121, 0
        %v7175 = vsel %vm459, %v7122, 0
        %v7178 = vsel %vm459, %v7123, 0
        %v7181 = vsel %vm459, %v7124, 0
        %v7184 = vsel %vm459, %v7125, 0
        %v7187 = vsel %vm459, %v7126, 0
        %v7190 = vsel %vm459, %v7127, 0
        %7192 = vmatprep.subr.bf16.mxu0 0
        %7193 = vmatpush1.bf16.msra.mxu0 0
        %7194 = vmatprep.subr.bf16.mxu0 0
        %7195 = vmatpush1.bf16.msra.mxu0 0
        %7196 = vmatprep.subr.bf16.mxu0 0
        %7197 = vmatpush1.bf16.msra.mxu0 0
        %7198 = vmatprep.subr.bf16.mxu0 0
        %7199 = vmatpush1.bf16.msra.mxu0 0
        %7200 = vmatprep.subr.bf16.mxu0 0
        %7201 = vmatpush1.bf16.msra.mxu0 0
        %7202 = vmatprep.subr.bf16.mxu0 0
        %7203 = vmatpush1.bf16.msra.mxu0 0
        %7204 = vmatprep.subr.bf16.mxu0 0
        %7205 = vmatpush1.bf16.msra.mxu0 %v7141
        %7206 = vmatprep.subr.bf16.mxu0 0
        %7207 = vmatpush1.bf16.msra.mxu0 %v7140
        %7208 = vmatprep.subr.bf16.mxu0 0
        %7209 = vmatpush2.bf16.msra.mxu0 0
        %7210 = vmatprep.subr.bf16.mxu0 0
        %7211 = vmatpush2.bf16.msra.mxu0 0
        %7212 = vmatprep.subr.bf16.mxu0 0
        %7213 = vmatpush2.bf16.msra.mxu0 0
        %7214 = vmatprep.subr.bf16.mxu0 0
        %7215 = vmatpush2.bf16.msra.mxu0 0
        %7216 = vmatprep.subr.bf16.mxu0 0
        %7217 = vmatpush2.bf16.msra.mxu0 0
        %7218 = vmatprep.subr.bf16.mxu0 0
        %7219 = vmatpush2.bf16.msra.mxu0 0
        %7220 = vmatprep.subr.bf16.mxu0 0
        %7221 = vmatpush2.bf16.msra.mxu0 0
        %7222 = vmatprep.subr.bf16.mxu0 0
        %7223 = vmatpush2.bf16.msra.mxu0 0
        %7224 = vmatprep.mubr.bf16.mxu0 0
        %7225 = vmatmul.mubr.bf16.gmra.mxu0 %v7145
        %v7226 = vpop.f32.mrf.mxu0
        %v7227 = vadd.f32 %v7131, %v7226
        %v7228 = vpop.f32.mrf.mxu0
        %v7229 = vpop.f32.mrf.mxu0
        %v7230 = vadd.f32 %v7131, %v7229
        %v7231 = vpop.f32.mrf.mxu0
        %7232 = vmatprep.mubr.bf16.mxu0 0
        %7233 = vmatmul.mubr.bf16.gmra.mxu0 %v7148
        %v7234 = vpop.f32.mrf.mxu0
        %v7235 = vadd.f32 %v7131, %v7234
        %v7236 = vpop.f32.mrf.mxu0
        %v7237 = vpop.f32.mrf.mxu0
        %v7238 = vadd.f32 %v7131, %v7237
        %v7239 = vpop.f32.mrf.mxu0
        %7240 = vmatprep.mubr.bf16.mxu0 0
        %7241 = vmatmul.mubr.bf16.gmra.mxu0 %v7151
        %v7242 = vpop.f32.mrf.mxu0
        %v7243 = vadd.f32 %v7131, %v7242
        %v7244 = vpop.f32.mrf.mxu0
        %v7245 = vpop.f32.mrf.mxu0
        %v7246 = vadd.f32 %v7131, %v7245
        %v7247 = vpop.f32.mrf.mxu0
        %7248 = vmatprep.mubr.bf16.mxu0 0
        %7249 = vmatmul.mubr.bf16.gmra.mxu0 %v7154
        %v7250 = vpop.f32.mrf.mxu0
        %v7251 = vadd.f32 %v7131, %v7250
        %v7252 = vpop.f32.mrf.mxu0
        %v7253 = vpop.f32.mrf.mxu0
        %v7254 = vadd.f32 %v7131, %v7253
        %v7255 = vpop.f32.mrf.mxu0
        %7256 = vmatprep.mubr.bf16.mxu0 0
        %7257 = vmatmul.mubr.bf16.gmra.mxu0 %v7157
        %v7258 = vpop.f32.mrf.mxu0
        %v7259 = vadd.f32 %v7131, %v7258
        %v7260 = vpop.f32.mrf.mxu0
        %v7261 = vpop.f32.mrf.mxu0
        %v7262 = vadd.f32 %v7131, %v7261
        %v7263 = vpop.f32.mrf.mxu0
        %7264 = vmatprep.mubr.bf16.mxu0 0
        %7265 = vmatmul.mubr.bf16.gmra.mxu0 %v7160
        %v7266 = vpop.f32.mrf.mxu0
        %v7267 = vadd.f32 %v7131, %v7266
        %v7268 = vpop.f32.mrf.mxu0
        %v7269 = vpop.f32.mrf.mxu0
        %v7270 = vadd.f32 %v7131, %v7269
        %v7271 = vpop.f32.mrf.mxu0
        %7272 = vmatprep.mubr.bf16.mxu0 0
        %7273 = vmatmul.mubr.bf16.gmra.mxu0 %v7163
        %v7274 = vpop.f32.mrf.mxu0
        %v7275 = vadd.f32 %v7131, %v7274
        %v7276 = vpop.f32.mrf.mxu0
        %v7277 = vpop.f32.mrf.mxu0
        %v7278 = vadd.f32 %v7131, %v7277
        %v7279 = vpop.f32.mrf.mxu0
        %7280 = vmatprep.mubr.bf16.mxu0 0
        %7281 = vmatmul.mubr.bf16.gmra.mxu0 %v7166
        %v7282 = vpop.f32.mrf.mxu0
        %v7283 = vadd.f32 %v7131, %v7282
        %v7284 = vpop.f32.mrf.mxu0
        %v7285 = vpop.f32.mrf.mxu0
        %v7286 = vadd.f32 %v7131, %v7285
        %v7287 = vpop.f32.mrf.mxu0
        %7288 = vmatprep.mubr.bf16.mxu0 0
        %7289 = vmatmul.mubr.bf16.gmra.mxu0 %v7169
        %v7290 = vpop.f32.mrf.mxu0
        %v7291 = vadd.f32 %v7131, %v7290
        %v7292 = vpop.f32.mrf.mxu0
        %v7293 = vpop.f32.mrf.mxu0
        %v7294 = vadd.f32 %v7131, %v7293
        %v7295 = vpop.f32.mrf.mxu0
        %7296 = vmatprep.mubr.bf16.mxu0 0
        %7297 = vmatmul.mubr.bf16.gmra.mxu0 %v7172
        %v7298 = vpop.f32.mrf.mxu0
        %v7299 = vadd.f32 %v7131, %v7298
        %v7300 = vpop.f32.mrf.mxu0
        %v7301 = vpop.f32.mrf.mxu0
        %v7302 = vadd.f32 %v7131, %v7301
        %v7303 = vpop.f32.mrf.mxu0
        %7304 = vmatprep.mubr.bf16.mxu0 0
        %7305 = vmatmul.mubr.bf16.gmra.mxu0 %v7175
        %v7306 = vpop.f32.mrf.mxu0
        %v7307 = vadd.f32 %v7131, %v7306
        %v7308 = vpop.f32.mrf.mxu0
        %v7309 = vpop.f32.mrf.mxu0
        %v7310 = vadd.f32 %v7131, %v7309
        %v7311 = vpop.f32.mrf.mxu0
        %7312 = vmatprep.mubr.bf16.mxu0 0
        %7313 = vmatmul.mubr.bf16.gmra.mxu0 %v7178
        %v7314 = vpop.f32.mrf.mxu0
        %v7315 = vadd.f32 %v7131, %v7314
        %v7316 = vpop.f32.mrf.mxu0
        %v7317 = vpop.f32.mrf.mxu0
        %v7318 = vadd.f32 %v7131, %v7317
        %v7319 = vpop.f32.mrf.mxu0
        %7320 = vmatprep.mubr.bf16.mxu0 0
        %7321 = vmatmul.mubr.bf16.gmra.mxu0 %v7181
        %v7322 = vpop.f32.mrf.mxu0
        %v7323 = vadd.f32 %v7131, %v7322
        %v7324 = vpop.f32.mrf.mxu0
        %v7325 = vpop.f32.mrf.mxu0
        %v7326 = vadd.f32 %v7131, %v7325
        %v7327 = vpop.f32.mrf.mxu0
        %7328 = vmatprep.mubr.bf16.mxu0 0
        %7329 = vmatmul.mubr.bf16.gmra.mxu0 %v7184
        %v7330 = vpop.f32.mrf.mxu0
        %v7331 = vadd.f32 %v7131, %v7330
        %v7332 = vpop.f32.mrf.mxu0
        %v7333 = vpop.f32.mrf.mxu0
        %v7334 = vadd.f32 %v7131, %v7333
        %v7335 = vpop.f32.mrf.mxu0
        %7336 = vmatprep.mubr.bf16.mxu0 0
        %7337 = vmatmul.mubr.bf16.gmra.mxu0 %v7187
        %v7338 = vpop.f32.mrf.mxu0
        %v7339 = vadd.f32 %v7131, %v7338
        %v7340 = vpop.f32.mrf.mxu0
        %v7341 = vpop.f32.mrf.mxu0
        %v7342 = vadd.f32 %v7131, %v7341
        %v7343 = vpop.f32.mrf.mxu0
        %7344 = vmatprep.mubr.bf16.mxu0 0
        %7345 = vmatmul.mubr.bf16.gmra.mxu0 %v7190
        %v7346 = vpop.f32.mrf.mxu0
        %v7347 = vadd.f32 %v7131, %v7346
        %v7348 = vpop.f32.mrf.mxu0
        %v7349 = vpop.f32.mrf.mxu0
        %v7350 = vadd.f32 %v7131, %v7349
        %v7351 = vpop.f32.mrf.mxu0
        %7352 = vdwg.mxu0
        %v7353 = vmul.f32 %v7227, 0.5
        %v7354 = vmul.f32 %v7230, 0.5
        %v7355 = vmul.f32 %v7235, 0.5
        %v7356 = vmul.f32 %v7238, 0.5
        %v7357 = vmul.f32 %v7243, 0.5
        %v7358 = vmul.f32 %v7246, 0.5
        %v7359 = vmul.f32 %v7251, 0.5
        %v7360 = vmul.f32 %v7254, 0.5
        %v7361 = vmul.f32 %v7259, 0.5
        %v7362 = vmul.f32 %v7262, 0.5
        %v7363 = vmul.f32 %v7267, 0.5
        %v7364 = vmul.f32 %v7270, 0.5
        %v7365 = vmul.f32 %v7275, 0.5
        %v7366 = vmul.f32 %v7278, 0.5
        %v7367 = vmul.f32 %v7283, 0.5
        %v7368 = vmul.f32 %v7286, 0.5
        %v7369 = vmul.f32 %v7291, 0.5
        %v7370 = vmul.f32 %v7294, 0.5
        %v7371 = vmul.f32 %v7299, 0.5
        %v7372 = vmul.f32 %v7302, 0.5
        %v7373 = vmul.f32 %v7307, 0.5
        %v7374 = vmul.f32 %v7310, 0.5
        %v7375 = vmul.f32 %v7315, 0.5
        %v7376 = vmul.f32 %v7318, 0.5
        %v7377 = vmul.f32 %v7323, 0.5
        %v7378 = vmul.f32 %v7326, 0.5
        %v7379 = vmul.f32 %v7331, 0.5
        %v7380 = vmul.f32 %v7334, 0.5
        %v7381 = vmul.f32 %v7339, 0.5
        %v7382 = vmul.f32 %v7342, 0.5
        %v7383 = vmul.f32 %v7347, 0.5
        %v7384 = vmul.f32 %v7350, 0.5
        %v7385 = vmul.f32 %v7227, 0.70710677
        %v7386 = vmul.f32 %v7230, 0.70710677
        %v7387 = vmul.f32 %v7235, 0.70710677
        %v7388 = vmul.f32 %v7238, 0.70710677
        %v7389 = vmul.f32 %v7243, 0.70710677
        %v7390 = vmul.f32 %v7246, 0.70710677
        %v7391 = vmul.f32 %v7251, 0.70710677
        %v7392 = vmul.f32 %v7254, 0.70710677
        %v7393 = vmul.f32 %v7259, 0.70710677
        %v7394 = vmul.f32 %v7262, 0.70710677
        %v7395 = vmul.f32 %v7267, 0.70710677
        %v7396 = vmul.f32 %v7270, 0.70710677
        %v7397 = vmul.f32 %v7275, 0.70710677
        %v7398 = vmul.f32 %v7278, 0.70710677
        %v7399 = vmul.f32 %v7283, 0.70710677
        %v7400 = vmul.f32 %v7286, 0.70710677
        %v7401 = vmul.f32 %v7291, 0.70710677
        %v7402 = vmul.f32 %v7294, 0.70710677
        %v7403 = vmul.f32 %v7299, 0.70710677
        %v7404 = vmul.f32 %v7302, 0.70710677
        %v7405 = vmul.f32 %v7307, 0.70710677
        %v7406 = vmul.f32 %v7310, 0.70710677
        %v7407 = vmul.f32 %v7315, 0.70710677
        %v7408 = vmul.f32 %v7318, 0.70710677
        %v7409 = vmul.f32 %v7323, 0.70710677
        %v7410 = vmul.f32 %v7326, 0.70710677
        %v7411 = vmul.f32 %v7331, 0.70710677
        %v7412 = vmul.f32 %v7334, 0.70710677
        %v7413 = vmul.f32 %v7339, 0.70710677
        %v7414 = vmul.f32 %v7342, 0.70710677
        %v7415 = vmul.f32 %v7347, 0.70710677
        %v7416 = vmul.f32 %v7350, 0.70710677
        %v7417 = verf.f32.pop %v7385
        %v7418 = verf.f32.pop %v7386
        %v7419 = verf.f32.pop %v7387
        %v7420 = verf.f32.pop %v7388
        %v7421 = verf.f32.pop %v7389
        %v7422 = verf.f32.pop %v7390
        %v7423 = verf.f32.pop %v7391
        %v7424 = verf.f32.pop %v7392
        %v7425 = verf.f32.pop %v7393
        %v7426 = verf.f32.pop %v7394
        %v7427 = verf.f32.pop %v7395
        %v7428 = verf.f32.pop %v7396
        %v7429 = verf.f32.pop %v7397
        %v7430 = verf.f32.pop %v7398
        %v7431 = verf.f32.pop %v7399
        %v7432 = verf.f32.pop %v7400
        %v7433 = verf.f32.pop %v7401
        %v7434 = verf.f32.pop %v7402
        %v7435 = verf.f32.pop %v7403
        %v7436 = verf.f32.pop %v7404
        %v7437 = verf.f32.pop %v7405
        %v7438 = verf.f32.pop %v7406
        %v7439 = verf.f32.pop %v7407
        %v7440 = verf.f32.pop %v7408
        %v7441 = verf.f32.pop %v7409
        %v7442 = verf.f32.pop %v7410
        %v7443 = verf.f32.pop %v7411
        %v7444 = verf.f32.pop %v7412
        %v7445 = verf.f32.pop %v7413
        %v7446 = verf.f32.pop %v7414
        %v7447 = verf.f32.pop %v7415
        %v7448 = verf.f32.pop %v7416
        %v7449 = vadd.f32 %v7417, 1.0
        %v7450 = vadd.f32 %v7418, 1.0
        %v7451 = vadd.f32 %v7419, 1.0
        %v7452 = vadd.f32 %v7420, 1.0
        %v7453 = vadd.f32 %v7421, 1.0
        %v7454 = vadd.f32 %v7422, 1.0
        %v7455 = vadd.f32 %v7423, 1.0
        %v7456 = vadd.f32 %v7424, 1.0
        %v7457 = vadd.f32 %v7425, 1.0
        %v7458 = vadd.f32 %v7426, 1.0
        %v7459 = vadd.f32 %v7427, 1.0
        %v7460 = vadd.f32 %v7428, 1.0
        %v7461 = vadd.f32 %v7429, 1.0
        %v7462 = vadd.f32 %v7430, 1.0
        %v7463 = vadd.f32 %v7431, 1.0
        %v7464 = vadd.f32 %v7432, 1.0
        %v7465 = vadd.f32 %v7433, 1.0
        %v7466 = vadd.f32 %v7434, 1.0
        %v7467 = vadd.f32 %v7435, 1.0
        %v7468 = vadd.f32 %v7436, 1.0
        %v7469 = vadd.f32 %v7437, 1.0
        %v7470 = vadd.f32 %v7438, 1.0
        %v7471 = vadd.f32 %v7439, 1.0
        %v7472 = vadd.f32 %v7440, 1.0
        %v7473 = vadd.f32 %v7441, 1.0
        %v7474 = vadd.f32 %v7442, 1.0
        %v7475 = vadd.f32 %v7443, 1.0
        %v7476 = vadd.f32 %v7444, 1.0
        %v7477 = vadd.f32 %v7445, 1.0
        %v7478 = vadd.f32 %v7446, 1.0
        %v7479 = vadd.f32 %v7447, 1.0
        %v7480 = vadd.f32 %v7448, 1.0
        %v7481 = vmul.f32 %v7353, %v7449
        %v7482 = vmul.f32 %v7354, %v7450
        %v7483 = vmul.f32 %v7355, %v7451
        %v7484 = vmul.f32 %v7356, %v7452
        %v7485 = vmul.f32 %v7357, %v7453
        %v7486 = vmul.f32 %v7358, %v7454
        %v7487 = vmul.f32 %v7359, %v7455
        %v7488 = vmul.f32 %v7360, %v7456
        %v7489 = vmul.f32 %v7361, %v7457
        %v7490 = vmul.f32 %v7362, %v7458
        %v7491 = vmul.f32 %v7363, %v7459
        %v7492 = vmul.f32 %v7364, %v7460
        %v7493 = vmul.f32 %v7365, %v7461
        %v7494 = vmul.f32 %v7366, %v7462
        %v7495 = vmul.f32 %v7367, %v7463
        %v7496 = vmul.f32 %v7368, %v7464
        %v7497 = vmul.f32 %v7369, %v7465
        %v7498 = vmul.f32 %v7370, %v7466
        %v7499 = vmul.f32 %v7371, %v7467
        %v7500 = vmul.f32 %v7372, %v7468
        %v7501 = vmul.f32 %v7373, %v7469
        %v7502 = vmul.f32 %v7374, %v7470
        %v7503 = vmul.f32 %v7375, %v7471
        %v7504 = vmul.f32 %v7376, %v7472
        %v7505 = vmul.f32 %v7377, %v7473
        %v7506 = vmul.f32 %v7378, %v7474
        %v7507 = vmul.f32 %v7379, %v7475
        %v7508 = vmul.f32 %v7380, %v7476
        %v7509 = vmul.f32 %v7381, %v7477
        %v7510 = vmul.f32 %v7382, %v7478
        %v7511 = vmul.f32 %v7383, %v7479
        %v7512 = vmul.f32 %v7384, %v7480
        %v7513 = vpack.c.bf16 %v7482, %v7481
        %v7514 = vpack.c.bf16 %v7484, %v7483
        %v7515 = vpack.c.bf16 %v7486, %v7485
        %v7516 = vpack.c.bf16 %v7488, %v7487
        %v7517 = vpack.c.bf16 %v7490, %v7489
        %v7518 = vpack.c.bf16 %v7492, %v7491
        %v7519 = vpack.c.bf16 %v7494, %v7493
        %v7520 = vpack.c.bf16 %v7496, %v7495
        %v7521 = vpack.c.bf16 %v7498, %v7497
        %v7522 = vpack.c.bf16 %v7500, %v7499
        %v7523 = vpack.c.bf16 %v7502, %v7501
        %v7524 = vpack.c.bf16 %v7504, %v7503
        %v7525 = vpack.c.bf16 %v7506, %v7505
        %v7526 = vpack.c.bf16 %v7508, %v7507
        %v7527 = vpack.c.bf16 %v7510, %v7509
        %v7528 = vpack.c.bf16 %v7512, %v7511
        %v7529 = vlaneseq
        %v7530 = vshrl.u32 %v7529, 7
        %v7531 = vsub.s32 2, %v7530
        %v7532 = vrot.slane %v5875, %v7531
        %v7537 = vunpack.c.l.b16 %v5871
        %v7538 = vunpack.c.l.b16 %v5872
        %v7539 = vunpack.c.l.b16 %v5873
        %v7540 = vunpack.c.l.b16 %v5874
        %v7541 = vpack.c.b16 %v7538, %v7537
        %v7542 = vpack.c.b16 %v7540, %v7539
        %v7546 = vsel %vm459, %v7513, 0
        %v7549 = vsel %vm459, %v7514, 0
        %v7552 = vsel %vm459, %v7515, 0
        %v7555 = vsel %vm459, %v7516, 0
        %v7558 = vsel %vm459, %v7517, 0
        %v7561 = vsel %vm459, %v7518, 0
        %v7564 = vsel %vm459, %v7519, 0
        %v7567 = vsel %vm459, %v7520, 0
        %v7570 = vsel %vm459, %v7521, 0
        %v7573 = vsel %vm459, %v7522, 0
        %v7576 = vsel %vm459, %v7523, 0
        %v7579 = vsel %vm459, %v7524, 0
        %v7582 = vsel %vm459, %v7525, 0
        %v7585 = vsel %vm459, %v7526, 0
        %v7588 = vsel %vm459, %v7527, 0
        %v7591 = vsel %vm459, %v7528, 0
        %7593 = vmatprep.subr.bf16.mxu0 0
        %7594 = vmatpush1.bf16.msra.mxu0 0
        %7595 = vmatprep.subr.bf16.mxu0 0
        %7596 = vmatpush1.bf16.msra.mxu0 0
        %7597 = vmatprep.subr.bf16.mxu0 0
        %7598 = vmatpush1.bf16.msra.mxu0 0
        %7599 = vmatprep.subr.bf16.mxu0 0
        %7600 = vmatpush1.bf16.msra.mxu0 0
        %7601 = vmatprep.subr.bf16.mxu0 0
        %7602 = vmatpush1.bf16.msra.mxu0 0
        %7603 = vmatprep.subr.bf16.mxu0 0
        %7604 = vmatpush1.bf16.msra.mxu0 0
        %7605 = vmatprep.subr.bf16.mxu0 0
        %7606 = vmatpush1.bf16.msra.mxu0 %v7542
        %7607 = vmatprep.subr.bf16.mxu0 0
        %7608 = vmatpush1.bf16.msra.mxu0 %v7541
        %7609 = vmatprep.subr.bf16.mxu0 0
        %7610 = vmatpush2.bf16.msra.mxu0 0
        %7611 = vmatprep.subr.bf16.mxu0 0
        %7612 = vmatpush2.bf16.msra.mxu0 0
        %7613 = vmatprep.subr.bf16.mxu0 0
        %7614 = vmatpush2.bf16.msra.mxu0 0
        %7615 = vmatprep.subr.bf16.mxu0 0
        %7616 = vmatpush2.bf16.msra.mxu0 0
        %7617 = vmatprep.subr.bf16.mxu0 0
        %7618 = vmatpush2.bf16.msra.mxu0 0
        %7619 = vmatprep.subr.bf16.mxu0 0
        %7620 = vmatpush2.bf16.msra.mxu0 0
        %7621 = vmatprep.subr.bf16.mxu0 0
        %7622 = vmatpush2.bf16.msra.mxu0 0
        %7623 = vmatprep.subr.bf16.mxu0 0
        %7624 = vmatpush2.bf16.msra.mxu0 0
        %7625 = vmatprep.mubr.bf16.mxu0 0
        %7626 = vmatmul.mubr.bf16.gmra.mxu0 %v7546
        %v7627 = vpop.f32.mrf.mxu0
        %v7628 = vadd.f32 %v7532, %v7627
        %v7629 = vpop.f32.mrf.mxu0
        %v7630 = vpop.f32.mrf.mxu0
        %v7631 = vadd.f32 %v7532, %v7630
        %v7632 = vpop.f32.mrf.mxu0
        %7633 = vmatprep.mubr.bf16.mxu0 0
        %7634 = vmatmul.mubr.bf16.gmra.mxu0 %v7549
        %v7635 = vpop.f32.mrf.mxu0
        %v7636 = vadd.f32 %v7532, %v7635
        %v7637 = vpop.f32.mrf.mxu0
        %v7638 = vpop.f32.mrf.mxu0
        %v7639 = vadd.f32 %v7532, %v7638
        %v7640 = vpop.f32.mrf.mxu0
        %7641 = vmatprep.mubr.bf16.mxu0 0
        %7642 = vmatmul.mubr.bf16.gmra.mxu0 %v7552
        %v7643 = vpop.f32.mrf.mxu0
        %v7644 = vadd.f32 %v7532, %v7643
        %v7645 = vpop.f32.mrf.mxu0
        %v7646 = vpop.f32.mrf.mxu0
        %v7647 = vadd.f32 %v7532, %v7646
        %v7648 = vpop.f32.mrf.mxu0
        %7649 = vmatprep.mubr.bf16.mxu0 0
        %7650 = vmatmul.mubr.bf16.gmra.mxu0 %v7555
        %v7651 = vpop.f32.mrf.mxu0
        %v7652 = vadd.f32 %v7532, %v7651
        %v7653 = vpop.f32.mrf.mxu0
        %v7654 = vpop.f32.mrf.mxu0
        %v7655 = vadd.f32 %v7532, %v7654
        %v7656 = vpop.f32.mrf.mxu0
        %7657 = vmatprep.mubr.bf16.mxu0 0
        %7658 = vmatmul.mubr.bf16.gmra.mxu0 %v7558
        %v7659 = vpop.f32.mrf.mxu0
        %v7660 = vadd.f32 %v7532, %v7659
        %v7661 = vpop.f32.mrf.mxu0
        %v7662 = vpop.f32.mrf.mxu0
        %v7663 = vadd.f32 %v7532, %v7662
        %v7664 = vpop.f32.mrf.mxu0
        %7665 = vmatprep.mubr.bf16.mxu0 0
        %7666 = vmatmul.mubr.bf16.gmra.mxu0 %v7561
        %v7667 = vpop.f32.mrf.mxu0
        %v7668 = vadd.f32 %v7532, %v7667
        %v7669 = vpop.f32.mrf.mxu0
        %v7670 = vpop.f32.mrf.mxu0
        %v7671 = vadd.f32 %v7532, %v7670
        %v7672 = vpop.f32.mrf.mxu0
        %7673 = vmatprep.mubr.bf16.mxu0 0
        %7674 = vmatmul.mubr.bf16.gmra.mxu0 %v7564
        %v7675 = vpop.f32.mrf.mxu0
        %v7676 = vadd.f32 %v7532, %v7675
        %v7677 = vpop.f32.mrf.mxu0
        %v7678 = vpop.f32.mrf.mxu0
        %v7679 = vadd.f32 %v7532, %v7678
        %v7680 = vpop.f32.mrf.mxu0
        %7681 = vmatprep.mubr.bf16.mxu0 0
        %7682 = vmatmul.mubr.bf16.gmra.mxu0 %v7567
        %v7683 = vpop.f32.mrf.mxu0
        %v7684 = vadd.f32 %v7532, %v7683
        %v7685 = vpop.f32.mrf.mxu0
        %v7686 = vpop.f32.mrf.mxu0
        %v7687 = vadd.f32 %v7532, %v7686
        %v7688 = vpop.f32.mrf.mxu0
        %7689 = vmatprep.mubr.bf16.mxu0 0
        %7690 = vmatmul.mubr.bf16.gmra.mxu0 %v7570
        %v7691 = vpop.f32.mrf.mxu0
        %v7692 = vadd.f32 %v7532, %v7691
        %v7693 = vpop.f32.mrf.mxu0
        %v7694 = vpop.f32.mrf.mxu0
        %v7695 = vadd.f32 %v7532, %v7694
        %v7696 = vpop.f32.mrf.mxu0
        %7697 = vmatprep.mubr.bf16.mxu0 0
        %7698 = vmatmul.mubr.bf16.gmra.mxu0 %v7573
        %v7699 = vpop.f32.mrf.mxu0
        %v7700 = vadd.f32 %v7532, %v7699
        %v7701 = vpop.f32.mrf.mxu0
        %v7702 = vpop.f32.mrf.mxu0
        %v7703 = vadd.f32 %v7532, %v7702
        %v7704 = vpop.f32.mrf.mxu0
        %7705 = vmatprep.mubr.bf16.mxu0 0
        %7706 = vmatmul.mubr.bf16.gmra.mxu0 %v7576
        %v7707 = vpop.f32.mrf.mxu0
        %v7708 = vadd.f32 %v7532, %v7707
        %v7709 = vpop.f32.mrf.mxu0
        %v7710 = vpop.f32.mrf.mxu0
        %v7711 = vadd.f32 %v7532, %v7710
        %v7712 = vpop.f32.mrf.mxu0
        %7713 = vmatprep.mubr.bf16.mxu0 0
        %7714 = vmatmul.mubr.bf16.gmra.mxu0 %v7579
        %v7715 = vpop.f32.mrf.mxu0
        %v7716 = vadd.f32 %v7532, %v7715
        %v7717 = vpop.f32.mrf.mxu0
        %v7718 = vpop.f32.mrf.mxu0
        %v7719 = vadd.f32 %v7532, %v7718
        %v7720 = vpop.f32.mrf.mxu0
        %7721 = vmatprep.mubr.bf16.mxu0 0
        %7722 = vmatmul.mubr.bf16.gmra.mxu0 %v7582
        %v7723 = vpop.f32.mrf.mxu0
        %v7724 = vadd.f32 %v7532, %v7723
        %v7725 = vpop.f32.mrf.mxu0
        %v7726 = vpop.f32.mrf.mxu0
        %v7727 = vadd.f32 %v7532, %v7726
        %v7728 = vpop.f32.mrf.mxu0
        %7729 = vmatprep.mubr.bf16.mxu0 0
        %7730 = vmatmul.mubr.bf16.gmra.mxu0 %v7585
        %v7731 = vpop.f32.mrf.mxu0
        %v7732 = vadd.f32 %v7532, %v7731
        %v7733 = vpop.f32.mrf.mxu0
        %v7734 = vpop.f32.mrf.mxu0
        %v7735 = vadd.f32 %v7532, %v7734
        %v7736 = vpop.f32.mrf.mxu0
        %7737 = vmatprep.mubr.bf16.mxu0 0
        %7738 = vmatmul.mubr.bf16.gmra.mxu0 %v7588
        %v7739 = vpop.f32.mrf.mxu0
        %v7740 = vadd.f32 %v7532, %v7739
        %v7741 = vpop.f32.mrf.mxu0
        %v7742 = vpop.f32.mrf.mxu0
        %v7743 = vadd.f32 %v7532, %v7742
        %v7744 = vpop.f32.mrf.mxu0
        %7745 = vmatprep.mubr.bf16.mxu0 0
        %7746 = vmatmul.mubr.bf16.gmra.mxu0 %v7591
        %v7747 = vpop.f32.mrf.mxu0
        %v7748 = vadd.f32 %v7532, %v7747
        %v7749 = vpop.f32.mrf.mxu0
        %v7750 = vpop.f32.mrf.mxu0
        %v7751 = vadd.f32 %v7532, %v7750
        %v7752 = vpop.f32.mrf.mxu0
        %7753 = vdwg.mxu0
        %v7754 = vadd.f32 %v6664, %v7628
        %v7755 = vadd.f32 %v6665, %v7631
        %v7756 = vadd.f32 %v6666, %v7636
        %v7757 = vadd.f32 %v6667, %v7639
        %v7758 = vadd.f32 %v6668, %v7644
        %v7759 = vadd.f32 %v6669, %v7647
        %v7760 = vadd.f32 %v6670, %v7652
        %v7761 = vadd.f32 %v6671, %v7655
        %v7762 = vadd.f32 %v6672, %v7660
        %v7763 = vadd.f32 %v6673, %v7663
        %v7764 = vadd.f32 %v6674, %v7668
        %v7765 = vadd.f32 %v6675, %v7671
        %v7766 = vadd.f32 %v6676, %v7676
        %v7767 = vadd.f32 %v6677, %v7679
        %v7768 = vadd.f32 %v6678, %v7684
        %v7769 = vadd.f32 %v6679, %v7687
        %v7770 = vadd.f32 %v6680, %v7692
        %v7771 = vadd.f32 %v6681, %v7695
        %v7772 = vadd.f32 %v6682, %v7700
        %v7773 = vadd.f32 %v6683, %v7703
        %v7774 = vadd.f32 %v6684, %v7708
        %v7775 = vadd.f32 %v6685, %v7711
        %v7776 = vadd.f32 %v6686, %v7716
        %v7777 = vadd.f32 %v6687, %v7719
        %v7778 = vadd.f32 %v6688, %v7724
        %v7779 = vadd.f32 %v6689, %v7727
        %v7780 = vadd.f32 %v6690, %v7732
        %v7781 = vadd.f32 %v6691, %v7735
        %v7782 = vadd.f32 %v6692, %v7740
        %v7783 = vadd.f32 %v6693, %v7743
        %v7784 = vadd.f32 %v6694, %v7748
        %v7785 = vadd.f32 %v6695, %v7751
        %7786 = vst.msk [vmem:[%s423] sm:$0xff] %vm459, %v7754
        %7787 = vst.msk [vmem:[%s423 + $0x8] sm:$0xff] %vm459, %v7755
        %7788 = vst.msk [vmem:[%s423 + $0x10] sm:$0xff] %vm459, %v7756
        %7789 = vst.msk [vmem:[%s423 + $0x18] sm:$0xff] %vm459, %v7757
        %7790 = vst.msk [vmem:[%s423 + $0x20] sm:$0xff] %vm459, %v7758
        %7791 = vst.msk [vmem:[%s423 + $0x28] sm:$0xff] %vm459, %v7759
        %7792 = vst.msk [vmem:[%s423 + $0x30] sm:$0xff] %vm459, %v7760
        %7793 = vst.msk [vmem:[%s423 + $0x38] sm:$0xff] %vm459, %v7761
        %7794 = vst.msk [vmem:[%s423 + $0x40] sm:$0xff] %vm459, %v7762
        %7795 = vst.msk [vmem:[%s423 + $0x48] sm:$0xff] %vm459, %v7763
        %7796 = vst.msk [vmem:[%s423 + $0x50] sm:$0xff] %vm459, %v7764
        %7797 = vst.msk [vmem:[%s423 + $0x58] sm:$0xff] %vm459, %v7765
        %7798 = vst.msk [vmem:[%s423 + $0x60] sm:$0xff] %vm459, %v7766
        %7799 = vst.msk [vmem:[%s423 + $0x68] sm:$0xff] %vm459, %v7767
        %7800 = vst.msk [vmem:[%s423 + $0x70] sm:$0xff] %vm459, %v7768
        %7801 = vst.msk [vmem:[%s423 + $0x78] sm:$0xff] %vm459, %v7769
        %7802 = vst.msk [vmem:[%s423 + $0x80] sm:$0xff] %vm459, %v7770
        %7803 = vst.msk [vmem:[%s423 + $0x88] sm:$0xff] %vm459, %v7771
        %7804 = vst.msk [vmem:[%s423 + $0x90] sm:$0xff] %vm459, %v7772
        %7805 = vst.msk [vmem:[%s423 + $0x98] sm:$0xff] %vm459, %v7773
        %7806 = vst.msk [vmem:[%s423 + $0xa0] sm:$0xff] %vm459, %v7774
        %7807 = vst.msk [vmem:[%s423 + $0xa8] sm:$0xff] %vm459, %v7775
        %7808 = vst.msk [vmem:[%s423 + $0xb0] sm:$0xff] %vm459, %v7776
        %7809 = vst.msk [vmem:[%s423 + $0xb8] sm:$0xff] %vm459, %v7777
        %7810 = vst.msk [vmem:[%s423 + $0xc0] sm:$0xff] %vm459, %v7778
        %7811 = vst.msk [vmem:[%s423 + $0xc8] sm:$0xff] %vm459, %v7779
        %7812 = vst.msk [vmem:[%s423 + $0xd0] sm:$0xff] %vm459, %v7780
        %7813 = vst.msk [vmem:[%s423 + $0xd8] sm:$0xff] %vm459, %v7781
        %7814 = vst.msk [vmem:[%s423 + $0xe0] sm:$0xff] %vm459, %v7782
        %7815 = vst.msk [vmem:[%s423 + $0xe8] sm:$0xff] %vm459, %v7783
        %7816 = vst.msk [vmem:[%s423 + $0xf0] sm:$0xff] %vm459, %v7784
        %7817 = vst.msk [vmem:[%s423 + $0xf8] sm:$0xff] %vm459, %v7785
        %s7818 = sand.u32 %s172, 1
        %s7819 = sand.u32 %s172, 1
        %s7820 = smul.addr %s7819, 256
        %s7821 = scalar_lea.vmem [#allocation4], %s7820
        // Predicated region
        $region83: #{swin_block_forward.1} parent=77 // pred_check
          %p7822 = pneg %p182
        $region84: #{swin_block_forward.1} parent=77 // pred_check_branch
          %7824 = sbr.rel (%p7822) target = $region86
        $region85: #{swin_block_forward.1} parent=77 // pred_region
          %s7825 = smul.u32 16, %s22
          %s7826 = smul.addr %s7825, 2
          %s7827 = sadd.s32 %s21, %s7826
          %s7828 = smul.addr %s7827, 8
          %s7829 = scalar_lea.vmem %s6, %s7828
          // Predicated region
          $region87: #{swin_block_forward.1} parent=85 // pred_check
            _
          $region88: #{swin_block_forward.1} parent=85 // pred_check_branch
            %7831 = sbr.rel (0) target = $region90
          $region89: #{swin_block_forward.1} parent=85 // pred_region
            // Predicated region
            $region91: #{swin_block_forward.1} parent=89 // pred_check
              _
            $region92: #{swin_block_forward.1} parent=89 // pred_check_branch
              %7833 = sbr.rel (0) target = $region94
            $region93: #{swin_block_forward.1} parent=89 // pred_region
              // Predicated region
              $region106: #{swin_block_forward.1} parent=93 // pred_check
                _
              $region107: #{swin_block_forward.1} parent=93 // pred_check_branch
                %7911 = sbr.rel (0) target = $region109
              $region108: #{swin_block_forward.1} parent=93 // pred_region
                loop: start=0, step=1, limit=1
                $region110: #{swin_block_forward.1} parent=108 // loop_pre_header
                  _
                $region111: #{swin_block_forward.1} parent=108 // loop_header
                  %s7913 = sphi 0, %s7917
                  %p7914 = scmp.ge.s32.totalorder %s7913, 1
                  %s7918 = sphi %s7821, %s7821
                  %s7919 = sphi %s7829, %s7829
                $region112: #{swin_block_forward.1} parent=108 // loop_header_branch
                  %7916 = sbr.rel (%p7914) target = $region116
                $region113: #{swin_block_forward.1} parent=108 // loop_body
                  %v7920 = vld [vmem:[%s7918] sm:$0xff]
                  %7921 = vst [vmem:[%s7919] sm:$0xff] %v7920
                  %v7922 = vld [vmem:[%s7918 + $0x8] sm:$0xff]
                  %7923 = vst [vmem:[%s7919 + $0x10] sm:$0xff] %v7922
                  %v7924 = vld [vmem:[%s7918 + $0x10] sm:$0xff]
                  %7925 = vst [vmem:[%s7919 + $0x20] sm:$0xff] %v7924
                  %v7926 = vld [vmem:[%s7918 + $0x18] sm:$0xff]
                  %7927 = vst [vmem:[%s7919 + $0x30] sm:$0xff] %v7926
                  %v7928 = vld [vmem:[%s7918 + $0x20] sm:$0xff]
                  %7929 = vst [vmem:[%s7919 + $0x40] sm:$0xff] %v7928
                  %v7930 = vld [vmem:[%s7918 + $0x28] sm:$0xff]
                  %7931 = vst [vmem:[%s7919 + $0x50] sm:$0xff] %v7930
                  %v7932 = vld [vmem:[%s7918 + $0x30] sm:$0xff]
                  %7933 = vst [vmem:[%s7919 + $0x60] sm:$0xff] %v7932
                  %v7934 = vld [vmem:[%s7918 + $0x38] sm:$0xff]
                  %7935 = vst [vmem:[%s7919 + $0x70] sm:$0xff] %v7934
                  %v7936 = vld [vmem:[%s7918 + $0x40] sm:$0xff]
                  %7937 = vst [vmem:[%s7919 + $0x80] sm:$0xff] %v7936
                  %v7938 = vld [vmem:[%s7918 + $0x48] sm:$0xff]
                  %7939 = vst [vmem:[%s7919 + $0x90] sm:$0xff] %v7938
                  %v7940 = vld [vmem:[%s7918 + $0x50] sm:$0xff]
                  %7941 = vst [vmem:[%s7919 + $0xa0] sm:$0xff] %v7940
                  %v7942 = vld [vmem:[%s7918 + $0x58] sm:$0xff]
                  %7943 = vst [vmem:[%s7919 + $0xb0] sm:$0xff] %v7942
                  %v7944 = vld [vmem:[%s7918 + $0x60] sm:$0xff]
                  %7945 = vst [vmem:[%s7919 + $0xc0] sm:$0xff] %v7944
                  %v7946 = vld [vmem:[%s7918 + $0x68] sm:$0xff]
                  %7947 = vst [vmem:[%s7919 + $0xd0] sm:$0xff] %v7946
                  %v7948 = vld [vmem:[%s7918 + $0x70] sm:$0xff]
                  %7949 = vst [vmem:[%s7919 + $0xe0] sm:$0xff] %v7948
                  %v7950 = vld [vmem:[%s7918 + $0x78] sm:$0xff]
                  %7951 = vst [vmem:[%s7919 + $0xf0] sm:$0xff] %v7950
                  %v7952 = vld [vmem:[%s7918 + $0x80] sm:$0xff]
                  %7953 = vst [vmem:[%s7919 + $0x100] sm:$0xff] %v7952
                  %v7954 = vld [vmem:[%s7918 + $0x88] sm:$0xff]
                  %7955 = vst [vmem:[%s7919 + $0x110] sm:$0xff] %v7954
                  %v7956 = vld [vmem:[%s7918 + $0x90] sm:$0xff]
                  %7957 = vst [vmem:[%s7919 + $0x120] sm:$0xff] %v7956
                  %v7958 = vld [vmem:[%s7918 + $0x98] sm:$0xff]
                  %7959 = vst [vmem:[%s7919 + $0x130] sm:$0xff] %v7958
                  %v7960 = vld [vmem:[%s7918 + $0xa0] sm:$0xff]
                  %7961 = vst [vmem:[%s7919 + $0x140] sm:$0xff] %v7960
                  %v7962 = vld [vmem:[%s7918 + $0xa8] sm:$0xff]
                  %7963 = vst [vmem:[%s7919 + $0x150] sm:$0xff] %v7962
                  %v7964 = vld [vmem:[%s7918 + $0xb0] sm:$0xff]
                  %7965 = vst [vmem:[%s7919 + $0x160] sm:$0xff] %v7964
                  %v7966 = vld [vmem:[%s7918 + $0xb8] sm:$0xff]
                  %7967 = vst [vmem:[%s7919 + $0x170] sm:$0xff] %v7966
                  %v7968 = vld [vmem:[%s7918 + $0xc0] sm:$0xff]
                  %7969 = vst [vmem:[%s7919 + $0x180] sm:$0xff] %v7968
                  %v7970 = vld [vmem:[%s7918 + $0xc8] sm:$0xff]
                  %7971 = vst [vmem:[%s7919 + $0x190] sm:$0xff] %v7970
                  %v7972 = vld [vmem:[%s7918 + $0xd0] sm:$0xff]
                  %7973 = vst [vmem:[%s7919 + $0x1a0] sm:$0xff] %v7972
                  %v7974 = vld [vmem:[%s7918 + $0xd8] sm:$0xff]
                  %7975 = vst [vmem:[%s7919 + $0x1b0] sm:$0xff] %v7974
                  %v7976 = vld [vmem:[%s7918 + $0xe0] sm:$0xff]
                  %7977 = vst [vmem:[%s7919 + $0x1c0] sm:$0xff] %v7976
                  %v7978 = vld [vmem:[%s7918 + $0xe8] sm:$0xff]
                  %7979 = vst [vmem:[%s7919 + $0x1d0] sm:$0xff] %v7978
                  %v7980 = vld [vmem:[%s7918 + $0xf0] sm:$0xff]
                  %7981 = vst [vmem:[%s7919 + $0x1e0] sm:$0xff] %v7980
                  %v7982 = vld [vmem:[%s7918 + $0xf8] sm:$0xff]
                  %7983 = vst [vmem:[%s7919 + $0x1f0] sm:$0xff] %v7982
                $region114: #{swin_block_forward.1} parent=108 // loop_footer
                  %s7917 = sadd.s32 1, %s7913
                $region115: #{swin_block_forward.1} parent=108 // loop_footer_branch
                  %7912 = sbr.rel target = $region111
                $region116: #{swin_block_forward.1} parent=108 // loop_exit
                  _
              $region109: #{swin_block_forward.1} parent=93 // pred_fallthru
                _
              // Predicated region
              $region117: #{swin_block_forward.1} parent=93 // pred_check
                _
              $region118: #{swin_block_forward.1} parent=93 // pred_check_branch
                %7985 = sbr.rel target = $region120
              $region119: #{swin_block_forward.1} parent=93 // pred_region
                _
              $region120: #{swin_block_forward.1} parent=93 // pred_fallthru
                _
            $region94: #{swin_block_forward.1} parent=89 // pred_fallthru
              _
            // Predicated region
            $region95: #{swin_block_forward.1} parent=89 // pred_check
              _
            $region96: #{swin_block_forward.1} parent=89 // pred_check_branch
              %7835 = sbr.rel target = $region98
            $region97: #{swin_block_forward.1} parent=89 // pred_region
              %s7837 = ssub.s32 256, 1
              loop: start=0, step=1, limit=1
              $region99: #{swin_block_forward.1} parent=97 // loop_pre_header
                _
              $region100: #{swin_block_forward.1} parent=97 // loop_header
                %s7839 = sphi 0, %s7843
                %p7840 = scmp.ge.s32.totalorder %s7839, 1
                %s7844 = sphi %s7821, %s7821
                %s7845 = sphi %s7829, %s7829
              $region101: #{swin_block_forward.1} parent=97 // loop_header_branch
                %7842 = sbr.rel (%p7840) target = $region105
              $region102: #{swin_block_forward.1} parent=97 // loop_body
                %v7846 = vld [vmem:[%s7844] sm:%s7837]
                %7847 = vst [vmem:[%s7845] sm:%s7837] %v7846
                %v7848 = vld [vmem:[%s7844 + $0x8] sm:%s7837]
                %7849 = vst [vmem:[%s7845 + $0x10] sm:%s7837] %v7848
                %v7850 = vld [vmem:[%s7844 + $0x10] sm:%s7837]
                %7851 = vst [vmem:[%s7845 + $0x20] sm:%s7837] %v7850
                %v7852 = vld [vmem:[%s7844 + $0x18] sm:%s7837]
                %7853 = vst [vmem:[%s7845 + $0x30] sm:%s7837] %v7852
                %v7854 = vld [vmem:[%s7844 + $0x20] sm:%s7837]
                %7855 = vst [vmem:[%s7845 + $0x40] sm:%s7837] %v7854
                %v7856 = vld [vmem:[%s7844 + $0x28] sm:%s7837]
                %7857 = vst [vmem:[%s7845 + $0x50] sm:%s7837] %v7856
                %v7858 = vld [vmem:[%s7844 + $0x30] sm:%s7837]
                %7859 = vst [vmem:[%s7845 + $0x60] sm:%s7837] %v7858
                %v7860 = vld [vmem:[%s7844 + $0x38] sm:%s7837]
                %7861 = vst [vmem:[%s7845 + $0x70] sm:%s7837] %v7860
                %v7862 = vld [vmem:[%s7844 + $0x40] sm:%s7837]
                %7863 = vst [vmem:[%s7845 + $0x80] sm:%s7837] %v7862
                %v7864 = vld [vmem:[%s7844 + $0x48] sm:%s7837]
                %7865 = vst [vmem:[%s7845 + $0x90] sm:%s7837] %v7864
                %v7866 = vld [vmem:[%s7844 + $0x50] sm:%s7837]
                %7867 = vst [vmem:[%s7845 + $0xa0] sm:%s7837] %v7866
                %v7868 = vld [vmem:[%s7844 + $0x58] sm:%s7837]
                %7869 = vst [vmem:[%s7845 + $0xb0] sm:%s7837] %v7868
                %v7870 = vld [vmem:[%s7844 + $0x60] sm:%s7837]
                %7871 = vst [vmem:[%s7845 + $0xc0] sm:%s7837] %v7870
                %v7872 = vld [vmem:[%s7844 + $0x68] sm:%s7837]
                %7873 = vst [vmem:[%s7845 + $0xd0] sm:%s7837] %v7872
                %v7874 = vld [vmem:[%s7844 + $0x70] sm:%s7837]
                %7875 = vst [vmem:[%s7845 + $0xe0] sm:%s7837] %v7874
                %v7876 = vld [vmem:[%s7844 + $0x78] sm:%s7837]
                %7877 = vst [vmem:[%s7845 + $0xf0] sm:%s7837] %v7876
                %v7878 = vld [vmem:[%s7844 + $0x80] sm:%s7837]
                %7879 = vst [vmem:[%s7845 + $0x100] sm:%s7837] %v7878
                %v7880 = vld [vmem:[%s7844 + $0x88] sm:%s7837]
                %7881 = vst [vmem:[%s7845 + $0x110] sm:%s7837] %v7880
                %v7882 = vld [vmem:[%s7844 + $0x90] sm:%s7837]
                %7883 = vst [vmem:[%s7845 + $0x120] sm:%s7837] %v7882
                %v7884 = vld [vmem:[%s7844 + $0x98] sm:%s7837]
                %7885 = vst [vmem:[%s7845 + $0x130] sm:%s7837] %v7884
                %v7886 = vld [vmem:[%s7844 + $0xa0] sm:%s7837]
                %7887 = vst [vmem:[%s7845 + $0x140] sm:%s7837] %v7886
                %v7888 = vld [vmem:[%s7844 + $0xa8] sm:%s7837]
                %7889 = vst [vmem:[%s7845 + $0x150] sm:%s7837] %v7888
                %v7890 = vld [vmem:[%s7844 + $0xb0] sm:%s7837]
                %7891 = vst [vmem:[%s7845 + $0x160] sm:%s7837] %v7890
                %v7892 = vld [vmem:[%s7844 + $0xb8] sm:%s7837]
                %7893 = vst [vmem:[%s7845 + $0x170] sm:%s7837] %v7892
                %v7894 = vld [vmem:[%s7844 + $0xc0] sm:%s7837]
                %7895 = vst [vmem:[%s7845 + $0x180] sm:%s7837] %v7894
                %v7896 = vld [vmem:[%s7844 + $0xc8] sm:%s7837]
                %7897 = vst [vmem:[%s7845 + $0x190] sm:%s7837] %v7896
                %v7898 = vld [vmem:[%s7844 + $0xd0] sm:%s7837]
                %7899 = vst [vmem:[%s7845 + $0x1a0] sm:%s7837] %v7898
                %v7900 = vld [vmem:[%s7844 + $0xd8] sm:%s7837]
                %7901 = vst [vmem:[%s7845 + $0x1b0] sm:%s7837] %v7900
                %v7902 = vld [vmem:[%s7844 + $0xe0] sm:%s7837]
                %7903 = vst [vmem:[%s7845 + $0x1c0] sm:%s7837] %v7902
                %v7904 = vld [vmem:[%s7844 + $0xe8] sm:%s7837]
                %7905 = vst [vmem:[%s7845 + $0x1d0] sm:%s7837] %v7904
                %v7906 = vld [vmem:[%s7844 + $0xf0] sm:%s7837]
                %7907 = vst [vmem:[%s7845 + $0x1e0] sm:%s7837] %v7906
                %v7908 = vld [vmem:[%s7844 + $0xf8] sm:%s7837]
                %7909 = vst [vmem:[%s7845 + $0x1f0] sm:%s7837] %v7908
              $region103: #{swin_block_forward.1} parent=97 // loop_footer
                %s7843 = sadd.s32 1, %s7839
              $region104: #{swin_block_forward.1} parent=97 // loop_footer_branch
                %7838 = sbr.rel target = $region100
              $region105: #{swin_block_forward.1} parent=97 // loop_exit
                _
            $region98: #{swin_block_forward.1} parent=89 // pred_fallthru
              _
          $region90: #{swin_block_forward.1} parent=85 // pred_fallthru
            _
          %7986 = vnop
        $region86: #{swin_block_forward.1} parent=77 // pred_fallthru
          _
      $region78: #{swin_block_forward.1} parent=5 // pred_fallthru
        _
      %p7987 = scmp.le.s32.totalorder 2, %s12
      // Predicated region
      $region121: #{swin_block_forward.1} parent=5 // pred_check
        %p7988 = pneg %p7987
      $region122: #{swin_block_forward.1} parent=5 // pred_check_branch
        %7990 = sbr.rel (%p7988) target = $region124
      $region123: #{swin_block_forward.1} parent=5 // pred_region
        %s7991 = ssub.s32 %s12, 2
        // Predicated region
        $region125: #{swin_block_forward.1} parent=123 // pred_check
          %p7992 = pneg %p188
        $region126: #{swin_block_forward.1} parent=123 // pred_check_branch
          %7994 = sbr.rel (%p7992) target = $region128
        $region127: #{swin_block_forward.1} parent=123 // pred_region
          %s7995 = sand.u32 %s173, 1
          %s7996 = sand.u32 %s173, 1
          %s7997 = smul.addr %s7996, 256
          %s7998 = scalar_lea.vmem [#allocation4], %s7997
        $region128: #{swin_block_forward.1} parent=123 // pred_fallthru
          _
      $region124: #{swin_block_forward.1} parent=5 // pred_fallthru
        _
    $region6: #{swin_block_forward.1} parent=1 // loop_footer
      %s16 = sadd.s32 1, %s12
    $region7: #{swin_block_forward.1} parent=1 // loop_footer_branch
      %11 = sbr.rel target = $region3
    $region8: #{swin_block_forward.1} parent=1 // loop_exit
      _

</llo_original>
